<compile_context>
chip_gen: v7x
topology: tpu7x:2x2x1
jax: 0.10.0
libtpu: 0.0.40
codegen_flags: <defaults>
</compile_context>

<pallas_src>
import jax
import jax.numpy as jnp
from jax.experimental import pallas as pl
from jax.experimental.pallas import tpu as pltpu


def deconv2d(x, weight, bias, *, stride=1, padding=1, output_padding=0,
             block_h=8):
    """ConvTranspose2d forward (NCHW). weight: (Ci, Co, KH, KW), bias: (Co,)."""
    assert stride == 1 and output_padding == 0

    N, Ci, H, W = x.shape
    _, Co, KH, KW = weight.shape
    Ho = (H - 1) * stride - 2 * padding + KH + output_padding
    Wo = (W - 1) * stride - 2 * padding + KW + output_padding

    p_h = KH - 1 - padding          # equivalent-conv halo
    p_w = KW - 1 - padding

    TH = block_h
    assert TH % 8 == 0              # keep the band slice sublane-aligned
    nb = pl.cdiv(Ho, TH)            # row bands per image
    BH = TH + KH - 1                # padded-input rows needed per band

    # Pad H so the last band's BH-row read stays in bounds (extra zero rows
    # only feed output rows that the partial last block discards).
    Hp = (nb - 1) * TH + BH
    Wp = W + 2 * p_w
    x_pad = jnp.pad(x, ((0, 0), (0, 0), (p_h, Hp - H - p_h), (p_w, p_w)))

    # (Ci, Co, KH, KW) -> spatial flip -> (KH, KW, Ci, Co) -> flat f32 (SMEM).
    w_conv = jnp.transpose(jnp.flip(weight, axis=(2, 3)), (2, 3, 0, 1))
    w_flat = w_conv.reshape(-1).astype(jnp.float32)
    b_flat = bias.reshape(-1).astype(jnp.float32)

    def kernel(x_ref, w_ref, b_ref, o_ref):
        # x_ref: (1, Ci, Hp, Wp) padded image (VMEM, same block for all bands)
        # w_ref: (KH*KW*Ci*Co,)  flattened conv weights (SMEM scalars)
        # b_ref: (Co,)           bias (SMEM scalars)
        # o_ref: (1, Co, TH, Wo) one output row-band, W on lanes
        band = pl.program_id(1)
        row0 = pl.multiple_of(band * TH, 8)
        xb = x_ref[0, :, pl.ds(row0, BH), :].astype(jnp.float32)  # (Ci, BH, Wp)

        accs = [jnp.full((TH, Wo), b_ref[co], dtype=jnp.float32)
                for co in range(Co)]
        for kh in range(KH):
            for kw in range(KW):
                for ci in range(Ci):
                    xs = xb[ci, kh:kh + TH, kw:kw + Wo]        # (TH, Wo)
                    base = ((kh * KW + kw) * Ci + ci) * Co
                    for co in range(Co):
                        accs[co] = accs[co] + w_ref[base + co] * xs
        for co in range(Co):
            o_ref[0, co, :, :] = accs[co].astype(o_ref.dtype)

    flops = 2 * N * Ho * Wo * KH * KW * Ci * Co
    bytes_accessed = (x_pad.size * x_pad.dtype.itemsize
                      + w_flat.size * 4 + b_flat.size * 4
                      + N * Co * Ho * Wo * x.dtype.itemsize)

    out = pl.pallas_call(
        kernel,
        out_shape=jax.ShapeDtypeStruct((N, Co, Ho, Wo), x.dtype),
        grid_spec=pltpu.PrefetchScalarGridSpec(
            num_scalar_prefetch=0,
            grid=(N, nb),
            in_specs=[
                pl.BlockSpec((1, Ci, Hp, Wp), lambda n, b: (n, 0, 0, 0)),
                pl.BlockSpec(memory_space=pltpu.MemorySpace.SMEM),
                pl.BlockSpec(memory_space=pltpu.MemorySpace.SMEM),
            ],
            out_specs=pl.BlockSpec((1, Co, TH, Wo), lambda n, b: (n, 0, b, 0)),
        ),
        compiler_params=pltpu.CompilerParams(
            dimension_semantics=("parallel", "parallel")),
        cost_estimate=pl.CostEstimate(
            flops=flops, transcendentals=0, bytes_accessed=bytes_accessed),
    )(x_pad, w_flat, b_flat)
    return out


def _conv_transpose_ref(x, w, b, padding=1):
    """Direct (scatter-form) reference of ConvTranspose2d, stride=1."""
    N, Ci, H, W = x.shape
    _, Co, K, _ = w.shape
    Hout = H + K - 1 - 2 * padding
    Wout = W + K - 1 - 2 * padding
    yf = jnp.zeros((N, Co, H + K - 1, W + K - 1), jnp.float32)
    for kh in range(K):
        for kw in range(K):
            yf = yf.at[:, :, kh:kh + H, kw:kw + W].add(
                jnp.einsum('nihw,io->nohw', x, w[:, :, kh, kw]))
    y = yf[:, :, padding:padding + Hout, padding:padding + Wout]
    return y + b[None, :, None, None]


if __name__ == "__main__":
    key = jax.random.PRNGKey(0)
    kx, kw, kb = jax.random.split(key, 3)

    N, Ci, H, W = 2, 4, 16, 16      # input NCHW
    Co, K = 8, 4                    # nch_out, kernel_size

    x = jax.random.normal(kx, (N, Ci, H, W), jnp.float32)
    # ConvTranspose2d weight shape: (in_channels, out_channels, kH, kW)
    weight = jax.random.normal(kw, (Ci, Co, K, K), jnp.float32) * 0.1
    bias = jax.random.normal(kb, (Co,), jnp.float32)

    y = deconv2d(x, weight, bias, stride=1, padding=1, output_padding=0)
    y = jax.block_until_ready(y)

    y_ref = _conv_transpose_ref(x, weight, bias, padding=1)

    assert y.shape == (N, Co, H + 1, W + 1), y.shape
    assert jnp.allclose(y, y_ref, atol=1e-4, rtol=1e-4), \
        float(jnp.max(jnp.abs(y - y_ref)))

    print("KERNEL_OK")
</pallas_src>

<mosaic_0001>
module attributes {stable_mosaic.version = 11 : i64} {
  func.func @kernel(%arg0: i32, %arg1: i32, %arg2: memref<1x4x27x20xf32, #tpu.memory_space<vmem>>, %arg3: memref<512xf32, #tpu.memory_space<smem>>, %arg4: memref<8xf32, #tpu.memory_space<smem>>, %arg5: memref<1x8x8x17xf32, #tpu.memory_space<vmem>>) attributes {dimension_semantics = [#tpu.dimension_semantics<parallel>, #tpu.dimension_semantics<parallel>], iteration_bounds = array<i64: 2, 3>, scalar_prefetch = 0 : i64, scratch_operands = 0 : i64, tpu.core_type = #tpu.core_type<tc>, window_params = [{transform_indices = @transform_0, window_bounds = array<i64: 1, 4, 27, 20>}, {transform_indices = @transform_1, window_bounds = array<i64: 512>}, {transform_indices = @transform_2, window_bounds = array<i64: 8>}, {transform_indices = @transform_3, window_bounds = array<i64: 1, 8, 8, 17>}]} {
    %c8_i32 = arith.constant 8 : i32
    %0 = arith.muli %arg1, %c8_i32 : i32
    %1 = tpu.assume_multiple %0, 8 : i32
    %c0 = arith.constant 0 : index
    %c0_0 = arith.constant 0 : index
    %2 = arith.index_cast %1 : i32 to index
    %c0_1 = arith.constant 0 : index
    %3 = vector.load %arg2[%c0, %c0_0, %2, %c0_1] : memref<1x4x27x20xf32, #tpu.memory_space<vmem>>, vector<1x4x11x20xf32>
    %4 = vector.shape_cast %3 : vector<1x4x11x20xf32> to vector<4x11x20xf32>
    %c0_2 = arith.constant 0 : index
    %5 = memref.load %arg4[%c0_2] : memref<8xf32, #tpu.memory_space<smem>>
    %6 = vector.broadcast %5 : f32 to vector<8x17xf32>
    %c1 = arith.constant 1 : index
    %7 = memref.load %arg4[%c1] : memref<8xf32, #tpu.memory_space<smem>>
    %8 = vector.broadcast %7 : f32 to vector<8x17xf32>
    %c2 = arith.constant 2 : index
    %9 = memref.load %arg4[%c2] : memref<8xf32, #tpu.memory_space<smem>>
    %10 = vector.broadcast %9 : f32 to vector<8x17xf32>
    %c3 = arith.constant 3 : index
    %11 = memref.load %arg4[%c3] : memref<8xf32, #tpu.memory_space<smem>>
    %12 = vector.broadcast %11 : f32 to vector<8x17xf32>
    %c4 = arith.constant 4 : index
    %13 = memref.load %arg4[%c4] : memref<8xf32, #tpu.memory_space<smem>>
    %14 = vector.broadcast %13 : f32 to vector<8x17xf32>
    %c5 = arith.constant 5 : index
    %15 = memref.load %arg4[%c5] : memref<8xf32, #tpu.memory_space<smem>>
    %16 = vector.broadcast %15 : f32 to vector<8x17xf32>
    %c6 = arith.constant 6 : index
    %17 = memref.load %arg4[%c6] : memref<8xf32, #tpu.memory_space<smem>>
    %18 = vector.broadcast %17 : f32 to vector<8x17xf32>
    %c7 = arith.constant 7 : index
    %19 = memref.load %arg4[%c7] : memref<8xf32, #tpu.memory_space<smem>>
    %20 = vector.broadcast %19 : f32 to vector<8x17xf32>
    %21 = vector.extract_strided_slice %4 {offsets = [0, 0, 0], sizes = [1, 8, 17], strides = [1, 1, 1]} : vector<4x11x20xf32> to vector<1x8x17xf32>
    %22 = vector.shape_cast %21 : vector<1x8x17xf32> to vector<8x17xf32>
    %c0_3 = arith.constant 0 : index
    %23 = memref.load %arg3[%c0_3] : memref<512xf32, #tpu.memory_space<smem>>
    %24 = vector.broadcast %23 : f32 to vector<8x17xf32>
    %25 = arith.mulf %24, %22 : vector<8x17xf32>
    %26 = arith.addf %6, %25 : vector<8x17xf32>
    %c1_4 = arith.constant 1 : index
    %27 = memref.load %arg3[%c1_4] : memref<512xf32, #tpu.memory_space<smem>>
    %28 = vector.broadcast %27 : f32 to vector<8x17xf32>
    %29 = arith.mulf %28, %22 : vector<8x17xf32>
    %30 = arith.addf %8, %29 : vector<8x17xf32>
    %c2_5 = arith.constant 2 : index
    %31 = memref.load %arg3[%c2_5] : memref<512xf32, #tpu.memory_space<smem>>
    %32 = vector.broadcast %31 : f32 to vector<8x17xf32>
    %33 = arith.mulf %32, %22 : vector<8x17xf32>
    %34 = arith.addf %10, %33 : vector<8x17xf32>
    %c3_6 = arith.constant 3 : index
    %35 = memref.load %arg3[%c3_6] : memref<512xf32, #tpu.memory_space<smem>>
    %36 = vector.broadcast %35 : f32 to vector<8x17xf32>
    %37 = arith.mulf %36, %22 : vector<8x17xf32>
    %38 = arith.addf %12, %37 : vector<8x17xf32>
    %c4_7 = arith.constant 4 : index
    %39 = memref.load %arg3[%c4_7] : memref<512xf32, #tpu.memory_space<smem>>
    %40 = vector.broadcast %39 : f32 to vector<8x17xf32>
    %41 = arith.mulf %40, %22 : vector<8x17xf32>
    %42 = arith.addf %14, %41 : vector<8x17xf32>
    %c5_8 = arith.constant 5 : index
    %43 = memref.load %arg3[%c5_8] : memref<512xf32, #tpu.memory_space<smem>>
    %44 = vector.broadcast %43 : f32 to vector<8x17xf32>
    %45 = arith.mulf %44, %22 : vector<8x17xf32>
    %46 = arith.addf %16, %45 : vector<8x17xf32>
    %c6_9 = arith.constant 6 : index
    %47 = memref.load %arg3[%c6_9] : memref<512xf32, #tpu.memory_space<smem>>
    %48 = vector.broadcast %47 : f32 to vector<8x17xf32>
    %49 = arith.mulf %48, %22 : vector<8x17xf32>
    %50 = arith.addf %18, %49 : vector<8x17xf32>
    %c7_10 = arith.constant 7 : index
    %51 = memref.load %arg3[%c7_10] : memref<512xf32, #tpu.memory_space<smem>>
    %52 = vector.broadcast %51 : f32 to vector<8x17xf32>
    %53 = arith.mulf %52, %22 : vector<8x17xf32>
    %54 = arith.addf %20, %53 : vector<8x17xf32>
    %55 = vector.extract_strided_slice %4 {offsets = [1, 0, 0], sizes = [1, 8, 17], strides = [1, 1, 1]} : vector<4x11x20xf32> to vector<1x8x17xf32>
    %56 = vector.shape_cast %55 : vector<1x8x17xf32> to vector<8x17xf32>
    %c8 = arith.constant 8 : index
    %57 = memref.load %arg3[%c8] : memref<512xf32, #tpu.memory_space<smem>>
    %58 = vector.broadcast %57 : f32 to vector<8x17xf32>
    %59 = arith.mulf %58, %56 : vector<8x17xf32>
    %60 = arith.addf %26, %59 : vector<8x17xf32>
    %c9 = arith.constant 9 : index
    %61 = memref.load %arg3[%c9] : memref<512xf32, #tpu.memory_space<smem>>
    %62 = vector.broadcast %61 : f32 to vector<8x17xf32>
    %63 = arith.mulf %62, %56 : vector<8x17xf32>
    %64 = arith.addf %30, %63 : vector<8x17xf32>
    %c10 = arith.constant 10 : index
    %65 = memref.load %arg3[%c10] : memref<512xf32, #tpu.memory_space<smem>>
    %66 = vector.broadcast %65 : f32 to vector<8x17xf32>
    %67 = arith.mulf %66, %56 : vector<8x17xf32>
    %68 = arith.addf %34, %67 : vector<8x17xf32>
    %c11 = arith.constant 11 : index
    %69 = memref.load %arg3[%c11] : memref<512xf32, #tpu.memory_space<smem>>
    %70 = vector.broadcast %69 : f32 to vector<8x17xf32>
    %71 = arith.mulf %70, %56 : vector<8x17xf32>
    %72 = arith.addf %38, %71 : vector<8x17xf32>
    %c12 = arith.constant 12 : index
    %73 = memref.load %arg3[%c12] : memref<512xf32, #tpu.memory_space<smem>>
    %74 = vector.broadcast %73 : f32 to vector<8x17xf32>
    %75 = arith.mulf %74, %56 : vector<8x17xf32>
    %76 = arith.addf %42, %75 : vector<8x17xf32>
    %c13 = arith.constant 13 : index
    %77 = memref.load %arg3[%c13] : memref<512xf32, #tpu.memory_space<smem>>
    %78 = vector.broadcast %77 : f32 to vector<8x17xf32>
    %79 = arith.mulf %78, %56 : vector<8x17xf32>
    %80 = arith.addf %46, %79 : vector<8x17xf32>
    %c14 = arith.constant 14 : index
    %81 = memref.load %arg3[%c14] : memref<512xf32, #tpu.memory_space<smem>>
    %82 = vector.broadcast %81 : f32 to vector<8x17xf32>
    %83 = arith.mulf %82, %56 : vector<8x17xf32>
    %84 = arith.addf %50, %83 : vector<8x17xf32>
    %c15 = arith.constant 15 : index
    %85 = memref.load %arg3[%c15] : memref<512xf32, #tpu.memory_space<smem>>
    %86 = vector.broadcast %85 : f32 to vector<8x17xf32>
    %87 = arith.mulf %86, %56 : vector<8x17xf32>
    %88 = arith.addf %54, %87 : vector<8x17xf32>
    %89 = vector.extract_strided_slice %4 {offsets = [2, 0, 0], sizes = [1, 8, 17], strides = [1, 1, 1]} : vector<4x11x20xf32> to vector<1x8x17xf32>
    %90 = vector.shape_cast %89 : vector<1x8x17xf32> to vector<8x17xf32>
    %c16 = arith.constant 16 : index
    %91 = memref.load %arg3[%c16] : memref<512xf32, #tpu.memory_space<smem>>
    %92 = vector.broadcast %91 : f32 to vector<8x17xf32>
    %93 = arith.mulf %92, %90 : vector<8x17xf32>
    %94 = arith.addf %60, %93 : vector<8x17xf32>
    %c17 = arith.constant 17 : index
    %95 = memref.load %arg3[%c17] : memref<512xf32, #tpu.memory_space<smem>>
    %96 = vector.broadcast %95 : f32 to vector<8x17xf32>
    %97 = arith.mulf %96, %90 : vector<8x17xf32>
    %98 = arith.addf %64, %97 : vector<8x17xf32>
    %c18 = arith.constant 18 : index
    %99 = memref.load %arg3[%c18] : memref<512xf32, #tpu.memory_space<smem>>
    %100 = vector.broadcast %99 : f32 to vector<8x17xf32>
    %101 = arith.mulf %100, %90 : vector<8x17xf32>
    %102 = arith.addf %68, %101 : vector<8x17xf32>
    %c19 = arith.constant 19 : index
    %103 = memref.load %arg3[%c19] : memref<512xf32, #tpu.memory_space<smem>>
    %104 = vector.broadcast %103 : f32 to vector<8x17xf32>
    %105 = arith.mulf %104, %90 : vector<8x17xf32>
    %106 = arith.addf %72, %105 : vector<8x17xf32>
    %c20 = arith.constant 20 : index
    %107 = memref.load %arg3[%c20] : memref<512xf32, #tpu.memory_space<smem>>
    %108 = vector.broadcast %107 : f32 to vector<8x17xf32>
    %109 = arith.mulf %108, %90 : vector<8x17xf32>
    %110 = arith.addf %76, %109 : vector<8x17xf32>
    %c21 = arith.constant 21 : index
    %111 = memref.load %arg3[%c21] : memref<512xf32, #tpu.memory_space<smem>>
    %112 = vector.broadcast %111 : f32 to vector<8x17xf32>
    %113 = arith.mulf %112, %90 : vector<8x17xf32>
    %114 = arith.addf %80, %113 : vector<8x17xf32>
    %c22 = arith.constant 22 : index
    %115 = memref.load %arg3[%c22] : memref<512xf32, #tpu.memory_space<smem>>
    %116 = vector.broadcast %115 : f32 to vector<8x17xf32>
    %117 = arith.mulf %116, %90 : vector<8x17xf32>
    %118 = arith.addf %84, %117 : vector<8x17xf32>
    %c23 = arith.constant 23 : index
    %119 = memref.load %arg3[%c23] : memref<512xf32, #tpu.memory_space<smem>>
    %120 = vector.broadcast %119 : f32 to vector<8x17xf32>
    %121 = arith.mulf %120, %90 : vector<8x17xf32>
    %122 = arith.addf %88, %121 : vector<8x17xf32>
    %123 = vector.extract_strided_slice %4 {offsets = [3, 0, 0], sizes = [1, 8, 17], strides = [1, 1, 1]} : vector<4x11x20xf32> to vector<1x8x17xf32>
    %124 = vector.shape_cast %123 : vector<1x8x17xf32> to vector<8x17xf32>
    %c24 = arith.constant 24 : index
    %125 = memref.load %arg3[%c24] : memref<512xf32, #tpu.memory_space<smem>>
    %126 = vector.broadcast %125 : f32 to vector<8x17xf32>
    %127 = arith.mulf %126, %124 : vector<8x17xf32>
    %128 = arith.addf %94, %127 : vector<8x17xf32>
    %c25 = arith.constant 25 : index
    %129 = memref.load %arg3[%c25] : memref<512xf32, #tpu.memory_space<smem>>
    %130 = vector.broadcast %129 : f32 to vector<8x17xf32>
    %131 = arith.mulf %130, %124 : vector<8x17xf32>
    %132 = arith.addf %98, %131 : vector<8x17xf32>
    %c26 = arith.constant 26 : index
    %133 = memref.load %arg3[%c26] : memref<512xf32, #tpu.memory_space<smem>>
    %134 = vector.broadcast %133 : f32 to vector<8x17xf32>
    %135 = arith.mulf %134, %124 : vector<8x17xf32>
    %136 = arith.addf %102, %135 : vector<8x17xf32>
    %c27 = arith.constant 27 : index
    %137 = memref.load %arg3[%c27] : memref<512xf32, #tpu.memory_space<smem>>
    %138 = vector.broadcast %137 : f32 to vector<8x17xf32>
    %139 = arith.mulf %138, %124 : vector<8x17xf32>
    %140 = arith.addf %106, %139 : vector<8x17xf32>
    %c28 = arith.constant 28 : index
    %141 = memref.load %arg3[%c28] : memref<512xf32, #tpu.memory_space<smem>>
    %142 = vector.broadcast %141 : f32 to vector<8x17xf32>
    %143 = arith.mulf %142, %124 : vector<8x17xf32>
    %144 = arith.addf %110, %143 : vector<8x17xf32>
    %c29 = arith.constant 29 : index
    %145 = memref.load %arg3[%c29] : memref<512xf32, #tpu.memory_space<smem>>
    %146 = vector.broadcast %145 : f32 to vector<8x17xf32>
    %147 = arith.mulf %146, %124 : vector<8x17xf32>
    %148 = arith.addf %114, %147 : vector<8x17xf32>
    %c30 = arith.constant 30 : index
    %149 = memref.load %arg3[%c30] : memref<512xf32, #tpu.memory_space<smem>>
    %150 = vector.broadcast %149 : f32 to vector<8x17xf32>
    %151 = arith.mulf %150, %124 : vector<8x17xf32>
    %152 = arith.addf %118, %151 : vector<8x17xf32>
    %c31 = arith.constant 31 : index
    %153 = memref.load %arg3[%c31] : memref<512xf32, #tpu.memory_space<smem>>
    %154 = vector.broadcast %153 : f32 to vector<8x17xf32>
    %155 = arith.mulf %154, %124 : vector<8x17xf32>
    %156 = arith.addf %122, %155 : vector<8x17xf32>
    %157 = vector.extract_strided_slice %4 {offsets = [0, 0, 1], sizes = [1, 8, 17], strides = [1, 1, 1]} : vector<4x11x20xf32> to vector<1x8x17xf32>
    %158 = vector.shape_cast %157 : vector<1x8x17xf32> to vector<8x17xf32>
    %c32 = arith.constant 32 : index
    %159 = memref.load %arg3[%c32] : memref<512xf32, #tpu.memory_space<smem>>
    %160 = vector.broadcast %159 : f32 to vector<8x17xf32>
    %161 = arith.mulf %160, %158 : vector<8x17xf32>
    %162 = arith.addf %128, %161 : vector<8x17xf32>
    %c33 = arith.constant 33 : index
    %163 = memref.load %arg3[%c33] : memref<512xf32, #tpu.memory_space<smem>>
    %164 = vector.broadcast %163 : f32 to vector<8x17xf32>
    %165 = arith.mulf %164, %158 : vector<8x17xf32>
    %166 = arith.addf %132, %165 : vector<8x17xf32>
    %c34 = arith.constant 34 : index
    %167 = memref.load %arg3[%c34] : memref<512xf32, #tpu.memory_space<smem>>
    %168 = vector.broadcast %167 : f32 to vector<8x17xf32>
    %169 = arith.mulf %168, %158 : vector<8x17xf32>
    %170 = arith.addf %136, %169 : vector<8x17xf32>
    %c35 = arith.constant 35 : index
    %171 = memref.load %arg3[%c35] : memref<512xf32, #tpu.memory_space<smem>>
    %172 = vector.broadcast %171 : f32 to vector<8x17xf32>
    %173 = arith.mulf %172, %158 : vector<8x17xf32>
    %174 = arith.addf %140, %173 : vector<8x17xf32>
    %c36 = arith.constant 36 : index
    %175 = memref.load %arg3[%c36] : memref<512xf32, #tpu.memory_space<smem>>
    %176 = vector.broadcast %175 : f32 to vector<8x17xf32>
    %177 = arith.mulf %176, %158 : vector<8x17xf32>
    %178 = arith.addf %144, %177 : vector<8x17xf32>
    %c37 = arith.constant 37 : index
    %179 = memref.load %arg3[%c37] : memref<512xf32, #tpu.memory_space<smem>>
    %180 = vector.broadcast %179 : f32 to vector<8x17xf32>
    %181 = arith.mulf %180, %158 : vector<8x17xf32>
    %182 = arith.addf %148, %181 : vector<8x17xf32>
    %c38 = arith.constant 38 : index
    %183 = memref.load %arg3[%c38] : memref<512xf32, #tpu.memory_space<smem>>
    %184 = vector.broadcast %183 : f32 to vector<8x17xf32>
    %185 = arith.mulf %184, %158 : vector<8x17xf32>
    %186 = arith.addf %152, %185 : vector<8x17xf32>
    %c39 = arith.constant 39 : index
    %187 = memref.load %arg3[%c39] : memref<512xf32, #tpu.memory_space<smem>>
    %188 = vector.broadcast %187 : f32 to vector<8x17xf32>
    %189 = arith.mulf %188, %158 : vector<8x17xf32>
    %190 = arith.addf %156, %189 : vector<8x17xf32>
    %191 = vector.extract_strided_slice %4 {offsets = [1, 0, 1], sizes = [1, 8, 17], strides = [1, 1, 1]} : vector<4x11x20xf32> to vector<1x8x17xf32>
    %192 = vector.shape_cast %191 : vector<1x8x17xf32> to vector<8x17xf32>
    %c40 = arith.constant 40 : index
    %193 = memref.load %arg3[%c40] : memref<512xf32, #tpu.memory_space<smem>>
    %194 = vector.broadcast %193 : f32 to vector<8x17xf32>
    %195 = arith.mulf %194, %192 : vector<8x17xf32>
    %196 = arith.addf %162, %195 : vector<8x17xf32>
    %c41 = arith.constant 41 : index
    %197 = memref.load %arg3[%c41] : memref<512xf32, #tpu.memory_space<smem>>
    %198 = vector.broadcast %197 : f32 to vector<8x17xf32>
    %199 = arith.mulf %198, %192 : vector<8x17xf32>
    %200 = arith.addf %166, %199 : vector<8x17xf32>
    %c42 = arith.constant 42 : index
    %201 = memref.load %arg3[%c42] : memref<512xf32, #tpu.memory_space<smem>>
    %202 = vector.broadcast %201 : f32 to vector<8x17xf32>
    %203 = arith.mulf %202, %192 : vector<8x17xf32>
    %204 = arith.addf %170, %203 : vector<8x17xf32>
    %c43 = arith.constant 43 : index
    %205 = memref.load %arg3[%c43] : memref<512xf32, #tpu.memory_space<smem>>
    %206 = vector.broadcast %205 : f32 to vector<8x17xf32>
    %207 = arith.mulf %206, %192 : vector<8x17xf32>
    %208 = arith.addf %174, %207 : vector<8x17xf32>
    %c44 = arith.constant 44 : index
    %209 = memref.load %arg3[%c44] : memref<512xf32, #tpu.memory_space<smem>>
    %210 = vector.broadcast %209 : f32 to vector<8x17xf32>
    %211 = arith.mulf %210, %192 : vector<8x17xf32>
    %212 = arith.addf %178, %211 : vector<8x17xf32>
    %c45 = arith.constant 45 : index
    %213 = memref.load %arg3[%c45] : memref<512xf32, #tpu.memory_space<smem>>
    %214 = vector.broadcast %213 : f32 to vector<8x17xf32>
    %215 = arith.mulf %214, %192 : vector<8x17xf32>
    %216 = arith.addf %182, %215 : vector<8x17xf32>
    %c46 = arith.constant 46 : index
    %217 = memref.load %arg3[%c46] : memref<512xf32, #tpu.memory_space<smem>>
    %218 = vector.broadcast %217 : f32 to vector<8x17xf32>
    %219 = arith.mulf %218, %192 : vector<8x17xf32>
    %220 = arith.addf %186, %219 : vector<8x17xf32>
    %c47 = arith.constant 47 : index
    %221 = memref.load %arg3[%c47] : memref<512xf32, #tpu.memory_space<smem>>
    %222 = vector.broadcast %221 : f32 to vector<8x17xf32>
    %223 = arith.mulf %222, %192 : vector<8x17xf32>
    %224 = arith.addf %190, %223 : vector<8x17xf32>
    %225 = vector.extract_strided_slice %4 {offsets = [2, 0, 1], sizes = [1, 8, 17], strides = [1, 1, 1]} : vector<4x11x20xf32> to vector<1x8x17xf32>
    %226 = vector.shape_cast %225 : vector<1x8x17xf32> to vector<8x17xf32>
    %c48 = arith.constant 48 : index
    %227 = memref.load %arg3[%c48] : memref<512xf32, #tpu.memory_space<smem>>
    %228 = vector.broadcast %227 : f32 to vector<8x17xf32>
    %229 = arith.mulf %228, %226 : vector<8x17xf32>
    %230 = arith.addf %196, %229 : vector<8x17xf32>
    %c49 = arith.constant 49 : index
    %231 = memref.load %arg3[%c49] : memref<512xf32, #tpu.memory_space<smem>>
    %232 = vector.broadcast %231 : f32 to vector<8x17xf32>
    %233 = arith.mulf %232, %226 : vector<8x17xf32>
    %234 = arith.addf %200, %233 : vector<8x17xf32>
    %c50 = arith.constant 50 : index
    %235 = memref.load %arg3[%c50] : memref<512xf32, #tpu.memory_space<smem>>
    %236 = vector.broadcast %235 : f32 to vector<8x17xf32>
    %237 = arith.mulf %236, %226 : vector<8x17xf32>
    %238 = arith.addf %204, %237 : vector<8x17xf32>
    %c51 = arith.constant 51 : index
    %239 = memref.load %arg3[%c51] : memref<512xf32, #tpu.memory_space<smem>>
    %240 = vector.broadcast %239 : f32 to vector<8x17xf32>
    %241 = arith.mulf %240, %226 : vector<8x17xf32>
    %242 = arith.addf %208, %241 : vector<8x17xf32>
    %c52 = arith.constant 52 : index
    %243 = memref.load %arg3[%c52] : memref<512xf32, #tpu.memory_space<smem>>
    %244 = vector.broadcast %243 : f32 to vector<8x17xf32>
    %245 = arith.mulf %244, %226 : vector<8x17xf32>
    %246 = arith.addf %212, %245 : vector<8x17xf32>
    %c53 = arith.constant 53 : index
    %247 = memref.load %arg3[%c53] : memref<512xf32, #tpu.memory_space<smem>>
    %248 = vector.broadcast %247 : f32 to vector<8x17xf32>
    %249 = arith.mulf %248, %226 : vector<8x17xf32>
    %250 = arith.addf %216, %249 : vector<8x17xf32>
    %c54 = arith.constant 54 : index
    %251 = memref.load %arg3[%c54] : memref<512xf32, #tpu.memory_space<smem>>
    %252 = vector.broadcast %251 : f32 to vector<8x17xf32>
    %253 = arith.mulf %252, %226 : vector<8x17xf32>
    %254 = arith.addf %220, %253 : vector<8x17xf32>
    %c55 = arith.constant 55 : index
    %255 = memref.load %arg3[%c55] : memref<512xf32, #tpu.memory_space<smem>>
    %256 = vector.broadcast %255 : f32 to vector<8x17xf32>
    %257 = arith.mulf %256, %226 : vector<8x17xf32>
    %258 = arith.addf %224, %257 : vector<8x17xf32>
    %259 = vector.extract_strided_slice %4 {offsets = [3, 0, 1], sizes = [1, 8, 17], strides = [1, 1, 1]} : vector<4x11x20xf32> to vector<1x8x17xf32>
    %260 = vector.shape_cast %259 : vector<1x8x17xf32> to vector<8x17xf32>
    %c56 = arith.constant 56 : index
    %261 = memref.load %arg3[%c56] : memref<512xf32, #tpu.memory_space<smem>>
    %262 = vector.broadcast %261 : f32 to vector<8x17xf32>
    %263 = arith.mulf %262, %260 : vector<8x17xf32>
    %264 = arith.addf %230, %263 : vector<8x17xf32>
    %c57 = arith.constant 57 : index
    %265 = memref.load %arg3[%c57] : memref<512xf32, #tpu.memory_space<smem>>
    %266 = vector.broadcast %265 : f32 to vector<8x17xf32>
    %267 = arith.mulf %266, %260 : vector<8x17xf32>
    %268 = arith.addf %234, %267 : vector<8x17xf32>
    %c58 = arith.constant 58 : index
    %269 = memref.load %arg3[%c58] : memref<512xf32, #tpu.memory_space<smem>>
    %270 = vector.broadcast %269 : f32 to vector<8x17xf32>
    %271 = arith.mulf %270, %260 : vector<8x17xf32>
    %272 = arith.addf %238, %271 : vector<8x17xf32>
    %c59 = arith.constant 59 : index
    %273 = memref.load %arg3[%c59] : memref<512xf32, #tpu.memory_space<smem>>
    %274 = vector.broadcast %273 : f32 to vector<8x17xf32>
    %275 = arith.mulf %274, %260 : vector<8x17xf32>
    %276 = arith.addf %242, %275 : vector<8x17xf32>
    %c60 = arith.constant 60 : index
    %277 = memref.load %arg3[%c60] : memref<512xf32, #tpu.memory_space<smem>>
    %278 = vector.broadcast %277 : f32 to vector<8x17xf32>
    %279 = arith.mulf %278, %260 : vector<8x17xf32>
    %280 = arith.addf %246, %279 : vector<8x17xf32>
    %c61 = arith.constant 61 : index
    %281 = memref.load %arg3[%c61] : memref<512xf32, #tpu.memory_space<smem>>
    %282 = vector.broadcast %281 : f32 to vector<8x17xf32>
    %283 = arith.mulf %282, %260 : vector<8x17xf32>
    %284 = arith.addf %250, %283 : vector<8x17xf32>
    %c62 = arith.constant 62 : index
    %285 = memref.load %arg3[%c62] : memref<512xf32, #tpu.memory_space<smem>>
    %286 = vector.broadcast %285 : f32 to vector<8x17xf32>
    %287 = arith.mulf %286, %260 : vector<8x17xf32>
    %288 = arith.addf %254, %287 : vector<8x17xf32>
    %c63 = arith.constant 63 : index
    %289 = memref.load %arg3[%c63] : memref<512xf32, #tpu.memory_space<smem>>
    %290 = vector.broadcast %289 : f32 to vector<8x17xf32>
    %291 = arith.mulf %290, %260 : vector<8x17xf32>
    %292 = arith.addf %258, %291 : vector<8x17xf32>
    %293 = vector.extract_strided_slice %4 {offsets = [0, 0, 2], sizes = [1, 8, 17], strides = [1, 1, 1]} : vector<4x11x20xf32> to vector<1x8x17xf32>
    %294 = vector.shape_cast %293 : vector<1x8x17xf32> to vector<8x17xf32>
    %c64 = arith.constant 64 : index
    %295 = memref.load %arg3[%c64] : memref<512xf32, #tpu.memory_space<smem>>
    %296 = vector.broadcast %295 : f32 to vector<8x17xf32>
    %297 = arith.mulf %296, %294 : vector<8x17xf32>
    %298 = arith.addf %264, %297 : vector<8x17xf32>
    %c65 = arith.constant 65 : index
    %299 = memref.load %arg3[%c65] : memref<512xf32, #tpu.memory_space<smem>>
    %300 = vector.broadcast %299 : f32 to vector<8x17xf32>
    %301 = arith.mulf %300, %294 : vector<8x17xf32>
    %302 = arith.addf %268, %301 : vector<8x17xf32>
    %c66 = arith.constant 66 : index
    %303 = memref.load %arg3[%c66] : memref<512xf32, #tpu.memory_space<smem>>
    %304 = vector.broadcast %303 : f32 to vector<8x17xf32>
    %305 = arith.mulf %304, %294 : vector<8x17xf32>
    %306 = arith.addf %272, %305 : vector<8x17xf32>
    %c67 = arith.constant 67 : index
    %307 = memref.load %arg3[%c67] : memref<512xf32, #tpu.memory_space<smem>>
    %308 = vector.broadcast %307 : f32 to vector<8x17xf32>
    %309 = arith.mulf %308, %294 : vector<8x17xf32>
    %310 = arith.addf %276, %309 : vector<8x17xf32>
    %c68 = arith.constant 68 : index
    %311 = memref.load %arg3[%c68] : memref<512xf32, #tpu.memory_space<smem>>
    %312 = vector.broadcast %311 : f32 to vector<8x17xf32>
    %313 = arith.mulf %312, %294 : vector<8x17xf32>
    %314 = arith.addf %280, %313 : vector<8x17xf32>
    %c69 = arith.constant 69 : index
    %315 = memref.load %arg3[%c69] : memref<512xf32, #tpu.memory_space<smem>>
    %316 = vector.broadcast %315 : f32 to vector<8x17xf32>
    %317 = arith.mulf %316, %294 : vector<8x17xf32>
    %318 = arith.addf %284, %317 : vector<8x17xf32>
    %c70 = arith.constant 70 : index
    %319 = memref.load %arg3[%c70] : memref<512xf32, #tpu.memory_space<smem>>
    %320 = vector.broadcast %319 : f32 to vector<8x17xf32>
    %321 = arith.mulf %320, %294 : vector<8x17xf32>
    %322 = arith.addf %288, %321 : vector<8x17xf32>
    %c71 = arith.constant 71 : index
    %323 = memref.load %arg3[%c71] : memref<512xf32, #tpu.memory_space<smem>>
    %324 = vector.broadcast %323 : f32 to vector<8x17xf32>
    %325 = arith.mulf %324, %294 : vector<8x17xf32>
    %326 = arith.addf %292, %325 : vector<8x17xf32>
    %327 = vector.extract_strided_slice %4 {offsets = [1, 0, 2], sizes = [1, 8, 17], strides = [1, 1, 1]} : vector<4x11x20xf32> to vector<1x8x17xf32>
    %328 = vector.shape_cast %327 : vector<1x8x17xf32> to vector<8x17xf32>
    %c72 = arith.constant 72 : index
    %329 = memref.load %arg3[%c72] : memref<512xf32, #tpu.memory_space<smem>>
    %330 = vector.broadcast %329 : f32 to vector<8x17xf32>
    %331 = arith.mulf %330, %328 : vector<8x17xf32>
    %332 = arith.addf %298, %331 : vector<8x17xf32>
    %c73 = arith.constant 73 : index
    %333 = memref.load %arg3[%c73] : memref<512xf32, #tpu.memory_space<smem>>
    %334 = vector.broadcast %333 : f32 to vector<8x17xf32>
    %335 = arith.mulf %334, %328 : vector<8x17xf32>
    %336 = arith.addf %302, %335 : vector<8x17xf32>
    %c74 = arith.constant 74 : index
    %337 = memref.load %arg3[%c74] : memref<512xf32, #tpu.memory_space<smem>>
    %338 = vector.broadcast %337 : f32 to vector<8x17xf32>
    %339 = arith.mulf %338, %328 : vector<8x17xf32>
    %340 = arith.addf %306, %339 : vector<8x17xf32>
    %c75 = arith.constant 75 : index
    %341 = memref.load %arg3[%c75] : memref<512xf32, #tpu.memory_space<smem>>
    %342 = vector.broadcast %341 : f32 to vector<8x17xf32>
    %343 = arith.mulf %342, %328 : vector<8x17xf32>
    %344 = arith.addf %310, %343 : vector<8x17xf32>
    %c76 = arith.constant 76 : index
    %345 = memref.load %arg3[%c76] : memref<512xf32, #tpu.memory_space<smem>>
    %346 = vector.broadcast %345 : f32 to vector<8x17xf32>
    %347 = arith.mulf %346, %328 : vector<8x17xf32>
    %348 = arith.addf %314, %347 : vector<8x17xf32>
    %c77 = arith.constant 77 : index
    %349 = memref.load %arg3[%c77] : memref<512xf32, #tpu.memory_space<smem>>
    %350 = vector.broadcast %349 : f32 to vector<8x17xf32>
    %351 = arith.mulf %350, %328 : vector<8x17xf32>
    %352 = arith.addf %318, %351 : vector<8x17xf32>
    %c78 = arith.constant 78 : index
    %353 = memref.load %arg3[%c78] : memref<512xf32, #tpu.memory_space<smem>>
    %354 = vector.broadcast %353 : f32 to vector<8x17xf32>
    %355 = arith.mulf %354, %328 : vector<8x17xf32>
    %356 = arith.addf %322, %355 : vector<8x17xf32>
    %c79 = arith.constant 79 : index
    %357 = memref.load %arg3[%c79] : memref<512xf32, #tpu.memory_space<smem>>
    %358 = vector.broadcast %357 : f32 to vector<8x17xf32>
    %359 = arith.mulf %358, %328 : vector<8x17xf32>
    %360 = arith.addf %326, %359 : vector<8x17xf32>
    %361 = vector.extract_strided_slice %4 {offsets = [2, 0, 2], sizes = [1, 8, 17], strides = [1, 1, 1]} : vector<4x11x20xf32> to vector<1x8x17xf32>
    %362 = vector.shape_cast %361 : vector<1x8x17xf32> to vector<8x17xf32>
    %c80 = arith.constant 80 : index
    %363 = memref.load %arg3[%c80] : memref<512xf32, #tpu.memory_space<smem>>
    %364 = vector.broadcast %363 : f32 to vector<8x17xf32>
    %365 = arith.mulf %364, %362 : vector<8x17xf32>
    %366 = arith.addf %332, %365 : vector<8x17xf32>
    %c81 = arith.constant 81 : index
    %367 = memref.load %arg3[%c81] : memref<512xf32, #tpu.memory_space<smem>>
    %368 = vector.broadcast %367 : f32 to vector<8x17xf32>
    %369 = arith.mulf %368, %362 : vector<8x17xf32>
    %370 = arith.addf %336, %369 : vector<8x17xf32>
    %c82 = arith.constant 82 : index
    %371 = memref.load %arg3[%c82] : memref<512xf32, #tpu.memory_space<smem>>
    %372 = vector.broadcast %371 : f32 to vector<8x17xf32>
    %373 = arith.mulf %372, %362 : vector<8x17xf32>
    %374 = arith.addf %340, %373 : vector<8x17xf32>
    %c83 = arith.constant 83 : index
    %375 = memref.load %arg3[%c83] : memref<512xf32, #tpu.memory_space<smem>>
    %376 = vector.broadcast %375 : f32 to vector<8x17xf32>
    %377 = arith.mulf %376, %362 : vector<8x17xf32>
    %378 = arith.addf %344, %377 : vector<8x17xf32>
    %c84 = arith.constant 84 : index
    %379 = memref.load %arg3[%c84] : memref<512xf32, #tpu.memory_space<smem>>
    %380 = vector.broadcast %379 : f32 to vector<8x17xf32>
    %381 = arith.mulf %380, %362 : vector<8x17xf32>
    %382 = arith.addf %348, %381 : vector<8x17xf32>
    %c85 = arith.constant 85 : index
    %383 = memref.load %arg3[%c85] : memref<512xf32, #tpu.memory_space<smem>>
    %384 = vector.broadcast %383 : f32 to vector<8x17xf32>
    %385 = arith.mulf %384, %362 : vector<8x17xf32>
    %386 = arith.addf %352, %385 : vector<8x17xf32>
    %c86 = arith.constant 86 : index
    %387 = memref.load %arg3[%c86] : memref<512xf32, #tpu.memory_space<smem>>
    %388 = vector.broadcast %387 : f32 to vector<8x17xf32>
    %389 = arith.mulf %388, %362 : vector<8x17xf32>
    %390 = arith.addf %356, %389 : vector<8x17xf32>
    %c87 = arith.constant 87 : index
    %391 = memref.load %arg3[%c87] : memref<512xf32, #tpu.memory_space<smem>>
    %392 = vector.broadcast %391 : f32 to vector<8x17xf32>
    %393 = arith.mulf %392, %362 : vector<8x17xf32>
    %394 = arith.addf %360, %393 : vector<8x17xf32>
    %395 = vector.extract_strided_slice %4 {offsets = [3, 0, 2], sizes = [1, 8, 17], strides = [1, 1, 1]} : vector<4x11x20xf32> to vector<1x8x17xf32>
    %396 = vector.shape_cast %395 : vector<1x8x17xf32> to vector<8x17xf32>
    %c88 = arith.constant 88 : index
    %397 = memref.load %arg3[%c88] : memref<512xf32, #tpu.memory_space<smem>>
    %398 = vector.broadcast %397 : f32 to vector<8x17xf32>
    %399 = arith.mulf %398, %396 : vector<8x17xf32>
    %400 = arith.addf %366, %399 : vector<8x17xf32>
    %c89 = arith.constant 89 : index
    %401 = memref.load %arg3[%c89] : memref<512xf32, #tpu.memory_space<smem>>
    %402 = vector.broadcast %401 : f32 to vector<8x17xf32>
    %403 = arith.mulf %402, %396 : vector<8x17xf32>
    %404 = arith.addf %370, %403 : vector<8x17xf32>
    %c90 = arith.constant 90 : index
    %405 = memref.load %arg3[%c90] : memref<512xf32, #tpu.memory_space<smem>>
    %406 = vector.broadcast %405 : f32 to vector<8x17xf32>
    %407 = arith.mulf %406, %396 : vector<8x17xf32>
    %408 = arith.addf %374, %407 : vector<8x17xf32>
    %c91 = arith.constant 91 : index
    %409 = memref.load %arg3[%c91] : memref<512xf32, #tpu.memory_space<smem>>
    %410 = vector.broadcast %409 : f32 to vector<8x17xf32>
    %411 = arith.mulf %410, %396 : vector<8x17xf32>
    %412 = arith.addf %378, %411 : vector<8x17xf32>
    %c92 = arith.constant 92 : index
    %413 = memref.load %arg3[%c92] : memref<512xf32, #tpu.memory_space<smem>>
    %414 = vector.broadcast %413 : f32 to vector<8x17xf32>
    %415 = arith.mulf %414, %396 : vector<8x17xf32>
    %416 = arith.addf %382, %415 : vector<8x17xf32>
    %c93 = arith.constant 93 : index
    %417 = memref.load %arg3[%c93] : memref<512xf32, #tpu.memory_space<smem>>
    %418 = vector.broadcast %417 : f32 to vector<8x17xf32>
    %419 = arith.mulf %418, %396 : vector<8x17xf32>
    %420 = arith.addf %386, %419 : vector<8x17xf32>
    %c94 = arith.constant 94 : index
    %421 = memref.load %arg3[%c94] : memref<512xf32, #tpu.memory_space<smem>>
    %422 = vector.broadcast %421 : f32 to vector<8x17xf32>
    %423 = arith.mulf %422, %396 : vector<8x17xf32>
    %424 = arith.addf %390, %423 : vector<8x17xf32>
    %c95 = arith.constant 95 : index
    %425 = memref.load %arg3[%c95] : memref<512xf32, #tpu.memory_space<smem>>
    %426 = vector.broadcast %425 : f32 to vector<8x17xf32>
    %427 = arith.mulf %426, %396 : vector<8x17xf32>
    %428 = arith.addf %394, %427 : vector<8x17xf32>
    %429 = vector.extract_strided_slice %4 {offsets = [0, 0, 3], sizes = [1, 8, 17], strides = [1, 1, 1]} : vector<4x11x20xf32> to vector<1x8x17xf32>
    %430 = vector.shape_cast %429 : vector<1x8x17xf32> to vector<8x17xf32>
    %c96 = arith.constant 96 : index
    %431 = memref.load %arg3[%c96] : memref<512xf32, #tpu.memory_space<smem>>
    %432 = vector.broadcast %431 : f32 to vector<8x17xf32>
    %433 = arith.mulf %432, %430 : vector<8x17xf32>
    %434 = arith.addf %400, %433 : vector<8x17xf32>
    %c97 = arith.constant 97 : index
    %435 = memref.load %arg3[%c97] : memref<512xf32, #tpu.memory_space<smem>>
    %436 = vector.broadcast %435 : f32 to vector<8x17xf32>
    %437 = arith.mulf %436, %430 : vector<8x17xf32>
    %438 = arith.addf %404, %437 : vector<8x17xf32>
    %c98 = arith.constant 98 : index
    %439 = memref.load %arg3[%c98] : memref<512xf32, #tpu.memory_space<smem>>
    %440 = vector.broadcast %439 : f32 to vector<8x17xf32>
    %441 = arith.mulf %440, %430 : vector<8x17xf32>
    %442 = arith.addf %408, %441 : vector<8x17xf32>
    %c99 = arith.constant 99 : index
    %443 = memref.load %arg3[%c99] : memref<512xf32, #tpu.memory_space<smem>>
    %444 = vector.broadcast %443 : f32 to vector<8x17xf32>
    %445 = arith.mulf %444, %430 : vector<8x17xf32>
    %446 = arith.addf %412, %445 : vector<8x17xf32>
    %c100 = arith.constant 100 : index
    %447 = memref.load %arg3[%c100] : memref<512xf32, #tpu.memory_space<smem>>
    %448 = vector.broadcast %447 : f32 to vector<8x17xf32>
    %449 = arith.mulf %448, %430 : vector<8x17xf32>
    %450 = arith.addf %416, %449 : vector<8x17xf32>
    %c101 = arith.constant 101 : index
    %451 = memref.load %arg3[%c101] : memref<512xf32, #tpu.memory_space<smem>>
    %452 = vector.broadcast %451 : f32 to vector<8x17xf32>
    %453 = arith.mulf %452, %430 : vector<8x17xf32>
    %454 = arith.addf %420, %453 : vector<8x17xf32>
    %c102 = arith.constant 102 : index
    %455 = memref.load %arg3[%c102] : memref<512xf32, #tpu.memory_space<smem>>
    %456 = vector.broadcast %455 : f32 to vector<8x17xf32>
    %457 = arith.mulf %456, %430 : vector<8x17xf32>
    %458 = arith.addf %424, %457 : vector<8x17xf32>
    %c103 = arith.constant 103 : index
    %459 = memref.load %arg3[%c103] : memref<512xf32, #tpu.memory_space<smem>>
    %460 = vector.broadcast %459 : f32 to vector<8x17xf32>
    %461 = arith.mulf %460, %430 : vector<8x17xf32>
    %462 = arith.addf %428, %461 : vector<8x17xf32>
    %463 = vector.extract_strided_slice %4 {offsets = [1, 0, 3], sizes = [1, 8, 17], strides = [1, 1, 1]} : vector<4x11x20xf32> to vector<1x8x17xf32>
    %464 = vector.shape_cast %463 : vector<1x8x17xf32> to vector<8x17xf32>
    %c104 = arith.constant 104 : index
    %465 = memref.load %arg3[%c104] : memref<512xf32, #tpu.memory_space<smem>>
    %466 = vector.broadcast %465 : f32 to vector<8x17xf32>
    %467 = arith.mulf %466, %464 : vector<8x17xf32>
    %468 = arith.addf %434, %467 : vector<8x17xf32>
    %c105 = arith.constant 105 : index
    %469 = memref.load %arg3[%c105] : memref<512xf32, #tpu.memory_space<smem>>
    %470 = vector.broadcast %469 : f32 to vector<8x17xf32>
    %471 = arith.mulf %470, %464 : vector<8x17xf32>
    %472 = arith.addf %438, %471 : vector<8x17xf32>
    %c106 = arith.constant 106 : index
    %473 = memref.load %arg3[%c106] : memref<512xf32, #tpu.memory_space<smem>>
    %474 = vector.broadcast %473 : f32 to vector<8x17xf32>
    %475 = arith.mulf %474, %464 : vector<8x17xf32>
    %476 = arith.addf %442, %475 : vector<8x17xf32>
    %c107 = arith.constant 107 : index
    %477 = memref.load %arg3[%c107] : memref<512xf32, #tpu.memory_space<smem>>
    %478 = vector.broadcast %477 : f32 to vector<8x17xf32>
    %479 = arith.mulf %478, %464 : vector<8x17xf32>
    %480 = arith.addf %446, %479 : vector<8x17xf32>
    %c108 = arith.constant 108 : index
    %481 = memref.load %arg3[%c108] : memref<512xf32, #tpu.memory_space<smem>>
    %482 = vector.broadcast %481 : f32 to vector<8x17xf32>
    %483 = arith.mulf %482, %464 : vector<8x17xf32>
    %484 = arith.addf %450, %483 : vector<8x17xf32>
    %c109 = arith.constant 109 : index
    %485 = memref.load %arg3[%c109] : memref<512xf32, #tpu.memory_space<smem>>
    %486 = vector.broadcast %485 : f32 to vector<8x17xf32>
    %487 = arith.mulf %486, %464 : vector<8x17xf32>
    %488 = arith.addf %454, %487 : vector<8x17xf32>
    %c110 = arith.constant 110 : index
    %489 = memref.load %arg3[%c110] : memref<512xf32, #tpu.memory_space<smem>>
    %490 = vector.broadcast %489 : f32 to vector<8x17xf32>
    %491 = arith.mulf %490, %464 : vector<8x17xf32>
    %492 = arith.addf %458, %491 : vector<8x17xf32>
    %c111 = arith.constant 111 : index
    %493 = memref.load %arg3[%c111] : memref<512xf32, #tpu.memory_space<smem>>
    %494 = vector.broadcast %493 : f32 to vector<8x17xf32>
    %495 = arith.mulf %494, %464 : vector<8x17xf32>
    %496 = arith.addf %462, %495 : vector<8x17xf32>
    %497 = vector.extract_strided_slice %4 {offsets = [2, 0, 3], sizes = [1, 8, 17], strides = [1, 1, 1]} : vector<4x11x20xf32> to vector<1x8x17xf32>
    %498 = vector.shape_cast %497 : vector<1x8x17xf32> to vector<8x17xf32>
    %c112 = arith.constant 112 : index
    %499 = memref.load %arg3[%c112] : memref<512xf32, #tpu.memory_space<smem>>
    %500 = vector.broadcast %499 : f32 to vector<8x17xf32>
    %501 = arith.mulf %500, %498 : vector<8x17xf32>
    %502 = arith.addf %468, %501 : vector<8x17xf32>
    %c113 = arith.constant 113 : index
    %503 = memref.load %arg3[%c113] : memref<512xf32, #tpu.memory_space<smem>>
    %504 = vector.broadcast %503 : f32 to vector<8x17xf32>
    %505 = arith.mulf %504, %498 : vector<8x17xf32>
    %506 = arith.addf %472, %505 : vector<8x17xf32>
    %c114 = arith.constant 114 : index
    %507 = memref.load %arg3[%c114] : memref<512xf32, #tpu.memory_space<smem>>
    %508 = vector.broadcast %507 : f32 to vector<8x17xf32>
    %509 = arith.mulf %508, %498 : vector<8x17xf32>
    %510 = arith.addf %476, %509 : vector<8x17xf32>
    %c115 = arith.constant 115 : index
    %511 = memref.load %arg3[%c115] : memref<512xf32, #tpu.memory_space<smem>>
    %512 = vector.broadcast %511 : f32 to vector<8x17xf32>
    %513 = arith.mulf %512, %498 : vector<8x17xf32>
    %514 = arith.addf %480, %513 : vector<8x17xf32>
    %c116 = arith.constant 116 : index
    %515 = memref.load %arg3[%c116] : memref<512xf32, #tpu.memory_space<smem>>
    %516 = vector.broadcast %515 : f32 to vector<8x17xf32>
    %517 = arith.mulf %516, %498 : vector<8x17xf32>
    %518 = arith.addf %484, %517 : vector<8x17xf32>
    %c117 = arith.constant 117 : index
    %519 = memref.load %arg3[%c117] : memref<512xf32, #tpu.memory_space<smem>>
    %520 = vector.broadcast %519 : f32 to vector<8x17xf32>
    %521 = arith.mulf %520, %498 : vector<8x17xf32>
    %522 = arith.addf %488, %521 : vector<8x17xf32>
    %c118 = arith.constant 118 : index
    %523 = memref.load %arg3[%c118] : memref<512xf32, #tpu.memory_space<smem>>
    %524 = vector.broadcast %523 : f32 to vector<8x17xf32>
    %525 = arith.mulf %524, %498 : vector<8x17xf32>
    %526 = arith.addf %492, %525 : vector<8x17xf32>
    %c119 = arith.constant 119 : index
    %527 = memref.load %arg3[%c119] : memref<512xf32, #tpu.memory_space<smem>>
    %528 = vector.broadcast %527 : f32 to vector<8x17xf32>
    %529 = arith.mulf %528, %498 : vector<8x17xf32>
    %530 = arith.addf %496, %529 : vector<8x17xf32>
    %531 = vector.extract_strided_slice %4 {offsets = [3, 0, 3], sizes = [1, 8, 17], strides = [1, 1, 1]} : vector<4x11x20xf32> to vector<1x8x17xf32>
    %532 = vector.shape_cast %531 : vector<1x8x17xf32> to vector<8x17xf32>
    %c120 = arith.constant 120 : index
    %533 = memref.load %arg3[%c120] : memref<512xf32, #tpu.memory_space<smem>>
    %534 = vector.broadcast %533 : f32 to vector<8x17xf32>
    %535 = arith.mulf %534, %532 : vector<8x17xf32>
    %536 = arith.addf %502, %535 : vector<8x17xf32>
    %c121 = arith.constant 121 : index
    %537 = memref.load %arg3[%c121] : memref<512xf32, #tpu.memory_space<smem>>
    %538 = vector.broadcast %537 : f32 to vector<8x17xf32>
    %539 = arith.mulf %538, %532 : vector<8x17xf32>
    %540 = arith.addf %506, %539 : vector<8x17xf32>
    %c122 = arith.constant 122 : index
    %541 = memref.load %arg3[%c122] : memref<512xf32, #tpu.memory_space<smem>>
    %542 = vector.broadcast %541 : f32 to vector<8x17xf32>
    %543 = arith.mulf %542, %532 : vector<8x17xf32>
    %544 = arith.addf %510, %543 : vector<8x17xf32>
    %c123 = arith.constant 123 : index
    %545 = memref.load %arg3[%c123] : memref<512xf32, #tpu.memory_space<smem>>
    %546 = vector.broadcast %545 : f32 to vector<8x17xf32>
    %547 = arith.mulf %546, %532 : vector<8x17xf32>
    %548 = arith.addf %514, %547 : vector<8x17xf32>
    %c124 = arith.constant 124 : index
    %549 = memref.load %arg3[%c124] : memref<512xf32, #tpu.memory_space<smem>>
    %550 = vector.broadcast %549 : f32 to vector<8x17xf32>
    %551 = arith.mulf %550, %532 : vector<8x17xf32>
    %552 = arith.addf %518, %551 : vector<8x17xf32>
    %c125 = arith.constant 125 : index
    %553 = memref.load %arg3[%c125] : memref<512xf32, #tpu.memory_space<smem>>
    %554 = vector.broadcast %553 : f32 to vector<8x17xf32>
    %555 = arith.mulf %554, %532 : vector<8x17xf32>
    %556 = arith.addf %522, %555 : vector<8x17xf32>
    %c126 = arith.constant 126 : index
    %557 = memref.load %arg3[%c126] : memref<512xf32, #tpu.memory_space<smem>>
    %558 = vector.broadcast %557 : f32 to vector<8x17xf32>
    %559 = arith.mulf %558, %532 : vector<8x17xf32>
    %560 = arith.addf %526, %559 : vector<8x17xf32>
    %c127 = arith.constant 127 : index
    %561 = memref.load %arg3[%c127] : memref<512xf32, #tpu.memory_space<smem>>
    %562 = vector.broadcast %561 : f32 to vector<8x17xf32>
    %563 = arith.mulf %562, %532 : vector<8x17xf32>
    %564 = arith.addf %530, %563 : vector<8x17xf32>
    %565 = vector.extract_strided_slice %4 {offsets = [0, 1, 0], sizes = [1, 8, 17], strides = [1, 1, 1]} : vector<4x11x20xf32> to vector<1x8x17xf32>
    %566 = vector.shape_cast %565 : vector<1x8x17xf32> to vector<8x17xf32>
    %c128 = arith.constant 128 : index
    %567 = memref.load %arg3[%c128] : memref<512xf32, #tpu.memory_space<smem>>
    %568 = vector.broadcast %567 : f32 to vector<8x17xf32>
    %569 = arith.mulf %568, %566 : vector<8x17xf32>
    %570 = arith.addf %536, %569 : vector<8x17xf32>
    %c129 = arith.constant 129 : index
    %571 = memref.load %arg3[%c129] : memref<512xf32, #tpu.memory_space<smem>>
    %572 = vector.broadcast %571 : f32 to vector<8x17xf32>
    %573 = arith.mulf %572, %566 : vector<8x17xf32>
    %574 = arith.addf %540, %573 : vector<8x17xf32>
    %c130 = arith.constant 130 : index
    %575 = memref.load %arg3[%c130] : memref<512xf32, #tpu.memory_space<smem>>
    %576 = vector.broadcast %575 : f32 to vector<8x17xf32>
    %577 = arith.mulf %576, %566 : vector<8x17xf32>
    %578 = arith.addf %544, %577 : vector<8x17xf32>
    %c131 = arith.constant 131 : index
    %579 = memref.load %arg3[%c131] : memref<512xf32, #tpu.memory_space<smem>>
    %580 = vector.broadcast %579 : f32 to vector<8x17xf32>
    %581 = arith.mulf %580, %566 : vector<8x17xf32>
    %582 = arith.addf %548, %581 : vector<8x17xf32>
    %c132 = arith.constant 132 : index
    %583 = memref.load %arg3[%c132] : memref<512xf32, #tpu.memory_space<smem>>
    %584 = vector.broadcast %583 : f32 to vector<8x17xf32>
    %585 = arith.mulf %584, %566 : vector<8x17xf32>
    %586 = arith.addf %552, %585 : vector<8x17xf32>
    %c133 = arith.constant 133 : index
    %587 = memref.load %arg3[%c133] : memref<512xf32, #tpu.memory_space<smem>>
    %588 = vector.broadcast %587 : f32 to vector<8x17xf32>
    %589 = arith.mulf %588, %566 : vector<8x17xf32>
    %590 = arith.addf %556, %589 : vector<8x17xf32>
    %c134 = arith.constant 134 : index
    %591 = memref.load %arg3[%c134] : memref<512xf32, #tpu.memory_space<smem>>
    %592 = vector.broadcast %591 : f32 to vector<8x17xf32>
    %593 = arith.mulf %592, %566 : vector<8x17xf32>
    %594 = arith.addf %560, %593 : vector<8x17xf32>
    %c135 = arith.constant 135 : index
    %595 = memref.load %arg3[%c135] : memref<512xf32, #tpu.memory_space<smem>>
    %596 = vector.broadcast %595 : f32 to vector<8x17xf32>
    %597 = arith.mulf %596, %566 : vector<8x17xf32>
    %598 = arith.addf %564, %597 : vector<8x17xf32>
    %599 = vector.extract_strided_slice %4 {offsets = [1, 1, 0], sizes = [1, 8, 17], strides = [1, 1, 1]} : vector<4x11x20xf32> to vector<1x8x17xf32>
    %600 = vector.shape_cast %599 : vector<1x8x17xf32> to vector<8x17xf32>
    %c136 = arith.constant 136 : index
    %601 = memref.load %arg3[%c136] : memref<512xf32, #tpu.memory_space<smem>>
    %602 = vector.broadcast %601 : f32 to vector<8x17xf32>
    %603 = arith.mulf %602, %600 : vector<8x17xf32>
    %604 = arith.addf %570, %603 : vector<8x17xf32>
    %c137 = arith.constant 137 : index
    %605 = memref.load %arg3[%c137] : memref<512xf32, #tpu.memory_space<smem>>
    %606 = vector.broadcast %605 : f32 to vector<8x17xf32>
    %607 = arith.mulf %606, %600 : vector<8x17xf32>
    %608 = arith.addf %574, %607 : vector<8x17xf32>
    %c138 = arith.constant 138 : index
    %609 = memref.load %arg3[%c138] : memref<512xf32, #tpu.memory_space<smem>>
    %610 = vector.broadcast %609 : f32 to vector<8x17xf32>
    %611 = arith.mulf %610, %600 : vector<8x17xf32>
    %612 = arith.addf %578, %611 : vector<8x17xf32>
    %c139 = arith.constant 139 : index
    %613 = memref.load %arg3[%c139] : memref<512xf32, #tpu.memory_space<smem>>
    %614 = vector.broadcast %613 : f32 to vector<8x17xf32>
    %615 = arith.mulf %614, %600 : vector<8x17xf32>
    %616 = arith.addf %582, %615 : vector<8x17xf32>
    %c140 = arith.constant 140 : index
    %617 = memref.load %arg3[%c140] : memref<512xf32, #tpu.memory_space<smem>>
    %618 = vector.broadcast %617 : f32 to vector<8x17xf32>
    %619 = arith.mulf %618, %600 : vector<8x17xf32>
    %620 = arith.addf %586, %619 : vector<8x17xf32>
    %c141 = arith.constant 141 : index
    %621 = memref.load %arg3[%c141] : memref<512xf32, #tpu.memory_space<smem>>
    %622 = vector.broadcast %621 : f32 to vector<8x17xf32>
    %623 = arith.mulf %622, %600 : vector<8x17xf32>
    %624 = arith.addf %590, %623 : vector<8x17xf32>
    %c142 = arith.constant 142 : index
    %625 = memref.load %arg3[%c142] : memref<512xf32, #tpu.memory_space<smem>>
    %626 = vector.broadcast %625 : f32 to vector<8x17xf32>
    %627 = arith.mulf %626, %600 : vector<8x17xf32>
    %628 = arith.addf %594, %627 : vector<8x17xf32>
    %c143 = arith.constant 143 : index
    %629 = memref.load %arg3[%c143] : memref<512xf32, #tpu.memory_space<smem>>
    %630 = vector.broadcast %629 : f32 to vector<8x17xf32>
    %631 = arith.mulf %630, %600 : vector<8x17xf32>
    %632 = arith.addf %598, %631 : vector<8x17xf32>
    %633 = vector.extract_strided_slice %4 {offsets = [2, 1, 0], sizes = [1, 8, 17], strides = [1, 1, 1]} : vector<4x11x20xf32> to vector<1x8x17xf32>
    %634 = vector.shape_cast %633 : vector<1x8x17xf32> to vector<8x17xf32>
    %c144 = arith.constant 144 : index
    %635 = memref.load %arg3[%c144] : memref<512xf32, #tpu.memory_space<smem>>
    %636 = vector.broadcast %635 : f32 to vector<8x17xf32>
    %637 = arith.mulf %636, %634 : vector<8x17xf32>
    %638 = arith.addf %604, %637 : vector<8x17xf32>
    %c145 = arith.constant 145 : index
    %639 = memref.load %arg3[%c145] : memref<512xf32, #tpu.memory_space<smem>>
    %640 = vector.broadcast %639 : f32 to vector<8x17xf32>
    %641 = arith.mulf %640, %634 : vector<8x17xf32>
    %642 = arith.addf %608, %641 : vector<8x17xf32>
    %c146 = arith.constant 146 : index
    %643 = memref.load %arg3[%c146] : memref<512xf32, #tpu.memory_space<smem>>
    %644 = vector.broadcast %643 : f32 to vector<8x17xf32>
    %645 = arith.mulf %644, %634 : vector<8x17xf32>
    %646 = arith.addf %612, %645 : vector<8x17xf32>
    %c147 = arith.constant 147 : index
    %647 = memref.load %arg3[%c147] : memref<512xf32, #tpu.memory_space<smem>>
    %648 = vector.broadcast %647 : f32 to vector<8x17xf32>
    %649 = arith.mulf %648, %634 : vector<8x17xf32>
    %650 = arith.addf %616, %649 : vector<8x17xf32>
    %c148 = arith.constant 148 : index
    %651 = memref.load %arg3[%c148] : memref<512xf32, #tpu.memory_space<smem>>
    %652 = vector.broadcast %651 : f32 to vector<8x17xf32>
    %653 = arith.mulf %652, %634 : vector<8x17xf32>
    %654 = arith.addf %620, %653 : vector<8x17xf32>
    %c149 = arith.constant 149 : index
    %655 = memref.load %arg3[%c149] : memref<512xf32, #tpu.memory_space<smem>>
    %656 = vector.broadcast %655 : f32 to vector<8x17xf32>
    %657 = arith.mulf %656, %634 : vector<8x17xf32>
    %658 = arith.addf %624, %657 : vector<8x17xf32>
    %c150 = arith.constant 150 : index
    %659 = memref.load %arg3[%c150] : memref<512xf32, #tpu.memory_space<smem>>
    %660 = vector.broadcast %659 : f32 to vector<8x17xf32>
    %661 = arith.mulf %660, %634 : vector<8x17xf32>
    %662 = arith.addf %628, %661 : vector<8x17xf32>
    %c151 = arith.constant 151 : index
    %663 = memref.load %arg3[%c151] : memref<512xf32, #tpu.memory_space<smem>>
    %664 = vector.broadcast %663 : f32 to vector<8x17xf32>
    %665 = arith.mulf %664, %634 : vector<8x17xf32>
    %666 = arith.addf %632, %665 : vector<8x17xf32>
    %667 = vector.extract_strided_slice %4 {offsets = [3, 1, 0], sizes = [1, 8, 17], strides = [1, 1, 1]} : vector<4x11x20xf32> to vector<1x8x17xf32>
    %668 = vector.shape_cast %667 : vector<1x8x17xf32> to vector<8x17xf32>
    %c152 = arith.constant 152 : index
    %669 = memref.load %arg3[%c152] : memref<512xf32, #tpu.memory_space<smem>>
    %670 = vector.broadcast %669 : f32 to vector<8x17xf32>
    %671 = arith.mulf %670, %668 : vector<8x17xf32>
    %672 = arith.addf %638, %671 : vector<8x17xf32>
    %c153 = arith.constant 153 : index
    %673 = memref.load %arg3[%c153] : memref<512xf32, #tpu.memory_space<smem>>
    %674 = vector.broadcast %673 : f32 to vector<8x17xf32>
    %675 = arith.mulf %674, %668 : vector<8x17xf32>
    %676 = arith.addf %642, %675 : vector<8x17xf32>
    %c154 = arith.constant 154 : index
    %677 = memref.load %arg3[%c154] : memref<512xf32, #tpu.memory_space<smem>>
    %678 = vector.broadcast %677 : f32 to vector<8x17xf32>
    %679 = arith.mulf %678, %668 : vector<8x17xf32>
    %680 = arith.addf %646, %679 : vector<8x17xf32>
    %c155 = arith.constant 155 : index
    %681 = memref.load %arg3[%c155] : memref<512xf32, #tpu.memory_space<smem>>
    %682 = vector.broadcast %681 : f32 to vector<8x17xf32>
    %683 = arith.mulf %682, %668 : vector<8x17xf32>
    %684 = arith.addf %650, %683 : vector<8x17xf32>
    %c156 = arith.constant 156 : index
    %685 = memref.load %arg3[%c156] : memref<512xf32, #tpu.memory_space<smem>>
    %686 = vector.broadcast %685 : f32 to vector<8x17xf32>
    %687 = arith.mulf %686, %668 : vector<8x17xf32>
    %688 = arith.addf %654, %687 : vector<8x17xf32>
    %c157 = arith.constant 157 : index
    %689 = memref.load %arg3[%c157] : memref<512xf32, #tpu.memory_space<smem>>
    %690 = vector.broadcast %689 : f32 to vector<8x17xf32>
    %691 = arith.mulf %690, %668 : vector<8x17xf32>
    %692 = arith.addf %658, %691 : vector<8x17xf32>
    %c158 = arith.constant 158 : index
    %693 = memref.load %arg3[%c158] : memref<512xf32, #tpu.memory_space<smem>>
    %694 = vector.broadcast %693 : f32 to vector<8x17xf32>
    %695 = arith.mulf %694, %668 : vector<8x17xf32>
    %696 = arith.addf %662, %695 : vector<8x17xf32>
    %c159 = arith.constant 159 : index
    %697 = memref.load %arg3[%c159] : memref<512xf32, #tpu.memory_space<smem>>
    %698 = vector.broadcast %697 : f32 to vector<8x17xf32>
    %699 = arith.mulf %698, %668 : vector<8x17xf32>
    %700 = arith.addf %666, %699 : vector<8x17xf32>
    %701 = vector.extract_strided_slice %4 {offsets = [0, 1, 1], sizes = [1, 8, 17], strides = [1, 1, 1]} : vector<4x11x20xf32> to vector<1x8x17xf32>
    %702 = vector.shape_cast %701 : vector<1x8x17xf32> to vector<8x17xf32>
    %c160 = arith.constant 160 : index
    %703 = memref.load %arg3[%c160] : memref<512xf32, #tpu.memory_space<smem>>
    %704 = vector.broadcast %703 : f32 to vector<8x17xf32>
    %705 = arith.mulf %704, %702 : vector<8x17xf32>
    %706 = arith.addf %672, %705 : vector<8x17xf32>
    %c161 = arith.constant 161 : index
    %707 = memref.load %arg3[%c161] : memref<512xf32, #tpu.memory_space<smem>>
    %708 = vector.broadcast %707 : f32 to vector<8x17xf32>
    %709 = arith.mulf %708, %702 : vector<8x17xf32>
    %710 = arith.addf %676, %709 : vector<8x17xf32>
    %c162 = arith.constant 162 : index
    %711 = memref.load %arg3[%c162] : memref<512xf32, #tpu.memory_space<smem>>
    %712 = vector.broadcast %711 : f32 to vector<8x17xf32>
    %713 = arith.mulf %712, %702 : vector<8x17xf32>
    %714 = arith.addf %680, %713 : vector<8x17xf32>
    %c163 = arith.constant 163 : index
    %715 = memref.load %arg3[%c163] : memref<512xf32, #tpu.memory_space<smem>>
    %716 = vector.broadcast %715 : f32 to vector<8x17xf32>
    %717 = arith.mulf %716, %702 : vector<8x17xf32>
    %718 = arith.addf %684, %717 : vector<8x17xf32>
    %c164 = arith.constant 164 : index
    %719 = memref.load %arg3[%c164] : memref<512xf32, #tpu.memory_space<smem>>
    %720 = vector.broadcast %719 : f32 to vector<8x17xf32>
    %721 = arith.mulf %720, %702 : vector<8x17xf32>
    %722 = arith.addf %688, %721 : vector<8x17xf32>
    %c165 = arith.constant 165 : index
    %723 = memref.load %arg3[%c165] : memref<512xf32, #tpu.memory_space<smem>>
    %724 = vector.broadcast %723 : f32 to vector<8x17xf32>
    %725 = arith.mulf %724, %702 : vector<8x17xf32>
    %726 = arith.addf %692, %725 : vector<8x17xf32>
    %c166 = arith.constant 166 : index
    %727 = memref.load %arg3[%c166] : memref<512xf32, #tpu.memory_space<smem>>
    %728 = vector.broadcast %727 : f32 to vector<8x17xf32>
    %729 = arith.mulf %728, %702 : vector<8x17xf32>
    %730 = arith.addf %696, %729 : vector<8x17xf32>
    %c167 = arith.constant 167 : index
    %731 = memref.load %arg3[%c167] : memref<512xf32, #tpu.memory_space<smem>>
    %732 = vector.broadcast %731 : f32 to vector<8x17xf32>
    %733 = arith.mulf %732, %702 : vector<8x17xf32>
    %734 = arith.addf %700, %733 : vector<8x17xf32>
    %735 = vector.extract_strided_slice %4 {offsets = [1, 1, 1], sizes = [1, 8, 17], strides = [1, 1, 1]} : vector<4x11x20xf32> to vector<1x8x17xf32>
    %736 = vector.shape_cast %735 : vector<1x8x17xf32> to vector<8x17xf32>
    %c168 = arith.constant 168 : index
    %737 = memref.load %arg3[%c168] : memref<512xf32, #tpu.memory_space<smem>>
    %738 = vector.broadcast %737 : f32 to vector<8x17xf32>
    %739 = arith.mulf %738, %736 : vector<8x17xf32>
    %740 = arith.addf %706, %739 : vector<8x17xf32>
    %c169 = arith.constant 169 : index
    %741 = memref.load %arg3[%c169] : memref<512xf32, #tpu.memory_space<smem>>
    %742 = vector.broadcast %741 : f32 to vector<8x17xf32>
    %743 = arith.mulf %742, %736 : vector<8x17xf32>
    %744 = arith.addf %710, %743 : vector<8x17xf32>
    %c170 = arith.constant 170 : index
    %745 = memref.load %arg3[%c170] : memref<512xf32, #tpu.memory_space<smem>>
    %746 = vector.broadcast %745 : f32 to vector<8x17xf32>
    %747 = arith.mulf %746, %736 : vector<8x17xf32>
    %748 = arith.addf %714, %747 : vector<8x17xf32>
    %c171 = arith.constant 171 : index
    %749 = memref.load %arg3[%c171] : memref<512xf32, #tpu.memory_space<smem>>
    %750 = vector.broadcast %749 : f32 to vector<8x17xf32>
    %751 = arith.mulf %750, %736 : vector<8x17xf32>
    %752 = arith.addf %718, %751 : vector<8x17xf32>
    %c172 = arith.constant 172 : index
    %753 = memref.load %arg3[%c172] : memref<512xf32, #tpu.memory_space<smem>>
    %754 = vector.broadcast %753 : f32 to vector<8x17xf32>
    %755 = arith.mulf %754, %736 : vector<8x17xf32>
    %756 = arith.addf %722, %755 : vector<8x17xf32>
    %c173 = arith.constant 173 : index
    %757 = memref.load %arg3[%c173] : memref<512xf32, #tpu.memory_space<smem>>
    %758 = vector.broadcast %757 : f32 to vector<8x17xf32>
    %759 = arith.mulf %758, %736 : vector<8x17xf32>
    %760 = arith.addf %726, %759 : vector<8x17xf32>
    %c174 = arith.constant 174 : index
    %761 = memref.load %arg3[%c174] : memref<512xf32, #tpu.memory_space<smem>>
    %762 = vector.broadcast %761 : f32 to vector<8x17xf32>
    %763 = arith.mulf %762, %736 : vector<8x17xf32>
    %764 = arith.addf %730, %763 : vector<8x17xf32>
    %c175 = arith.constant 175 : index
    %765 = memref.load %arg3[%c175] : memref<512xf32, #tpu.memory_space<smem>>
    %766 = vector.broadcast %765 : f32 to vector<8x17xf32>
    %767 = arith.mulf %766, %736 : vector<8x17xf32>
    %768 = arith.addf %734, %767 : vector<8x17xf32>
    %769 = vector.extract_strided_slice %4 {offsets = [2, 1, 1], sizes = [1, 8, 17], strides = [1, 1, 1]} : vector<4x11x20xf32> to vector<1x8x17xf32>
    %770 = vector.shape_cast %769 : vector<1x8x17xf32> to vector<8x17xf32>
    %c176 = arith.constant 176 : index
    %771 = memref.load %arg3[%c176] : memref<512xf32, #tpu.memory_space<smem>>
    %772 = vector.broadcast %771 : f32 to vector<8x17xf32>
    %773 = arith.mulf %772, %770 : vector<8x17xf32>
    %774 = arith.addf %740, %773 : vector<8x17xf32>
    %c177 = arith.constant 177 : index
    %775 = memref.load %arg3[%c177] : memref<512xf32, #tpu.memory_space<smem>>
    %776 = vector.broadcast %775 : f32 to vector<8x17xf32>
    %777 = arith.mulf %776, %770 : vector<8x17xf32>
    %778 = arith.addf %744, %777 : vector<8x17xf32>
    %c178 = arith.constant 178 : index
    %779 = memref.load %arg3[%c178] : memref<512xf32, #tpu.memory_space<smem>>
    %780 = vector.broadcast %779 : f32 to vector<8x17xf32>
    %781 = arith.mulf %780, %770 : vector<8x17xf32>
    %782 = arith.addf %748, %781 : vector<8x17xf32>
    %c179 = arith.constant 179 : index
    %783 = memref.load %arg3[%c179] : memref<512xf32, #tpu.memory_space<smem>>
    %784 = vector.broadcast %783 : f32 to vector<8x17xf32>
    %785 = arith.mulf %784, %770 : vector<8x17xf32>
    %786 = arith.addf %752, %785 : vector<8x17xf32>
    %c180 = arith.constant 180 : index
    %787 = memref.load %arg3[%c180] : memref<512xf32, #tpu.memory_space<smem>>
    %788 = vector.broadcast %787 : f32 to vector<8x17xf32>
    %789 = arith.mulf %788, %770 : vector<8x17xf32>
    %790 = arith.addf %756, %789 : vector<8x17xf32>
    %c181 = arith.constant 181 : index
    %791 = memref.load %arg3[%c181] : memref<512xf32, #tpu.memory_space<smem>>
    %792 = vector.broadcast %791 : f32 to vector<8x17xf32>
    %793 = arith.mulf %792, %770 : vector<8x17xf32>
    %794 = arith.addf %760, %793 : vector<8x17xf32>
    %c182 = arith.constant 182 : index
    %795 = memref.load %arg3[%c182] : memref<512xf32, #tpu.memory_space<smem>>
    %796 = vector.broadcast %795 : f32 to vector<8x17xf32>
    %797 = arith.mulf %796, %770 : vector<8x17xf32>
    %798 = arith.addf %764, %797 : vector<8x17xf32>
    %c183 = arith.constant 183 : index
    %799 = memref.load %arg3[%c183] : memref<512xf32, #tpu.memory_space<smem>>
    %800 = vector.broadcast %799 : f32 to vector<8x17xf32>
    %801 = arith.mulf %800, %770 : vector<8x17xf32>
    %802 = arith.addf %768, %801 : vector<8x17xf32>
    %803 = vector.extract_strided_slice %4 {offsets = [3, 1, 1], sizes = [1, 8, 17], strides = [1, 1, 1]} : vector<4x11x20xf32> to vector<1x8x17xf32>
    %804 = vector.shape_cast %803 : vector<1x8x17xf32> to vector<8x17xf32>
    %c184 = arith.constant 184 : index
    %805 = memref.load %arg3[%c184] : memref<512xf32, #tpu.memory_space<smem>>
    %806 = vector.broadcast %805 : f32 to vector<8x17xf32>
    %807 = arith.mulf %806, %804 : vector<8x17xf32>
    %808 = arith.addf %774, %807 : vector<8x17xf32>
    %c185 = arith.constant 185 : index
    %809 = memref.load %arg3[%c185] : memref<512xf32, #tpu.memory_space<smem>>
    %810 = vector.broadcast %809 : f32 to vector<8x17xf32>
    %811 = arith.mulf %810, %804 : vector<8x17xf32>
    %812 = arith.addf %778, %811 : vector<8x17xf32>
    %c186 = arith.constant 186 : index
    %813 = memref.load %arg3[%c186] : memref<512xf32, #tpu.memory_space<smem>>
    %814 = vector.broadcast %813 : f32 to vector<8x17xf32>
    %815 = arith.mulf %814, %804 : vector<8x17xf32>
    %816 = arith.addf %782, %815 : vector<8x17xf32>
    %c187 = arith.constant 187 : index
    %817 = memref.load %arg3[%c187] : memref<512xf32, #tpu.memory_space<smem>>
    %818 = vector.broadcast %817 : f32 to vector<8x17xf32>
    %819 = arith.mulf %818, %804 : vector<8x17xf32>
    %820 = arith.addf %786, %819 : vector<8x17xf32>
    %c188 = arith.constant 188 : index
    %821 = memref.load %arg3[%c188] : memref<512xf32, #tpu.memory_space<smem>>
    %822 = vector.broadcast %821 : f32 to vector<8x17xf32>
    %823 = arith.mulf %822, %804 : vector<8x17xf32>
    %824 = arith.addf %790, %823 : vector<8x17xf32>
    %c189 = arith.constant 189 : index
    %825 = memref.load %arg3[%c189] : memref<512xf32, #tpu.memory_space<smem>>
    %826 = vector.broadcast %825 : f32 to vector<8x17xf32>
    %827 = arith.mulf %826, %804 : vector<8x17xf32>
    %828 = arith.addf %794, %827 : vector<8x17xf32>
    %c190 = arith.constant 190 : index
    %829 = memref.load %arg3[%c190] : memref<512xf32, #tpu.memory_space<smem>>
    %830 = vector.broadcast %829 : f32 to vector<8x17xf32>
    %831 = arith.mulf %830, %804 : vector<8x17xf32>
    %832 = arith.addf %798, %831 : vector<8x17xf32>
    %c191 = arith.constant 191 : index
    %833 = memref.load %arg3[%c191] : memref<512xf32, #tpu.memory_space<smem>>
    %834 = vector.broadcast %833 : f32 to vector<8x17xf32>
    %835 = arith.mulf %834, %804 : vector<8x17xf32>
    %836 = arith.addf %802, %835 : vector<8x17xf32>
    %837 = vector.extract_strided_slice %4 {offsets = [0, 1, 2], sizes = [1, 8, 17], strides = [1, 1, 1]} : vector<4x11x20xf32> to vector<1x8x17xf32>
    %838 = vector.shape_cast %837 : vector<1x8x17xf32> to vector<8x17xf32>
    %c192 = arith.constant 192 : index
    %839 = memref.load %arg3[%c192] : memref<512xf32, #tpu.memory_space<smem>>
    %840 = vector.broadcast %839 : f32 to vector<8x17xf32>
    %841 = arith.mulf %840, %838 : vector<8x17xf32>
    %842 = arith.addf %808, %841 : vector<8x17xf32>
    %c193 = arith.constant 193 : index
    %843 = memref.load %arg3[%c193] : memref<512xf32, #tpu.memory_space<smem>>
    %844 = vector.broadcast %843 : f32 to vector<8x17xf32>
    %845 = arith.mulf %844, %838 : vector<8x17xf32>
    %846 = arith.addf %812, %845 : vector<8x17xf32>
    %c194 = arith.constant 194 : index
    %847 = memref.load %arg3[%c194] : memref<512xf32, #tpu.memory_space<smem>>
    %848 = vector.broadcast %847 : f32 to vector<8x17xf32>
    %849 = arith.mulf %848, %838 : vector<8x17xf32>
    %850 = arith.addf %816, %849 : vector<8x17xf32>
    %c195 = arith.constant 195 : index
    %851 = memref.load %arg3[%c195] : memref<512xf32, #tpu.memory_space<smem>>
    %852 = vector.broadcast %851 : f32 to vector<8x17xf32>
    %853 = arith.mulf %852, %838 : vector<8x17xf32>
    %854 = arith.addf %820, %853 : vector<8x17xf32>
    %c196 = arith.constant 196 : index
    %855 = memref.load %arg3[%c196] : memref<512xf32, #tpu.memory_space<smem>>
    %856 = vector.broadcast %855 : f32 to vector<8x17xf32>
    %857 = arith.mulf %856, %838 : vector<8x17xf32>
    %858 = arith.addf %824, %857 : vector<8x17xf32>
    %c197 = arith.constant 197 : index
    %859 = memref.load %arg3[%c197] : memref<512xf32, #tpu.memory_space<smem>>
    %860 = vector.broadcast %859 : f32 to vector<8x17xf32>
    %861 = arith.mulf %860, %838 : vector<8x17xf32>
    %862 = arith.addf %828, %861 : vector<8x17xf32>
    %c198 = arith.constant 198 : index
    %863 = memref.load %arg3[%c198] : memref<512xf32, #tpu.memory_space<smem>>
    %864 = vector.broadcast %863 : f32 to vector<8x17xf32>
    %865 = arith.mulf %864, %838 : vector<8x17xf32>
    %866 = arith.addf %832, %865 : vector<8x17xf32>
    %c199 = arith.constant 199 : index
    %867 = memref.load %arg3[%c199] : memref<512xf32, #tpu.memory_space<smem>>
    %868 = vector.broadcast %867 : f32 to vector<8x17xf32>
    %869 = arith.mulf %868, %838 : vector<8x17xf32>
    %870 = arith.addf %836, %869 : vector<8x17xf32>
    %871 = vector.extract_strided_slice %4 {offsets = [1, 1, 2], sizes = [1, 8, 17], strides = [1, 1, 1]} : vector<4x11x20xf32> to vector<1x8x17xf32>
    %872 = vector.shape_cast %871 : vector<1x8x17xf32> to vector<8x17xf32>
    %c200 = arith.constant 200 : index
    %873 = memref.load %arg3[%c200] : memref<512xf32, #tpu.memory_space<smem>>
    %874 = vector.broadcast %873 : f32 to vector<8x17xf32>
    %875 = arith.mulf %874, %872 : vector<8x17xf32>
    %876 = arith.addf %842, %875 : vector<8x17xf32>
    %c201 = arith.constant 201 : index
    %877 = memref.load %arg3[%c201] : memref<512xf32, #tpu.memory_space<smem>>
    %878 = vector.broadcast %877 : f32 to vector<8x17xf32>
    %879 = arith.mulf %878, %872 : vector<8x17xf32>
    %880 = arith.addf %846, %879 : vector<8x17xf32>
    %c202 = arith.constant 202 : index
    %881 = memref.load %arg3[%c202] : memref<512xf32, #tpu.memory_space<smem>>
    %882 = vector.broadcast %881 : f32 to vector<8x17xf32>
    %883 = arith.mulf %882, %872 : vector<8x17xf32>
    %884 = arith.addf %850, %883 : vector<8x17xf32>
    %c203 = arith.constant 203 : index
    %885 = memref.load %arg3[%c203] : memref<512xf32, #tpu.memory_space<smem>>
    %886 = vector.broadcast %885 : f32 to vector<8x17xf32>
    %887 = arith.mulf %886, %872 : vector<8x17xf32>
    %888 = arith.addf %854, %887 : vector<8x17xf32>
    %c204 = arith.constant 204 : index
    %889 = memref.load %arg3[%c204] : memref<512xf32, #tpu.memory_space<smem>>
    %890 = vector.broadcast %889 : f32 to vector<8x17xf32>
    %891 = arith.mulf %890, %872 : vector<8x17xf32>
    %892 = arith.addf %858, %891 : vector<8x17xf32>
    %c205 = arith.constant 205 : index
    %893 = memref.load %arg3[%c205] : memref<512xf32, #tpu.memory_space<smem>>
    %894 = vector.broadcast %893 : f32 to vector<8x17xf32>
    %895 = arith.mulf %894, %872 : vector<8x17xf32>
    %896 = arith.addf %862, %895 : vector<8x17xf32>
    %c206 = arith.constant 206 : index
    %897 = memref.load %arg3[%c206] : memref<512xf32, #tpu.memory_space<smem>>
    %898 = vector.broadcast %897 : f32 to vector<8x17xf32>
    %899 = arith.mulf %898, %872 : vector<8x17xf32>
    %900 = arith.addf %866, %899 : vector<8x17xf32>
    %c207 = arith.constant 207 : index
    %901 = memref.load %arg3[%c207] : memref<512xf32, #tpu.memory_space<smem>>
    %902 = vector.broadcast %901 : f32 to vector<8x17xf32>
    %903 = arith.mulf %902, %872 : vector<8x17xf32>
    %904 = arith.addf %870, %903 : vector<8x17xf32>
    %905 = vector.extract_strided_slice %4 {offsets = [2, 1, 2], sizes = [1, 8, 17], strides = [1, 1, 1]} : vector<4x11x20xf32> to vector<1x8x17xf32>
    %906 = vector.shape_cast %905 : vector<1x8x17xf32> to vector<8x17xf32>
    %c208 = arith.constant 208 : index
    %907 = memref.load %arg3[%c208] : memref<512xf32, #tpu.memory_space<smem>>
    %908 = vector.broadcast %907 : f32 to vector<8x17xf32>
    %909 = arith.mulf %908, %906 : vector<8x17xf32>
    %910 = arith.addf %876, %909 : vector<8x17xf32>
    %c209 = arith.constant 209 : index
    %911 = memref.load %arg3[%c209] : memref<512xf32, #tpu.memory_space<smem>>
    %912 = vector.broadcast %911 : f32 to vector<8x17xf32>
    %913 = arith.mulf %912, %906 : vector<8x17xf32>
    %914 = arith.addf %880, %913 : vector<8x17xf32>
    %c210 = arith.constant 210 : index
    %915 = memref.load %arg3[%c210] : memref<512xf32, #tpu.memory_space<smem>>
    %916 = vector.broadcast %915 : f32 to vector<8x17xf32>
    %917 = arith.mulf %916, %906 : vector<8x17xf32>
    %918 = arith.addf %884, %917 : vector<8x17xf32>
    %c211 = arith.constant 211 : index
    %919 = memref.load %arg3[%c211] : memref<512xf32, #tpu.memory_space<smem>>
    %920 = vector.broadcast %919 : f32 to vector<8x17xf32>
    %921 = arith.mulf %920, %906 : vector<8x17xf32>
    %922 = arith.addf %888, %921 : vector<8x17xf32>
    %c212 = arith.constant 212 : index
    %923 = memref.load %arg3[%c212] : memref<512xf32, #tpu.memory_space<smem>>
    %924 = vector.broadcast %923 : f32 to vector<8x17xf32>
    %925 = arith.mulf %924, %906 : vector<8x17xf32>
    %926 = arith.addf %892, %925 : vector<8x17xf32>
    %c213 = arith.constant 213 : index
    %927 = memref.load %arg3[%c213] : memref<512xf32, #tpu.memory_space<smem>>
    %928 = vector.broadcast %927 : f32 to vector<8x17xf32>
    %929 = arith.mulf %928, %906 : vector<8x17xf32>
    %930 = arith.addf %896, %929 : vector<8x17xf32>
    %c214 = arith.constant 214 : index
    %931 = memref.load %arg3[%c214] : memref<512xf32, #tpu.memory_space<smem>>
    %932 = vector.broadcast %931 : f32 to vector<8x17xf32>
    %933 = arith.mulf %932, %906 : vector<8x17xf32>
    %934 = arith.addf %900, %933 : vector<8x17xf32>
    %c215 = arith.constant 215 : index
    %935 = memref.load %arg3[%c215] : memref<512xf32, #tpu.memory_space<smem>>
    %936 = vector.broadcast %935 : f32 to vector<8x17xf32>
    %937 = arith.mulf %936, %906 : vector<8x17xf32>
    %938 = arith.addf %904, %937 : vector<8x17xf32>
    %939 = vector.extract_strided_slice %4 {offsets = [3, 1, 2], sizes = [1, 8, 17], strides = [1, 1, 1]} : vector<4x11x20xf32> to vector<1x8x17xf32>
    %940 = vector.shape_cast %939 : vector<1x8x17xf32> to vector<8x17xf32>
    %c216 = arith.constant 216 : index
    %941 = memref.load %arg3[%c216] : memref<512xf32, #tpu.memory_space<smem>>
    %942 = vector.broadcast %941 : f32 to vector<8x17xf32>
    %943 = arith.mulf %942, %940 : vector<8x17xf32>
    %944 = arith.addf %910, %943 : vector<8x17xf32>
    %c217 = arith.constant 217 : index
    %945 = memref.load %arg3[%c217] : memref<512xf32, #tpu.memory_space<smem>>
    %946 = vector.broadcast %945 : f32 to vector<8x17xf32>
    %947 = arith.mulf %946, %940 : vector<8x17xf32>
    %948 = arith.addf %914, %947 : vector<8x17xf32>
    %c218 = arith.constant 218 : index
    %949 = memref.load %arg3[%c218] : memref<512xf32, #tpu.memory_space<smem>>
    %950 = vector.broadcast %949 : f32 to vector<8x17xf32>
    %951 = arith.mulf %950, %940 : vector<8x17xf32>
    %952 = arith.addf %918, %951 : vector<8x17xf32>
    %c219 = arith.constant 219 : index
    %953 = memref.load %arg3[%c219] : memref<512xf32, #tpu.memory_space<smem>>
    %954 = vector.broadcast %953 : f32 to vector<8x17xf32>
    %955 = arith.mulf %954, %940 : vector<8x17xf32>
    %956 = arith.addf %922, %955 : vector<8x17xf32>
    %c220 = arith.constant 220 : index
    %957 = memref.load %arg3[%c220] : memref<512xf32, #tpu.memory_space<smem>>
    %958 = vector.broadcast %957 : f32 to vector<8x17xf32>
    %959 = arith.mulf %958, %940 : vector<8x17xf32>
    %960 = arith.addf %926, %959 : vector<8x17xf32>
    %c221 = arith.constant 221 : index
    %961 = memref.load %arg3[%c221] : memref<512xf32, #tpu.memory_space<smem>>
    %962 = vector.broadcast %961 : f32 to vector<8x17xf32>
    %963 = arith.mulf %962, %940 : vector<8x17xf32>
    %964 = arith.addf %930, %963 : vector<8x17xf32>
    %c222 = arith.constant 222 : index
    %965 = memref.load %arg3[%c222] : memref<512xf32, #tpu.memory_space<smem>>
    %966 = vector.broadcast %965 : f32 to vector<8x17xf32>
    %967 = arith.mulf %966, %940 : vector<8x17xf32>
    %968 = arith.addf %934, %967 : vector<8x17xf32>
    %c223 = arith.constant 223 : index
    %969 = memref.load %arg3[%c223] : memref<512xf32, #tpu.memory_space<smem>>
    %970 = vector.broadcast %969 : f32 to vector<8x17xf32>
    %971 = arith.mulf %970, %940 : vector<8x17xf32>
    %972 = arith.addf %938, %971 : vector<8x17xf32>
    %973 = vector.extract_strided_slice %4 {offsets = [0, 1, 3], sizes = [1, 8, 17], strides = [1, 1, 1]} : vector<4x11x20xf32> to vector<1x8x17xf32>
    %974 = vector.shape_cast %973 : vector<1x8x17xf32> to vector<8x17xf32>
    %c224 = arith.constant 224 : index
    %975 = memref.load %arg3[%c224] : memref<512xf32, #tpu.memory_space<smem>>
    %976 = vector.broadcast %975 : f32 to vector<8x17xf32>
    %977 = arith.mulf %976, %974 : vector<8x17xf32>
    %978 = arith.addf %944, %977 : vector<8x17xf32>
    %c225 = arith.constant 225 : index
    %979 = memref.load %arg3[%c225] : memref<512xf32, #tpu.memory_space<smem>>
    %980 = vector.broadcast %979 : f32 to vector<8x17xf32>
    %981 = arith.mulf %980, %974 : vector<8x17xf32>
    %982 = arith.addf %948, %981 : vector<8x17xf32>
    %c226 = arith.constant 226 : index
    %983 = memref.load %arg3[%c226] : memref<512xf32, #tpu.memory_space<smem>>
    %984 = vector.broadcast %983 : f32 to vector<8x17xf32>
    %985 = arith.mulf %984, %974 : vector<8x17xf32>
    %986 = arith.addf %952, %985 : vector<8x17xf32>
    %c227 = arith.constant 227 : index
    %987 = memref.load %arg3[%c227] : memref<512xf32, #tpu.memory_space<smem>>
    %988 = vector.broadcast %987 : f32 to vector<8x17xf32>
    %989 = arith.mulf %988, %974 : vector<8x17xf32>
    %990 = arith.addf %956, %989 : vector<8x17xf32>
    %c228 = arith.constant 228 : index
    %991 = memref.load %arg3[%c228] : memref<512xf32, #tpu.memory_space<smem>>
    %992 = vector.broadcast %991 : f32 to vector<8x17xf32>
    %993 = arith.mulf %992, %974 : vector<8x17xf32>
    %994 = arith.addf %960, %993 : vector<8x17xf32>
    %c229 = arith.constant 229 : index
    %995 = memref.load %arg3[%c229] : memref<512xf32, #tpu.memory_space<smem>>
    %996 = vector.broadcast %995 : f32 to vector<8x17xf32>
    %997 = arith.mulf %996, %974 : vector<8x17xf32>
    %998 = arith.addf %964, %997 : vector<8x17xf32>
    %c230 = arith.constant 230 : index
    %999 = memref.load %arg3[%c230] : memref<512xf32, #tpu.memory_space<smem>>
    %1000 = vector.broadcast %999 : f32 to vector<8x17xf32>
    %1001 = arith.mulf %1000, %974 : vector<8x17xf32>
    %1002 = arith.addf %968, %1001 : vector<8x17xf32>
    %c231 = arith.constant 231 : index
    %1003 = memref.load %arg3[%c231] : memref<512xf32, #tpu.memory_space<smem>>
    %1004 = vector.broadcast %1003 : f32 to vector<8x17xf32>
    %1005 = arith.mulf %1004, %974 : vector<8x17xf32>
    %1006 = arith.addf %972, %1005 : vector<8x17xf32>
    %1007 = vector.extract_strided_slice %4 {offsets = [1, 1, 3], sizes = [1, 8, 17], strides = [1, 1, 1]} : vector<4x11x20xf32> to vector<1x8x17xf32>
    %1008 = vector.shape_cast %1007 : vector<1x8x17xf32> to vector<8x17xf32>
    %c232 = arith.constant 232 : index
    %1009 = memref.load %arg3[%c232] : memref<512xf32, #tpu.memory_space<smem>>
    %1010 = vector.broadcast %1009 : f32 to vector<8x17xf32>
    %1011 = arith.mulf %1010, %1008 : vector<8x17xf32>
    %1012 = arith.addf %978, %1011 : vector<8x17xf32>
    %c233 = arith.constant 233 : index
    %1013 = memref.load %arg3[%c233] : memref<512xf32, #tpu.memory_space<smem>>
    %1014 = vector.broadcast %1013 : f32 to vector<8x17xf32>
    %1015 = arith.mulf %1014, %1008 : vector<8x17xf32>
    %1016 = arith.addf %982, %1015 : vector<8x17xf32>
    %c234 = arith.constant 234 : index
    %1017 = memref.load %arg3[%c234] : memref<512xf32, #tpu.memory_space<smem>>
    %1018 = vector.broadcast %1017 : f32 to vector<8x17xf32>
    %1019 = arith.mulf %1018, %1008 : vector<8x17xf32>
    %1020 = arith.addf %986, %1019 : vector<8x17xf32>
    %c235 = arith.constant 235 : index
    %1021 = memref.load %arg3[%c235] : memref<512xf32, #tpu.memory_space<smem>>
    %1022 = vector.broadcast %1021 : f32 to vector<8x17xf32>
    %1023 = arith.mulf %1022, %1008 : vector<8x17xf32>
    %1024 = arith.addf %990, %1023 : vector<8x17xf32>
    %c236 = arith.constant 236 : index
    %1025 = memref.load %arg3[%c236] : memref<512xf32, #tpu.memory_space<smem>>
    %1026 = vector.broadcast %1025 : f32 to vector<8x17xf32>
    %1027 = arith.mulf %1026, %1008 : vector<8x17xf32>
    %1028 = arith.addf %994, %1027 : vector<8x17xf32>
    %c237 = arith.constant 237 : index
    %1029 = memref.load %arg3[%c237] : memref<512xf32, #tpu.memory_space<smem>>
    %1030 = vector.broadcast %1029 : f32 to vector<8x17xf32>
    %1031 = arith.mulf %1030, %1008 : vector<8x17xf32>
    %1032 = arith.addf %998, %1031 : vector<8x17xf32>
    %c238 = arith.constant 238 : index
    %1033 = memref.load %arg3[%c238] : memref<512xf32, #tpu.memory_space<smem>>
    %1034 = vector.broadcast %1033 : f32 to vector<8x17xf32>
    %1035 = arith.mulf %1034, %1008 : vector<8x17xf32>
    %1036 = arith.addf %1002, %1035 : vector<8x17xf32>
    %c239 = arith.constant 239 : index
    %1037 = memref.load %arg3[%c239] : memref<512xf32, #tpu.memory_space<smem>>
    %1038 = vector.broadcast %1037 : f32 to vector<8x17xf32>
    %1039 = arith.mulf %1038, %1008 : vector<8x17xf32>
    %1040 = arith.addf %1006, %1039 : vector<8x17xf32>
    %1041 = vector.extract_strided_slice %4 {offsets = [2, 1, 3], sizes = [1, 8, 17], strides = [1, 1, 1]} : vector<4x11x20xf32> to vector<1x8x17xf32>
    %1042 = vector.shape_cast %1041 : vector<1x8x17xf32> to vector<8x17xf32>
    %c240 = arith.constant 240 : index
    %1043 = memref.load %arg3[%c240] : memref<512xf32, #tpu.memory_space<smem>>
    %1044 = vector.broadcast %1043 : f32 to vector<8x17xf32>
    %1045 = arith.mulf %1044, %1042 : vector<8x17xf32>
    %1046 = arith.addf %1012, %1045 : vector<8x17xf32>
    %c241 = arith.constant 241 : index
    %1047 = memref.load %arg3[%c241] : memref<512xf32, #tpu.memory_space<smem>>
    %1048 = vector.broadcast %1047 : f32 to vector<8x17xf32>
    %1049 = arith.mulf %1048, %1042 : vector<8x17xf32>
    %1050 = arith.addf %1016, %1049 : vector<8x17xf32>
    %c242 = arith.constant 242 : index
    %1051 = memref.load %arg3[%c242] : memref<512xf32, #tpu.memory_space<smem>>
    %1052 = vector.broadcast %1051 : f32 to vector<8x17xf32>
    %1053 = arith.mulf %1052, %1042 : vector<8x17xf32>
    %1054 = arith.addf %1020, %1053 : vector<8x17xf32>
    %c243 = arith.constant 243 : index
    %1055 = memref.load %arg3[%c243] : memref<512xf32, #tpu.memory_space<smem>>
    %1056 = vector.broadcast %1055 : f32 to vector<8x17xf32>
    %1057 = arith.mulf %1056, %1042 : vector<8x17xf32>
    %1058 = arith.addf %1024, %1057 : vector<8x17xf32>
    %c244 = arith.constant 244 : index
    %1059 = memref.load %arg3[%c244] : memref<512xf32, #tpu.memory_space<smem>>
    %1060 = vector.broadcast %1059 : f32 to vector<8x17xf32>
    %1061 = arith.mulf %1060, %1042 : vector<8x17xf32>
    %1062 = arith.addf %1028, %1061 : vector<8x17xf32>
    %c245 = arith.constant 245 : index
    %1063 = memref.load %arg3[%c245] : memref<512xf32, #tpu.memory_space<smem>>
    %1064 = vector.broadcast %1063 : f32 to vector<8x17xf32>
    %1065 = arith.mulf %1064, %1042 : vector<8x17xf32>
    %1066 = arith.addf %1032, %1065 : vector<8x17xf32>
    %c246 = arith.constant 246 : index
    %1067 = memref.load %arg3[%c246] : memref<512xf32, #tpu.memory_space<smem>>
    %1068 = vector.broadcast %1067 : f32 to vector<8x17xf32>
    %1069 = arith.mulf %1068, %1042 : vector<8x17xf32>
    %1070 = arith.addf %1036, %1069 : vector<8x17xf32>
    %c247 = arith.constant 247 : index
    %1071 = memref.load %arg3[%c247] : memref<512xf32, #tpu.memory_space<smem>>
    %1072 = vector.broadcast %1071 : f32 to vector<8x17xf32>
    %1073 = arith.mulf %1072, %1042 : vector<8x17xf32>
    %1074 = arith.addf %1040, %1073 : vector<8x17xf32>
    %1075 = vector.extract_strided_slice %4 {offsets = [3, 1, 3], sizes = [1, 8, 17], strides = [1, 1, 1]} : vector<4x11x20xf32> to vector<1x8x17xf32>
    %1076 = vector.shape_cast %1075 : vector<1x8x17xf32> to vector<8x17xf32>
    %c248 = arith.constant 248 : index
    %1077 = memref.load %arg3[%c248] : memref<512xf32, #tpu.memory_space<smem>>
    %1078 = vector.broadcast %1077 : f32 to vector<8x17xf32>
    %1079 = arith.mulf %1078, %1076 : vector<8x17xf32>
    %1080 = arith.addf %1046, %1079 : vector<8x17xf32>
    %c249 = arith.constant 249 : index
    %1081 = memref.load %arg3[%c249] : memref<512xf32, #tpu.memory_space<smem>>
    %1082 = vector.broadcast %1081 : f32 to vector<8x17xf32>
    %1083 = arith.mulf %1082, %1076 : vector<8x17xf32>
    %1084 = arith.addf %1050, %1083 : vector<8x17xf32>
    %c250 = arith.constant 250 : index
    %1085 = memref.load %arg3[%c250] : memref<512xf32, #tpu.memory_space<smem>>
    %1086 = vector.broadcast %1085 : f32 to vector<8x17xf32>
    %1087 = arith.mulf %1086, %1076 : vector<8x17xf32>
    %1088 = arith.addf %1054, %1087 : vector<8x17xf32>
    %c251 = arith.constant 251 : index
    %1089 = memref.load %arg3[%c251] : memref<512xf32, #tpu.memory_space<smem>>
    %1090 = vector.broadcast %1089 : f32 to vector<8x17xf32>
    %1091 = arith.mulf %1090, %1076 : vector<8x17xf32>
    %1092 = arith.addf %1058, %1091 : vector<8x17xf32>
    %c252 = arith.constant 252 : index
    %1093 = memref.load %arg3[%c252] : memref<512xf32, #tpu.memory_space<smem>>
    %1094 = vector.broadcast %1093 : f32 to vector<8x17xf32>
    %1095 = arith.mulf %1094, %1076 : vector<8x17xf32>
    %1096 = arith.addf %1062, %1095 : vector<8x17xf32>
    %c253 = arith.constant 253 : index
    %1097 = memref.load %arg3[%c253] : memref<512xf32, #tpu.memory_space<smem>>
    %1098 = vector.broadcast %1097 : f32 to vector<8x17xf32>
    %1099 = arith.mulf %1098, %1076 : vector<8x17xf32>
    %1100 = arith.addf %1066, %1099 : vector<8x17xf32>
    %c254 = arith.constant 254 : index
    %1101 = memref.load %arg3[%c254] : memref<512xf32, #tpu.memory_space<smem>>
    %1102 = vector.broadcast %1101 : f32 to vector<8x17xf32>
    %1103 = arith.mulf %1102, %1076 : vector<8x17xf32>
    %1104 = arith.addf %1070, %1103 : vector<8x17xf32>
    %c255 = arith.constant 255 : index
    %1105 = memref.load %arg3[%c255] : memref<512xf32, #tpu.memory_space<smem>>
    %1106 = vector.broadcast %1105 : f32 to vector<8x17xf32>
    %1107 = arith.mulf %1106, %1076 : vector<8x17xf32>
    %1108 = arith.addf %1074, %1107 : vector<8x17xf32>
    %1109 = vector.extract_strided_slice %4 {offsets = [0, 2, 0], sizes = [1, 8, 17], strides = [1, 1, 1]} : vector<4x11x20xf32> to vector<1x8x17xf32>
    %1110 = vector.shape_cast %1109 : vector<1x8x17xf32> to vector<8x17xf32>
    %c256 = arith.constant 256 : index
    %1111 = memref.load %arg3[%c256] : memref<512xf32, #tpu.memory_space<smem>>
    %1112 = vector.broadcast %1111 : f32 to vector<8x17xf32>
    %1113 = arith.mulf %1112, %1110 : vector<8x17xf32>
    %1114 = arith.addf %1080, %1113 : vector<8x17xf32>
    %c257 = arith.constant 257 : index
    %1115 = memref.load %arg3[%c257] : memref<512xf32, #tpu.memory_space<smem>>
    %1116 = vector.broadcast %1115 : f32 to vector<8x17xf32>
    %1117 = arith.mulf %1116, %1110 : vector<8x17xf32>
    %1118 = arith.addf %1084, %1117 : vector<8x17xf32>
    %c258 = arith.constant 258 : index
    %1119 = memref.load %arg3[%c258] : memref<512xf32, #tpu.memory_space<smem>>
    %1120 = vector.broadcast %1119 : f32 to vector<8x17xf32>
    %1121 = arith.mulf %1120, %1110 : vector<8x17xf32>
    %1122 = arith.addf %1088, %1121 : vector<8x17xf32>
    %c259 = arith.constant 259 : index
    %1123 = memref.load %arg3[%c259] : memref<512xf32, #tpu.memory_space<smem>>
    %1124 = vector.broadcast %1123 : f32 to vector<8x17xf32>
    %1125 = arith.mulf %1124, %1110 : vector<8x17xf32>
    %1126 = arith.addf %1092, %1125 : vector<8x17xf32>
    %c260 = arith.constant 260 : index
    %1127 = memref.load %arg3[%c260] : memref<512xf32, #tpu.memory_space<smem>>
    %1128 = vector.broadcast %1127 : f32 to vector<8x17xf32>
    %1129 = arith.mulf %1128, %1110 : vector<8x17xf32>
    %1130 = arith.addf %1096, %1129 : vector<8x17xf32>
    %c261 = arith.constant 261 : index
    %1131 = memref.load %arg3[%c261] : memref<512xf32, #tpu.memory_space<smem>>
    %1132 = vector.broadcast %1131 : f32 to vector<8x17xf32>
    %1133 = arith.mulf %1132, %1110 : vector<8x17xf32>
    %1134 = arith.addf %1100, %1133 : vector<8x17xf32>
    %c262 = arith.constant 262 : index
    %1135 = memref.load %arg3[%c262] : memref<512xf32, #tpu.memory_space<smem>>
    %1136 = vector.broadcast %1135 : f32 to vector<8x17xf32>
    %1137 = arith.mulf %1136, %1110 : vector<8x17xf32>
    %1138 = arith.addf %1104, %1137 : vector<8x17xf32>
    %c263 = arith.constant 263 : index
    %1139 = memref.load %arg3[%c263] : memref<512xf32, #tpu.memory_space<smem>>
    %1140 = vector.broadcast %1139 : f32 to vector<8x17xf32>
    %1141 = arith.mulf %1140, %1110 : vector<8x17xf32>
    %1142 = arith.addf %1108, %1141 : vector<8x17xf32>
    %1143 = vector.extract_strided_slice %4 {offsets = [1, 2, 0], sizes = [1, 8, 17], strides = [1, 1, 1]} : vector<4x11x20xf32> to vector<1x8x17xf32>
    %1144 = vector.shape_cast %1143 : vector<1x8x17xf32> to vector<8x17xf32>
    %c264 = arith.constant 264 : index
    %1145 = memref.load %arg3[%c264] : memref<512xf32, #tpu.memory_space<smem>>
    %1146 = vector.broadcast %1145 : f32 to vector<8x17xf32>
    %1147 = arith.mulf %1146, %1144 : vector<8x17xf32>
    %1148 = arith.addf %1114, %1147 : vector<8x17xf32>
    %c265 = arith.constant 265 : index
    %1149 = memref.load %arg3[%c265] : memref<512xf32, #tpu.memory_space<smem>>
    %1150 = vector.broadcast %1149 : f32 to vector<8x17xf32>
    %1151 = arith.mulf %1150, %1144 : vector<8x17xf32>
    %1152 = arith.addf %1118, %1151 : vector<8x17xf32>
    %c266 = arith.constant 266 : index
    %1153 = memref.load %arg3[%c266] : memref<512xf32, #tpu.memory_space<smem>>
    %1154 = vector.broadcast %1153 : f32 to vector<8x17xf32>
    %1155 = arith.mulf %1154, %1144 : vector<8x17xf32>
    %1156 = arith.addf %1122, %1155 : vector<8x17xf32>
    %c267 = arith.constant 267 : index
    %1157 = memref.load %arg3[%c267] : memref<512xf32, #tpu.memory_space<smem>>
    %1158 = vector.broadcast %1157 : f32 to vector<8x17xf32>
    %1159 = arith.mulf %1158, %1144 : vector<8x17xf32>
    %1160 = arith.addf %1126, %1159 : vector<8x17xf32>
    %c268 = arith.constant 268 : index
    %1161 = memref.load %arg3[%c268] : memref<512xf32, #tpu.memory_space<smem>>
    %1162 = vector.broadcast %1161 : f32 to vector<8x17xf32>
    %1163 = arith.mulf %1162, %1144 : vector<8x17xf32>
    %1164 = arith.addf %1130, %1163 : vector<8x17xf32>
    %c269 = arith.constant 269 : index
    %1165 = memref.load %arg3[%c269] : memref<512xf32, #tpu.memory_space<smem>>
    %1166 = vector.broadcast %1165 : f32 to vector<8x17xf32>
    %1167 = arith.mulf %1166, %1144 : vector<8x17xf32>
    %1168 = arith.addf %1134, %1167 : vector<8x17xf32>
    %c270 = arith.constant 270 : index
    %1169 = memref.load %arg3[%c270] : memref<512xf32, #tpu.memory_space<smem>>
    %1170 = vector.broadcast %1169 : f32 to vector<8x17xf32>
    %1171 = arith.mulf %1170, %1144 : vector<8x17xf32>
    %1172 = arith.addf %1138, %1171 : vector<8x17xf32>
    %c271 = arith.constant 271 : index
    %1173 = memref.load %arg3[%c271] : memref<512xf32, #tpu.memory_space<smem>>
    %1174 = vector.broadcast %1173 : f32 to vector<8x17xf32>
    %1175 = arith.mulf %1174, %1144 : vector<8x17xf32>
    %1176 = arith.addf %1142, %1175 : vector<8x17xf32>
    %1177 = vector.extract_strided_slice %4 {offsets = [2, 2, 0], sizes = [1, 8, 17], strides = [1, 1, 1]} : vector<4x11x20xf32> to vector<1x8x17xf32>
    %1178 = vector.shape_cast %1177 : vector<1x8x17xf32> to vector<8x17xf32>
    %c272 = arith.constant 272 : index
    %1179 = memref.load %arg3[%c272] : memref<512xf32, #tpu.memory_space<smem>>
    %1180 = vector.broadcast %1179 : f32 to vector<8x17xf32>
    %1181 = arith.mulf %1180, %1178 : vector<8x17xf32>
    %1182 = arith.addf %1148, %1181 : vector<8x17xf32>
    %c273 = arith.constant 273 : index
    %1183 = memref.load %arg3[%c273] : memref<512xf32, #tpu.memory_space<smem>>
    %1184 = vector.broadcast %1183 : f32 to vector<8x17xf32>
    %1185 = arith.mulf %1184, %1178 : vector<8x17xf32>
    %1186 = arith.addf %1152, %1185 : vector<8x17xf32>
    %c274 = arith.constant 274 : index
    %1187 = memref.load %arg3[%c274] : memref<512xf32, #tpu.memory_space<smem>>
    %1188 = vector.broadcast %1187 : f32 to vector<8x17xf32>
    %1189 = arith.mulf %1188, %1178 : vector<8x17xf32>
    %1190 = arith.addf %1156, %1189 : vector<8x17xf32>
    %c275 = arith.constant 275 : index
    %1191 = memref.load %arg3[%c275] : memref<512xf32, #tpu.memory_space<smem>>
    %1192 = vector.broadcast %1191 : f32 to vector<8x17xf32>
    %1193 = arith.mulf %1192, %1178 : vector<8x17xf32>
    %1194 = arith.addf %1160, %1193 : vector<8x17xf32>
    %c276 = arith.constant 276 : index
    %1195 = memref.load %arg3[%c276] : memref<512xf32, #tpu.memory_space<smem>>
    %1196 = vector.broadcast %1195 : f32 to vector<8x17xf32>
    %1197 = arith.mulf %1196, %1178 : vector<8x17xf32>
    %1198 = arith.addf %1164, %1197 : vector<8x17xf32>
    %c277 = arith.constant 277 : index
    %1199 = memref.load %arg3[%c277] : memref<512xf32, #tpu.memory_space<smem>>
    %1200 = vector.broadcast %1199 : f32 to vector<8x17xf32>
    %1201 = arith.mulf %1200, %1178 : vector<8x17xf32>
    %1202 = arith.addf %1168, %1201 : vector<8x17xf32>
    %c278 = arith.constant 278 : index
    %1203 = memref.load %arg3[%c278] : memref<512xf32, #tpu.memory_space<smem>>
    %1204 = vector.broadcast %1203 : f32 to vector<8x17xf32>
    %1205 = arith.mulf %1204, %1178 : vector<8x17xf32>
    %1206 = arith.addf %1172, %1205 : vector<8x17xf32>
    %c279 = arith.constant 279 : index
    %1207 = memref.load %arg3[%c279] : memref<512xf32, #tpu.memory_space<smem>>
    %1208 = vector.broadcast %1207 : f32 to vector<8x17xf32>
    %1209 = arith.mulf %1208, %1178 : vector<8x17xf32>
    %1210 = arith.addf %1176, %1209 : vector<8x17xf32>
    %1211 = vector.extract_strided_slice %4 {offsets = [3, 2, 0], sizes = [1, 8, 17], strides = [1, 1, 1]} : vector<4x11x20xf32> to vector<1x8x17xf32>
    %1212 = vector.shape_cast %1211 : vector<1x8x17xf32> to vector<8x17xf32>
    %c280 = arith.constant 280 : index
    %1213 = memref.load %arg3[%c280] : memref<512xf32, #tpu.memory_space<smem>>
    %1214 = vector.broadcast %1213 : f32 to vector<8x17xf32>
    %1215 = arith.mulf %1214, %1212 : vector<8x17xf32>
    %1216 = arith.addf %1182, %1215 : vector<8x17xf32>
    %c281 = arith.constant 281 : index
    %1217 = memref.load %arg3[%c281] : memref<512xf32, #tpu.memory_space<smem>>
    %1218 = vector.broadcast %1217 : f32 to vector<8x17xf32>
    %1219 = arith.mulf %1218, %1212 : vector<8x17xf32>
    %1220 = arith.addf %1186, %1219 : vector<8x17xf32>
    %c282 = arith.constant 282 : index
    %1221 = memref.load %arg3[%c282] : memref<512xf32, #tpu.memory_space<smem>>
    %1222 = vector.broadcast %1221 : f32 to vector<8x17xf32>
    %1223 = arith.mulf %1222, %1212 : vector<8x17xf32>
    %1224 = arith.addf %1190, %1223 : vector<8x17xf32>
    %c283 = arith.constant 283 : index
    %1225 = memref.load %arg3[%c283] : memref<512xf32, #tpu.memory_space<smem>>
    %1226 = vector.broadcast %1225 : f32 to vector<8x17xf32>
    %1227 = arith.mulf %1226, %1212 : vector<8x17xf32>
    %1228 = arith.addf %1194, %1227 : vector<8x17xf32>
    %c284 = arith.constant 284 : index
    %1229 = memref.load %arg3[%c284] : memref<512xf32, #tpu.memory_space<smem>>
    %1230 = vector.broadcast %1229 : f32 to vector<8x17xf32>
    %1231 = arith.mulf %1230, %1212 : vector<8x17xf32>
    %1232 = arith.addf %1198, %1231 : vector<8x17xf32>
    %c285 = arith.constant 285 : index
    %1233 = memref.load %arg3[%c285] : memref<512xf32, #tpu.memory_space<smem>>
    %1234 = vector.broadcast %1233 : f32 to vector<8x17xf32>
    %1235 = arith.mulf %1234, %1212 : vector<8x17xf32>
    %1236 = arith.addf %1202, %1235 : vector<8x17xf32>
    %c286 = arith.constant 286 : index
    %1237 = memref.load %arg3[%c286] : memref<512xf32, #tpu.memory_space<smem>>
    %1238 = vector.broadcast %1237 : f32 to vector<8x17xf32>
    %1239 = arith.mulf %1238, %1212 : vector<8x17xf32>
    %1240 = arith.addf %1206, %1239 : vector<8x17xf32>
    %c287 = arith.constant 287 : index
    %1241 = memref.load %arg3[%c287] : memref<512xf32, #tpu.memory_space<smem>>
    %1242 = vector.broadcast %1241 : f32 to vector<8x17xf32>
    %1243 = arith.mulf %1242, %1212 : vector<8x17xf32>
    %1244 = arith.addf %1210, %1243 : vector<8x17xf32>
    %1245 = vector.extract_strided_slice %4 {offsets = [0, 2, 1], sizes = [1, 8, 17], strides = [1, 1, 1]} : vector<4x11x20xf32> to vector<1x8x17xf32>
    %1246 = vector.shape_cast %1245 : vector<1x8x17xf32> to vector<8x17xf32>
    %c288 = arith.constant 288 : index
    %1247 = memref.load %arg3[%c288] : memref<512xf32, #tpu.memory_space<smem>>
    %1248 = vector.broadcast %1247 : f32 to vector<8x17xf32>
    %1249 = arith.mulf %1248, %1246 : vector<8x17xf32>
    %1250 = arith.addf %1216, %1249 : vector<8x17xf32>
    %c289 = arith.constant 289 : index
    %1251 = memref.load %arg3[%c289] : memref<512xf32, #tpu.memory_space<smem>>
    %1252 = vector.broadcast %1251 : f32 to vector<8x17xf32>
    %1253 = arith.mulf %1252, %1246 : vector<8x17xf32>
    %1254 = arith.addf %1220, %1253 : vector<8x17xf32>
    %c290 = arith.constant 290 : index
    %1255 = memref.load %arg3[%c290] : memref<512xf32, #tpu.memory_space<smem>>
    %1256 = vector.broadcast %1255 : f32 to vector<8x17xf32>
    %1257 = arith.mulf %1256, %1246 : vector<8x17xf32>
    %1258 = arith.addf %1224, %1257 : vector<8x17xf32>
    %c291 = arith.constant 291 : index
    %1259 = memref.load %arg3[%c291] : memref<512xf32, #tpu.memory_space<smem>>
    %1260 = vector.broadcast %1259 : f32 to vector<8x17xf32>
    %1261 = arith.mulf %1260, %1246 : vector<8x17xf32>
    %1262 = arith.addf %1228, %1261 : vector<8x17xf32>
    %c292 = arith.constant 292 : index
    %1263 = memref.load %arg3[%c292] : memref<512xf32, #tpu.memory_space<smem>>
    %1264 = vector.broadcast %1263 : f32 to vector<8x17xf32>
    %1265 = arith.mulf %1264, %1246 : vector<8x17xf32>
    %1266 = arith.addf %1232, %1265 : vector<8x17xf32>
    %c293 = arith.constant 293 : index
    %1267 = memref.load %arg3[%c293] : memref<512xf32, #tpu.memory_space<smem>>
    %1268 = vector.broadcast %1267 : f32 to vector<8x17xf32>
    %1269 = arith.mulf %1268, %1246 : vector<8x17xf32>
    %1270 = arith.addf %1236, %1269 : vector<8x17xf32>
    %c294 = arith.constant 294 : index
    %1271 = memref.load %arg3[%c294] : memref<512xf32, #tpu.memory_space<smem>>
    %1272 = vector.broadcast %1271 : f32 to vector<8x17xf32>
    %1273 = arith.mulf %1272, %1246 : vector<8x17xf32>
    %1274 = arith.addf %1240, %1273 : vector<8x17xf32>
    %c295 = arith.constant 295 : index
    %1275 = memref.load %arg3[%c295] : memref<512xf32, #tpu.memory_space<smem>>
    %1276 = vector.broadcast %1275 : f32 to vector<8x17xf32>
    %1277 = arith.mulf %1276, %1246 : vector<8x17xf32>
    %1278 = arith.addf %1244, %1277 : vector<8x17xf32>
    %1279 = vector.extract_strided_slice %4 {offsets = [1, 2, 1], sizes = [1, 8, 17], strides = [1, 1, 1]} : vector<4x11x20xf32> to vector<1x8x17xf32>
    %1280 = vector.shape_cast %1279 : vector<1x8x17xf32> to vector<8x17xf32>
    %c296 = arith.constant 296 : index
    %1281 = memref.load %arg3[%c296] : memref<512xf32, #tpu.memory_space<smem>>
    %1282 = vector.broadcast %1281 : f32 to vector<8x17xf32>
    %1283 = arith.mulf %1282, %1280 : vector<8x17xf32>
    %1284 = arith.addf %1250, %1283 : vector<8x17xf32>
    %c297 = arith.constant 297 : index
    %1285 = memref.load %arg3[%c297] : memref<512xf32, #tpu.memory_space<smem>>
    %1286 = vector.broadcast %1285 : f32 to vector<8x17xf32>
    %1287 = arith.mulf %1286, %1280 : vector<8x17xf32>
    %1288 = arith.addf %1254, %1287 : vector<8x17xf32>
    %c298 = arith.constant 298 : index
    %1289 = memref.load %arg3[%c298] : memref<512xf32, #tpu.memory_space<smem>>
    %1290 = vector.broadcast %1289 : f32 to vector<8x17xf32>
    %1291 = arith.mulf %1290, %1280 : vector<8x17xf32>
    %1292 = arith.addf %1258, %1291 : vector<8x17xf32>
    %c299 = arith.constant 299 : index
    %1293 = memref.load %arg3[%c299] : memref<512xf32, #tpu.memory_space<smem>>
    %1294 = vector.broadcast %1293 : f32 to vector<8x17xf32>
    %1295 = arith.mulf %1294, %1280 : vector<8x17xf32>
    %1296 = arith.addf %1262, %1295 : vector<8x17xf32>
    %c300 = arith.constant 300 : index
    %1297 = memref.load %arg3[%c300] : memref<512xf32, #tpu.memory_space<smem>>
    %1298 = vector.broadcast %1297 : f32 to vector<8x17xf32>
    %1299 = arith.mulf %1298, %1280 : vector<8x17xf32>
    %1300 = arith.addf %1266, %1299 : vector<8x17xf32>
    %c301 = arith.constant 301 : index
    %1301 = memref.load %arg3[%c301] : memref<512xf32, #tpu.memory_space<smem>>
    %1302 = vector.broadcast %1301 : f32 to vector<8x17xf32>
    %1303 = arith.mulf %1302, %1280 : vector<8x17xf32>
    %1304 = arith.addf %1270, %1303 : vector<8x17xf32>
    %c302 = arith.constant 302 : index
    %1305 = memref.load %arg3[%c302] : memref<512xf32, #tpu.memory_space<smem>>
    %1306 = vector.broadcast %1305 : f32 to vector<8x17xf32>
    %1307 = arith.mulf %1306, %1280 : vector<8x17xf32>
    %1308 = arith.addf %1274, %1307 : vector<8x17xf32>
    %c303 = arith.constant 303 : index
    %1309 = memref.load %arg3[%c303] : memref<512xf32, #tpu.memory_space<smem>>
    %1310 = vector.broadcast %1309 : f32 to vector<8x17xf32>
    %1311 = arith.mulf %1310, %1280 : vector<8x17xf32>
    %1312 = arith.addf %1278, %1311 : vector<8x17xf32>
    %1313 = vector.extract_strided_slice %4 {offsets = [2, 2, 1], sizes = [1, 8, 17], strides = [1, 1, 1]} : vector<4x11x20xf32> to vector<1x8x17xf32>
    %1314 = vector.shape_cast %1313 : vector<1x8x17xf32> to vector<8x17xf32>
    %c304 = arith.constant 304 : index
    %1315 = memref.load %arg3[%c304] : memref<512xf32, #tpu.memory_space<smem>>
    %1316 = vector.broadcast %1315 : f32 to vector<8x17xf32>
    %1317 = arith.mulf %1316, %1314 : vector<8x17xf32>
    %1318 = arith.addf %1284, %1317 : vector<8x17xf32>
    %c305 = arith.constant 305 : index
    %1319 = memref.load %arg3[%c305] : memref<512xf32, #tpu.memory_space<smem>>
    %1320 = vector.broadcast %1319 : f32 to vector<8x17xf32>
    %1321 = arith.mulf %1320, %1314 : vector<8x17xf32>
    %1322 = arith.addf %1288, %1321 : vector<8x17xf32>
    %c306 = arith.constant 306 : index
    %1323 = memref.load %arg3[%c306] : memref<512xf32, #tpu.memory_space<smem>>
    %1324 = vector.broadcast %1323 : f32 to vector<8x17xf32>
    %1325 = arith.mulf %1324, %1314 : vector<8x17xf32>
    %1326 = arith.addf %1292, %1325 : vector<8x17xf32>
    %c307 = arith.constant 307 : index
    %1327 = memref.load %arg3[%c307] : memref<512xf32, #tpu.memory_space<smem>>
    %1328 = vector.broadcast %1327 : f32 to vector<8x17xf32>
    %1329 = arith.mulf %1328, %1314 : vector<8x17xf32>
    %1330 = arith.addf %1296, %1329 : vector<8x17xf32>
    %c308 = arith.constant 308 : index
    %1331 = memref.load %arg3[%c308] : memref<512xf32, #tpu.memory_space<smem>>
    %1332 = vector.broadcast %1331 : f32 to vector<8x17xf32>
    %1333 = arith.mulf %1332, %1314 : vector<8x17xf32>
    %1334 = arith.addf %1300, %1333 : vector<8x17xf32>
    %c309 = arith.constant 309 : index
    %1335 = memref.load %arg3[%c309] : memref<512xf32, #tpu.memory_space<smem>>
    %1336 = vector.broadcast %1335 : f32 to vector<8x17xf32>
    %1337 = arith.mulf %1336, %1314 : vector<8x17xf32>
    %1338 = arith.addf %1304, %1337 : vector<8x17xf32>
    %c310 = arith.constant 310 : index
    %1339 = memref.load %arg3[%c310] : memref<512xf32, #tpu.memory_space<smem>>
    %1340 = vector.broadcast %1339 : f32 to vector<8x17xf32>
    %1341 = arith.mulf %1340, %1314 : vector<8x17xf32>
    %1342 = arith.addf %1308, %1341 : vector<8x17xf32>
    %c311 = arith.constant 311 : index
    %1343 = memref.load %arg3[%c311] : memref<512xf32, #tpu.memory_space<smem>>
    %1344 = vector.broadcast %1343 : f32 to vector<8x17xf32>
    %1345 = arith.mulf %1344, %1314 : vector<8x17xf32>
    %1346 = arith.addf %1312, %1345 : vector<8x17xf32>
    %1347 = vector.extract_strided_slice %4 {offsets = [3, 2, 1], sizes = [1, 8, 17], strides = [1, 1, 1]} : vector<4x11x20xf32> to vector<1x8x17xf32>
    %1348 = vector.shape_cast %1347 : vector<1x8x17xf32> to vector<8x17xf32>
    %c312 = arith.constant 312 : index
    %1349 = memref.load %arg3[%c312] : memref<512xf32, #tpu.memory_space<smem>>
    %1350 = vector.broadcast %1349 : f32 to vector<8x17xf32>
    %1351 = arith.mulf %1350, %1348 : vector<8x17xf32>
    %1352 = arith.addf %1318, %1351 : vector<8x17xf32>
    %c313 = arith.constant 313 : index
    %1353 = memref.load %arg3[%c313] : memref<512xf32, #tpu.memory_space<smem>>
    %1354 = vector.broadcast %1353 : f32 to vector<8x17xf32>
    %1355 = arith.mulf %1354, %1348 : vector<8x17xf32>
    %1356 = arith.addf %1322, %1355 : vector<8x17xf32>
    %c314 = arith.constant 314 : index
    %1357 = memref.load %arg3[%c314] : memref<512xf32, #tpu.memory_space<smem>>
    %1358 = vector.broadcast %1357 : f32 to vector<8x17xf32>
    %1359 = arith.mulf %1358, %1348 : vector<8x17xf32>
    %1360 = arith.addf %1326, %1359 : vector<8x17xf32>
    %c315 = arith.constant 315 : index
    %1361 = memref.load %arg3[%c315] : memref<512xf32, #tpu.memory_space<smem>>
    %1362 = vector.broadcast %1361 : f32 to vector<8x17xf32>
    %1363 = arith.mulf %1362, %1348 : vector<8x17xf32>
    %1364 = arith.addf %1330, %1363 : vector<8x17xf32>
    %c316 = arith.constant 316 : index
    %1365 = memref.load %arg3[%c316] : memref<512xf32, #tpu.memory_space<smem>>
    %1366 = vector.broadcast %1365 : f32 to vector<8x17xf32>
    %1367 = arith.mulf %1366, %1348 : vector<8x17xf32>
    %1368 = arith.addf %1334, %1367 : vector<8x17xf32>
    %c317 = arith.constant 317 : index
    %1369 = memref.load %arg3[%c317] : memref<512xf32, #tpu.memory_space<smem>>
    %1370 = vector.broadcast %1369 : f32 to vector<8x17xf32>
    %1371 = arith.mulf %1370, %1348 : vector<8x17xf32>
    %1372 = arith.addf %1338, %1371 : vector<8x17xf32>
    %c318 = arith.constant 318 : index
    %1373 = memref.load %arg3[%c318] : memref<512xf32, #tpu.memory_space<smem>>
    %1374 = vector.broadcast %1373 : f32 to vector<8x17xf32>
    %1375 = arith.mulf %1374, %1348 : vector<8x17xf32>
    %1376 = arith.addf %1342, %1375 : vector<8x17xf32>
    %c319 = arith.constant 319 : index
    %1377 = memref.load %arg3[%c319] : memref<512xf32, #tpu.memory_space<smem>>
    %1378 = vector.broadcast %1377 : f32 to vector<8x17xf32>
    %1379 = arith.mulf %1378, %1348 : vector<8x17xf32>
    %1380 = arith.addf %1346, %1379 : vector<8x17xf32>
    %1381 = vector.extract_strided_slice %4 {offsets = [0, 2, 2], sizes = [1, 8, 17], strides = [1, 1, 1]} : vector<4x11x20xf32> to vector<1x8x17xf32>
    %1382 = vector.shape_cast %1381 : vector<1x8x17xf32> to vector<8x17xf32>
    %c320 = arith.constant 320 : index
    %1383 = memref.load %arg3[%c320] : memref<512xf32, #tpu.memory_space<smem>>
    %1384 = vector.broadcast %1383 : f32 to vector<8x17xf32>
    %1385 = arith.mulf %1384, %1382 : vector<8x17xf32>
    %1386 = arith.addf %1352, %1385 : vector<8x17xf32>
    %c321 = arith.constant 321 : index
    %1387 = memref.load %arg3[%c321] : memref<512xf32, #tpu.memory_space<smem>>
    %1388 = vector.broadcast %1387 : f32 to vector<8x17xf32>
    %1389 = arith.mulf %1388, %1382 : vector<8x17xf32>
    %1390 = arith.addf %1356, %1389 : vector<8x17xf32>
    %c322 = arith.constant 322 : index
    %1391 = memref.load %arg3[%c322] : memref<512xf32, #tpu.memory_space<smem>>
    %1392 = vector.broadcast %1391 : f32 to vector<8x17xf32>
    %1393 = arith.mulf %1392, %1382 : vector<8x17xf32>
    %1394 = arith.addf %1360, %1393 : vector<8x17xf32>
    %c323 = arith.constant 323 : index
    %1395 = memref.load %arg3[%c323] : memref<512xf32, #tpu.memory_space<smem>>
    %1396 = vector.broadcast %1395 : f32 to vector<8x17xf32>
    %1397 = arith.mulf %1396, %1382 : vector<8x17xf32>
    %1398 = arith.addf %1364, %1397 : vector<8x17xf32>
    %c324 = arith.constant 324 : index
    %1399 = memref.load %arg3[%c324] : memref<512xf32, #tpu.memory_space<smem>>
    %1400 = vector.broadcast %1399 : f32 to vector<8x17xf32>
    %1401 = arith.mulf %1400, %1382 : vector<8x17xf32>
    %1402 = arith.addf %1368, %1401 : vector<8x17xf32>
    %c325 = arith.constant 325 : index
    %1403 = memref.load %arg3[%c325] : memref<512xf32, #tpu.memory_space<smem>>
    %1404 = vector.broadcast %1403 : f32 to vector<8x17xf32>
    %1405 = arith.mulf %1404, %1382 : vector<8x17xf32>
    %1406 = arith.addf %1372, %1405 : vector<8x17xf32>
    %c326 = arith.constant 326 : index
    %1407 = memref.load %arg3[%c326] : memref<512xf32, #tpu.memory_space<smem>>
    %1408 = vector.broadcast %1407 : f32 to vector<8x17xf32>
    %1409 = arith.mulf %1408, %1382 : vector<8x17xf32>
    %1410 = arith.addf %1376, %1409 : vector<8x17xf32>
    %c327 = arith.constant 327 : index
    %1411 = memref.load %arg3[%c327] : memref<512xf32, #tpu.memory_space<smem>>
    %1412 = vector.broadcast %1411 : f32 to vector<8x17xf32>
    %1413 = arith.mulf %1412, %1382 : vector<8x17xf32>
    %1414 = arith.addf %1380, %1413 : vector<8x17xf32>
    %1415 = vector.extract_strided_slice %4 {offsets = [1, 2, 2], sizes = [1, 8, 17], strides = [1, 1, 1]} : vector<4x11x20xf32> to vector<1x8x17xf32>
    %1416 = vector.shape_cast %1415 : vector<1x8x17xf32> to vector<8x17xf32>
    %c328 = arith.constant 328 : index
    %1417 = memref.load %arg3[%c328] : memref<512xf32, #tpu.memory_space<smem>>
    %1418 = vector.broadcast %1417 : f32 to vector<8x17xf32>
    %1419 = arith.mulf %1418, %1416 : vector<8x17xf32>
    %1420 = arith.addf %1386, %1419 : vector<8x17xf32>
    %c329 = arith.constant 329 : index
    %1421 = memref.load %arg3[%c329] : memref<512xf32, #tpu.memory_space<smem>>
    %1422 = vector.broadcast %1421 : f32 to vector<8x17xf32>
    %1423 = arith.mulf %1422, %1416 : vector<8x17xf32>
    %1424 = arith.addf %1390, %1423 : vector<8x17xf32>
    %c330 = arith.constant 330 : index
    %1425 = memref.load %arg3[%c330] : memref<512xf32, #tpu.memory_space<smem>>
    %1426 = vector.broadcast %1425 : f32 to vector<8x17xf32>
    %1427 = arith.mulf %1426, %1416 : vector<8x17xf32>
    %1428 = arith.addf %1394, %1427 : vector<8x17xf32>
    %c331 = arith.constant 331 : index
    %1429 = memref.load %arg3[%c331] : memref<512xf32, #tpu.memory_space<smem>>
    %1430 = vector.broadcast %1429 : f32 to vector<8x17xf32>
    %1431 = arith.mulf %1430, %1416 : vector<8x17xf32>
    %1432 = arith.addf %1398, %1431 : vector<8x17xf32>
    %c332 = arith.constant 332 : index
    %1433 = memref.load %arg3[%c332] : memref<512xf32, #tpu.memory_space<smem>>
    %1434 = vector.broadcast %1433 : f32 to vector<8x17xf32>
    %1435 = arith.mulf %1434, %1416 : vector<8x17xf32>
    %1436 = arith.addf %1402, %1435 : vector<8x17xf32>
    %c333 = arith.constant 333 : index
    %1437 = memref.load %arg3[%c333] : memref<512xf32, #tpu.memory_space<smem>>
    %1438 = vector.broadcast %1437 : f32 to vector<8x17xf32>
    %1439 = arith.mulf %1438, %1416 : vector<8x17xf32>
    %1440 = arith.addf %1406, %1439 : vector<8x17xf32>
    %c334 = arith.constant 334 : index
    %1441 = memref.load %arg3[%c334] : memref<512xf32, #tpu.memory_space<smem>>
    %1442 = vector.broadcast %1441 : f32 to vector<8x17xf32>
    %1443 = arith.mulf %1442, %1416 : vector<8x17xf32>
    %1444 = arith.addf %1410, %1443 : vector<8x17xf32>
    %c335 = arith.constant 335 : index
    %1445 = memref.load %arg3[%c335] : memref<512xf32, #tpu.memory_space<smem>>
    %1446 = vector.broadcast %1445 : f32 to vector<8x17xf32>
    %1447 = arith.mulf %1446, %1416 : vector<8x17xf32>
    %1448 = arith.addf %1414, %1447 : vector<8x17xf32>
    %1449 = vector.extract_strided_slice %4 {offsets = [2, 2, 2], sizes = [1, 8, 17], strides = [1, 1, 1]} : vector<4x11x20xf32> to vector<1x8x17xf32>
    %1450 = vector.shape_cast %1449 : vector<1x8x17xf32> to vector<8x17xf32>
    %c336 = arith.constant 336 : index
    %1451 = memref.load %arg3[%c336] : memref<512xf32, #tpu.memory_space<smem>>
    %1452 = vector.broadcast %1451 : f32 to vector<8x17xf32>
    %1453 = arith.mulf %1452, %1450 : vector<8x17xf32>
    %1454 = arith.addf %1420, %1453 : vector<8x17xf32>
    %c337 = arith.constant 337 : index
    %1455 = memref.load %arg3[%c337] : memref<512xf32, #tpu.memory_space<smem>>
    %1456 = vector.broadcast %1455 : f32 to vector<8x17xf32>
    %1457 = arith.mulf %1456, %1450 : vector<8x17xf32>
    %1458 = arith.addf %1424, %1457 : vector<8x17xf32>
    %c338 = arith.constant 338 : index
    %1459 = memref.load %arg3[%c338] : memref<512xf32, #tpu.memory_space<smem>>
    %1460 = vector.broadcast %1459 : f32 to vector<8x17xf32>
    %1461 = arith.mulf %1460, %1450 : vector<8x17xf32>
    %1462 = arith.addf %1428, %1461 : vector<8x17xf32>
    %c339 = arith.constant 339 : index
    %1463 = memref.load %arg3[%c339] : memref<512xf32, #tpu.memory_space<smem>>
    %1464 = vector.broadcast %1463 : f32 to vector<8x17xf32>
    %1465 = arith.mulf %1464, %1450 : vector<8x17xf32>
    %1466 = arith.addf %1432, %1465 : vector<8x17xf32>
    %c340 = arith.constant 340 : index
    %1467 = memref.load %arg3[%c340] : memref<512xf32, #tpu.memory_space<smem>>
    %1468 = vector.broadcast %1467 : f32 to vector<8x17xf32>
    %1469 = arith.mulf %1468, %1450 : vector<8x17xf32>
    %1470 = arith.addf %1436, %1469 : vector<8x17xf32>
    %c341 = arith.constant 341 : index
    %1471 = memref.load %arg3[%c341] : memref<512xf32, #tpu.memory_space<smem>>
    %1472 = vector.broadcast %1471 : f32 to vector<8x17xf32>
    %1473 = arith.mulf %1472, %1450 : vector<8x17xf32>
    %1474 = arith.addf %1440, %1473 : vector<8x17xf32>
    %c342 = arith.constant 342 : index
    %1475 = memref.load %arg3[%c342] : memref<512xf32, #tpu.memory_space<smem>>
    %1476 = vector.broadcast %1475 : f32 to vector<8x17xf32>
    %1477 = arith.mulf %1476, %1450 : vector<8x17xf32>
    %1478 = arith.addf %1444, %1477 : vector<8x17xf32>
    %c343 = arith.constant 343 : index
    %1479 = memref.load %arg3[%c343] : memref<512xf32, #tpu.memory_space<smem>>
    %1480 = vector.broadcast %1479 : f32 to vector<8x17xf32>
    %1481 = arith.mulf %1480, %1450 : vector<8x17xf32>
    %1482 = arith.addf %1448, %1481 : vector<8x17xf32>
    %1483 = vector.extract_strided_slice %4 {offsets = [3, 2, 2], sizes = [1, 8, 17], strides = [1, 1, 1]} : vector<4x11x20xf32> to vector<1x8x17xf32>
    %1484 = vector.shape_cast %1483 : vector<1x8x17xf32> to vector<8x17xf32>
    %c344 = arith.constant 344 : index
    %1485 = memref.load %arg3[%c344] : memref<512xf32, #tpu.memory_space<smem>>
    %1486 = vector.broadcast %1485 : f32 to vector<8x17xf32>
    %1487 = arith.mulf %1486, %1484 : vector<8x17xf32>
    %1488 = arith.addf %1454, %1487 : vector<8x17xf32>
    %c345 = arith.constant 345 : index
    %1489 = memref.load %arg3[%c345] : memref<512xf32, #tpu.memory_space<smem>>
    %1490 = vector.broadcast %1489 : f32 to vector<8x17xf32>
    %1491 = arith.mulf %1490, %1484 : vector<8x17xf32>
    %1492 = arith.addf %1458, %1491 : vector<8x17xf32>
    %c346 = arith.constant 346 : index
    %1493 = memref.load %arg3[%c346] : memref<512xf32, #tpu.memory_space<smem>>
    %1494 = vector.broadcast %1493 : f32 to vector<8x17xf32>
    %1495 = arith.mulf %1494, %1484 : vector<8x17xf32>
    %1496 = arith.addf %1462, %1495 : vector<8x17xf32>
    %c347 = arith.constant 347 : index
    %1497 = memref.load %arg3[%c347] : memref<512xf32, #tpu.memory_space<smem>>
    %1498 = vector.broadcast %1497 : f32 to vector<8x17xf32>
    %1499 = arith.mulf %1498, %1484 : vector<8x17xf32>
    %1500 = arith.addf %1466, %1499 : vector<8x17xf32>
    %c348 = arith.constant 348 : index
    %1501 = memref.load %arg3[%c348] : memref<512xf32, #tpu.memory_space<smem>>
    %1502 = vector.broadcast %1501 : f32 to vector<8x17xf32>
    %1503 = arith.mulf %1502, %1484 : vector<8x17xf32>
    %1504 = arith.addf %1470, %1503 : vector<8x17xf32>
    %c349 = arith.constant 349 : index
    %1505 = memref.load %arg3[%c349] : memref<512xf32, #tpu.memory_space<smem>>
    %1506 = vector.broadcast %1505 : f32 to vector<8x17xf32>
    %1507 = arith.mulf %1506, %1484 : vector<8x17xf32>
    %1508 = arith.addf %1474, %1507 : vector<8x17xf32>
    %c350 = arith.constant 350 : index
    %1509 = memref.load %arg3[%c350] : memref<512xf32, #tpu.memory_space<smem>>
    %1510 = vector.broadcast %1509 : f32 to vector<8x17xf32>
    %1511 = arith.mulf %1510, %1484 : vector<8x17xf32>
    %1512 = arith.addf %1478, %1511 : vector<8x17xf32>
    %c351 = arith.constant 351 : index
    %1513 = memref.load %arg3[%c351] : memref<512xf32, #tpu.memory_space<smem>>
    %1514 = vector.broadcast %1513 : f32 to vector<8x17xf32>
    %1515 = arith.mulf %1514, %1484 : vector<8x17xf32>
    %1516 = arith.addf %1482, %1515 : vector<8x17xf32>
    %1517 = vector.extract_strided_slice %4 {offsets = [0, 2, 3], sizes = [1, 8, 17], strides = [1, 1, 1]} : vector<4x11x20xf32> to vector<1x8x17xf32>
    %1518 = vector.shape_cast %1517 : vector<1x8x17xf32> to vector<8x17xf32>
    %c352 = arith.constant 352 : index
    %1519 = memref.load %arg3[%c352] : memref<512xf32, #tpu.memory_space<smem>>
    %1520 = vector.broadcast %1519 : f32 to vector<8x17xf32>
    %1521 = arith.mulf %1520, %1518 : vector<8x17xf32>
    %1522 = arith.addf %1488, %1521 : vector<8x17xf32>
    %c353 = arith.constant 353 : index
    %1523 = memref.load %arg3[%c353] : memref<512xf32, #tpu.memory_space<smem>>
    %1524 = vector.broadcast %1523 : f32 to vector<8x17xf32>
    %1525 = arith.mulf %1524, %1518 : vector<8x17xf32>
    %1526 = arith.addf %1492, %1525 : vector<8x17xf32>
    %c354 = arith.constant 354 : index
    %1527 = memref.load %arg3[%c354] : memref<512xf32, #tpu.memory_space<smem>>
    %1528 = vector.broadcast %1527 : f32 to vector<8x17xf32>
    %1529 = arith.mulf %1528, %1518 : vector<8x17xf32>
    %1530 = arith.addf %1496, %1529 : vector<8x17xf32>
    %c355 = arith.constant 355 : index
    %1531 = memref.load %arg3[%c355] : memref<512xf32, #tpu.memory_space<smem>>
    %1532 = vector.broadcast %1531 : f32 to vector<8x17xf32>
    %1533 = arith.mulf %1532, %1518 : vector<8x17xf32>
    %1534 = arith.addf %1500, %1533 : vector<8x17xf32>
    %c356 = arith.constant 356 : index
    %1535 = memref.load %arg3[%c356] : memref<512xf32, #tpu.memory_space<smem>>
    %1536 = vector.broadcast %1535 : f32 to vector<8x17xf32>
    %1537 = arith.mulf %1536, %1518 : vector<8x17xf32>
    %1538 = arith.addf %1504, %1537 : vector<8x17xf32>
    %c357 = arith.constant 357 : index
    %1539 = memref.load %arg3[%c357] : memref<512xf32, #tpu.memory_space<smem>>
    %1540 = vector.broadcast %1539 : f32 to vector<8x17xf32>
    %1541 = arith.mulf %1540, %1518 : vector<8x17xf32>
    %1542 = arith.addf %1508, %1541 : vector<8x17xf32>
    %c358 = arith.constant 358 : index
    %1543 = memref.load %arg3[%c358] : memref<512xf32, #tpu.memory_space<smem>>
    %1544 = vector.broadcast %1543 : f32 to vector<8x17xf32>
    %1545 = arith.mulf %1544, %1518 : vector<8x17xf32>
    %1546 = arith.addf %1512, %1545 : vector<8x17xf32>
    %c359 = arith.constant 359 : index
    %1547 = memref.load %arg3[%c359] : memref<512xf32, #tpu.memory_space<smem>>
    %1548 = vector.broadcast %1547 : f32 to vector<8x17xf32>
    %1549 = arith.mulf %1548, %1518 : vector<8x17xf32>
    %1550 = arith.addf %1516, %1549 : vector<8x17xf32>
    %1551 = vector.extract_strided_slice %4 {offsets = [1, 2, 3], sizes = [1, 8, 17], strides = [1, 1, 1]} : vector<4x11x20xf32> to vector<1x8x17xf32>
    %1552 = vector.shape_cast %1551 : vector<1x8x17xf32> to vector<8x17xf32>
    %c360 = arith.constant 360 : index
    %1553 = memref.load %arg3[%c360] : memref<512xf32, #tpu.memory_space<smem>>
    %1554 = vector.broadcast %1553 : f32 to vector<8x17xf32>
    %1555 = arith.mulf %1554, %1552 : vector<8x17xf32>
    %1556 = arith.addf %1522, %1555 : vector<8x17xf32>
    %c361 = arith.constant 361 : index
    %1557 = memref.load %arg3[%c361] : memref<512xf32, #tpu.memory_space<smem>>
    %1558 = vector.broadcast %1557 : f32 to vector<8x17xf32>
    %1559 = arith.mulf %1558, %1552 : vector<8x17xf32>
    %1560 = arith.addf %1526, %1559 : vector<8x17xf32>
    %c362 = arith.constant 362 : index
    %1561 = memref.load %arg3[%c362] : memref<512xf32, #tpu.memory_space<smem>>
    %1562 = vector.broadcast %1561 : f32 to vector<8x17xf32>
    %1563 = arith.mulf %1562, %1552 : vector<8x17xf32>
    %1564 = arith.addf %1530, %1563 : vector<8x17xf32>
    %c363 = arith.constant 363 : index
    %1565 = memref.load %arg3[%c363] : memref<512xf32, #tpu.memory_space<smem>>
    %1566 = vector.broadcast %1565 : f32 to vector<8x17xf32>
    %1567 = arith.mulf %1566, %1552 : vector<8x17xf32>
    %1568 = arith.addf %1534, %1567 : vector<8x17xf32>
    %c364 = arith.constant 364 : index
    %1569 = memref.load %arg3[%c364] : memref<512xf32, #tpu.memory_space<smem>>
    %1570 = vector.broadcast %1569 : f32 to vector<8x17xf32>
    %1571 = arith.mulf %1570, %1552 : vector<8x17xf32>
    %1572 = arith.addf %1538, %1571 : vector<8x17xf32>
    %c365 = arith.constant 365 : index
    %1573 = memref.load %arg3[%c365] : memref<512xf32, #tpu.memory_space<smem>>
    %1574 = vector.broadcast %1573 : f32 to vector<8x17xf32>
    %1575 = arith.mulf %1574, %1552 : vector<8x17xf32>
    %1576 = arith.addf %1542, %1575 : vector<8x17xf32>
    %c366 = arith.constant 366 : index
    %1577 = memref.load %arg3[%c366] : memref<512xf32, #tpu.memory_space<smem>>
    %1578 = vector.broadcast %1577 : f32 to vector<8x17xf32>
    %1579 = arith.mulf %1578, %1552 : vector<8x17xf32>
    %1580 = arith.addf %1546, %1579 : vector<8x17xf32>
    %c367 = arith.constant 367 : index
    %1581 = memref.load %arg3[%c367] : memref<512xf32, #tpu.memory_space<smem>>
    %1582 = vector.broadcast %1581 : f32 to vector<8x17xf32>
    %1583 = arith.mulf %1582, %1552 : vector<8x17xf32>
    %1584 = arith.addf %1550, %1583 : vector<8x17xf32>
    %1585 = vector.extract_strided_slice %4 {offsets = [2, 2, 3], sizes = [1, 8, 17], strides = [1, 1, 1]} : vector<4x11x20xf32> to vector<1x8x17xf32>
    %1586 = vector.shape_cast %1585 : vector<1x8x17xf32> to vector<8x17xf32>
    %c368 = arith.constant 368 : index
    %1587 = memref.load %arg3[%c368] : memref<512xf32, #tpu.memory_space<smem>>
    %1588 = vector.broadcast %1587 : f32 to vector<8x17xf32>
    %1589 = arith.mulf %1588, %1586 : vector<8x17xf32>
    %1590 = arith.addf %1556, %1589 : vector<8x17xf32>
    %c369 = arith.constant 369 : index
    %1591 = memref.load %arg3[%c369] : memref<512xf32, #tpu.memory_space<smem>>
    %1592 = vector.broadcast %1591 : f32 to vector<8x17xf32>
    %1593 = arith.mulf %1592, %1586 : vector<8x17xf32>
    %1594 = arith.addf %1560, %1593 : vector<8x17xf32>
    %c370 = arith.constant 370 : index
    %1595 = memref.load %arg3[%c370] : memref<512xf32, #tpu.memory_space<smem>>
    %1596 = vector.broadcast %1595 : f32 to vector<8x17xf32>
    %1597 = arith.mulf %1596, %1586 : vector<8x17xf32>
    %1598 = arith.addf %1564, %1597 : vector<8x17xf32>
    %c371 = arith.constant 371 : index
    %1599 = memref.load %arg3[%c371] : memref<512xf32, #tpu.memory_space<smem>>
    %1600 = vector.broadcast %1599 : f32 to vector<8x17xf32>
    %1601 = arith.mulf %1600, %1586 : vector<8x17xf32>
    %1602 = arith.addf %1568, %1601 : vector<8x17xf32>
    %c372 = arith.constant 372 : index
    %1603 = memref.load %arg3[%c372] : memref<512xf32, #tpu.memory_space<smem>>
    %1604 = vector.broadcast %1603 : f32 to vector<8x17xf32>
    %1605 = arith.mulf %1604, %1586 : vector<8x17xf32>
    %1606 = arith.addf %1572, %1605 : vector<8x17xf32>
    %c373 = arith.constant 373 : index
    %1607 = memref.load %arg3[%c373] : memref<512xf32, #tpu.memory_space<smem>>
    %1608 = vector.broadcast %1607 : f32 to vector<8x17xf32>
    %1609 = arith.mulf %1608, %1586 : vector<8x17xf32>
    %1610 = arith.addf %1576, %1609 : vector<8x17xf32>
    %c374 = arith.constant 374 : index
    %1611 = memref.load %arg3[%c374] : memref<512xf32, #tpu.memory_space<smem>>
    %1612 = vector.broadcast %1611 : f32 to vector<8x17xf32>
    %1613 = arith.mulf %1612, %1586 : vector<8x17xf32>
    %1614 = arith.addf %1580, %1613 : vector<8x17xf32>
    %c375 = arith.constant 375 : index
    %1615 = memref.load %arg3[%c375] : memref<512xf32, #tpu.memory_space<smem>>
    %1616 = vector.broadcast %1615 : f32 to vector<8x17xf32>
    %1617 = arith.mulf %1616, %1586 : vector<8x17xf32>
    %1618 = arith.addf %1584, %1617 : vector<8x17xf32>
    %1619 = vector.extract_strided_slice %4 {offsets = [3, 2, 3], sizes = [1, 8, 17], strides = [1, 1, 1]} : vector<4x11x20xf32> to vector<1x8x17xf32>
    %1620 = vector.shape_cast %1619 : vector<1x8x17xf32> to vector<8x17xf32>
    %c376 = arith.constant 376 : index
    %1621 = memref.load %arg3[%c376] : memref<512xf32, #tpu.memory_space<smem>>
    %1622 = vector.broadcast %1621 : f32 to vector<8x17xf32>
    %1623 = arith.mulf %1622, %1620 : vector<8x17xf32>
    %1624 = arith.addf %1590, %1623 : vector<8x17xf32>
    %c377 = arith.constant 377 : index
    %1625 = memref.load %arg3[%c377] : memref<512xf32, #tpu.memory_space<smem>>
    %1626 = vector.broadcast %1625 : f32 to vector<8x17xf32>
    %1627 = arith.mulf %1626, %1620 : vector<8x17xf32>
    %1628 = arith.addf %1594, %1627 : vector<8x17xf32>
    %c378 = arith.constant 378 : index
    %1629 = memref.load %arg3[%c378] : memref<512xf32, #tpu.memory_space<smem>>
    %1630 = vector.broadcast %1629 : f32 to vector<8x17xf32>
    %1631 = arith.mulf %1630, %1620 : vector<8x17xf32>
    %1632 = arith.addf %1598, %1631 : vector<8x17xf32>
    %c379 = arith.constant 379 : index
    %1633 = memref.load %arg3[%c379] : memref<512xf32, #tpu.memory_space<smem>>
    %1634 = vector.broadcast %1633 : f32 to vector<8x17xf32>
    %1635 = arith.mulf %1634, %1620 : vector<8x17xf32>
    %1636 = arith.addf %1602, %1635 : vector<8x17xf32>
    %c380 = arith.constant 380 : index
    %1637 = memref.load %arg3[%c380] : memref<512xf32, #tpu.memory_space<smem>>
    %1638 = vector.broadcast %1637 : f32 to vector<8x17xf32>
    %1639 = arith.mulf %1638, %1620 : vector<8x17xf32>
    %1640 = arith.addf %1606, %1639 : vector<8x17xf32>
    %c381 = arith.constant 381 : index
    %1641 = memref.load %arg3[%c381] : memref<512xf32, #tpu.memory_space<smem>>
    %1642 = vector.broadcast %1641 : f32 to vector<8x17xf32>
    %1643 = arith.mulf %1642, %1620 : vector<8x17xf32>
    %1644 = arith.addf %1610, %1643 : vector<8x17xf32>
    %c382 = arith.constant 382 : index
    %1645 = memref.load %arg3[%c382] : memref<512xf32, #tpu.memory_space<smem>>
    %1646 = vector.broadcast %1645 : f32 to vector<8x17xf32>
    %1647 = arith.mulf %1646, %1620 : vector<8x17xf32>
    %1648 = arith.addf %1614, %1647 : vector<8x17xf32>
    %c383 = arith.constant 383 : index
    %1649 = memref.load %arg3[%c383] : memref<512xf32, #tpu.memory_space<smem>>
    %1650 = vector.broadcast %1649 : f32 to vector<8x17xf32>
    %1651 = arith.mulf %1650, %1620 : vector<8x17xf32>
    %1652 = arith.addf %1618, %1651 : vector<8x17xf32>
    %1653 = vector.extract_strided_slice %4 {offsets = [0, 3, 0], sizes = [1, 8, 17], strides = [1, 1, 1]} : vector<4x11x20xf32> to vector<1x8x17xf32>
    %1654 = vector.shape_cast %1653 : vector<1x8x17xf32> to vector<8x17xf32>
    %c384 = arith.constant 384 : index
    %1655 = memref.load %arg3[%c384] : memref<512xf32, #tpu.memory_space<smem>>
    %1656 = vector.broadcast %1655 : f32 to vector<8x17xf32>
    %1657 = arith.mulf %1656, %1654 : vector<8x17xf32>
    %1658 = arith.addf %1624, %1657 : vector<8x17xf32>
    %c385 = arith.constant 385 : index
    %1659 = memref.load %arg3[%c385] : memref<512xf32, #tpu.memory_space<smem>>
    %1660 = vector.broadcast %1659 : f32 to vector<8x17xf32>
    %1661 = arith.mulf %1660, %1654 : vector<8x17xf32>
    %1662 = arith.addf %1628, %1661 : vector<8x17xf32>
    %c386 = arith.constant 386 : index
    %1663 = memref.load %arg3[%c386] : memref<512xf32, #tpu.memory_space<smem>>
    %1664 = vector.broadcast %1663 : f32 to vector<8x17xf32>
    %1665 = arith.mulf %1664, %1654 : vector<8x17xf32>
    %1666 = arith.addf %1632, %1665 : vector<8x17xf32>
    %c387 = arith.constant 387 : index
    %1667 = memref.load %arg3[%c387] : memref<512xf32, #tpu.memory_space<smem>>
    %1668 = vector.broadcast %1667 : f32 to vector<8x17xf32>
    %1669 = arith.mulf %1668, %1654 : vector<8x17xf32>
    %1670 = arith.addf %1636, %1669 : vector<8x17xf32>
    %c388 = arith.constant 388 : index
    %1671 = memref.load %arg3[%c388] : memref<512xf32, #tpu.memory_space<smem>>
    %1672 = vector.broadcast %1671 : f32 to vector<8x17xf32>
    %1673 = arith.mulf %1672, %1654 : vector<8x17xf32>
    %1674 = arith.addf %1640, %1673 : vector<8x17xf32>
    %c389 = arith.constant 389 : index
    %1675 = memref.load %arg3[%c389] : memref<512xf32, #tpu.memory_space<smem>>
    %1676 = vector.broadcast %1675 : f32 to vector<8x17xf32>
    %1677 = arith.mulf %1676, %1654 : vector<8x17xf32>
    %1678 = arith.addf %1644, %1677 : vector<8x17xf32>
    %c390 = arith.constant 390 : index
    %1679 = memref.load %arg3[%c390] : memref<512xf32, #tpu.memory_space<smem>>
    %1680 = vector.broadcast %1679 : f32 to vector<8x17xf32>
    %1681 = arith.mulf %1680, %1654 : vector<8x17xf32>
    %1682 = arith.addf %1648, %1681 : vector<8x17xf32>
    %c391 = arith.constant 391 : index
    %1683 = memref.load %arg3[%c391] : memref<512xf32, #tpu.memory_space<smem>>
    %1684 = vector.broadcast %1683 : f32 to vector<8x17xf32>
    %1685 = arith.mulf %1684, %1654 : vector<8x17xf32>
    %1686 = arith.addf %1652, %1685 : vector<8x17xf32>
    %1687 = vector.extract_strided_slice %4 {offsets = [1, 3, 0], sizes = [1, 8, 17], strides = [1, 1, 1]} : vector<4x11x20xf32> to vector<1x8x17xf32>
    %1688 = vector.shape_cast %1687 : vector<1x8x17xf32> to vector<8x17xf32>
    %c392 = arith.constant 392 : index
    %1689 = memref.load %arg3[%c392] : memref<512xf32, #tpu.memory_space<smem>>
    %1690 = vector.broadcast %1689 : f32 to vector<8x17xf32>
    %1691 = arith.mulf %1690, %1688 : vector<8x17xf32>
    %1692 = arith.addf %1658, %1691 : vector<8x17xf32>
    %c393 = arith.constant 393 : index
    %1693 = memref.load %arg3[%c393] : memref<512xf32, #tpu.memory_space<smem>>
    %1694 = vector.broadcast %1693 : f32 to vector<8x17xf32>
    %1695 = arith.mulf %1694, %1688 : vector<8x17xf32>
    %1696 = arith.addf %1662, %1695 : vector<8x17xf32>
    %c394 = arith.constant 394 : index
    %1697 = memref.load %arg3[%c394] : memref<512xf32, #tpu.memory_space<smem>>
    %1698 = vector.broadcast %1697 : f32 to vector<8x17xf32>
    %1699 = arith.mulf %1698, %1688 : vector<8x17xf32>
    %1700 = arith.addf %1666, %1699 : vector<8x17xf32>
    %c395 = arith.constant 395 : index
    %1701 = memref.load %arg3[%c395] : memref<512xf32, #tpu.memory_space<smem>>
    %1702 = vector.broadcast %1701 : f32 to vector<8x17xf32>
    %1703 = arith.mulf %1702, %1688 : vector<8x17xf32>
    %1704 = arith.addf %1670, %1703 : vector<8x17xf32>
    %c396 = arith.constant 396 : index
    %1705 = memref.load %arg3[%c396] : memref<512xf32, #tpu.memory_space<smem>>
    %1706 = vector.broadcast %1705 : f32 to vector<8x17xf32>
    %1707 = arith.mulf %1706, %1688 : vector<8x17xf32>
    %1708 = arith.addf %1674, %1707 : vector<8x17xf32>
    %c397 = arith.constant 397 : index
    %1709 = memref.load %arg3[%c397] : memref<512xf32, #tpu.memory_space<smem>>
    %1710 = vector.broadcast %1709 : f32 to vector<8x17xf32>
    %1711 = arith.mulf %1710, %1688 : vector<8x17xf32>
    %1712 = arith.addf %1678, %1711 : vector<8x17xf32>
    %c398 = arith.constant 398 : index
    %1713 = memref.load %arg3[%c398] : memref<512xf32, #tpu.memory_space<smem>>
    %1714 = vector.broadcast %1713 : f32 to vector<8x17xf32>
    %1715 = arith.mulf %1714, %1688 : vector<8x17xf32>
    %1716 = arith.addf %1682, %1715 : vector<8x17xf32>
    %c399 = arith.constant 399 : index
    %1717 = memref.load %arg3[%c399] : memref<512xf32, #tpu.memory_space<smem>>
    %1718 = vector.broadcast %1717 : f32 to vector<8x17xf32>
    %1719 = arith.mulf %1718, %1688 : vector<8x17xf32>
    %1720 = arith.addf %1686, %1719 : vector<8x17xf32>
    %1721 = vector.extract_strided_slice %4 {offsets = [2, 3, 0], sizes = [1, 8, 17], strides = [1, 1, 1]} : vector<4x11x20xf32> to vector<1x8x17xf32>
    %1722 = vector.shape_cast %1721 : vector<1x8x17xf32> to vector<8x17xf32>
    %c400 = arith.constant 400 : index
    %1723 = memref.load %arg3[%c400] : memref<512xf32, #tpu.memory_space<smem>>
    %1724 = vector.broadcast %1723 : f32 to vector<8x17xf32>
    %1725 = arith.mulf %1724, %1722 : vector<8x17xf32>
    %1726 = arith.addf %1692, %1725 : vector<8x17xf32>
    %c401 = arith.constant 401 : index
    %1727 = memref.load %arg3[%c401] : memref<512xf32, #tpu.memory_space<smem>>
    %1728 = vector.broadcast %1727 : f32 to vector<8x17xf32>
    %1729 = arith.mulf %1728, %1722 : vector<8x17xf32>
    %1730 = arith.addf %1696, %1729 : vector<8x17xf32>
    %c402 = arith.constant 402 : index
    %1731 = memref.load %arg3[%c402] : memref<512xf32, #tpu.memory_space<smem>>
    %1732 = vector.broadcast %1731 : f32 to vector<8x17xf32>
    %1733 = arith.mulf %1732, %1722 : vector<8x17xf32>
    %1734 = arith.addf %1700, %1733 : vector<8x17xf32>
    %c403 = arith.constant 403 : index
    %1735 = memref.load %arg3[%c403] : memref<512xf32, #tpu.memory_space<smem>>
    %1736 = vector.broadcast %1735 : f32 to vector<8x17xf32>
    %1737 = arith.mulf %1736, %1722 : vector<8x17xf32>
    %1738 = arith.addf %1704, %1737 : vector<8x17xf32>
    %c404 = arith.constant 404 : index
    %1739 = memref.load %arg3[%c404] : memref<512xf32, #tpu.memory_space<smem>>
    %1740 = vector.broadcast %1739 : f32 to vector<8x17xf32>
    %1741 = arith.mulf %1740, %1722 : vector<8x17xf32>
    %1742 = arith.addf %1708, %1741 : vector<8x17xf32>
    %c405 = arith.constant 405 : index
    %1743 = memref.load %arg3[%c405] : memref<512xf32, #tpu.memory_space<smem>>
    %1744 = vector.broadcast %1743 : f32 to vector<8x17xf32>
    %1745 = arith.mulf %1744, %1722 : vector<8x17xf32>
    %1746 = arith.addf %1712, %1745 : vector<8x17xf32>
    %c406 = arith.constant 406 : index
    %1747 = memref.load %arg3[%c406] : memref<512xf32, #tpu.memory_space<smem>>
    %1748 = vector.broadcast %1747 : f32 to vector<8x17xf32>
    %1749 = arith.mulf %1748, %1722 : vector<8x17xf32>
    %1750 = arith.addf %1716, %1749 : vector<8x17xf32>
    %c407 = arith.constant 407 : index
    %1751 = memref.load %arg3[%c407] : memref<512xf32, #tpu.memory_space<smem>>
    %1752 = vector.broadcast %1751 : f32 to vector<8x17xf32>
    %1753 = arith.mulf %1752, %1722 : vector<8x17xf32>
    %1754 = arith.addf %1720, %1753 : vector<8x17xf32>
    %1755 = vector.extract_strided_slice %4 {offsets = [3, 3, 0], sizes = [1, 8, 17], strides = [1, 1, 1]} : vector<4x11x20xf32> to vector<1x8x17xf32>
    %1756 = vector.shape_cast %1755 : vector<1x8x17xf32> to vector<8x17xf32>
    %c408 = arith.constant 408 : index
    %1757 = memref.load %arg3[%c408] : memref<512xf32, #tpu.memory_space<smem>>
    %1758 = vector.broadcast %1757 : f32 to vector<8x17xf32>
    %1759 = arith.mulf %1758, %1756 : vector<8x17xf32>
    %1760 = arith.addf %1726, %1759 : vector<8x17xf32>
    %c409 = arith.constant 409 : index
    %1761 = memref.load %arg3[%c409] : memref<512xf32, #tpu.memory_space<smem>>
    %1762 = vector.broadcast %1761 : f32 to vector<8x17xf32>
    %1763 = arith.mulf %1762, %1756 : vector<8x17xf32>
    %1764 = arith.addf %1730, %1763 : vector<8x17xf32>
    %c410 = arith.constant 410 : index
    %1765 = memref.load %arg3[%c410] : memref<512xf32, #tpu.memory_space<smem>>
    %1766 = vector.broadcast %1765 : f32 to vector<8x17xf32>
    %1767 = arith.mulf %1766, %1756 : vector<8x17xf32>
    %1768 = arith.addf %1734, %1767 : vector<8x17xf32>
    %c411 = arith.constant 411 : index
    %1769 = memref.load %arg3[%c411] : memref<512xf32, #tpu.memory_space<smem>>
    %1770 = vector.broadcast %1769 : f32 to vector<8x17xf32>
    %1771 = arith.mulf %1770, %1756 : vector<8x17xf32>
    %1772 = arith.addf %1738, %1771 : vector<8x17xf32>
    %c412 = arith.constant 412 : index
    %1773 = memref.load %arg3[%c412] : memref<512xf32, #tpu.memory_space<smem>>
    %1774 = vector.broadcast %1773 : f32 to vector<8x17xf32>
    %1775 = arith.mulf %1774, %1756 : vector<8x17xf32>
    %1776 = arith.addf %1742, %1775 : vector<8x17xf32>
    %c413 = arith.constant 413 : index
    %1777 = memref.load %arg3[%c413] : memref<512xf32, #tpu.memory_space<smem>>
    %1778 = vector.broadcast %1777 : f32 to vector<8x17xf32>
    %1779 = arith.mulf %1778, %1756 : vector<8x17xf32>
    %1780 = arith.addf %1746, %1779 : vector<8x17xf32>
    %c414 = arith.constant 414 : index
    %1781 = memref.load %arg3[%c414] : memref<512xf32, #tpu.memory_space<smem>>
    %1782 = vector.broadcast %1781 : f32 to vector<8x17xf32>
    %1783 = arith.mulf %1782, %1756 : vector<8x17xf32>
    %1784 = arith.addf %1750, %1783 : vector<8x17xf32>
    %c415 = arith.constant 415 : index
    %1785 = memref.load %arg3[%c415] : memref<512xf32, #tpu.memory_space<smem>>
    %1786 = vector.broadcast %1785 : f32 to vector<8x17xf32>
    %1787 = arith.mulf %1786, %1756 : vector<8x17xf32>
    %1788 = arith.addf %1754, %1787 : vector<8x17xf32>
    %1789 = vector.extract_strided_slice %4 {offsets = [0, 3, 1], sizes = [1, 8, 17], strides = [1, 1, 1]} : vector<4x11x20xf32> to vector<1x8x17xf32>
    %1790 = vector.shape_cast %1789 : vector<1x8x17xf32> to vector<8x17xf32>
    %c416 = arith.constant 416 : index
    %1791 = memref.load %arg3[%c416] : memref<512xf32, #tpu.memory_space<smem>>
    %1792 = vector.broadcast %1791 : f32 to vector<8x17xf32>
    %1793 = arith.mulf %1792, %1790 : vector<8x17xf32>
    %1794 = arith.addf %1760, %1793 : vector<8x17xf32>
    %c417 = arith.constant 417 : index
    %1795 = memref.load %arg3[%c417] : memref<512xf32, #tpu.memory_space<smem>>
    %1796 = vector.broadcast %1795 : f32 to vector<8x17xf32>
    %1797 = arith.mulf %1796, %1790 : vector<8x17xf32>
    %1798 = arith.addf %1764, %1797 : vector<8x17xf32>
    %c418 = arith.constant 418 : index
    %1799 = memref.load %arg3[%c418] : memref<512xf32, #tpu.memory_space<smem>>
    %1800 = vector.broadcast %1799 : f32 to vector<8x17xf32>
    %1801 = arith.mulf %1800, %1790 : vector<8x17xf32>
    %1802 = arith.addf %1768, %1801 : vector<8x17xf32>
    %c419 = arith.constant 419 : index
    %1803 = memref.load %arg3[%c419] : memref<512xf32, #tpu.memory_space<smem>>
    %1804 = vector.broadcast %1803 : f32 to vector<8x17xf32>
    %1805 = arith.mulf %1804, %1790 : vector<8x17xf32>
    %1806 = arith.addf %1772, %1805 : vector<8x17xf32>
    %c420 = arith.constant 420 : index
    %1807 = memref.load %arg3[%c420] : memref<512xf32, #tpu.memory_space<smem>>
    %1808 = vector.broadcast %1807 : f32 to vector<8x17xf32>
    %1809 = arith.mulf %1808, %1790 : vector<8x17xf32>
    %1810 = arith.addf %1776, %1809 : vector<8x17xf32>
    %c421 = arith.constant 421 : index
    %1811 = memref.load %arg3[%c421] : memref<512xf32, #tpu.memory_space<smem>>
    %1812 = vector.broadcast %1811 : f32 to vector<8x17xf32>
    %1813 = arith.mulf %1812, %1790 : vector<8x17xf32>
    %1814 = arith.addf %1780, %1813 : vector<8x17xf32>
    %c422 = arith.constant 422 : index
    %1815 = memref.load %arg3[%c422] : memref<512xf32, #tpu.memory_space<smem>>
    %1816 = vector.broadcast %1815 : f32 to vector<8x17xf32>
    %1817 = arith.mulf %1816, %1790 : vector<8x17xf32>
    %1818 = arith.addf %1784, %1817 : vector<8x17xf32>
    %c423 = arith.constant 423 : index
    %1819 = memref.load %arg3[%c423] : memref<512xf32, #tpu.memory_space<smem>>
    %1820 = vector.broadcast %1819 : f32 to vector<8x17xf32>
    %1821 = arith.mulf %1820, %1790 : vector<8x17xf32>
    %1822 = arith.addf %1788, %1821 : vector<8x17xf32>
    %1823 = vector.extract_strided_slice %4 {offsets = [1, 3, 1], sizes = [1, 8, 17], strides = [1, 1, 1]} : vector<4x11x20xf32> to vector<1x8x17xf32>
    %1824 = vector.shape_cast %1823 : vector<1x8x17xf32> to vector<8x17xf32>
    %c424 = arith.constant 424 : index
    %1825 = memref.load %arg3[%c424] : memref<512xf32, #tpu.memory_space<smem>>
    %1826 = vector.broadcast %1825 : f32 to vector<8x17xf32>
    %1827 = arith.mulf %1826, %1824 : vector<8x17xf32>
    %1828 = arith.addf %1794, %1827 : vector<8x17xf32>
    %c425 = arith.constant 425 : index
    %1829 = memref.load %arg3[%c425] : memref<512xf32, #tpu.memory_space<smem>>
    %1830 = vector.broadcast %1829 : f32 to vector<8x17xf32>
    %1831 = arith.mulf %1830, %1824 : vector<8x17xf32>
    %1832 = arith.addf %1798, %1831 : vector<8x17xf32>
    %c426 = arith.constant 426 : index
    %1833 = memref.load %arg3[%c426] : memref<512xf32, #tpu.memory_space<smem>>
    %1834 = vector.broadcast %1833 : f32 to vector<8x17xf32>
    %1835 = arith.mulf %1834, %1824 : vector<8x17xf32>
    %1836 = arith.addf %1802, %1835 : vector<8x17xf32>
    %c427 = arith.constant 427 : index
    %1837 = memref.load %arg3[%c427] : memref<512xf32, #tpu.memory_space<smem>>
    %1838 = vector.broadcast %1837 : f32 to vector<8x17xf32>
    %1839 = arith.mulf %1838, %1824 : vector<8x17xf32>
    %1840 = arith.addf %1806, %1839 : vector<8x17xf32>
    %c428 = arith.constant 428 : index
    %1841 = memref.load %arg3[%c428] : memref<512xf32, #tpu.memory_space<smem>>
    %1842 = vector.broadcast %1841 : f32 to vector<8x17xf32>
    %1843 = arith.mulf %1842, %1824 : vector<8x17xf32>
    %1844 = arith.addf %1810, %1843 : vector<8x17xf32>
    %c429 = arith.constant 429 : index
    %1845 = memref.load %arg3[%c429] : memref<512xf32, #tpu.memory_space<smem>>
    %1846 = vector.broadcast %1845 : f32 to vector<8x17xf32>
    %1847 = arith.mulf %1846, %1824 : vector<8x17xf32>
    %1848 = arith.addf %1814, %1847 : vector<8x17xf32>
    %c430 = arith.constant 430 : index
    %1849 = memref.load %arg3[%c430] : memref<512xf32, #tpu.memory_space<smem>>
    %1850 = vector.broadcast %1849 : f32 to vector<8x17xf32>
    %1851 = arith.mulf %1850, %1824 : vector<8x17xf32>
    %1852 = arith.addf %1818, %1851 : vector<8x17xf32>
    %c431 = arith.constant 431 : index
    %1853 = memref.load %arg3[%c431] : memref<512xf32, #tpu.memory_space<smem>>
    %1854 = vector.broadcast %1853 : f32 to vector<8x17xf32>
    %1855 = arith.mulf %1854, %1824 : vector<8x17xf32>
    %1856 = arith.addf %1822, %1855 : vector<8x17xf32>
    %1857 = vector.extract_strided_slice %4 {offsets = [2, 3, 1], sizes = [1, 8, 17], strides = [1, 1, 1]} : vector<4x11x20xf32> to vector<1x8x17xf32>
    %1858 = vector.shape_cast %1857 : vector<1x8x17xf32> to vector<8x17xf32>
    %c432 = arith.constant 432 : index
    %1859 = memref.load %arg3[%c432] : memref<512xf32, #tpu.memory_space<smem>>
    %1860 = vector.broadcast %1859 : f32 to vector<8x17xf32>
    %1861 = arith.mulf %1860, %1858 : vector<8x17xf32>
    %1862 = arith.addf %1828, %1861 : vector<8x17xf32>
    %c433 = arith.constant 433 : index
    %1863 = memref.load %arg3[%c433] : memref<512xf32, #tpu.memory_space<smem>>
    %1864 = vector.broadcast %1863 : f32 to vector<8x17xf32>
    %1865 = arith.mulf %1864, %1858 : vector<8x17xf32>
    %1866 = arith.addf %1832, %1865 : vector<8x17xf32>
    %c434 = arith.constant 434 : index
    %1867 = memref.load %arg3[%c434] : memref<512xf32, #tpu.memory_space<smem>>
    %1868 = vector.broadcast %1867 : f32 to vector<8x17xf32>
    %1869 = arith.mulf %1868, %1858 : vector<8x17xf32>
    %1870 = arith.addf %1836, %1869 : vector<8x17xf32>
    %c435 = arith.constant 435 : index
    %1871 = memref.load %arg3[%c435] : memref<512xf32, #tpu.memory_space<smem>>
    %1872 = vector.broadcast %1871 : f32 to vector<8x17xf32>
    %1873 = arith.mulf %1872, %1858 : vector<8x17xf32>
    %1874 = arith.addf %1840, %1873 : vector<8x17xf32>
    %c436 = arith.constant 436 : index
    %1875 = memref.load %arg3[%c436] : memref<512xf32, #tpu.memory_space<smem>>
    %1876 = vector.broadcast %1875 : f32 to vector<8x17xf32>
    %1877 = arith.mulf %1876, %1858 : vector<8x17xf32>
    %1878 = arith.addf %1844, %1877 : vector<8x17xf32>
    %c437 = arith.constant 437 : index
    %1879 = memref.load %arg3[%c437] : memref<512xf32, #tpu.memory_space<smem>>
    %1880 = vector.broadcast %1879 : f32 to vector<8x17xf32>
    %1881 = arith.mulf %1880, %1858 : vector<8x17xf32>
    %1882 = arith.addf %1848, %1881 : vector<8x17xf32>
    %c438 = arith.constant 438 : index
    %1883 = memref.load %arg3[%c438] : memref<512xf32, #tpu.memory_space<smem>>
    %1884 = vector.broadcast %1883 : f32 to vector<8x17xf32>
    %1885 = arith.mulf %1884, %1858 : vector<8x17xf32>
    %1886 = arith.addf %1852, %1885 : vector<8x17xf32>
    %c439 = arith.constant 439 : index
    %1887 = memref.load %arg3[%c439] : memref<512xf32, #tpu.memory_space<smem>>
    %1888 = vector.broadcast %1887 : f32 to vector<8x17xf32>
    %1889 = arith.mulf %1888, %1858 : vector<8x17xf32>
    %1890 = arith.addf %1856, %1889 : vector<8x17xf32>
    %1891 = vector.extract_strided_slice %4 {offsets = [3, 3, 1], sizes = [1, 8, 17], strides = [1, 1, 1]} : vector<4x11x20xf32> to vector<1x8x17xf32>
    %1892 = vector.shape_cast %1891 : vector<1x8x17xf32> to vector<8x17xf32>
    %c440 = arith.constant 440 : index
    %1893 = memref.load %arg3[%c440] : memref<512xf32, #tpu.memory_space<smem>>
    %1894 = vector.broadcast %1893 : f32 to vector<8x17xf32>
    %1895 = arith.mulf %1894, %1892 : vector<8x17xf32>
    %1896 = arith.addf %1862, %1895 : vector<8x17xf32>
    %c441 = arith.constant 441 : index
    %1897 = memref.load %arg3[%c441] : memref<512xf32, #tpu.memory_space<smem>>
    %1898 = vector.broadcast %1897 : f32 to vector<8x17xf32>
    %1899 = arith.mulf %1898, %1892 : vector<8x17xf32>
    %1900 = arith.addf %1866, %1899 : vector<8x17xf32>
    %c442 = arith.constant 442 : index
    %1901 = memref.load %arg3[%c442] : memref<512xf32, #tpu.memory_space<smem>>
    %1902 = vector.broadcast %1901 : f32 to vector<8x17xf32>
    %1903 = arith.mulf %1902, %1892 : vector<8x17xf32>
    %1904 = arith.addf %1870, %1903 : vector<8x17xf32>
    %c443 = arith.constant 443 : index
    %1905 = memref.load %arg3[%c443] : memref<512xf32, #tpu.memory_space<smem>>
    %1906 = vector.broadcast %1905 : f32 to vector<8x17xf32>
    %1907 = arith.mulf %1906, %1892 : vector<8x17xf32>
    %1908 = arith.addf %1874, %1907 : vector<8x17xf32>
    %c444 = arith.constant 444 : index
    %1909 = memref.load %arg3[%c444] : memref<512xf32, #tpu.memory_space<smem>>
    %1910 = vector.broadcast %1909 : f32 to vector<8x17xf32>
    %1911 = arith.mulf %1910, %1892 : vector<8x17xf32>
    %1912 = arith.addf %1878, %1911 : vector<8x17xf32>
    %c445 = arith.constant 445 : index
    %1913 = memref.load %arg3[%c445] : memref<512xf32, #tpu.memory_space<smem>>
    %1914 = vector.broadcast %1913 : f32 to vector<8x17xf32>
    %1915 = arith.mulf %1914, %1892 : vector<8x17xf32>
    %1916 = arith.addf %1882, %1915 : vector<8x17xf32>
    %c446 = arith.constant 446 : index
    %1917 = memref.load %arg3[%c446] : memref<512xf32, #tpu.memory_space<smem>>
    %1918 = vector.broadcast %1917 : f32 to vector<8x17xf32>
    %1919 = arith.mulf %1918, %1892 : vector<8x17xf32>
    %1920 = arith.addf %1886, %1919 : vector<8x17xf32>
    %c447 = arith.constant 447 : index
    %1921 = memref.load %arg3[%c447] : memref<512xf32, #tpu.memory_space<smem>>
    %1922 = vector.broadcast %1921 : f32 to vector<8x17xf32>
    %1923 = arith.mulf %1922, %1892 : vector<8x17xf32>
    %1924 = arith.addf %1890, %1923 : vector<8x17xf32>
    %1925 = vector.extract_strided_slice %4 {offsets = [0, 3, 2], sizes = [1, 8, 17], strides = [1, 1, 1]} : vector<4x11x20xf32> to vector<1x8x17xf32>
    %1926 = vector.shape_cast %1925 : vector<1x8x17xf32> to vector<8x17xf32>
    %c448 = arith.constant 448 : index
    %1927 = memref.load %arg3[%c448] : memref<512xf32, #tpu.memory_space<smem>>
    %1928 = vector.broadcast %1927 : f32 to vector<8x17xf32>
    %1929 = arith.mulf %1928, %1926 : vector<8x17xf32>
    %1930 = arith.addf %1896, %1929 : vector<8x17xf32>
    %c449 = arith.constant 449 : index
    %1931 = memref.load %arg3[%c449] : memref<512xf32, #tpu.memory_space<smem>>
    %1932 = vector.broadcast %1931 : f32 to vector<8x17xf32>
    %1933 = arith.mulf %1932, %1926 : vector<8x17xf32>
    %1934 = arith.addf %1900, %1933 : vector<8x17xf32>
    %c450 = arith.constant 450 : index
    %1935 = memref.load %arg3[%c450] : memref<512xf32, #tpu.memory_space<smem>>
    %1936 = vector.broadcast %1935 : f32 to vector<8x17xf32>
    %1937 = arith.mulf %1936, %1926 : vector<8x17xf32>
    %1938 = arith.addf %1904, %1937 : vector<8x17xf32>
    %c451 = arith.constant 451 : index
    %1939 = memref.load %arg3[%c451] : memref<512xf32, #tpu.memory_space<smem>>
    %1940 = vector.broadcast %1939 : f32 to vector<8x17xf32>
    %1941 = arith.mulf %1940, %1926 : vector<8x17xf32>
    %1942 = arith.addf %1908, %1941 : vector<8x17xf32>
    %c452 = arith.constant 452 : index
    %1943 = memref.load %arg3[%c452] : memref<512xf32, #tpu.memory_space<smem>>
    %1944 = vector.broadcast %1943 : f32 to vector<8x17xf32>
    %1945 = arith.mulf %1944, %1926 : vector<8x17xf32>
    %1946 = arith.addf %1912, %1945 : vector<8x17xf32>
    %c453 = arith.constant 453 : index
    %1947 = memref.load %arg3[%c453] : memref<512xf32, #tpu.memory_space<smem>>
    %1948 = vector.broadcast %1947 : f32 to vector<8x17xf32>
    %1949 = arith.mulf %1948, %1926 : vector<8x17xf32>
    %1950 = arith.addf %1916, %1949 : vector<8x17xf32>
    %c454 = arith.constant 454 : index
    %1951 = memref.load %arg3[%c454] : memref<512xf32, #tpu.memory_space<smem>>
    %1952 = vector.broadcast %1951 : f32 to vector<8x17xf32>
    %1953 = arith.mulf %1952, %1926 : vector<8x17xf32>
    %1954 = arith.addf %1920, %1953 : vector<8x17xf32>
    %c455 = arith.constant 455 : index
    %1955 = memref.load %arg3[%c455] : memref<512xf32, #tpu.memory_space<smem>>
    %1956 = vector.broadcast %1955 : f32 to vector<8x17xf32>
    %1957 = arith.mulf %1956, %1926 : vector<8x17xf32>
    %1958 = arith.addf %1924, %1957 : vector<8x17xf32>
    %1959 = vector.extract_strided_slice %4 {offsets = [1, 3, 2], sizes = [1, 8, 17], strides = [1, 1, 1]} : vector<4x11x20xf32> to vector<1x8x17xf32>
    %1960 = vector.shape_cast %1959 : vector<1x8x17xf32> to vector<8x17xf32>
    %c456 = arith.constant 456 : index
    %1961 = memref.load %arg3[%c456] : memref<512xf32, #tpu.memory_space<smem>>
    %1962 = vector.broadcast %1961 : f32 to vector<8x17xf32>
    %1963 = arith.mulf %1962, %1960 : vector<8x17xf32>
    %1964 = arith.addf %1930, %1963 : vector<8x17xf32>
    %c457 = arith.constant 457 : index
    %1965 = memref.load %arg3[%c457] : memref<512xf32, #tpu.memory_space<smem>>
    %1966 = vector.broadcast %1965 : f32 to vector<8x17xf32>
    %1967 = arith.mulf %1966, %1960 : vector<8x17xf32>
    %1968 = arith.addf %1934, %1967 : vector<8x17xf32>
    %c458 = arith.constant 458 : index
    %1969 = memref.load %arg3[%c458] : memref<512xf32, #tpu.memory_space<smem>>
    %1970 = vector.broadcast %1969 : f32 to vector<8x17xf32>
    %1971 = arith.mulf %1970, %1960 : vector<8x17xf32>
    %1972 = arith.addf %1938, %1971 : vector<8x17xf32>
    %c459 = arith.constant 459 : index
    %1973 = memref.load %arg3[%c459] : memref<512xf32, #tpu.memory_space<smem>>
    %1974 = vector.broadcast %1973 : f32 to vector<8x17xf32>
    %1975 = arith.mulf %1974, %1960 : vector<8x17xf32>
    %1976 = arith.addf %1942, %1975 : vector<8x17xf32>
    %c460 = arith.constant 460 : index
    %1977 = memref.load %arg3[%c460] : memref<512xf32, #tpu.memory_space<smem>>
    %1978 = vector.broadcast %1977 : f32 to vector<8x17xf32>
    %1979 = arith.mulf %1978, %1960 : vector<8x17xf32>
    %1980 = arith.addf %1946, %1979 : vector<8x17xf32>
    %c461 = arith.constant 461 : index
    %1981 = memref.load %arg3[%c461] : memref<512xf32, #tpu.memory_space<smem>>
    %1982 = vector.broadcast %1981 : f32 to vector<8x17xf32>
    %1983 = arith.mulf %1982, %1960 : vector<8x17xf32>
    %1984 = arith.addf %1950, %1983 : vector<8x17xf32>
    %c462 = arith.constant 462 : index
    %1985 = memref.load %arg3[%c462] : memref<512xf32, #tpu.memory_space<smem>>
    %1986 = vector.broadcast %1985 : f32 to vector<8x17xf32>
    %1987 = arith.mulf %1986, %1960 : vector<8x17xf32>
    %1988 = arith.addf %1954, %1987 : vector<8x17xf32>
    %c463 = arith.constant 463 : index
    %1989 = memref.load %arg3[%c463] : memref<512xf32, #tpu.memory_space<smem>>
    %1990 = vector.broadcast %1989 : f32 to vector<8x17xf32>
    %1991 = arith.mulf %1990, %1960 : vector<8x17xf32>
    %1992 = arith.addf %1958, %1991 : vector<8x17xf32>
    %1993 = vector.extract_strided_slice %4 {offsets = [2, 3, 2], sizes = [1, 8, 17], strides = [1, 1, 1]} : vector<4x11x20xf32> to vector<1x8x17xf32>
    %1994 = vector.shape_cast %1993 : vector<1x8x17xf32> to vector<8x17xf32>
    %c464 = arith.constant 464 : index
    %1995 = memref.load %arg3[%c464] : memref<512xf32, #tpu.memory_space<smem>>
    %1996 = vector.broadcast %1995 : f32 to vector<8x17xf32>
    %1997 = arith.mulf %1996, %1994 : vector<8x17xf32>
    %1998 = arith.addf %1964, %1997 : vector<8x17xf32>
    %c465 = arith.constant 465 : index
    %1999 = memref.load %arg3[%c465] : memref<512xf32, #tpu.memory_space<smem>>
    %2000 = vector.broadcast %1999 : f32 to vector<8x17xf32>
    %2001 = arith.mulf %2000, %1994 : vector<8x17xf32>
    %2002 = arith.addf %1968, %2001 : vector<8x17xf32>
    %c466 = arith.constant 466 : index
    %2003 = memref.load %arg3[%c466] : memref<512xf32, #tpu.memory_space<smem>>
    %2004 = vector.broadcast %2003 : f32 to vector<8x17xf32>
    %2005 = arith.mulf %2004, %1994 : vector<8x17xf32>
    %2006 = arith.addf %1972, %2005 : vector<8x17xf32>
    %c467 = arith.constant 467 : index
    %2007 = memref.load %arg3[%c467] : memref<512xf32, #tpu.memory_space<smem>>
    %2008 = vector.broadcast %2007 : f32 to vector<8x17xf32>
    %2009 = arith.mulf %2008, %1994 : vector<8x17xf32>
    %2010 = arith.addf %1976, %2009 : vector<8x17xf32>
    %c468 = arith.constant 468 : index
    %2011 = memref.load %arg3[%c468] : memref<512xf32, #tpu.memory_space<smem>>
    %2012 = vector.broadcast %2011 : f32 to vector<8x17xf32>
    %2013 = arith.mulf %2012, %1994 : vector<8x17xf32>
    %2014 = arith.addf %1980, %2013 : vector<8x17xf32>
    %c469 = arith.constant 469 : index
    %2015 = memref.load %arg3[%c469] : memref<512xf32, #tpu.memory_space<smem>>
    %2016 = vector.broadcast %2015 : f32 to vector<8x17xf32>
    %2017 = arith.mulf %2016, %1994 : vector<8x17xf32>
    %2018 = arith.addf %1984, %2017 : vector<8x17xf32>
    %c470 = arith.constant 470 : index
    %2019 = memref.load %arg3[%c470] : memref<512xf32, #tpu.memory_space<smem>>
    %2020 = vector.broadcast %2019 : f32 to vector<8x17xf32>
    %2021 = arith.mulf %2020, %1994 : vector<8x17xf32>
    %2022 = arith.addf %1988, %2021 : vector<8x17xf32>
    %c471 = arith.constant 471 : index
    %2023 = memref.load %arg3[%c471] : memref<512xf32, #tpu.memory_space<smem>>
    %2024 = vector.broadcast %2023 : f32 to vector<8x17xf32>
    %2025 = arith.mulf %2024, %1994 : vector<8x17xf32>
    %2026 = arith.addf %1992, %2025 : vector<8x17xf32>
    %2027 = vector.extract_strided_slice %4 {offsets = [3, 3, 2], sizes = [1, 8, 17], strides = [1, 1, 1]} : vector<4x11x20xf32> to vector<1x8x17xf32>
    %2028 = vector.shape_cast %2027 : vector<1x8x17xf32> to vector<8x17xf32>
    %c472 = arith.constant 472 : index
    %2029 = memref.load %arg3[%c472] : memref<512xf32, #tpu.memory_space<smem>>
    %2030 = vector.broadcast %2029 : f32 to vector<8x17xf32>
    %2031 = arith.mulf %2030, %2028 : vector<8x17xf32>
    %2032 = arith.addf %1998, %2031 : vector<8x17xf32>
    %c473 = arith.constant 473 : index
    %2033 = memref.load %arg3[%c473] : memref<512xf32, #tpu.memory_space<smem>>
    %2034 = vector.broadcast %2033 : f32 to vector<8x17xf32>
    %2035 = arith.mulf %2034, %2028 : vector<8x17xf32>
    %2036 = arith.addf %2002, %2035 : vector<8x17xf32>
    %c474 = arith.constant 474 : index
    %2037 = memref.load %arg3[%c474] : memref<512xf32, #tpu.memory_space<smem>>
    %2038 = vector.broadcast %2037 : f32 to vector<8x17xf32>
    %2039 = arith.mulf %2038, %2028 : vector<8x17xf32>
    %2040 = arith.addf %2006, %2039 : vector<8x17xf32>
    %c475 = arith.constant 475 : index
    %2041 = memref.load %arg3[%c475] : memref<512xf32, #tpu.memory_space<smem>>
    %2042 = vector.broadcast %2041 : f32 to vector<8x17xf32>
    %2043 = arith.mulf %2042, %2028 : vector<8x17xf32>
    %2044 = arith.addf %2010, %2043 : vector<8x17xf32>
    %c476 = arith.constant 476 : index
    %2045 = memref.load %arg3[%c476] : memref<512xf32, #tpu.memory_space<smem>>
    %2046 = vector.broadcast %2045 : f32 to vector<8x17xf32>
    %2047 = arith.mulf %2046, %2028 : vector<8x17xf32>
    %2048 = arith.addf %2014, %2047 : vector<8x17xf32>
    %c477 = arith.constant 477 : index
    %2049 = memref.load %arg3[%c477] : memref<512xf32, #tpu.memory_space<smem>>
    %2050 = vector.broadcast %2049 : f32 to vector<8x17xf32>
    %2051 = arith.mulf %2050, %2028 : vector<8x17xf32>
    %2052 = arith.addf %2018, %2051 : vector<8x17xf32>
    %c478 = arith.constant 478 : index
    %2053 = memref.load %arg3[%c478] : memref<512xf32, #tpu.memory_space<smem>>
    %2054 = vector.broadcast %2053 : f32 to vector<8x17xf32>
    %2055 = arith.mulf %2054, %2028 : vector<8x17xf32>
    %2056 = arith.addf %2022, %2055 : vector<8x17xf32>
    %c479 = arith.constant 479 : index
    %2057 = memref.load %arg3[%c479] : memref<512xf32, #tpu.memory_space<smem>>
    %2058 = vector.broadcast %2057 : f32 to vector<8x17xf32>
    %2059 = arith.mulf %2058, %2028 : vector<8x17xf32>
    %2060 = arith.addf %2026, %2059 : vector<8x17xf32>
    %2061 = vector.extract_strided_slice %4 {offsets = [0, 3, 3], sizes = [1, 8, 17], strides = [1, 1, 1]} : vector<4x11x20xf32> to vector<1x8x17xf32>
    %2062 = vector.shape_cast %2061 : vector<1x8x17xf32> to vector<8x17xf32>
    %c480 = arith.constant 480 : index
    %2063 = memref.load %arg3[%c480] : memref<512xf32, #tpu.memory_space<smem>>
    %2064 = vector.broadcast %2063 : f32 to vector<8x17xf32>
    %2065 = arith.mulf %2064, %2062 : vector<8x17xf32>
    %2066 = arith.addf %2032, %2065 : vector<8x17xf32>
    %c481 = arith.constant 481 : index
    %2067 = memref.load %arg3[%c481] : memref<512xf32, #tpu.memory_space<smem>>
    %2068 = vector.broadcast %2067 : f32 to vector<8x17xf32>
    %2069 = arith.mulf %2068, %2062 : vector<8x17xf32>
    %2070 = arith.addf %2036, %2069 : vector<8x17xf32>
    %c482 = arith.constant 482 : index
    %2071 = memref.load %arg3[%c482] : memref<512xf32, #tpu.memory_space<smem>>
    %2072 = vector.broadcast %2071 : f32 to vector<8x17xf32>
    %2073 = arith.mulf %2072, %2062 : vector<8x17xf32>
    %2074 = arith.addf %2040, %2073 : vector<8x17xf32>
    %c483 = arith.constant 483 : index
    %2075 = memref.load %arg3[%c483] : memref<512xf32, #tpu.memory_space<smem>>
    %2076 = vector.broadcast %2075 : f32 to vector<8x17xf32>
    %2077 = arith.mulf %2076, %2062 : vector<8x17xf32>
    %2078 = arith.addf %2044, %2077 : vector<8x17xf32>
    %c484 = arith.constant 484 : index
    %2079 = memref.load %arg3[%c484] : memref<512xf32, #tpu.memory_space<smem>>
    %2080 = vector.broadcast %2079 : f32 to vector<8x17xf32>
    %2081 = arith.mulf %2080, %2062 : vector<8x17xf32>
    %2082 = arith.addf %2048, %2081 : vector<8x17xf32>
    %c485 = arith.constant 485 : index
    %2083 = memref.load %arg3[%c485] : memref<512xf32, #tpu.memory_space<smem>>
    %2084 = vector.broadcast %2083 : f32 to vector<8x17xf32>
    %2085 = arith.mulf %2084, %2062 : vector<8x17xf32>
    %2086 = arith.addf %2052, %2085 : vector<8x17xf32>
    %c486 = arith.constant 486 : index
    %2087 = memref.load %arg3[%c486] : memref<512xf32, #tpu.memory_space<smem>>
    %2088 = vector.broadcast %2087 : f32 to vector<8x17xf32>
    %2089 = arith.mulf %2088, %2062 : vector<8x17xf32>
    %2090 = arith.addf %2056, %2089 : vector<8x17xf32>
    %c487 = arith.constant 487 : index
    %2091 = memref.load %arg3[%c487] : memref<512xf32, #tpu.memory_space<smem>>
    %2092 = vector.broadcast %2091 : f32 to vector<8x17xf32>
    %2093 = arith.mulf %2092, %2062 : vector<8x17xf32>
    %2094 = arith.addf %2060, %2093 : vector<8x17xf32>
    %2095 = vector.extract_strided_slice %4 {offsets = [1, 3, 3], sizes = [1, 8, 17], strides = [1, 1, 1]} : vector<4x11x20xf32> to vector<1x8x17xf32>
    %2096 = vector.shape_cast %2095 : vector<1x8x17xf32> to vector<8x17xf32>
    %c488 = arith.constant 488 : index
    %2097 = memref.load %arg3[%c488] : memref<512xf32, #tpu.memory_space<smem>>
    %2098 = vector.broadcast %2097 : f32 to vector<8x17xf32>
    %2099 = arith.mulf %2098, %2096 : vector<8x17xf32>
    %2100 = arith.addf %2066, %2099 : vector<8x17xf32>
    %c489 = arith.constant 489 : index
    %2101 = memref.load %arg3[%c489] : memref<512xf32, #tpu.memory_space<smem>>
    %2102 = vector.broadcast %2101 : f32 to vector<8x17xf32>
    %2103 = arith.mulf %2102, %2096 : vector<8x17xf32>
    %2104 = arith.addf %2070, %2103 : vector<8x17xf32>
    %c490 = arith.constant 490 : index
    %2105 = memref.load %arg3[%c490] : memref<512xf32, #tpu.memory_space<smem>>
    %2106 = vector.broadcast %2105 : f32 to vector<8x17xf32>
    %2107 = arith.mulf %2106, %2096 : vector<8x17xf32>
    %2108 = arith.addf %2074, %2107 : vector<8x17xf32>
    %c491 = arith.constant 491 : index
    %2109 = memref.load %arg3[%c491] : memref<512xf32, #tpu.memory_space<smem>>
    %2110 = vector.broadcast %2109 : f32 to vector<8x17xf32>
    %2111 = arith.mulf %2110, %2096 : vector<8x17xf32>
    %2112 = arith.addf %2078, %2111 : vector<8x17xf32>
    %c492 = arith.constant 492 : index
    %2113 = memref.load %arg3[%c492] : memref<512xf32, #tpu.memory_space<smem>>
    %2114 = vector.broadcast %2113 : f32 to vector<8x17xf32>
    %2115 = arith.mulf %2114, %2096 : vector<8x17xf32>
    %2116 = arith.addf %2082, %2115 : vector<8x17xf32>
    %c493 = arith.constant 493 : index
    %2117 = memref.load %arg3[%c493] : memref<512xf32, #tpu.memory_space<smem>>
    %2118 = vector.broadcast %2117 : f32 to vector<8x17xf32>
    %2119 = arith.mulf %2118, %2096 : vector<8x17xf32>
    %2120 = arith.addf %2086, %2119 : vector<8x17xf32>
    %c494 = arith.constant 494 : index
    %2121 = memref.load %arg3[%c494] : memref<512xf32, #tpu.memory_space<smem>>
    %2122 = vector.broadcast %2121 : f32 to vector<8x17xf32>
    %2123 = arith.mulf %2122, %2096 : vector<8x17xf32>
    %2124 = arith.addf %2090, %2123 : vector<8x17xf32>
    %c495 = arith.constant 495 : index
    %2125 = memref.load %arg3[%c495] : memref<512xf32, #tpu.memory_space<smem>>
    %2126 = vector.broadcast %2125 : f32 to vector<8x17xf32>
    %2127 = arith.mulf %2126, %2096 : vector<8x17xf32>
    %2128 = arith.addf %2094, %2127 : vector<8x17xf32>
    %2129 = vector.extract_strided_slice %4 {offsets = [2, 3, 3], sizes = [1, 8, 17], strides = [1, 1, 1]} : vector<4x11x20xf32> to vector<1x8x17xf32>
    %2130 = vector.shape_cast %2129 : vector<1x8x17xf32> to vector<8x17xf32>
    %c496 = arith.constant 496 : index
    %2131 = memref.load %arg3[%c496] : memref<512xf32, #tpu.memory_space<smem>>
    %2132 = vector.broadcast %2131 : f32 to vector<8x17xf32>
    %2133 = arith.mulf %2132, %2130 : vector<8x17xf32>
    %2134 = arith.addf %2100, %2133 : vector<8x17xf32>
    %c497 = arith.constant 497 : index
    %2135 = memref.load %arg3[%c497] : memref<512xf32, #tpu.memory_space<smem>>
    %2136 = vector.broadcast %2135 : f32 to vector<8x17xf32>
    %2137 = arith.mulf %2136, %2130 : vector<8x17xf32>
    %2138 = arith.addf %2104, %2137 : vector<8x17xf32>
    %c498 = arith.constant 498 : index
    %2139 = memref.load %arg3[%c498] : memref<512xf32, #tpu.memory_space<smem>>
    %2140 = vector.broadcast %2139 : f32 to vector<8x17xf32>
    %2141 = arith.mulf %2140, %2130 : vector<8x17xf32>
    %2142 = arith.addf %2108, %2141 : vector<8x17xf32>
    %c499 = arith.constant 499 : index
    %2143 = memref.load %arg3[%c499] : memref<512xf32, #tpu.memory_space<smem>>
    %2144 = vector.broadcast %2143 : f32 to vector<8x17xf32>
    %2145 = arith.mulf %2144, %2130 : vector<8x17xf32>
    %2146 = arith.addf %2112, %2145 : vector<8x17xf32>
    %c500 = arith.constant 500 : index
    %2147 = memref.load %arg3[%c500] : memref<512xf32, #tpu.memory_space<smem>>
    %2148 = vector.broadcast %2147 : f32 to vector<8x17xf32>
    %2149 = arith.mulf %2148, %2130 : vector<8x17xf32>
    %2150 = arith.addf %2116, %2149 : vector<8x17xf32>
    %c501 = arith.constant 501 : index
    %2151 = memref.load %arg3[%c501] : memref<512xf32, #tpu.memory_space<smem>>
    %2152 = vector.broadcast %2151 : f32 to vector<8x17xf32>
    %2153 = arith.mulf %2152, %2130 : vector<8x17xf32>
    %2154 = arith.addf %2120, %2153 : vector<8x17xf32>
    %c502 = arith.constant 502 : index
    %2155 = memref.load %arg3[%c502] : memref<512xf32, #tpu.memory_space<smem>>
    %2156 = vector.broadcast %2155 : f32 to vector<8x17xf32>
    %2157 = arith.mulf %2156, %2130 : vector<8x17xf32>
    %2158 = arith.addf %2124, %2157 : vector<8x17xf32>
    %c503 = arith.constant 503 : index
    %2159 = memref.load %arg3[%c503] : memref<512xf32, #tpu.memory_space<smem>>
    %2160 = vector.broadcast %2159 : f32 to vector<8x17xf32>
    %2161 = arith.mulf %2160, %2130 : vector<8x17xf32>
    %2162 = arith.addf %2128, %2161 : vector<8x17xf32>
    %2163 = vector.extract_strided_slice %4 {offsets = [3, 3, 3], sizes = [1, 8, 17], strides = [1, 1, 1]} : vector<4x11x20xf32> to vector<1x8x17xf32>
    %2164 = vector.shape_cast %2163 : vector<1x8x17xf32> to vector<8x17xf32>
    %c504 = arith.constant 504 : index
    %2165 = memref.load %arg3[%c504] : memref<512xf32, #tpu.memory_space<smem>>
    %2166 = vector.broadcast %2165 : f32 to vector<8x17xf32>
    %2167 = arith.mulf %2166, %2164 : vector<8x17xf32>
    %2168 = arith.addf %2134, %2167 : vector<8x17xf32>
    %c505 = arith.constant 505 : index
    %2169 = memref.load %arg3[%c505] : memref<512xf32, #tpu.memory_space<smem>>
    %2170 = vector.broadcast %2169 : f32 to vector<8x17xf32>
    %2171 = arith.mulf %2170, %2164 : vector<8x17xf32>
    %2172 = arith.addf %2138, %2171 : vector<8x17xf32>
    %c506 = arith.constant 506 : index
    %2173 = memref.load %arg3[%c506] : memref<512xf32, #tpu.memory_space<smem>>
    %2174 = vector.broadcast %2173 : f32 to vector<8x17xf32>
    %2175 = arith.mulf %2174, %2164 : vector<8x17xf32>
    %2176 = arith.addf %2142, %2175 : vector<8x17xf32>
    %c507 = arith.constant 507 : index
    %2177 = memref.load %arg3[%c507] : memref<512xf32, #tpu.memory_space<smem>>
    %2178 = vector.broadcast %2177 : f32 to vector<8x17xf32>
    %2179 = arith.mulf %2178, %2164 : vector<8x17xf32>
    %2180 = arith.addf %2146, %2179 : vector<8x17xf32>
    %c508 = arith.constant 508 : index
    %2181 = memref.load %arg3[%c508] : memref<512xf32, #tpu.memory_space<smem>>
    %2182 = vector.broadcast %2181 : f32 to vector<8x17xf32>
    %2183 = arith.mulf %2182, %2164 : vector<8x17xf32>
    %2184 = arith.addf %2150, %2183 : vector<8x17xf32>
    %c509 = arith.constant 509 : index
    %2185 = memref.load %arg3[%c509] : memref<512xf32, #tpu.memory_space<smem>>
    %2186 = vector.broadcast %2185 : f32 to vector<8x17xf32>
    %2187 = arith.mulf %2186, %2164 : vector<8x17xf32>
    %2188 = arith.addf %2154, %2187 : vector<8x17xf32>
    %c510 = arith.constant 510 : index
    %2189 = memref.load %arg3[%c510] : memref<512xf32, #tpu.memory_space<smem>>
    %2190 = vector.broadcast %2189 : f32 to vector<8x17xf32>
    %2191 = arith.mulf %2190, %2164 : vector<8x17xf32>
    %2192 = arith.addf %2158, %2191 : vector<8x17xf32>
    %c511 = arith.constant 511 : index
    %2193 = memref.load %arg3[%c511] : memref<512xf32, #tpu.memory_space<smem>>
    %2194 = vector.broadcast %2193 : f32 to vector<8x17xf32>
    %2195 = arith.mulf %2194, %2164 : vector<8x17xf32>
    %2196 = arith.addf %2162, %2195 : vector<8x17xf32>
    %c0_11 = arith.constant 0 : index
    %c0_12 = arith.constant 0 : index
    %c0_13 = arith.constant 0 : index
    %c0_14 = arith.constant 0 : index
    %2197 = vector.load %arg5[%c0_11, %c0_12, %c0_13, %c0_14] : memref<1x8x8x17xf32, #tpu.memory_space<vmem>>, vector<1x1x8x17xf32>
    %2198 = vector.shape_cast %2197 : vector<1x1x8x17xf32> to vector<8x17xf32>
    %2199 = vector.shape_cast %2168 : vector<8x17xf32> to vector<1x1x8x17xf32>
    tpu.vector_store %arg5[%c0_11, %c0_12, %c0_13, %c0_14], %2199 {strides = array<i32>} : memref<1x8x8x17xf32, #tpu.memory_space<vmem>>, vector<1x1x8x17xf32>,
    %c0_15 = arith.constant 0 : index
    %c1_16 = arith.constant 1 : index
    %c0_17 = arith.constant 0 : index
    %c0_18 = arith.constant 0 : index
    %2200 = vector.load %arg5[%c0_15, %c1_16, %c0_17, %c0_18] : memref<1x8x8x17xf32, #tpu.memory_space<vmem>>, vector<1x1x8x17xf32>
    %2201 = vector.shape_cast %2200 : vector<1x1x8x17xf32> to vector<8x17xf32>
    %2202 = vector.shape_cast %2172 : vector<8x17xf32> to vector<1x1x8x17xf32>
    tpu.vector_store %arg5[%c0_15, %c1_16, %c0_17, %c0_18], %2202 {strides = array<i32>} : memref<1x8x8x17xf32, #tpu.memory_space<vmem>>, vector<1x1x8x17xf32>,
    %c0_19 = arith.constant 0 : index
    %c2_20 = arith.constant 2 : index
    %c0_21 = arith.constant 0 : index
    %c0_22 = arith.constant 0 : index
    %2203 = vector.load %arg5[%c0_19, %c2_20, %c0_21, %c0_22] : memref<1x8x8x17xf32, #tpu.memory_space<vmem>>, vector<1x1x8x17xf32>
    %2204 = vector.shape_cast %2203 : vector<1x1x8x17xf32> to vector<8x17xf32>
    %2205 = vector.shape_cast %2176 : vector<8x17xf32> to vector<1x1x8x17xf32>
    tpu.vector_store %arg5[%c0_19, %c2_20, %c0_21, %c0_22], %2205 {strides = array<i32>} : memref<1x8x8x17xf32, #tpu.memory_space<vmem>>, vector<1x1x8x17xf32>,
    %c0_23 = arith.constant 0 : index
    %c3_24 = arith.constant 3 : index
    %c0_25 = arith.constant 0 : index
    %c0_26 = arith.constant 0 : index
    %2206 = vector.load %arg5[%c0_23, %c3_24, %c0_25, %c0_26] : memref<1x8x8x17xf32, #tpu.memory_space<vmem>>, vector<1x1x8x17xf32>
    %2207 = vector.shape_cast %2206 : vector<1x1x8x17xf32> to vector<8x17xf32>
    %2208 = vector.shape_cast %2180 : vector<8x17xf32> to vector<1x1x8x17xf32>
    tpu.vector_store %arg5[%c0_23, %c3_24, %c0_25, %c0_26], %2208 {strides = array<i32>} : memref<1x8x8x17xf32, #tpu.memory_space<vmem>>, vector<1x1x8x17xf32>,
    %c0_27 = arith.constant 0 : index
    %c4_28 = arith.constant 4 : index
    %c0_29 = arith.constant 0 : index
    %c0_30 = arith.constant 0 : index
    %2209 = vector.load %arg5[%c0_27, %c4_28, %c0_29, %c0_30] : memref<1x8x8x17xf32, #tpu.memory_space<vmem>>, vector<1x1x8x17xf32>
    %2210 = vector.shape_cast %2209 : vector<1x1x8x17xf32> to vector<8x17xf32>
    %2211 = vector.shape_cast %2184 : vector<8x17xf32> to vector<1x1x8x17xf32>
    tpu.vector_store %arg5[%c0_27, %c4_28, %c0_29, %c0_30], %2211 {strides = array<i32>} : memref<1x8x8x17xf32, #tpu.memory_space<vmem>>, vector<1x1x8x17xf32>,
    %c0_31 = arith.constant 0 : index
    %c5_32 = arith.constant 5 : index
    %c0_33 = arith.constant 0 : index
    %c0_34 = arith.constant 0 : index
    %2212 = vector.load %arg5[%c0_31, %c5_32, %c0_33, %c0_34] : memref<1x8x8x17xf32, #tpu.memory_space<vmem>>, vector<1x1x8x17xf32>
    %2213 = vector.shape_cast %2212 : vector<1x1x8x17xf32> to vector<8x17xf32>
    %2214 = vector.shape_cast %2188 : vector<8x17xf32> to vector<1x1x8x17xf32>
    tpu.vector_store %arg5[%c0_31, %c5_32, %c0_33, %c0_34], %2214 {strides = array<i32>} : memref<1x8x8x17xf32, #tpu.memory_space<vmem>>, vector<1x1x8x17xf32>,
    %c0_35 = arith.constant 0 : index
    %c6_36 = arith.constant 6 : index
    %c0_37 = arith.constant 0 : index
    %c0_38 = arith.constant 0 : index
    %2215 = vector.load %arg5[%c0_35, %c6_36, %c0_37, %c0_38] : memref<1x8x8x17xf32, #tpu.memory_space<vmem>>, vector<1x1x8x17xf32>
    %2216 = vector.shape_cast %2215 : vector<1x1x8x17xf32> to vector<8x17xf32>
    %2217 = vector.shape_cast %2192 : vector<8x17xf32> to vector<1x1x8x17xf32>
    tpu.vector_store %arg5[%c0_35, %c6_36, %c0_37, %c0_38], %2217 {strides = array<i32>} : memref<1x8x8x17xf32, #tpu.memory_space<vmem>>, vector<1x1x8x17xf32>,
    %c0_39 = arith.constant 0 : index
    %c7_40 = arith.constant 7 : index
    %c0_41 = arith.constant 0 : index
    %c0_42 = arith.constant 0 : index
    %2218 = vector.load %arg5[%c0_39, %c7_40, %c0_41, %c0_42] : memref<1x8x8x17xf32, #tpu.memory_space<vmem>>, vector<1x1x8x17xf32>
    %2219 = vector.shape_cast %2218 : vector<1x1x8x17xf32> to vector<8x17xf32>
    %2220 = vector.shape_cast %2196 : vector<8x17xf32> to vector<1x1x8x17xf32>
    tpu.vector_store %arg5[%c0_39, %c7_40, %c0_41, %c0_42], %2220 {strides = array<i32>} : memref<1x8x8x17xf32, #tpu.memory_space<vmem>>, vector<1x1x8x17xf32>,
    return
  }
  func.func @transform_0(%arg0: i32, %arg1: i32) -> (i32, i32, i32, i32) {
    %c0_i32 = arith.constant 0 : i32
    %c0_i32_0 = arith.constant 0 : i32
    %c0_i32_1 = arith.constant 0 : i32
    %c0_i32_2 = arith.constant 0 : i32
    return %arg0, %c0_i32, %c0_i32_0, %c0_i32_1 : i32, i32, i32, i32
  }
  func.func @transform_1(%arg0: i32, %arg1: i32) -> i32 {
    %c0_i32 = arith.constant 0 : i32
    %c0_i32_0 = arith.constant 0 : i32
    return %c0_i32 : i32
  }
  func.func @transform_2(%arg0: i32, %arg1: i32) -> i32 {
    %c0_i32 = arith.constant 0 : i32
    %c0_i32_0 = arith.constant 0 : i32
    return %c0_i32 : i32
  }
  func.func @transform_3(%arg0: i32, %arg1: i32) -> (i32, i32, i32, i32) {
    %c0_i32 = arith.constant 0 : i32
    %c0_i32_0 = arith.constant 0 : i32
    %c0_i32_1 = arith.constant 0 : i32
    return %arg0, %c0_i32, %arg1, %c0_i32_0 : i32, i32, i32, i32
  }
}

</mosaic_0001>

<llo_original>
// kernel: tpu_custom_call.1
$region0: #{tpu_custom_call.1}
  #allocation0 [shape = 'u32[]', space=smem, size = 0x4, offset = 0x4, fixed_abs, tag = 'smem constant byte address 0x4 - core index']
  #allocation1 [shape = 'u32[144,128]{1,0:T(1,128)}', space=vmem, size = 0x12000, scoped, tag = 'internal scratch']
  %s0 = inlined_call_operand.vmem [shape: f32[2,4,27,20], index: 0, kind: input, shape index: {}]
  %s1 = inlined_call_operand.vmem [shape: f32[512], index: 1, kind: input, shape index: {}]
  %s2 = inlined_call_operand.vmem [shape: f32[8], index: 2, kind: input, shape index: {}]
  %s3 = inlined_call_operand.vmem [shape: f32[2,8,17,17], index: 3, kind: output, shape index: {}]
  %s4 = sld [smem:[#allocation0]]
  $region87: #{tpu_custom_call.1} parent=0
    _
  %s6 = ssub.s32 1, %s4
  %s7 = scalar_select 0, %s6, %s4
  $region1: #{tpu_custom_call.1} parent=0
    #allocation2 [shape = 'u8[2048]{0}', space=smem, size = 0x800, scoped, tag = 'input window, operand 1, single buffered']
    #allocation3 [shape = 's32[2]{0}', space=sflag, size = 0x8, scoped, tag = 'scoped memory for tpu_custom_call.1']
    #allocation4 [shape = 'u8[512]{0}', space=smem, size = 0x200, scoped, tag = 'input window, operand 2, single buffered']
    #allocation5 [shape = 's32[1]{0}', space=sflag, size = 0x4, scoped, tag = 'scoped memory for tpu_custom_call.1']
    #allocation6 [shape = 'u8[65536]{0}', space=vmem, size = 0x10000, scoped, tag = 'output window, operand 0']
    %8 = vsyncpa [#allocation3], 0
    %9 = vsyncpa [#allocation5], 0
    loop: start=0, step=1, limit=8
    $region2: #{tpu_custom_call.1} parent=1 // loop_pre_header
      _
    $region3: #{tpu_custom_call.1} parent=1 // loop_header
      %s11 = sphi 0, %s15
      %p12 = scmp.ge.s32.totalorder %s11, 8
      %s18 = sphi 0, %s30
      %s19 = sphi 0, %s26
      %s20 = sphi 0, %s18
      %s21 = sphi 0, %s19
      %s22 = sphi 0, %s20
      %s23 = sphi 0, %s21
      %s33 = sphi 0, %s35
      %s36 = sphi 0, %s33
      %s37 = sphi 0, %s36
      %s53 = sphi 0, %s37
      %s57 = sphi 0, %s57
      %s59 = sphi 0, %s57
      %s60 = sphi 0, %s59
      %s74 = sphi 0, %s60
      %s78 = sphi 0, %s78
      %s80 = sphi 0, %s78
      %s81 = sphi 0, %s80
      %s95 = sphi 0, %s81
      %s103 = sphi 0, %s105
      %s106 = sphi 0, %s103
      %s107 = sphi 0, %s106
      %s123 = sphi 0, %s107
    $region4: #{tpu_custom_call.1} parent=1 // loop_header_branch
      %14 = sbr.rel (%p12) target = $region8
    $region5: #{tpu_custom_call.1} parent=1 // loop_body
      %s16 = ssub.s32 %s11, 1
      %s17 = ssub.s32 %s11, 2
      %s24 = sadd.s32 1, %s19
      %p25 = scmp.ge.s32.totalorder %s24, 3
      %s26 = scalar_select %p25, 0, %s24
      %s27 = sadd.s32 1, %s18
      %s28 = scalar_select %p25, %s27, %s18
      %p29 = scmp.ge.s32.totalorder %s28, 2
      %s30 = scalar_select %p29, 0, %s28
      %s31 = ssub.s32 %s18, %s30
      %p32 = scmp.eq.s32.totalorder %s31, 0
      %s34 = sadd.s32 %s33, 1
      %s35 = scalar_select %p32, %s33, %s34
      %p38 = pneg %p32
      %p39 = scmp.eq.s32.totalorder %s11, 5
      %p40 = por %p38, %p39
      %p41 = scmp.ne.s32.totalorder %s33, %s36
      %p42 = scmp.eq.s32.totalorder %s11, 0
      %p43 = por %p41, %p42
      %p44 = scmp.ne.s32.totalorder %s33, %s36
      %p45 = scmp.eq.s32.totalorder %s16, 5
      %p46 = por %p44, %p45
      %p47 = scmp.ne.s32.totalorder %s36, %s37
      %p48 = scmp.eq.s32.totalorder %s16, 0
      %p49 = por %p47, %p48
      %p50 = scmp.ne.s32.totalorder %s36, %s37
      %p51 = scmp.eq.s32.totalorder %s17, 5
      %p52 = por %p50, %p51
      %p54 = scmp.ne.s32.totalorder %s37, %s53
      %p55 = scmp.eq.s32.totalorder %s17, 0
      %p56 = por %p54, %p55
      %s58 = sadd.s32 %s57, 1
      %p61 = scmp.eq.s32.totalorder %s11, 5
      %p62 = scmp.ne.s32.totalorder %s57, %s59
      %p63 = scmp.eq.s32.totalorder %s11, 0
      %p64 = por %p62, %p63
      %p65 = scmp.ne.s32.totalorder %s57, %s59
      %p66 = scmp.eq.s32.totalorder %s16, 5
      %p67 = por %p65, %p66
      %p68 = scmp.ne.s32.totalorder %s59, %s60
      %p69 = scmp.eq.s32.totalorder %s16, 0
      %p70 = por %p68, %p69
      %p71 = scmp.ne.s32.totalorder %s59, %s60
      %p72 = scmp.eq.s32.totalorder %s17, 5
      %p73 = por %p71, %p72
      %p75 = scmp.ne.s32.totalorder %s60, %s74
      %p76 = scmp.eq.s32.totalorder %s17, 0
      %p77 = por %p75, %p76
      %s79 = sadd.s32 %s78, 1
      %p82 = scmp.eq.s32.totalorder %s11, 5
      %p83 = scmp.ne.s32.totalorder %s78, %s80
      %p84 = scmp.eq.s32.totalorder %s11, 0
      %p85 = por %p83, %p84
      %p86 = scmp.ne.s32.totalorder %s78, %s80
      %p87 = scmp.eq.s32.totalorder %s16, 5
      %p88 = por %p86, %p87
      %p89 = scmp.ne.s32.totalorder %s80, %s81
      %p90 = scmp.eq.s32.totalorder %s16, 0
      %p91 = por %p89, %p90
      %p92 = scmp.ne.s32.totalorder %s80, %s81
      %p93 = scmp.eq.s32.totalorder %s17, 5
      %p94 = por %p92, %p93
      %p96 = scmp.ne.s32.totalorder %s81, %s95
      %p97 = scmp.eq.s32.totalorder %s17, 0
      %p98 = por %p96, %p97
      %s99 = ssub.s32 %s18, %s30
      %s100 = ssub.s32 %s19, %s26
      %s101 = sor.u32 %s99, %s100
      %p102 = scmp.eq.s32.totalorder %s101, 0
      %s104 = sadd.s32 %s103, 1
      %s105 = scalar_select %p102, %s103, %s104
      %p108 = pneg %p102
      %p109 = scmp.eq.s32.totalorder %s11, 5
      %p110 = por %p108, %p109
      %p111 = scmp.ne.s32.totalorder %s103, %s106
      %p112 = scmp.eq.s32.totalorder %s11, 0
      %p113 = por %p111, %p112
      %p114 = scmp.ne.s32.totalorder %s103, %s106
      %p115 = scmp.eq.s32.totalorder %s16, 5
      %p116 = por %p114, %p115
      %p117 = scmp.ne.s32.totalorder %s106, %s107
      %p118 = scmp.eq.s32.totalorder %s16, 0
      %p119 = por %p117, %p118
      %p120 = scmp.ne.s32.totalorder %s106, %s107
      %p121 = scmp.eq.s32.totalorder %s17, 5
      %p122 = por %p120, %p121
      %p124 = scmp.ne.s32.totalorder %s107, %s123
      %p125 = scmp.eq.s32.totalorder %s17, 0
      %p126 = por %p124, %p125
      %p127 = scmp.le.s32.totalorder 1, %s11
      %p128 = scmp.lt.s32.totalorder %s11, 7
      %p129 = pnand %p127, %p128
      %p130 = pneg %p129
      // Predicated region
      $region9: #{tpu_custom_call.1} parent=5 // pred_check
        _
      $region10: #{tpu_custom_call.1} parent=5 // pred_check_branch
        %132 = sbr.rel (%p129) target = $region12
      $region11: #{tpu_custom_call.1} parent=5 // pred_region
        %s133 = ssub.s32 %s11, 1
        // Predicated region
        $region13: #{tpu_custom_call.1} parent=11 // pred_check
          %p134 = pneg %p70
        $region14: #{tpu_custom_call.1} parent=11 // pred_check_branch
          %136 = sbr.rel (%p134) target = $region16
        $region15: #{tpu_custom_call.1} parent=11 // pred_region
          %s138 = ssub.s32 64, 64
          %139 = vsyncadd [#allocation3], %s138
          %s141 = sshll.u32 %s1, 4
          %s142 = int_to_ptr.vmem [resolvable:$true] %s141
          %144 = dma.vmem_to_smem %s142, 64, [#allocation2], [#allocation3]
        $region16: #{tpu_custom_call.1} parent=11 // pred_fallthru
          _
        // Predicated region
        $region17: #{tpu_custom_call.1} parent=11 // pred_check
          %p145 = pneg %p91
        $region18: #{tpu_custom_call.1} parent=11 // pred_check_branch
          %147 = sbr.rel (%p145) target = $region20
        $region19: #{tpu_custom_call.1} parent=11 // pred_region
          %s149 = ssub.s32 16, 16
          %150 = vsyncadd [#allocation5], %s149
          %s152 = sshll.u32 %s2, 4
          %s153 = int_to_ptr.vmem [resolvable:$true] %s152
          %155 = dma.vmem_to_smem %s153, 16, [#allocation4], [#allocation5]
        $region20: #{tpu_custom_call.1} parent=11 // pred_fallthru
          _
      $region12: #{tpu_custom_call.1} parent=5 // pred_fallthru
        _
      %p156 = scmp.lt.s32.totalorder %s11, 6
      // Predicated region
      $region21: #{tpu_custom_call.1} parent=5 // pred_check
        %p157 = pneg %p156
      $region22: #{tpu_custom_call.1} parent=5 // pred_check_branch
        %159 = sbr.rel (%p157) target = $region24
      $region23: #{tpu_custom_call.1} parent=5 // pred_region
        // Predicated region
        $region25: #{tpu_custom_call.1} parent=23 // pred_check
          %p160 = pneg %p43
        $region26: #{tpu_custom_call.1} parent=23 // pred_check_branch
          %162 = sbr.rel (%p160) target = $region28
        $region27: #{tpu_custom_call.1} parent=23 // pred_region
          %p163 = scmp.lt.s32.totalorder %s18, 1
          %s164 = scalar_select %p163, %s18, 1
          %s165 = smul.addr %s164, 16
          %s166 = smul.addr %s165, 8
          %s167 = scalar_lea.vmem %s0, %s166
        $region28: #{tpu_custom_call.1} parent=23 // pred_fallthru
          _
      $region24: #{tpu_custom_call.1} parent=5 // pred_fallthru
        _
      %p168 = scmp.le.s32.totalorder 1, %s11
      %p169 = scmp.lt.s32.totalorder %s11, 7
      %p170 = pnand %p168, %p169
      %p171 = pneg %p170
      // Predicated region
      $region29: #{tpu_custom_call.1} parent=5 // pred_check
        _
      $region30: #{tpu_custom_call.1} parent=5 // pred_check_branch
        %173 = sbr.rel (%p170) target = $region32
      $region31: #{tpu_custom_call.1} parent=5 // pred_region
        %s174 = ssub.s32 %s11, 1
        // Predicated region
        $region33: #{tpu_custom_call.1} parent=31 // pred_check
          %p175 = pneg %p70
        $region34: #{tpu_custom_call.1} parent=31 // pred_check_branch
          %177 = sbr.rel (%p175) target = $region36
        $region35: #{tpu_custom_call.1} parent=31 // pred_region
          %178 = dma.done [#allocation3], 64
        $region36: #{tpu_custom_call.1} parent=31 // pred_fallthru
          _
        // Predicated region
        $region37: #{tpu_custom_call.1} parent=31 // pred_check
          %p179 = pneg %p91
        $region38: #{tpu_custom_call.1} parent=31 // pred_check_branch
          %181 = sbr.rel (%p179) target = $region40
        $region39: #{tpu_custom_call.1} parent=31 // pred_region
          %182 = dma.done [#allocation5], 16
        $region40: #{tpu_custom_call.1} parent=31 // pred_fallthru
          _
        %183 = sfence
        %p184 = scmp.lt.s32.totalorder %s20, 1
        %s185 = scalar_select %p184, %s20, 1
        %s186 = smul.addr %s185, 16
        %s187 = smul.addr %s186, 8
        %s188 = scalar_lea.vmem %s0, %s187
        %p189 = pneg %p49
        %p190 = pneg %p46
        %p191 = pneg %p70
        %p192 = pneg %p67
        %p193 = pneg %p91
        %p194 = pneg %p88
        %p195 = pneg %p119
        %p196 = pneg %p116
        %s197 = sand.u32 %s106, 1
        %s198 = sand.u32 %s106, 1
        %s199 = smul.addr %s198, 64
        %s200 = scalar_lea.vmem [#allocation6], %s199
        %p201 = scmp.lt.s32.totalorder %s20, 1
        %s202 = scalar_select %p201, %s20, 1
        %s203 = smul.addr %s202, 16
        %s204 = smul.addr %s203, 8
        %s205 = scalar_lea.vmem %s0, %s204
        %s206 = smul.u32 %s21, 8
        %s207 = scalar_lea.vmem %s205, %s206
        %v208 = vld [vmem:[%s207] sm:$0xff]
        %v209 = vld [vmem:[%s207 + $0x8] sm:$0x7]
        %v210 = vld [vmem:[%s207 + $0x20] sm:$0xff]
        %v211 = vld [vmem:[%s207 + $0x28] sm:$0x7]
        %v212 = vld [vmem:[%s207 + $0x40] sm:$0xff]
        %v213 = vld [vmem:[%s207 + $0x48] sm:$0x7]
        %v214 = vld [vmem:[%s207 + $0x60] sm:$0xff]
        %v215 = vld [vmem:[%s207 + $0x68] sm:$0x7]
        %s216 = sld [smem:[#allocation4]]
        %v217 = vstv %s216
        %s218 = sld [smem:[#allocation4 + $0x1]]
        %v219 = vstv %s218
        %s220 = sld [smem:[#allocation4 + $0x2]]
        %v221 = vstv %s220
        %s222 = sld [smem:[#allocation4 + $0x3]]
        %v223 = vstv %s222
        %s224 = sld [smem:[#allocation4 + $0x4]]
        %v225 = vstv %s224
        %s226 = sld [smem:[#allocation4 + $0x5]]
        %v227 = vstv %s226
        %s228 = sld [smem:[#allocation4 + $0x6]]
        %v229 = vstv %s228
        %s230 = sld [smem:[#allocation4 + $0x7]]
        %v231 = vstv %s230
        %s232 = sld [smem:[#allocation2]]
        %v233 = vstv %s232
        %v234 = vmul.f32 %v233, %v208
        %v235 = vadd.f32 %v217, %v234
        %s236 = sld [smem:[#allocation2 + $0x1]]
        %v237 = vstv %s236
        %v238 = vmul.f32 %v237, %v208
        %v239 = vadd.f32 %v219, %v238
        %s240 = sld [smem:[#allocation2 + $0x2]]
        %v241 = vstv %s240
        %v242 = vmul.f32 %v241, %v208
        %v243 = vadd.f32 %v221, %v242
        %s244 = sld [smem:[#allocation2 + $0x3]]
        %v245 = vstv %s244
        %v246 = vmul.f32 %v245, %v208
        %v247 = vadd.f32 %v223, %v246
        %s248 = sld [smem:[#allocation2 + $0x4]]
        %v249 = vstv %s248
        %v250 = vmul.f32 %v249, %v208
        %v251 = vadd.f32 %v225, %v250
        %s252 = sld [smem:[#allocation2 + $0x5]]
        %v253 = vstv %s252
        %v254 = vmul.f32 %v253, %v208
        %v255 = vadd.f32 %v227, %v254
        %s256 = sld [smem:[#allocation2 + $0x6]]
        %v257 = vstv %s256
        %v258 = vmul.f32 %v257, %v208
        %v259 = vadd.f32 %v229, %v258
        %s260 = sld [smem:[#allocation2 + $0x7]]
        %v261 = vstv %s260
        %v262 = vmul.f32 %v261, %v208
        %v263 = vadd.f32 %v231, %v262
        %s264 = sld [smem:[#allocation2 + $0x8]]
        %v265 = vstv %s264
        %v266 = vmul.f32 %v265, %v210
        %v267 = vadd.f32 %v235, %v266
        %s268 = sld [smem:[#allocation2 + $0x9]]
        %v269 = vstv %s268
        %v270 = vmul.f32 %v269, %v210
        %v271 = vadd.f32 %v239, %v270
        %s272 = sld [smem:[#allocation2 + $0xa]]
        %v273 = vstv %s272
        %v274 = vmul.f32 %v273, %v210
        %v275 = vadd.f32 %v243, %v274
        %s276 = sld [smem:[#allocation2 + $0xb]]
        %v277 = vstv %s276
        %v278 = vmul.f32 %v277, %v210
        %v279 = vadd.f32 %v247, %v278
        %s280 = sld [smem:[#allocation2 + $0xc]]
        %v281 = vstv %s280
        %v282 = vmul.f32 %v281, %v210
        %v283 = vadd.f32 %v251, %v282
        %s284 = sld [smem:[#allocation2 + $0xd]]
        %v285 = vstv %s284
        %v286 = vmul.f32 %v285, %v210
        %v287 = vadd.f32 %v255, %v286
        %s288 = sld [smem:[#allocation2 + $0xe]]
        %v289 = vstv %s288
        %v290 = vmul.f32 %v289, %v210
        %v291 = vadd.f32 %v259, %v290
        %s292 = sld [smem:[#allocation2 + $0xf]]
        %v293 = vstv %s292
        %v294 = vmul.f32 %v293, %v210
        %v295 = vadd.f32 %v263, %v294
        %s296 = sld [smem:[#allocation2 + $0x10]]
        %v297 = vstv %s296
        %v298 = vmul.f32 %v297, %v212
        %v299 = vadd.f32 %v267, %v298
        %s300 = sld [smem:[#allocation2 + $0x11]]
        %v301 = vstv %s300
        %v302 = vmul.f32 %v301, %v212
        %v303 = vadd.f32 %v271, %v302
        %s304 = sld [smem:[#allocation2 + $0x12]]
        %v305 = vstv %s304
        %v306 = vmul.f32 %v305, %v212
        %v307 = vadd.f32 %v275, %v306
        %s308 = sld [smem:[#allocation2 + $0x13]]
        %v309 = vstv %s308
        %v310 = vmul.f32 %v309, %v212
        %v311 = vadd.f32 %v279, %v310
        %s312 = sld [smem:[#allocation2 + $0x14]]
        %v313 = vstv %s312
        %v314 = vmul.f32 %v313, %v212
        %v315 = vadd.f32 %v283, %v314
        %s316 = sld [smem:[#allocation2 + $0x15]]
        %v317 = vstv %s316
        %v318 = vmul.f32 %v317, %v212
        %v319 = vadd.f32 %v287, %v318
        %s320 = sld [smem:[#allocation2 + $0x16]]
        %v321 = vstv %s320
        %v322 = vmul.f32 %v321, %v212
        %v323 = vadd.f32 %v291, %v322
        %s324 = sld [smem:[#allocation2 + $0x17]]
        %v325 = vstv %s324
        %v326 = vmul.f32 %v325, %v212
        %v327 = vadd.f32 %v295, %v326
        %s328 = sld [smem:[#allocation2 + $0x18]]
        %v329 = vstv %s328
        %v330 = vmul.f32 %v329, %v214
        %v331 = vadd.f32 %v299, %v330
        %s332 = sld [smem:[#allocation2 + $0x19]]
        %v333 = vstv %s332
        %v334 = vmul.f32 %v333, %v214
        %v335 = vadd.f32 %v303, %v334
        %s336 = sld [smem:[#allocation2 + $0x1a]]
        %v337 = vstv %s336
        %v338 = vmul.f32 %v337, %v214
        %v339 = vadd.f32 %v307, %v338
        %s340 = sld [smem:[#allocation2 + $0x1b]]
        %v341 = vstv %s340
        %v342 = vmul.f32 %v341, %v214
        %v343 = vadd.f32 %v311, %v342
        %s344 = sld [smem:[#allocation2 + $0x1c]]
        %v345 = vstv %s344
        %v346 = vmul.f32 %v345, %v214
        %v347 = vadd.f32 %v315, %v346
        %s348 = sld [smem:[#allocation2 + $0x1d]]
        %v349 = vstv %s348
        %v350 = vmul.f32 %v349, %v214
        %v351 = vadd.f32 %v319, %v350
        %s352 = sld [smem:[#allocation2 + $0x1e]]
        %v353 = vstv %s352
        %v354 = vmul.f32 %v353, %v214
        %v355 = vadd.f32 %v323, %v354
        %s356 = sld [smem:[#allocation2 + $0x1f]]
        %v357 = vstv %s356
        %v358 = vmul.f32 %v357, %v214
        %v359 = vadd.f32 %v327, %v358
        %s360 = sld [smem:[#allocation2 + $0x20]]
        %v361 = vstv %s360
        %v362 = vmul.f32 %v361, %v208
        %364 = vrot.lane.b32.xlu0 %v362, 127
        %v365 = vpop.permute.xlu0 %364
        %v367 = vadd.f32 %v331, %v365
        %s368 = sld [smem:[#allocation2 + $0x21]]
        %v369 = vstv %s368
        %v370 = vmul.f32 %v369, %v208
        %372 = vrot.lane.b32.xlu0 %v370, 127
        %v373 = vpop.permute.xlu0 %372
        %v375 = vadd.f32 %v335, %v373
        %s376 = sld [smem:[#allocation2 + $0x22]]
        %v377 = vstv %s376
        %v378 = vmul.f32 %v377, %v208
        %380 = vrot.lane.b32.xlu0 %v378, 127
        %v381 = vpop.permute.xlu0 %380
        %v383 = vadd.f32 %v339, %v381
        %s384 = sld [smem:[#allocation2 + $0x23]]
        %v385 = vstv %s384
        %v386 = vmul.f32 %v385, %v208
        %388 = vrot.lane.b32.xlu0 %v386, 127
        %v389 = vpop.permute.xlu0 %388
        %v391 = vadd.f32 %v343, %v389
        %s392 = sld [smem:[#allocation2 + $0x24]]
        %v393 = vstv %s392
        %v394 = vmul.f32 %v393, %v208
        %396 = vrot.lane.b32.xlu0 %v394, 127
        %v397 = vpop.permute.xlu0 %396
        %v399 = vadd.f32 %v347, %v397
        %s400 = sld [smem:[#allocation2 + $0x25]]
        %v401 = vstv %s400
        %v402 = vmul.f32 %v401, %v208
        %404 = vrot.lane.b32.xlu0 %v402, 127
        %v405 = vpop.permute.xlu0 %404
        %v407 = vadd.f32 %v351, %v405
        %s408 = sld [smem:[#allocation2 + $0x26]]
        %v409 = vstv %s408
        %v410 = vmul.f32 %v409, %v208
        %412 = vrot.lane.b32.xlu0 %v410, 127
        %v413 = vpop.permute.xlu0 %412
        %v415 = vadd.f32 %v355, %v413
        %s416 = sld [smem:[#allocation2 + $0x27]]
        %v417 = vstv %s416
        %v418 = vmul.f32 %v417, %v208
        %420 = vrot.lane.b32.xlu0 %v418, 127
        %v421 = vpop.permute.xlu0 %420
        %v423 = vadd.f32 %v359, %v421
        %s424 = sld [smem:[#allocation2 + $0x28]]
        %v425 = vstv %s424
        %v426 = vmul.f32 %v425, %v210
        %428 = vrot.lane.b32.xlu0 %v426, 127
        %v429 = vpop.permute.xlu0 %428
        %v431 = vadd.f32 %v367, %v429
        %s432 = sld [smem:[#allocation2 + $0x29]]
        %v433 = vstv %s432
        %v434 = vmul.f32 %v433, %v210
        %436 = vrot.lane.b32.xlu0 %v434, 127
        %v437 = vpop.permute.xlu0 %436
        %v439 = vadd.f32 %v375, %v437
        %s440 = sld [smem:[#allocation2 + $0x2a]]
        %v441 = vstv %s440
        %v442 = vmul.f32 %v441, %v210
        %444 = vrot.lane.b32.xlu0 %v442, 127
        %v445 = vpop.permute.xlu0 %444
        %v447 = vadd.f32 %v383, %v445
        %s448 = sld [smem:[#allocation2 + $0x2b]]
        %v449 = vstv %s448
        %v450 = vmul.f32 %v449, %v210
        %452 = vrot.lane.b32.xlu0 %v450, 127
        %v453 = vpop.permute.xlu0 %452
        %v455 = vadd.f32 %v391, %v453
        %s456 = sld [smem:[#allocation2 + $0x2c]]
        %v457 = vstv %s456
        %v458 = vmul.f32 %v457, %v210
        %460 = vrot.lane.b32.xlu0 %v458, 127
        %v461 = vpop.permute.xlu0 %460
        %v463 = vadd.f32 %v399, %v461
        %s464 = sld [smem:[#allocation2 + $0x2d]]
        %v465 = vstv %s464
        %v466 = vmul.f32 %v465, %v210
        %468 = vrot.lane.b32.xlu0 %v466, 127
        %v469 = vpop.permute.xlu0 %468
        %v471 = vadd.f32 %v407, %v469
        %s472 = sld [smem:[#allocation2 + $0x2e]]
        %v473 = vstv %s472
        %v474 = vmul.f32 %v473, %v210
        %476 = vrot.lane.b32.xlu0 %v474, 127
        %v477 = vpop.permute.xlu0 %476
        %v479 = vadd.f32 %v415, %v477
        %s480 = sld [smem:[#allocation2 + $0x2f]]
        %v481 = vstv %s480
        %v482 = vmul.f32 %v481, %v210
        %484 = vrot.lane.b32.xlu0 %v482, 127
        %v485 = vpop.permute.xlu0 %484
        %v487 = vadd.f32 %v423, %v485
        %s488 = sld [smem:[#allocation2 + $0x30]]
        %v489 = vstv %s488
        %v490 = vmul.f32 %v489, %v212
        %492 = vrot.lane.b32.xlu0 %v490, 127
        %v493 = vpop.permute.xlu0 %492
        %v495 = vadd.f32 %v431, %v493
        %s496 = sld [smem:[#allocation2 + $0x31]]
        %v497 = vstv %s496
        %v498 = vmul.f32 %v497, %v212
        %500 = vrot.lane.b32.xlu0 %v498, 127
        %v501 = vpop.permute.xlu0 %500
        %v503 = vadd.f32 %v439, %v501
        %s504 = sld [smem:[#allocation2 + $0x32]]
        %v505 = vstv %s504
        %v506 = vmul.f32 %v505, %v212
        %508 = vrot.lane.b32.xlu0 %v506, 127
        %v509 = vpop.permute.xlu0 %508
        %v511 = vadd.f32 %v447, %v509
        %s512 = sld [smem:[#allocation2 + $0x33]]
        %v513 = vstv %s512
        %v514 = vmul.f32 %v513, %v212
        %516 = vrot.lane.b32.xlu0 %v514, 127
        %v517 = vpop.permute.xlu0 %516
        %v519 = vadd.f32 %v455, %v517
        %s520 = sld [smem:[#allocation2 + $0x34]]
        %v521 = vstv %s520
        %v522 = vmul.f32 %v521, %v212
        %524 = vrot.lane.b32.xlu0 %v522, 127
        %v525 = vpop.permute.xlu0 %524
        %v527 = vadd.f32 %v463, %v525
        %s528 = sld [smem:[#allocation2 + $0x35]]
        %v529 = vstv %s528
        %v530 = vmul.f32 %v529, %v212
        %532 = vrot.lane.b32.xlu0 %v530, 127
        %v533 = vpop.permute.xlu0 %532
        %v535 = vadd.f32 %v471, %v533
        %s536 = sld [smem:[#allocation2 + $0x36]]
        %v537 = vstv %s536
        %v538 = vmul.f32 %v537, %v212
        %540 = vrot.lane.b32.xlu0 %v538, 127
        %v541 = vpop.permute.xlu0 %540
        %v543 = vadd.f32 %v479, %v541
        %s544 = sld [smem:[#allocation2 + $0x37]]
        %v545 = vstv %s544
        %v546 = vmul.f32 %v545, %v212
        %548 = vrot.lane.b32.xlu0 %v546, 127
        %v549 = vpop.permute.xlu0 %548
        %v551 = vadd.f32 %v487, %v549
        %s552 = sld [smem:[#allocation2 + $0x38]]
        %v553 = vstv %s552
        %v554 = vmul.f32 %v553, %v214
        %556 = vrot.lane.b32.xlu0 %v554, 127
        %v557 = vpop.permute.xlu0 %556
        %v559 = vadd.f32 %v495, %v557
        %s560 = sld [smem:[#allocation2 + $0x39]]
        %v561 = vstv %s560
        %v562 = vmul.f32 %v561, %v214
        %564 = vrot.lane.b32.xlu0 %v562, 127
        %v565 = vpop.permute.xlu0 %564
        %v567 = vadd.f32 %v503, %v565
        %s568 = sld [smem:[#allocation2 + $0x3a]]
        %v569 = vstv %s568
        %v570 = vmul.f32 %v569, %v214
        %572 = vrot.lane.b32.xlu0 %v570, 127
        %v573 = vpop.permute.xlu0 %572
        %v575 = vadd.f32 %v511, %v573
        %s576 = sld [smem:[#allocation2 + $0x3b]]
        %v577 = vstv %s576
        %v578 = vmul.f32 %v577, %v214
        %580 = vrot.lane.b32.xlu0 %v578, 127
        %v581 = vpop.permute.xlu0 %580
        %v583 = vadd.f32 %v519, %v581
        %s584 = sld [smem:[#allocation2 + $0x3c]]
        %v585 = vstv %s584
        %v586 = vmul.f32 %v585, %v214
        %588 = vrot.lane.b32.xlu0 %v586, 127
        %v589 = vpop.permute.xlu0 %588
        %v591 = vadd.f32 %v527, %v589
        %s592 = sld [smem:[#allocation2 + $0x3d]]
        %v593 = vstv %s592
        %v594 = vmul.f32 %v593, %v214
        %596 = vrot.lane.b32.xlu0 %v594, 127
        %v597 = vpop.permute.xlu0 %596
        %v599 = vadd.f32 %v535, %v597
        %s600 = sld [smem:[#allocation2 + $0x3e]]
        %v601 = vstv %s600
        %v602 = vmul.f32 %v601, %v214
        %604 = vrot.lane.b32.xlu0 %v602, 127
        %v605 = vpop.permute.xlu0 %604
        %v607 = vadd.f32 %v543, %v605
        %s608 = sld [smem:[#allocation2 + $0x3f]]
        %v609 = vstv %s608
        %v610 = vmul.f32 %v609, %v214
        %612 = vrot.lane.b32.xlu0 %v610, 127
        %v613 = vpop.permute.xlu0 %612
        %v615 = vadd.f32 %v551, %v613
        %s616 = sld [smem:[#allocation2 + $0x40]]
        %v617 = vstv %s616
        %v618 = vmul.f32 %v617, %v208
        %620 = vrot.lane.b32.xlu0 %v618, 126
        %v621 = vpop.permute.xlu0 %620
        %v623 = vadd.f32 %v559, %v621
        %s624 = sld [smem:[#allocation2 + $0x41]]
        %v625 = vstv %s624
        %v626 = vmul.f32 %v625, %v208
        %628 = vrot.lane.b32.xlu0 %v626, 126
        %v629 = vpop.permute.xlu0 %628
        %v631 = vadd.f32 %v567, %v629
        %s632 = sld [smem:[#allocation2 + $0x42]]
        %v633 = vstv %s632
        %v634 = vmul.f32 %v633, %v208
        %636 = vrot.lane.b32.xlu0 %v634, 126
        %v637 = vpop.permute.xlu0 %636
        %v639 = vadd.f32 %v575, %v637
        %s640 = sld [smem:[#allocation2 + $0x43]]
        %v641 = vstv %s640
        %v642 = vmul.f32 %v641, %v208
        %644 = vrot.lane.b32.xlu0 %v642, 126
        %v645 = vpop.permute.xlu0 %644
        %v647 = vadd.f32 %v583, %v645
        %s648 = sld [smem:[#allocation2 + $0x44]]
        %v649 = vstv %s648
        %v650 = vmul.f32 %v649, %v208
        %652 = vrot.lane.b32.xlu0 %v650, 126
        %v653 = vpop.permute.xlu0 %652
        %v655 = vadd.f32 %v591, %v653
        %s656 = sld [smem:[#allocation2 + $0x45]]
        %v657 = vstv %s656
        %v658 = vmul.f32 %v657, %v208
        %660 = vrot.lane.b32.xlu0 %v658, 126
        %v661 = vpop.permute.xlu0 %660
        %v663 = vadd.f32 %v599, %v661
        %s664 = sld [smem:[#allocation2 + $0x46]]
        %v665 = vstv %s664
        %v666 = vmul.f32 %v665, %v208
        %668 = vrot.lane.b32.xlu0 %v666, 126
        %v669 = vpop.permute.xlu0 %668
        %v671 = vadd.f32 %v607, %v669
        %s672 = sld [smem:[#allocation2 + $0x47]]
        %v673 = vstv %s672
        %v674 = vmul.f32 %v673, %v208
        %676 = vrot.lane.b32.xlu0 %v674, 126
        %v677 = vpop.permute.xlu0 %676
        %v679 = vadd.f32 %v615, %v677
        %s680 = sld [smem:[#allocation2 + $0x48]]
        %v681 = vstv %s680
        %v682 = vmul.f32 %v681, %v210
        %684 = vrot.lane.b32.xlu0 %v682, 126
        %v685 = vpop.permute.xlu0 %684
        %v687 = vadd.f32 %v623, %v685
        %s688 = sld [smem:[#allocation2 + $0x49]]
        %v689 = vstv %s688
        %v690 = vmul.f32 %v689, %v210
        %692 = vrot.lane.b32.xlu0 %v690, 126
        %v693 = vpop.permute.xlu0 %692
        %v695 = vadd.f32 %v631, %v693
        %s696 = sld [smem:[#allocation2 + $0x4a]]
        %v697 = vstv %s696
        %v698 = vmul.f32 %v697, %v210
        %700 = vrot.lane.b32.xlu0 %v698, 126
        %v701 = vpop.permute.xlu0 %700
        %v703 = vadd.f32 %v639, %v701
        %s704 = sld [smem:[#allocation2 + $0x4b]]
        %v705 = vstv %s704
        %v706 = vmul.f32 %v705, %v210
        %708 = vrot.lane.b32.xlu0 %v706, 126
        %v709 = vpop.permute.xlu0 %708
        %v711 = vadd.f32 %v647, %v709
        %s712 = sld [smem:[#allocation2 + $0x4c]]
        %v713 = vstv %s712
        %v714 = vmul.f32 %v713, %v210
        %716 = vrot.lane.b32.xlu0 %v714, 126
        %v717 = vpop.permute.xlu0 %716
        %v719 = vadd.f32 %v655, %v717
        %s720 = sld [smem:[#allocation2 + $0x4d]]
        %v721 = vstv %s720
        %v722 = vmul.f32 %v721, %v210
        %724 = vrot.lane.b32.xlu0 %v722, 126
        %v725 = vpop.permute.xlu0 %724
        %v727 = vadd.f32 %v663, %v725
        %s728 = sld [smem:[#allocation2 + $0x4e]]
        %v729 = vstv %s728
        %v730 = vmul.f32 %v729, %v210
        %732 = vrot.lane.b32.xlu0 %v730, 126
        %v733 = vpop.permute.xlu0 %732
        %v735 = vadd.f32 %v671, %v733
        %s736 = sld [smem:[#allocation2 + $0x4f]]
        %v737 = vstv %s736
        %v738 = vmul.f32 %v737, %v210
        %740 = vrot.lane.b32.xlu0 %v738, 126
        %v741 = vpop.permute.xlu0 %740
        %v743 = vadd.f32 %v679, %v741
        %s744 = sld [smem:[#allocation2 + $0x50]]
        %v745 = vstv %s744
        %v746 = vmul.f32 %v745, %v212
        %748 = vrot.lane.b32.xlu0 %v746, 126
        %v749 = vpop.permute.xlu0 %748
        %v751 = vadd.f32 %v687, %v749
        %s752 = sld [smem:[#allocation2 + $0x51]]
        %v753 = vstv %s752
        %v754 = vmul.f32 %v753, %v212
        %756 = vrot.lane.b32.xlu0 %v754, 126
        %v757 = vpop.permute.xlu0 %756
        %v759 = vadd.f32 %v695, %v757
        %s760 = sld [smem:[#allocation2 + $0x52]]
        %v761 = vstv %s760
        %v762 = vmul.f32 %v761, %v212
        %764 = vrot.lane.b32.xlu0 %v762, 126
        %v765 = vpop.permute.xlu0 %764
        %v767 = vadd.f32 %v703, %v765
        %s768 = sld [smem:[#allocation2 + $0x53]]
        %v769 = vstv %s768
        %v770 = vmul.f32 %v769, %v212
        %772 = vrot.lane.b32.xlu0 %v770, 126
        %v773 = vpop.permute.xlu0 %772
        %v775 = vadd.f32 %v711, %v773
        %s776 = sld [smem:[#allocation2 + $0x54]]
        %v777 = vstv %s776
        %v778 = vmul.f32 %v777, %v212
        %780 = vrot.lane.b32.xlu0 %v778, 126
        %v781 = vpop.permute.xlu0 %780
        %v783 = vadd.f32 %v719, %v781
        %s784 = sld [smem:[#allocation2 + $0x55]]
        %v785 = vstv %s784
        %v786 = vmul.f32 %v785, %v212
        %788 = vrot.lane.b32.xlu0 %v786, 126
        %v789 = vpop.permute.xlu0 %788
        %v791 = vadd.f32 %v727, %v789
        %s792 = sld [smem:[#allocation2 + $0x56]]
        %v793 = vstv %s792
        %v794 = vmul.f32 %v793, %v212
        %796 = vrot.lane.b32.xlu0 %v794, 126
        %v797 = vpop.permute.xlu0 %796
        %v799 = vadd.f32 %v735, %v797
        %s800 = sld [smem:[#allocation2 + $0x57]]
        %v801 = vstv %s800
        %v802 = vmul.f32 %v801, %v212
        %804 = vrot.lane.b32.xlu0 %v802, 126
        %v805 = vpop.permute.xlu0 %804
        %v807 = vadd.f32 %v743, %v805
        %s808 = sld [smem:[#allocation2 + $0x58]]
        %v809 = vstv %s808
        %v810 = vmul.f32 %v809, %v214
        %812 = vrot.lane.b32.xlu0 %v810, 126
        %v813 = vpop.permute.xlu0 %812
        %v815 = vadd.f32 %v751, %v813
        %s816 = sld [smem:[#allocation2 + $0x59]]
        %v817 = vstv %s816
        %v818 = vmul.f32 %v817, %v214
        %820 = vrot.lane.b32.xlu0 %v818, 126
        %v821 = vpop.permute.xlu0 %820
        %v823 = vadd.f32 %v759, %v821
        %s824 = sld [smem:[#allocation2 + $0x5a]]
        %v825 = vstv %s824
        %v826 = vmul.f32 %v825, %v214
        %828 = vrot.lane.b32.xlu0 %v826, 126
        %v829 = vpop.permute.xlu0 %828
        %v831 = vadd.f32 %v767, %v829
        %s832 = sld [smem:[#allocation2 + $0x5b]]
        %v833 = vstv %s832
        %v834 = vmul.f32 %v833, %v214
        %836 = vrot.lane.b32.xlu0 %v834, 126
        %v837 = vpop.permute.xlu0 %836
        %v839 = vadd.f32 %v775, %v837
        %s840 = sld [smem:[#allocation2 + $0x5c]]
        %v841 = vstv %s840
        %v842 = vmul.f32 %v841, %v214
        %844 = vrot.lane.b32.xlu0 %v842, 126
        %v845 = vpop.permute.xlu0 %844
        %v847 = vadd.f32 %v783, %v845
        %s848 = sld [smem:[#allocation2 + $0x5d]]
        %v849 = vstv %s848
        %v850 = vmul.f32 %v849, %v214
        %852 = vrot.lane.b32.xlu0 %v850, 126
        %v853 = vpop.permute.xlu0 %852
        %v855 = vadd.f32 %v791, %v853
        %s856 = sld [smem:[#allocation2 + $0x5e]]
        %v857 = vstv %s856
        %v858 = vmul.f32 %v857, %v214
        %860 = vrot.lane.b32.xlu0 %v858, 126
        %v861 = vpop.permute.xlu0 %860
        %v863 = vadd.f32 %v799, %v861
        %s864 = sld [smem:[#allocation2 + $0x5f]]
        %v865 = vstv %s864
        %v866 = vmul.f32 %v865, %v214
        %868 = vrot.lane.b32.xlu0 %v866, 126
        %v869 = vpop.permute.xlu0 %868
        %v871 = vadd.f32 %v807, %v869
        %s872 = sld [smem:[#allocation2 + $0x60]]
        %v873 = vstv %s872
        %v874 = vmul.f32 %v873, %v208
        %876 = vrot.lane.b32.xlu0 %v874, 125
        %v877 = vpop.permute.xlu0 %876
        %v879 = vadd.f32 %v815, %v877
        %s880 = sld [smem:[#allocation2 + $0x61]]
        %v881 = vstv %s880
        %v882 = vmul.f32 %v881, %v208
        %884 = vrot.lane.b32.xlu0 %v882, 125
        %v885 = vpop.permute.xlu0 %884
        %v887 = vadd.f32 %v823, %v885
        %s888 = sld [smem:[#allocation2 + $0x62]]
        %v889 = vstv %s888
        %v890 = vmul.f32 %v889, %v208
        %892 = vrot.lane.b32.xlu0 %v890, 125
        %v893 = vpop.permute.xlu0 %892
        %v895 = vadd.f32 %v831, %v893
        %s896 = sld [smem:[#allocation2 + $0x63]]
        %v897 = vstv %s896
        %v898 = vmul.f32 %v897, %v208
        %900 = vrot.lane.b32.xlu0 %v898, 125
        %v901 = vpop.permute.xlu0 %900
        %v903 = vadd.f32 %v839, %v901
        %s904 = sld [smem:[#allocation2 + $0x64]]
        %v905 = vstv %s904
        %v906 = vmul.f32 %v905, %v208
        %908 = vrot.lane.b32.xlu0 %v906, 125
        %v909 = vpop.permute.xlu0 %908
        %v911 = vadd.f32 %v847, %v909
        %s912 = sld [smem:[#allocation2 + $0x65]]
        %v913 = vstv %s912
        %v914 = vmul.f32 %v913, %v208
        %916 = vrot.lane.b32.xlu0 %v914, 125
        %v917 = vpop.permute.xlu0 %916
        %v919 = vadd.f32 %v855, %v917
        %s920 = sld [smem:[#allocation2 + $0x66]]
        %v921 = vstv %s920
        %v922 = vmul.f32 %v921, %v208
        %924 = vrot.lane.b32.xlu0 %v922, 125
        %v925 = vpop.permute.xlu0 %924
        %v927 = vadd.f32 %v863, %v925
        %s928 = sld [smem:[#allocation2 + $0x67]]
        %v929 = vstv %s928
        %v930 = vmul.f32 %v929, %v208
        %932 = vrot.lane.b32.xlu0 %v930, 125
        %v933 = vpop.permute.xlu0 %932
        %v935 = vadd.f32 %v871, %v933
        %s936 = sld [smem:[#allocation2 + $0x68]]
        %v937 = vstv %s936
        %v938 = vmul.f32 %v937, %v210
        %940 = vrot.lane.b32.xlu0 %v938, 125
        %v941 = vpop.permute.xlu0 %940
        %v943 = vadd.f32 %v879, %v941
        %s944 = sld [smem:[#allocation2 + $0x69]]
        %v945 = vstv %s944
        %v946 = vmul.f32 %v945, %v210
        %948 = vrot.lane.b32.xlu0 %v946, 125
        %v949 = vpop.permute.xlu0 %948
        %v951 = vadd.f32 %v887, %v949
        %s952 = sld [smem:[#allocation2 + $0x6a]]
        %v953 = vstv %s952
        %v954 = vmul.f32 %v953, %v210
        %956 = vrot.lane.b32.xlu0 %v954, 125
        %v957 = vpop.permute.xlu0 %956
        %v959 = vadd.f32 %v895, %v957
        %s960 = sld [smem:[#allocation2 + $0x6b]]
        %v961 = vstv %s960
        %v962 = vmul.f32 %v961, %v210
        %964 = vrot.lane.b32.xlu0 %v962, 125
        %v965 = vpop.permute.xlu0 %964
        %v967 = vadd.f32 %v903, %v965
        %s968 = sld [smem:[#allocation2 + $0x6c]]
        %v969 = vstv %s968
        %v970 = vmul.f32 %v969, %v210
        %972 = vrot.lane.b32.xlu0 %v970, 125
        %v973 = vpop.permute.xlu0 %972
        %v975 = vadd.f32 %v911, %v973
        %s976 = sld [smem:[#allocation2 + $0x6d]]
        %v977 = vstv %s976
        %v978 = vmul.f32 %v977, %v210
        %980 = vrot.lane.b32.xlu0 %v978, 125
        %v981 = vpop.permute.xlu0 %980
        %v983 = vadd.f32 %v919, %v981
        %s984 = sld [smem:[#allocation2 + $0x6e]]
        %v985 = vstv %s984
        %v986 = vmul.f32 %v985, %v210
        %988 = vrot.lane.b32.xlu0 %v986, 125
        %v989 = vpop.permute.xlu0 %988
        %v991 = vadd.f32 %v927, %v989
        %s992 = sld [smem:[#allocation2 + $0x6f]]
        %v993 = vstv %s992
        %v994 = vmul.f32 %v993, %v210
        %996 = vrot.lane.b32.xlu0 %v994, 125
        %v997 = vpop.permute.xlu0 %996
        %v999 = vadd.f32 %v935, %v997
        %s1000 = sld [smem:[#allocation2 + $0x70]]
        %v1001 = vstv %s1000
        %v1002 = vmul.f32 %v1001, %v212
        %1004 = vrot.lane.b32.xlu0 %v1002, 125
        %v1005 = vpop.permute.xlu0 %1004
        %v1007 = vadd.f32 %v943, %v1005
        %s1008 = sld [smem:[#allocation2 + $0x71]]
        %v1009 = vstv %s1008
        %v1010 = vmul.f32 %v1009, %v212
        %1012 = vrot.lane.b32.xlu0 %v1010, 125
        %v1013 = vpop.permute.xlu0 %1012
        %v1015 = vadd.f32 %v951, %v1013
        %s1016 = sld [smem:[#allocation2 + $0x72]]
        %v1017 = vstv %s1016
        %v1018 = vmul.f32 %v1017, %v212
        %1020 = vrot.lane.b32.xlu0 %v1018, 125
        %v1021 = vpop.permute.xlu0 %1020
        %v1023 = vadd.f32 %v959, %v1021
        %s1024 = sld [smem:[#allocation2 + $0x73]]
        %v1025 = vstv %s1024
        %v1026 = vmul.f32 %v1025, %v212
        %1028 = vrot.lane.b32.xlu0 %v1026, 125
        %v1029 = vpop.permute.xlu0 %1028
        %v1031 = vadd.f32 %v967, %v1029
        %s1032 = sld [smem:[#allocation2 + $0x74]]
        %v1033 = vstv %s1032
        %v1034 = vmul.f32 %v1033, %v212
        %1036 = vrot.lane.b32.xlu0 %v1034, 125
        %v1037 = vpop.permute.xlu0 %1036
        %v1039 = vadd.f32 %v975, %v1037
        %s1040 = sld [smem:[#allocation2 + $0x75]]
        %v1041 = vstv %s1040
        %v1042 = vmul.f32 %v1041, %v212
        %1044 = vrot.lane.b32.xlu0 %v1042, 125
        %v1045 = vpop.permute.xlu0 %1044
        %v1047 = vadd.f32 %v983, %v1045
        %s1048 = sld [smem:[#allocation2 + $0x76]]
        %v1049 = vstv %s1048
        %v1050 = vmul.f32 %v1049, %v212
        %1052 = vrot.lane.b32.xlu0 %v1050, 125
        %v1053 = vpop.permute.xlu0 %1052
        %v1055 = vadd.f32 %v991, %v1053
        %s1056 = sld [smem:[#allocation2 + $0x77]]
        %v1057 = vstv %s1056
        %v1058 = vmul.f32 %v1057, %v212
        %1060 = vrot.lane.b32.xlu0 %v1058, 125
        %v1061 = vpop.permute.xlu0 %1060
        %v1063 = vadd.f32 %v999, %v1061
        %s1064 = sld [smem:[#allocation2 + $0x78]]
        %v1065 = vstv %s1064
        %v1066 = vmul.f32 %v1065, %v214
        %1068 = vrot.lane.b32.xlu0 %v1066, 125
        %v1069 = vpop.permute.xlu0 %1068
        %v1071 = vadd.f32 %v1007, %v1069
        %s1072 = sld [smem:[#allocation2 + $0x79]]
        %v1073 = vstv %s1072
        %v1074 = vmul.f32 %v1073, %v214
        %1076 = vrot.lane.b32.xlu0 %v1074, 125
        %v1077 = vpop.permute.xlu0 %1076
        %v1079 = vadd.f32 %v1015, %v1077
        %s1080 = sld [smem:[#allocation2 + $0x7a]]
        %v1081 = vstv %s1080
        %v1082 = vmul.f32 %v1081, %v214
        %1084 = vrot.lane.b32.xlu0 %v1082, 125
        %v1085 = vpop.permute.xlu0 %1084
        %v1087 = vadd.f32 %v1023, %v1085
        %s1088 = sld [smem:[#allocation2 + $0x7b]]
        %v1089 = vstv %s1088
        %v1090 = vmul.f32 %v1089, %v214
        %1092 = vrot.lane.b32.xlu0 %v1090, 125
        %v1093 = vpop.permute.xlu0 %1092
        %v1095 = vadd.f32 %v1031, %v1093
        %s1096 = sld [smem:[#allocation2 + $0x7c]]
        %v1097 = vstv %s1096
        %v1098 = vmul.f32 %v1097, %v214
        %1100 = vrot.lane.b32.xlu0 %v1098, 125
        %v1101 = vpop.permute.xlu0 %1100
        %v1103 = vadd.f32 %v1039, %v1101
        %s1104 = sld [smem:[#allocation2 + $0x7d]]
        %v1105 = vstv %s1104
        %v1106 = vmul.f32 %v1105, %v214
        %1108 = vrot.lane.b32.xlu0 %v1106, 125
        %v1109 = vpop.permute.xlu0 %1108
        %v1111 = vadd.f32 %v1047, %v1109
        %s1112 = sld [smem:[#allocation2 + $0x7e]]
        %v1113 = vstv %s1112
        %v1114 = vmul.f32 %v1113, %v214
        %1116 = vrot.lane.b32.xlu0 %v1114, 125
        %v1117 = vpop.permute.xlu0 %1116
        %v1119 = vadd.f32 %v1055, %v1117
        %s1120 = sld [smem:[#allocation2 + $0x7f]]
        %v1121 = vstv %s1120
        %v1122 = vmul.f32 %v1121, %v214
        %1124 = vrot.lane.b32.xlu0 %v1122, 125
        %v1125 = vpop.permute.xlu0 %1124
        %v1127 = vadd.f32 %v1063, %v1125
        %s1128 = sld [smem:[#allocation2 + $0x80]]
        %v1129 = vstv %s1128
        %v1130 = vmul.f32 %v1129, %v208
        %v1131 = vmul.f32 %v1129, %v209
        %vm1134 = vcmask 1046528
        %v1135 = vrot.slane %v1130, 1
        %v1136 = vrot.slane %v1131, 1
        %v1137 = vsel %vm1134, %v1135, %v1136
        %v1139 = vadd.f32 %v1071, %v1137
        %s1140 = sld [smem:[#allocation2 + $0x81]]
        %v1141 = vstv %s1140
        %v1142 = vmul.f32 %v1141, %v208
        %v1143 = vmul.f32 %v1141, %v209
        %v1146 = vrot.slane %v1142, 1
        %v1147 = vrot.slane %v1143, 1
        %v1148 = vsel %vm1134, %v1146, %v1147
        %v1150 = vadd.f32 %v1079, %v1148
        %s1151 = sld [smem:[#allocation2 + $0x82]]
        %v1152 = vstv %s1151
        %v1153 = vmul.f32 %v1152, %v208
        %v1154 = vmul.f32 %v1152, %v209
        %v1157 = vrot.slane %v1153, 1
        %v1158 = vrot.slane %v1154, 1
        %v1159 = vsel %vm1134, %v1157, %v1158
        %v1161 = vadd.f32 %v1087, %v1159
        %s1162 = sld [smem:[#allocation2 + $0x83]]
        %v1163 = vstv %s1162
        %v1164 = vmul.f32 %v1163, %v208
        %v1165 = vmul.f32 %v1163, %v209
        %v1168 = vrot.slane %v1164, 1
        %v1169 = vrot.slane %v1165, 1
        %v1170 = vsel %vm1134, %v1168, %v1169
        %v1172 = vadd.f32 %v1095, %v1170
        %s1173 = sld [smem:[#allocation2 + $0x84]]
        %v1174 = vstv %s1173
        %v1175 = vmul.f32 %v1174, %v208
        %v1176 = vmul.f32 %v1174, %v209
        %v1179 = vrot.slane %v1175, 1
        %v1180 = vrot.slane %v1176, 1
        %v1181 = vsel %vm1134, %v1179, %v1180
        %v1183 = vadd.f32 %v1103, %v1181
        %s1184 = sld [smem:[#allocation2 + $0x85]]
        %v1185 = vstv %s1184
        %v1186 = vmul.f32 %v1185, %v208
        %v1187 = vmul.f32 %v1185, %v209
        %v1190 = vrot.slane %v1186, 1
        %v1191 = vrot.slane %v1187, 1
        %v1192 = vsel %vm1134, %v1190, %v1191
        %v1194 = vadd.f32 %v1111, %v1192
        %s1195 = sld [smem:[#allocation2 + $0x86]]
        %v1196 = vstv %s1195
        %v1197 = vmul.f32 %v1196, %v208
        %v1198 = vmul.f32 %v1196, %v209
        %v1201 = vrot.slane %v1197, 1
        %v1202 = vrot.slane %v1198, 1
        %v1203 = vsel %vm1134, %v1201, %v1202
        %v1205 = vadd.f32 %v1119, %v1203
        %s1206 = sld [smem:[#allocation2 + $0x87]]
        %v1207 = vstv %s1206
        %v1208 = vmul.f32 %v1207, %v208
        %v1209 = vmul.f32 %v1207, %v209
        %v1212 = vrot.slane %v1208, 1
        %v1213 = vrot.slane %v1209, 1
        %v1214 = vsel %vm1134, %v1212, %v1213
        %v1216 = vadd.f32 %v1127, %v1214
        %s1217 = sld [smem:[#allocation2 + $0x88]]
        %v1218 = vstv %s1217
        %v1219 = vmul.f32 %v1218, %v210
        %v1220 = vmul.f32 %v1218, %v211
        %v1223 = vrot.slane %v1219, 1
        %v1224 = vrot.slane %v1220, 1
        %v1225 = vsel %vm1134, %v1223, %v1224
        %v1227 = vadd.f32 %v1139, %v1225
        %s1228 = sld [smem:[#allocation2 + $0x89]]
        %v1229 = vstv %s1228
        %v1230 = vmul.f32 %v1229, %v210
        %v1231 = vmul.f32 %v1229, %v211
        %v1234 = vrot.slane %v1230, 1
        %v1235 = vrot.slane %v1231, 1
        %v1236 = vsel %vm1134, %v1234, %v1235
        %v1238 = vadd.f32 %v1150, %v1236
        %s1239 = sld [smem:[#allocation2 + $0x8a]]
        %v1240 = vstv %s1239
        %v1241 = vmul.f32 %v1240, %v210
        %v1242 = vmul.f32 %v1240, %v211
        %v1245 = vrot.slane %v1241, 1
        %v1246 = vrot.slane %v1242, 1
        %v1247 = vsel %vm1134, %v1245, %v1246
        %v1249 = vadd.f32 %v1161, %v1247
        %s1250 = sld [smem:[#allocation2 + $0x8b]]
        %v1251 = vstv %s1250
        %v1252 = vmul.f32 %v1251, %v210
        %v1253 = vmul.f32 %v1251, %v211
        %v1256 = vrot.slane %v1252, 1
        %v1257 = vrot.slane %v1253, 1
        %v1258 = vsel %vm1134, %v1256, %v1257
        %v1260 = vadd.f32 %v1172, %v1258
        %s1261 = sld [smem:[#allocation2 + $0x8c]]
        %v1262 = vstv %s1261
        %v1263 = vmul.f32 %v1262, %v210
        %v1264 = vmul.f32 %v1262, %v211
        %v1267 = vrot.slane %v1263, 1
        %v1268 = vrot.slane %v1264, 1
        %v1269 = vsel %vm1134, %v1267, %v1268
        %v1271 = vadd.f32 %v1183, %v1269
        %s1272 = sld [smem:[#allocation2 + $0x8d]]
        %v1273 = vstv %s1272
        %v1274 = vmul.f32 %v1273, %v210
        %v1275 = vmul.f32 %v1273, %v211
        %v1278 = vrot.slane %v1274, 1
        %v1279 = vrot.slane %v1275, 1
        %v1280 = vsel %vm1134, %v1278, %v1279
        %v1282 = vadd.f32 %v1194, %v1280
        %s1283 = sld [smem:[#allocation2 + $0x8e]]
        %v1284 = vstv %s1283
        %v1285 = vmul.f32 %v1284, %v210
        %v1286 = vmul.f32 %v1284, %v211
        %v1289 = vrot.slane %v1285, 1
        %v1290 = vrot.slane %v1286, 1
        %v1291 = vsel %vm1134, %v1289, %v1290
        %v1293 = vadd.f32 %v1205, %v1291
        %s1294 = sld [smem:[#allocation2 + $0x8f]]
        %v1295 = vstv %s1294
        %v1296 = vmul.f32 %v1295, %v210
        %v1297 = vmul.f32 %v1295, %v211
        %v1300 = vrot.slane %v1296, 1
        %v1301 = vrot.slane %v1297, 1
        %v1302 = vsel %vm1134, %v1300, %v1301
        %v1304 = vadd.f32 %v1216, %v1302
        %s1305 = sld [smem:[#allocation2 + $0x90]]
        %v1306 = vstv %s1305
        %v1307 = vmul.f32 %v1306, %v212
        %v1308 = vmul.f32 %v1306, %v213
        %v1311 = vrot.slane %v1307, 1
        %v1312 = vrot.slane %v1308, 1
        %v1313 = vsel %vm1134, %v1311, %v1312
        %v1315 = vadd.f32 %v1227, %v1313
        %s1316 = sld [smem:[#allocation2 + $0x91]]
        %v1317 = vstv %s1316
        %v1318 = vmul.f32 %v1317, %v212
        %v1319 = vmul.f32 %v1317, %v213
        %v1322 = vrot.slane %v1318, 1
        %v1323 = vrot.slane %v1319, 1
        %v1324 = vsel %vm1134, %v1322, %v1323
        %v1326 = vadd.f32 %v1238, %v1324
        %s1327 = sld [smem:[#allocation2 + $0x92]]
        %v1328 = vstv %s1327
        %v1329 = vmul.f32 %v1328, %v212
        %v1330 = vmul.f32 %v1328, %v213
        %v1333 = vrot.slane %v1329, 1
        %v1334 = vrot.slane %v1330, 1
        %v1335 = vsel %vm1134, %v1333, %v1334
        %v1337 = vadd.f32 %v1249, %v1335
        %s1338 = sld [smem:[#allocation2 + $0x93]]
        %v1339 = vstv %s1338
        %v1340 = vmul.f32 %v1339, %v212
        %v1341 = vmul.f32 %v1339, %v213
        %v1344 = vrot.slane %v1340, 1
        %v1345 = vrot.slane %v1341, 1
        %v1346 = vsel %vm1134, %v1344, %v1345
        %v1348 = vadd.f32 %v1260, %v1346
        %s1349 = sld [smem:[#allocation2 + $0x94]]
        %v1350 = vstv %s1349
        %v1351 = vmul.f32 %v1350, %v212
        %v1352 = vmul.f32 %v1350, %v213
        %v1355 = vrot.slane %v1351, 1
        %v1356 = vrot.slane %v1352, 1
        %v1357 = vsel %vm1134, %v1355, %v1356
        %v1359 = vadd.f32 %v1271, %v1357
        %s1360 = sld [smem:[#allocation2 + $0x95]]
        %v1361 = vstv %s1360
        %v1362 = vmul.f32 %v1361, %v212
        %v1363 = vmul.f32 %v1361, %v213
        %v1366 = vrot.slane %v1362, 1
        %v1367 = vrot.slane %v1363, 1
        %v1368 = vsel %vm1134, %v1366, %v1367
        %v1370 = vadd.f32 %v1282, %v1368
        %s1371 = sld [smem:[#allocation2 + $0x96]]
        %v1372 = vstv %s1371
        %v1373 = vmul.f32 %v1372, %v212
        %v1374 = vmul.f32 %v1372, %v213
        %v1377 = vrot.slane %v1373, 1
        %v1378 = vrot.slane %v1374, 1
        %v1379 = vsel %vm1134, %v1377, %v1378
        %v1381 = vadd.f32 %v1293, %v1379
        %s1382 = sld [smem:[#allocation2 + $0x97]]
        %v1383 = vstv %s1382
        %v1384 = vmul.f32 %v1383, %v212
        %v1385 = vmul.f32 %v1383, %v213
        %v1388 = vrot.slane %v1384, 1
        %v1389 = vrot.slane %v1385, 1
        %v1390 = vsel %vm1134, %v1388, %v1389
        %v1392 = vadd.f32 %v1304, %v1390
        %s1393 = sld [smem:[#allocation2 + $0x98]]
        %v1394 = vstv %s1393
        %v1395 = vmul.f32 %v1394, %v214
        %v1396 = vmul.f32 %v1394, %v215
        %v1399 = vrot.slane %v1395, 1
        %v1400 = vrot.slane %v1396, 1
        %v1401 = vsel %vm1134, %v1399, %v1400
        %v1403 = vadd.f32 %v1315, %v1401
        %s1404 = sld [smem:[#allocation2 + $0x99]]
        %v1405 = vstv %s1404
        %v1406 = vmul.f32 %v1405, %v214
        %v1407 = vmul.f32 %v1405, %v215
        %v1410 = vrot.slane %v1406, 1
        %v1411 = vrot.slane %v1407, 1
        %v1412 = vsel %vm1134, %v1410, %v1411
        %v1414 = vadd.f32 %v1326, %v1412
        %s1415 = sld [smem:[#allocation2 + $0x9a]]
        %v1416 = vstv %s1415
        %v1417 = vmul.f32 %v1416, %v214
        %v1418 = vmul.f32 %v1416, %v215
        %v1421 = vrot.slane %v1417, 1
        %v1422 = vrot.slane %v1418, 1
        %v1423 = vsel %vm1134, %v1421, %v1422
        %v1425 = vadd.f32 %v1337, %v1423
        %s1426 = sld [smem:[#allocation2 + $0x9b]]
        %v1427 = vstv %s1426
        %v1428 = vmul.f32 %v1427, %v214
        %v1429 = vmul.f32 %v1427, %v215
        %v1432 = vrot.slane %v1428, 1
        %v1433 = vrot.slane %v1429, 1
        %v1434 = vsel %vm1134, %v1432, %v1433
        %v1436 = vadd.f32 %v1348, %v1434
        %s1437 = sld [smem:[#allocation2 + $0x9c]]
        %v1438 = vstv %s1437
        %v1439 = vmul.f32 %v1438, %v214
        %v1440 = vmul.f32 %v1438, %v215
        %v1443 = vrot.slane %v1439, 1
        %v1444 = vrot.slane %v1440, 1
        %v1445 = vsel %vm1134, %v1443, %v1444
        %v1447 = vadd.f32 %v1359, %v1445
        %s1448 = sld [smem:[#allocation2 + $0x9d]]
        %v1449 = vstv %s1448
        %v1450 = vmul.f32 %v1449, %v214
        %v1451 = vmul.f32 %v1449, %v215
        %v1454 = vrot.slane %v1450, 1
        %v1455 = vrot.slane %v1451, 1
        %v1456 = vsel %vm1134, %v1454, %v1455
        %v1458 = vadd.f32 %v1370, %v1456
        %s1459 = sld [smem:[#allocation2 + $0x9e]]
        %v1460 = vstv %s1459
        %v1461 = vmul.f32 %v1460, %v214
        %v1462 = vmul.f32 %v1460, %v215
        %v1465 = vrot.slane %v1461, 1
        %v1466 = vrot.slane %v1462, 1
        %v1467 = vsel %vm1134, %v1465, %v1466
        %v1469 = vadd.f32 %v1381, %v1467
        %s1470 = sld [smem:[#allocation2 + $0x9f]]
        %v1471 = vstv %s1470
        %v1472 = vmul.f32 %v1471, %v214
        %v1473 = vmul.f32 %v1471, %v215
        %v1476 = vrot.slane %v1472, 1
        %v1477 = vrot.slane %v1473, 1
        %v1478 = vsel %vm1134, %v1476, %v1477
        %v1480 = vadd.f32 %v1392, %v1478
        %s1481 = sld [smem:[#allocation2 + $0xa0]]
        %v1482 = vstv %s1481
        %v1483 = vmul.f32 %v1482, %v208
        %v1484 = vmul.f32 %v1482, %v209
        %v1487 = vrot.slane %v1483, 1
        %v1488 = vrot.slane %v1484, 1
        %v1489 = vsel %vm1134, %v1487, %v1488
        %1490 = vrot.lane.b32.xlu0 %v1489, 127
        %v1491 = vpop.permute.xlu0 %1490
        %v1493 = vadd.f32 %v1403, %v1491
        %s1494 = sld [smem:[#allocation2 + $0xa1]]
        %v1495 = vstv %s1494
        %v1496 = vmul.f32 %v1495, %v208
        %v1497 = vmul.f32 %v1495, %v209
        %v1500 = vrot.slane %v1496, 1
        %v1501 = vrot.slane %v1497, 1
        %v1502 = vsel %vm1134, %v1500, %v1501
        %1503 = vrot.lane.b32.xlu0 %v1502, 127
        %v1504 = vpop.permute.xlu0 %1503
        %v1506 = vadd.f32 %v1414, %v1504
        %s1507 = sld [smem:[#allocation2 + $0xa2]]
        %v1508 = vstv %s1507
        %v1509 = vmul.f32 %v1508, %v208
        %v1510 = vmul.f32 %v1508, %v209
        %v1513 = vrot.slane %v1509, 1
        %v1514 = vrot.slane %v1510, 1
        %v1515 = vsel %vm1134, %v1513, %v1514
        %1516 = vrot.lane.b32.xlu0 %v1515, 127
        %v1517 = vpop.permute.xlu0 %1516
        %v1519 = vadd.f32 %v1425, %v1517
        %s1520 = sld [smem:[#allocation2 + $0xa3]]
        %v1521 = vstv %s1520
        %v1522 = vmul.f32 %v1521, %v208
        %v1523 = vmul.f32 %v1521, %v209
        %v1526 = vrot.slane %v1522, 1
        %v1527 = vrot.slane %v1523, 1
        %v1528 = vsel %vm1134, %v1526, %v1527
        %1529 = vrot.lane.b32.xlu0 %v1528, 127
        %v1530 = vpop.permute.xlu0 %1529
        %v1532 = vadd.f32 %v1436, %v1530
        %s1533 = sld [smem:[#allocation2 + $0xa4]]
        %v1534 = vstv %s1533
        %v1535 = vmul.f32 %v1534, %v208
        %v1536 = vmul.f32 %v1534, %v209
        %v1539 = vrot.slane %v1535, 1
        %v1540 = vrot.slane %v1536, 1
        %v1541 = vsel %vm1134, %v1539, %v1540
        %1542 = vrot.lane.b32.xlu0 %v1541, 127
        %v1543 = vpop.permute.xlu0 %1542
        %v1545 = vadd.f32 %v1447, %v1543
        %s1546 = sld [smem:[#allocation2 + $0xa5]]
        %v1547 = vstv %s1546
        %v1548 = vmul.f32 %v1547, %v208
        %v1549 = vmul.f32 %v1547, %v209
        %v1552 = vrot.slane %v1548, 1
        %v1553 = vrot.slane %v1549, 1
        %v1554 = vsel %vm1134, %v1552, %v1553
        %1555 = vrot.lane.b32.xlu0 %v1554, 127
        %v1556 = vpop.permute.xlu0 %1555
        %v1558 = vadd.f32 %v1458, %v1556
        %s1559 = sld [smem:[#allocation2 + $0xa6]]
        %v1560 = vstv %s1559
        %v1561 = vmul.f32 %v1560, %v208
        %v1562 = vmul.f32 %v1560, %v209
        %v1565 = vrot.slane %v1561, 1
        %v1566 = vrot.slane %v1562, 1
        %v1567 = vsel %vm1134, %v1565, %v1566
        %1568 = vrot.lane.b32.xlu0 %v1567, 127
        %v1569 = vpop.permute.xlu0 %1568
        %v1571 = vadd.f32 %v1469, %v1569
        %s1572 = sld [smem:[#allocation2 + $0xa7]]
        %v1573 = vstv %s1572
        %v1574 = vmul.f32 %v1573, %v208
        %v1575 = vmul.f32 %v1573, %v209
        %v1578 = vrot.slane %v1574, 1
        %v1579 = vrot.slane %v1575, 1
        %v1580 = vsel %vm1134, %v1578, %v1579
        %1581 = vrot.lane.b32.xlu0 %v1580, 127
        %v1582 = vpop.permute.xlu0 %1581
        %v1584 = vadd.f32 %v1480, %v1582
        %s1585 = sld [smem:[#allocation2 + $0xa8]]
        %v1586 = vstv %s1585
        %v1587 = vmul.f32 %v1586, %v210
        %v1588 = vmul.f32 %v1586, %v211
        %v1591 = vrot.slane %v1587, 1
        %v1592 = vrot.slane %v1588, 1
        %v1593 = vsel %vm1134, %v1591, %v1592
        %1594 = vrot.lane.b32.xlu0 %v1593, 127
        %v1595 = vpop.permute.xlu0 %1594
        %v1597 = vadd.f32 %v1493, %v1595
        %s1598 = sld [smem:[#allocation2 + $0xa9]]
        %v1599 = vstv %s1598
        %v1600 = vmul.f32 %v1599, %v210
        %v1601 = vmul.f32 %v1599, %v211
        %v1604 = vrot.slane %v1600, 1
        %v1605 = vrot.slane %v1601, 1
        %v1606 = vsel %vm1134, %v1604, %v1605
        %1607 = vrot.lane.b32.xlu0 %v1606, 127
        %v1608 = vpop.permute.xlu0 %1607
        %v1610 = vadd.f32 %v1506, %v1608
        %s1611 = sld [smem:[#allocation2 + $0xaa]]
        %v1612 = vstv %s1611
        %v1613 = vmul.f32 %v1612, %v210
        %v1614 = vmul.f32 %v1612, %v211
        %v1617 = vrot.slane %v1613, 1
        %v1618 = vrot.slane %v1614, 1
        %v1619 = vsel %vm1134, %v1617, %v1618
        %1620 = vrot.lane.b32.xlu0 %v1619, 127
        %v1621 = vpop.permute.xlu0 %1620
        %v1623 = vadd.f32 %v1519, %v1621
        %s1624 = sld [smem:[#allocation2 + $0xab]]
        %v1625 = vstv %s1624
        %v1626 = vmul.f32 %v1625, %v210
        %v1627 = vmul.f32 %v1625, %v211
        %v1630 = vrot.slane %v1626, 1
        %v1631 = vrot.slane %v1627, 1
        %v1632 = vsel %vm1134, %v1630, %v1631
        %1633 = vrot.lane.b32.xlu0 %v1632, 127
        %v1634 = vpop.permute.xlu0 %1633
        %v1636 = vadd.f32 %v1532, %v1634
        %s1637 = sld [smem:[#allocation2 + $0xac]]
        %v1638 = vstv %s1637
        %v1639 = vmul.f32 %v1638, %v210
        %v1640 = vmul.f32 %v1638, %v211
        %v1643 = vrot.slane %v1639, 1
        %v1644 = vrot.slane %v1640, 1
        %v1645 = vsel %vm1134, %v1643, %v1644
        %1646 = vrot.lane.b32.xlu0 %v1645, 127
        %v1647 = vpop.permute.xlu0 %1646
        %v1649 = vadd.f32 %v1545, %v1647
        %s1650 = sld [smem:[#allocation2 + $0xad]]
        %v1651 = vstv %s1650
        %v1652 = vmul.f32 %v1651, %v210
        %v1653 = vmul.f32 %v1651, %v211
        %v1656 = vrot.slane %v1652, 1
        %v1657 = vrot.slane %v1653, 1
        %v1658 = vsel %vm1134, %v1656, %v1657
        %1659 = vrot.lane.b32.xlu0 %v1658, 127
        %v1660 = vpop.permute.xlu0 %1659
        %v1662 = vadd.f32 %v1558, %v1660
        %s1663 = sld [smem:[#allocation2 + $0xae]]
        %v1664 = vstv %s1663
        %v1665 = vmul.f32 %v1664, %v210
        %v1666 = vmul.f32 %v1664, %v211
        %v1669 = vrot.slane %v1665, 1
        %v1670 = vrot.slane %v1666, 1
        %v1671 = vsel %vm1134, %v1669, %v1670
        %1672 = vrot.lane.b32.xlu0 %v1671, 127
        %v1673 = vpop.permute.xlu0 %1672
        %v1675 = vadd.f32 %v1571, %v1673
        %s1676 = sld [smem:[#allocation2 + $0xaf]]
        %v1677 = vstv %s1676
        %v1678 = vmul.f32 %v1677, %v210
        %v1679 = vmul.f32 %v1677, %v211
        %v1682 = vrot.slane %v1678, 1
        %v1683 = vrot.slane %v1679, 1
        %v1684 = vsel %vm1134, %v1682, %v1683
        %1685 = vrot.lane.b32.xlu0 %v1684, 127
        %v1686 = vpop.permute.xlu0 %1685
        %v1688 = vadd.f32 %v1584, %v1686
        %s1689 = sld [smem:[#allocation2 + $0xb0]]
        %v1690 = vstv %s1689
        %v1691 = vmul.f32 %v1690, %v212
        %v1692 = vmul.f32 %v1690, %v213
        %v1695 = vrot.slane %v1691, 1
        %v1696 = vrot.slane %v1692, 1
        %v1697 = vsel %vm1134, %v1695, %v1696
        %1698 = vrot.lane.b32.xlu0 %v1697, 127
        %v1699 = vpop.permute.xlu0 %1698
        %v1701 = vadd.f32 %v1597, %v1699
        %s1702 = sld [smem:[#allocation2 + $0xb1]]
        %v1703 = vstv %s1702
        %v1704 = vmul.f32 %v1703, %v212
        %v1705 = vmul.f32 %v1703, %v213
        %v1708 = vrot.slane %v1704, 1
        %v1709 = vrot.slane %v1705, 1
        %v1710 = vsel %vm1134, %v1708, %v1709
        %1711 = vrot.lane.b32.xlu0 %v1710, 127
        %v1712 = vpop.permute.xlu0 %1711
        %v1714 = vadd.f32 %v1610, %v1712
        %s1715 = sld [smem:[#allocation2 + $0xb2]]
        %v1716 = vstv %s1715
        %v1717 = vmul.f32 %v1716, %v212
        %v1718 = vmul.f32 %v1716, %v213
        %v1721 = vrot.slane %v1717, 1
        %v1722 = vrot.slane %v1718, 1
        %v1723 = vsel %vm1134, %v1721, %v1722
        %1724 = vrot.lane.b32.xlu0 %v1723, 127
        %v1725 = vpop.permute.xlu0 %1724
        %v1727 = vadd.f32 %v1623, %v1725
        %s1728 = sld [smem:[#allocation2 + $0xb3]]
        %v1729 = vstv %s1728
        %v1730 = vmul.f32 %v1729, %v212
        %v1731 = vmul.f32 %v1729, %v213
        %v1734 = vrot.slane %v1730, 1
        %v1735 = vrot.slane %v1731, 1
        %v1736 = vsel %vm1134, %v1734, %v1735
        %1737 = vrot.lane.b32.xlu0 %v1736, 127
        %v1738 = vpop.permute.xlu0 %1737
        %v1740 = vadd.f32 %v1636, %v1738
        %s1741 = sld [smem:[#allocation2 + $0xb4]]
        %v1742 = vstv %s1741
        %v1743 = vmul.f32 %v1742, %v212
        %v1744 = vmul.f32 %v1742, %v213
        %v1747 = vrot.slane %v1743, 1
        %v1748 = vrot.slane %v1744, 1
        %v1749 = vsel %vm1134, %v1747, %v1748
        %1750 = vrot.lane.b32.xlu0 %v1749, 127
        %v1751 = vpop.permute.xlu0 %1750
        %v1753 = vadd.f32 %v1649, %v1751
        %s1754 = sld [smem:[#allocation2 + $0xb5]]
        %v1755 = vstv %s1754
        %v1756 = vmul.f32 %v1755, %v212
        %v1757 = vmul.f32 %v1755, %v213
        %v1760 = vrot.slane %v1756, 1
        %v1761 = vrot.slane %v1757, 1
        %v1762 = vsel %vm1134, %v1760, %v1761
        %1763 = vrot.lane.b32.xlu0 %v1762, 127
        %v1764 = vpop.permute.xlu0 %1763
        %v1766 = vadd.f32 %v1662, %v1764
        %s1767 = sld [smem:[#allocation2 + $0xb6]]
        %v1768 = vstv %s1767
        %v1769 = vmul.f32 %v1768, %v212
        %v1770 = vmul.f32 %v1768, %v213
        %v1773 = vrot.slane %v1769, 1
        %v1774 = vrot.slane %v1770, 1
        %v1775 = vsel %vm1134, %v1773, %v1774
        %1776 = vrot.lane.b32.xlu0 %v1775, 127
        %v1777 = vpop.permute.xlu0 %1776
        %v1779 = vadd.f32 %v1675, %v1777
        %s1780 = sld [smem:[#allocation2 + $0xb7]]
        %v1781 = vstv %s1780
        %v1782 = vmul.f32 %v1781, %v212
        %v1783 = vmul.f32 %v1781, %v213
        %v1786 = vrot.slane %v1782, 1
        %v1787 = vrot.slane %v1783, 1
        %v1788 = vsel %vm1134, %v1786, %v1787
        %1789 = vrot.lane.b32.xlu0 %v1788, 127
        %v1790 = vpop.permute.xlu0 %1789
        %v1792 = vadd.f32 %v1688, %v1790
        %s1793 = sld [smem:[#allocation2 + $0xb8]]
        %v1794 = vstv %s1793
        %v1795 = vmul.f32 %v1794, %v214
        %v1796 = vmul.f32 %v1794, %v215
        %v1799 = vrot.slane %v1795, 1
        %v1800 = vrot.slane %v1796, 1
        %v1801 = vsel %vm1134, %v1799, %v1800
        %1802 = vrot.lane.b32.xlu0 %v1801, 127
        %v1803 = vpop.permute.xlu0 %1802
        %v1805 = vadd.f32 %v1701, %v1803
        %s1806 = sld [smem:[#allocation2 + $0xb9]]
        %v1807 = vstv %s1806
        %v1808 = vmul.f32 %v1807, %v214
        %v1809 = vmul.f32 %v1807, %v215
        %v1812 = vrot.slane %v1808, 1
        %v1813 = vrot.slane %v1809, 1
        %v1814 = vsel %vm1134, %v1812, %v1813
        %1815 = vrot.lane.b32.xlu0 %v1814, 127
        %v1816 = vpop.permute.xlu0 %1815
        %v1818 = vadd.f32 %v1714, %v1816
        %s1819 = sld [smem:[#allocation2 + $0xba]]
        %v1820 = vstv %s1819
        %v1821 = vmul.f32 %v1820, %v214
        %v1822 = vmul.f32 %v1820, %v215
        %v1825 = vrot.slane %v1821, 1
        %v1826 = vrot.slane %v1822, 1
        %v1827 = vsel %vm1134, %v1825, %v1826
        %1828 = vrot.lane.b32.xlu0 %v1827, 127
        %v1829 = vpop.permute.xlu0 %1828
        %v1831 = vadd.f32 %v1727, %v1829
        %s1832 = sld [smem:[#allocation2 + $0xbb]]
        %v1833 = vstv %s1832
        %v1834 = vmul.f32 %v1833, %v214
        %v1835 = vmul.f32 %v1833, %v215
        %v1838 = vrot.slane %v1834, 1
        %v1839 = vrot.slane %v1835, 1
        %v1840 = vsel %vm1134, %v1838, %v1839
        %1841 = vrot.lane.b32.xlu0 %v1840, 127
        %v1842 = vpop.permute.xlu0 %1841
        %v1844 = vadd.f32 %v1740, %v1842
        %s1845 = sld [smem:[#allocation2 + $0xbc]]
        %v1846 = vstv %s1845
        %v1847 = vmul.f32 %v1846, %v214
        %v1848 = vmul.f32 %v1846, %v215
        %v1851 = vrot.slane %v1847, 1
        %v1852 = vrot.slane %v1848, 1
        %v1853 = vsel %vm1134, %v1851, %v1852
        %1854 = vrot.lane.b32.xlu0 %v1853, 127
        %v1855 = vpop.permute.xlu0 %1854
        %v1857 = vadd.f32 %v1753, %v1855
        %s1858 = sld [smem:[#allocation2 + $0xbd]]
        %v1859 = vstv %s1858
        %v1860 = vmul.f32 %v1859, %v214
        %v1861 = vmul.f32 %v1859, %v215
        %v1864 = vrot.slane %v1860, 1
        %v1865 = vrot.slane %v1861, 1
        %v1866 = vsel %vm1134, %v1864, %v1865
        %1867 = vrot.lane.b32.xlu0 %v1866, 127
        %v1868 = vpop.permute.xlu0 %1867
        %v1870 = vadd.f32 %v1766, %v1868
        %s1871 = sld [smem:[#allocation2 + $0xbe]]
        %v1872 = vstv %s1871
        %v1873 = vmul.f32 %v1872, %v214
        %v1874 = vmul.f32 %v1872, %v215
        %v1877 = vrot.slane %v1873, 1
        %v1878 = vrot.slane %v1874, 1
        %v1879 = vsel %vm1134, %v1877, %v1878
        %1880 = vrot.lane.b32.xlu0 %v1879, 127
        %v1881 = vpop.permute.xlu0 %1880
        %v1883 = vadd.f32 %v1779, %v1881
        %s1884 = sld [smem:[#allocation2 + $0xbf]]
        %v1885 = vstv %s1884
        %v1886 = vmul.f32 %v1885, %v214
        %v1887 = vmul.f32 %v1885, %v215
        %v1890 = vrot.slane %v1886, 1
        %v1891 = vrot.slane %v1887, 1
        %v1892 = vsel %vm1134, %v1890, %v1891
        %1893 = vrot.lane.b32.xlu0 %v1892, 127
        %v1894 = vpop.permute.xlu0 %1893
        %v1896 = vadd.f32 %v1792, %v1894
        %s1897 = sld [smem:[#allocation2 + $0xc0]]
        %v1898 = vstv %s1897
        %v1899 = vmul.f32 %v1898, %v208
        %v1900 = vmul.f32 %v1898, %v209
        %v1903 = vrot.slane %v1899, 1
        %v1904 = vrot.slane %v1900, 1
        %v1905 = vsel %vm1134, %v1903, %v1904
        %1906 = vrot.lane.b32.xlu0 %v1905, 126
        %v1907 = vpop.permute.xlu0 %1906
        %v1909 = vadd.f32 %v1805, %v1907
        %s1910 = sld [smem:[#allocation2 + $0xc1]]
        %v1911 = vstv %s1910
        %v1912 = vmul.f32 %v1911, %v208
        %v1913 = vmul.f32 %v1911, %v209
        %v1916 = vrot.slane %v1912, 1
        %v1917 = vrot.slane %v1913, 1
        %v1918 = vsel %vm1134, %v1916, %v1917
        %1919 = vrot.lane.b32.xlu0 %v1918, 126
        %v1920 = vpop.permute.xlu0 %1919
        %v1922 = vadd.f32 %v1818, %v1920
        %s1923 = sld [smem:[#allocation2 + $0xc2]]
        %v1924 = vstv %s1923
        %v1925 = vmul.f32 %v1924, %v208
        %v1926 = vmul.f32 %v1924, %v209
        %v1929 = vrot.slane %v1925, 1
        %v1930 = vrot.slane %v1926, 1
        %v1931 = vsel %vm1134, %v1929, %v1930
        %1932 = vrot.lane.b32.xlu0 %v1931, 126
        %v1933 = vpop.permute.xlu0 %1932
        %v1935 = vadd.f32 %v1831, %v1933
        %s1936 = sld [smem:[#allocation2 + $0xc3]]
        %v1937 = vstv %s1936
        %v1938 = vmul.f32 %v1937, %v208
        %v1939 = vmul.f32 %v1937, %v209
        %v1942 = vrot.slane %v1938, 1
        %v1943 = vrot.slane %v1939, 1
        %v1944 = vsel %vm1134, %v1942, %v1943
        %1945 = vrot.lane.b32.xlu0 %v1944, 126
        %v1946 = vpop.permute.xlu0 %1945
        %v1948 = vadd.f32 %v1844, %v1946
        %s1949 = sld [smem:[#allocation2 + $0xc4]]
        %v1950 = vstv %s1949
        %v1951 = vmul.f32 %v1950, %v208
        %v1952 = vmul.f32 %v1950, %v209
        %v1955 = vrot.slane %v1951, 1
        %v1956 = vrot.slane %v1952, 1
        %v1957 = vsel %vm1134, %v1955, %v1956
        %1958 = vrot.lane.b32.xlu0 %v1957, 126
        %v1959 = vpop.permute.xlu0 %1958
        %v1961 = vadd.f32 %v1857, %v1959
        %s1962 = sld [smem:[#allocation2 + $0xc5]]
        %v1963 = vstv %s1962
        %v1964 = vmul.f32 %v1963, %v208
        %v1965 = vmul.f32 %v1963, %v209
        %v1968 = vrot.slane %v1964, 1
        %v1969 = vrot.slane %v1965, 1
        %v1970 = vsel %vm1134, %v1968, %v1969
        %1971 = vrot.lane.b32.xlu0 %v1970, 126
        %v1972 = vpop.permute.xlu0 %1971
        %v1974 = vadd.f32 %v1870, %v1972
        %s1975 = sld [smem:[#allocation2 + $0xc6]]
        %v1976 = vstv %s1975
        %v1977 = vmul.f32 %v1976, %v208
        %v1978 = vmul.f32 %v1976, %v209
        %v1981 = vrot.slane %v1977, 1
        %v1982 = vrot.slane %v1978, 1
        %v1983 = vsel %vm1134, %v1981, %v1982
        %1984 = vrot.lane.b32.xlu0 %v1983, 126
        %v1985 = vpop.permute.xlu0 %1984
        %v1987 = vadd.f32 %v1883, %v1985
        %s1988 = sld [smem:[#allocation2 + $0xc7]]
        %v1989 = vstv %s1988
        %v1990 = vmul.f32 %v1989, %v208
        %v1991 = vmul.f32 %v1989, %v209
        %v1994 = vrot.slane %v1990, 1
        %v1995 = vrot.slane %v1991, 1
        %v1996 = vsel %vm1134, %v1994, %v1995
        %1997 = vrot.lane.b32.xlu0 %v1996, 126
        %v1998 = vpop.permute.xlu0 %1997
        %v2000 = vadd.f32 %v1896, %v1998
        %s2001 = sld [smem:[#allocation2 + $0xc8]]
        %v2002 = vstv %s2001
        %v2003 = vmul.f32 %v2002, %v210
        %v2004 = vmul.f32 %v2002, %v211
        %v2007 = vrot.slane %v2003, 1
        %v2008 = vrot.slane %v2004, 1
        %v2009 = vsel %vm1134, %v2007, %v2008
        %2010 = vrot.lane.b32.xlu0 %v2009, 126
        %v2011 = vpop.permute.xlu0 %2010
        %v2013 = vadd.f32 %v1909, %v2011
        %s2014 = sld [smem:[#allocation2 + $0xc9]]
        %v2015 = vstv %s2014
        %v2016 = vmul.f32 %v2015, %v210
        %v2017 = vmul.f32 %v2015, %v211
        %v2020 = vrot.slane %v2016, 1
        %v2021 = vrot.slane %v2017, 1
        %v2022 = vsel %vm1134, %v2020, %v2021
        %2023 = vrot.lane.b32.xlu0 %v2022, 126
        %v2024 = vpop.permute.xlu0 %2023
        %v2026 = vadd.f32 %v1922, %v2024
        %s2027 = sld [smem:[#allocation2 + $0xca]]
        %v2028 = vstv %s2027
        %v2029 = vmul.f32 %v2028, %v210
        %v2030 = vmul.f32 %v2028, %v211
        %v2033 = vrot.slane %v2029, 1
        %v2034 = vrot.slane %v2030, 1
        %v2035 = vsel %vm1134, %v2033, %v2034
        %2036 = vrot.lane.b32.xlu0 %v2035, 126
        %v2037 = vpop.permute.xlu0 %2036
        %v2039 = vadd.f32 %v1935, %v2037
        %s2040 = sld [smem:[#allocation2 + $0xcb]]
        %v2041 = vstv %s2040
        %v2042 = vmul.f32 %v2041, %v210
        %v2043 = vmul.f32 %v2041, %v211
        %v2046 = vrot.slane %v2042, 1
        %v2047 = vrot.slane %v2043, 1
        %v2048 = vsel %vm1134, %v2046, %v2047
        %2049 = vrot.lane.b32.xlu0 %v2048, 126
        %v2050 = vpop.permute.xlu0 %2049
        %v2052 = vadd.f32 %v1948, %v2050
        %s2053 = sld [smem:[#allocation2 + $0xcc]]
        %v2054 = vstv %s2053
        %v2055 = vmul.f32 %v2054, %v210
        %v2056 = vmul.f32 %v2054, %v211
        %v2059 = vrot.slane %v2055, 1
        %v2060 = vrot.slane %v2056, 1
        %v2061 = vsel %vm1134, %v2059, %v2060
        %2062 = vrot.lane.b32.xlu0 %v2061, 126
        %v2063 = vpop.permute.xlu0 %2062
        %v2065 = vadd.f32 %v1961, %v2063
        %s2066 = sld [smem:[#allocation2 + $0xcd]]
        %v2067 = vstv %s2066
        %v2068 = vmul.f32 %v2067, %v210
        %v2069 = vmul.f32 %v2067, %v211
        %v2072 = vrot.slane %v2068, 1
        %v2073 = vrot.slane %v2069, 1
        %v2074 = vsel %vm1134, %v2072, %v2073
        %2075 = vrot.lane.b32.xlu0 %v2074, 126
        %v2076 = vpop.permute.xlu0 %2075
        %v2078 = vadd.f32 %v1974, %v2076
        %s2079 = sld [smem:[#allocation2 + $0xce]]
        %v2080 = vstv %s2079
        %v2081 = vmul.f32 %v2080, %v210
        %v2082 = vmul.f32 %v2080, %v211
        %v2085 = vrot.slane %v2081, 1
        %v2086 = vrot.slane %v2082, 1
        %v2087 = vsel %vm1134, %v2085, %v2086
        %2088 = vrot.lane.b32.xlu0 %v2087, 126
        %v2089 = vpop.permute.xlu0 %2088
        %v2091 = vadd.f32 %v1987, %v2089
        %s2092 = sld [smem:[#allocation2 + $0xcf]]
        %v2093 = vstv %s2092
        %v2094 = vmul.f32 %v2093, %v210
        %v2095 = vmul.f32 %v2093, %v211
        %v2098 = vrot.slane %v2094, 1
        %v2099 = vrot.slane %v2095, 1
        %v2100 = vsel %vm1134, %v2098, %v2099
        %2101 = vrot.lane.b32.xlu0 %v2100, 126
        %v2102 = vpop.permute.xlu0 %2101
        %v2104 = vadd.f32 %v2000, %v2102
        %s2105 = sld [smem:[#allocation2 + $0xd0]]
        %v2106 = vstv %s2105
        %v2107 = vmul.f32 %v2106, %v212
        %v2108 = vmul.f32 %v2106, %v213
        %v2111 = vrot.slane %v2107, 1
        %v2112 = vrot.slane %v2108, 1
        %v2113 = vsel %vm1134, %v2111, %v2112
        %2114 = vrot.lane.b32.xlu0 %v2113, 126
        %v2115 = vpop.permute.xlu0 %2114
        %v2117 = vadd.f32 %v2013, %v2115
        %s2118 = sld [smem:[#allocation2 + $0xd1]]
        %v2119 = vstv %s2118
        %v2120 = vmul.f32 %v2119, %v212
        %v2121 = vmul.f32 %v2119, %v213
        %v2124 = vrot.slane %v2120, 1
        %v2125 = vrot.slane %v2121, 1
        %v2126 = vsel %vm1134, %v2124, %v2125
        %2127 = vrot.lane.b32.xlu0 %v2126, 126
        %v2128 = vpop.permute.xlu0 %2127
        %v2130 = vadd.f32 %v2026, %v2128
        %s2131 = sld [smem:[#allocation2 + $0xd2]]
        %v2132 = vstv %s2131
        %v2133 = vmul.f32 %v2132, %v212
        %v2134 = vmul.f32 %v2132, %v213
        %v2137 = vrot.slane %v2133, 1
        %v2138 = vrot.slane %v2134, 1
        %v2139 = vsel %vm1134, %v2137, %v2138
        %2140 = vrot.lane.b32.xlu0 %v2139, 126
        %v2141 = vpop.permute.xlu0 %2140
        %v2143 = vadd.f32 %v2039, %v2141
        %s2144 = sld [smem:[#allocation2 + $0xd3]]
        %v2145 = vstv %s2144
        %v2146 = vmul.f32 %v2145, %v212
        %v2147 = vmul.f32 %v2145, %v213
        %v2150 = vrot.slane %v2146, 1
        %v2151 = vrot.slane %v2147, 1
        %v2152 = vsel %vm1134, %v2150, %v2151
        %2153 = vrot.lane.b32.xlu0 %v2152, 126
        %v2154 = vpop.permute.xlu0 %2153
        %v2156 = vadd.f32 %v2052, %v2154
        %s2157 = sld [smem:[#allocation2 + $0xd4]]
        %v2158 = vstv %s2157
        %v2159 = vmul.f32 %v2158, %v212
        %v2160 = vmul.f32 %v2158, %v213
        %v2163 = vrot.slane %v2159, 1
        %v2164 = vrot.slane %v2160, 1
        %v2165 = vsel %vm1134, %v2163, %v2164
        %2166 = vrot.lane.b32.xlu0 %v2165, 126
        %v2167 = vpop.permute.xlu0 %2166
        %v2169 = vadd.f32 %v2065, %v2167
        %s2170 = sld [smem:[#allocation2 + $0xd5]]
        %v2171 = vstv %s2170
        %v2172 = vmul.f32 %v2171, %v212
        %v2173 = vmul.f32 %v2171, %v213
        %v2176 = vrot.slane %v2172, 1
        %v2177 = vrot.slane %v2173, 1
        %v2178 = vsel %vm1134, %v2176, %v2177
        %2179 = vrot.lane.b32.xlu0 %v2178, 126
        %v2180 = vpop.permute.xlu0 %2179
        %v2182 = vadd.f32 %v2078, %v2180
        %s2183 = sld [smem:[#allocation2 + $0xd6]]
        %v2184 = vstv %s2183
        %v2185 = vmul.f32 %v2184, %v212
        %v2186 = vmul.f32 %v2184, %v213
        %v2189 = vrot.slane %v2185, 1
        %v2190 = vrot.slane %v2186, 1
        %v2191 = vsel %vm1134, %v2189, %v2190
        %2192 = vrot.lane.b32.xlu0 %v2191, 126
        %v2193 = vpop.permute.xlu0 %2192
        %v2195 = vadd.f32 %v2091, %v2193
        %s2196 = sld [smem:[#allocation2 + $0xd7]]
        %v2197 = vstv %s2196
        %v2198 = vmul.f32 %v2197, %v212
        %v2199 = vmul.f32 %v2197, %v213
        %v2202 = vrot.slane %v2198, 1
        %v2203 = vrot.slane %v2199, 1
        %v2204 = vsel %vm1134, %v2202, %v2203
        %2205 = vrot.lane.b32.xlu0 %v2204, 126
        %v2206 = vpop.permute.xlu0 %2205
        %v2208 = vadd.f32 %v2104, %v2206
        %s2209 = sld [smem:[#allocation2 + $0xd8]]
        %v2210 = vstv %s2209
        %v2211 = vmul.f32 %v2210, %v214
        %v2212 = vmul.f32 %v2210, %v215
        %v2215 = vrot.slane %v2211, 1
        %v2216 = vrot.slane %v2212, 1
        %v2217 = vsel %vm1134, %v2215, %v2216
        %2218 = vrot.lane.b32.xlu0 %v2217, 126
        %v2219 = vpop.permute.xlu0 %2218
        %v2221 = vadd.f32 %v2117, %v2219
        %s2222 = sld [smem:[#allocation2 + $0xd9]]
        %v2223 = vstv %s2222
        %v2224 = vmul.f32 %v2223, %v214
        %v2225 = vmul.f32 %v2223, %v215
        %v2228 = vrot.slane %v2224, 1
        %v2229 = vrot.slane %v2225, 1
        %v2230 = vsel %vm1134, %v2228, %v2229
        %2231 = vrot.lane.b32.xlu0 %v2230, 126
        %v2232 = vpop.permute.xlu0 %2231
        %v2234 = vadd.f32 %v2130, %v2232
        %s2235 = sld [smem:[#allocation2 + $0xda]]
        %v2236 = vstv %s2235
        %v2237 = vmul.f32 %v2236, %v214
        %v2238 = vmul.f32 %v2236, %v215
        %v2241 = vrot.slane %v2237, 1
        %v2242 = vrot.slane %v2238, 1
        %v2243 = vsel %vm1134, %v2241, %v2242
        %2244 = vrot.lane.b32.xlu0 %v2243, 126
        %v2245 = vpop.permute.xlu0 %2244
        %v2247 = vadd.f32 %v2143, %v2245
        %s2248 = sld [smem:[#allocation2 + $0xdb]]
        %v2249 = vstv %s2248
        %v2250 = vmul.f32 %v2249, %v214
        %v2251 = vmul.f32 %v2249, %v215
        %v2254 = vrot.slane %v2250, 1
        %v2255 = vrot.slane %v2251, 1
        %v2256 = vsel %vm1134, %v2254, %v2255
        %2257 = vrot.lane.b32.xlu0 %v2256, 126
        %v2258 = vpop.permute.xlu0 %2257
        %v2260 = vadd.f32 %v2156, %v2258
        %s2261 = sld [smem:[#allocation2 + $0xdc]]
        %v2262 = vstv %s2261
        %v2263 = vmul.f32 %v2262, %v214
        %v2264 = vmul.f32 %v2262, %v215
        %v2267 = vrot.slane %v2263, 1
        %v2268 = vrot.slane %v2264, 1
        %v2269 = vsel %vm1134, %v2267, %v2268
        %2270 = vrot.lane.b32.xlu0 %v2269, 126
        %v2271 = vpop.permute.xlu0 %2270
        %v2273 = vadd.f32 %v2169, %v2271
        %s2274 = sld [smem:[#allocation2 + $0xdd]]
        %v2275 = vstv %s2274
        %v2276 = vmul.f32 %v2275, %v214
        %v2277 = vmul.f32 %v2275, %v215
        %v2280 = vrot.slane %v2276, 1
        %v2281 = vrot.slane %v2277, 1
        %v2282 = vsel %vm1134, %v2280, %v2281
        %2283 = vrot.lane.b32.xlu0 %v2282, 126
        %v2284 = vpop.permute.xlu0 %2283
        %v2286 = vadd.f32 %v2182, %v2284
        %s2287 = sld [smem:[#allocation2 + $0xde]]
        %v2288 = vstv %s2287
        %v2289 = vmul.f32 %v2288, %v214
        %v2290 = vmul.f32 %v2288, %v215
        %v2293 = vrot.slane %v2289, 1
        %v2294 = vrot.slane %v2290, 1
        %v2295 = vsel %vm1134, %v2293, %v2294
        %2296 = vrot.lane.b32.xlu0 %v2295, 126
        %v2297 = vpop.permute.xlu0 %2296
        %v2299 = vadd.f32 %v2195, %v2297
        %s2300 = sld [smem:[#allocation2 + $0xdf]]
        %v2301 = vstv %s2300
        %v2302 = vmul.f32 %v2301, %v214
        %v2303 = vmul.f32 %v2301, %v215
        %v2306 = vrot.slane %v2302, 1
        %v2307 = vrot.slane %v2303, 1
        %v2308 = vsel %vm1134, %v2306, %v2307
        %2309 = vrot.lane.b32.xlu0 %v2308, 126
        %v2310 = vpop.permute.xlu0 %2309
        %v2312 = vadd.f32 %v2208, %v2310
        %s2313 = sld [smem:[#allocation2 + $0xe0]]
        %v2314 = vstv %s2313
        %v2315 = vmul.f32 %v2314, %v208
        %v2316 = vmul.f32 %v2314, %v209
        %v2319 = vrot.slane %v2315, 1
        %v2320 = vrot.slane %v2316, 1
        %v2321 = vsel %vm1134, %v2319, %v2320
        %2322 = vrot.lane.b32.xlu0 %v2321, 125
        %v2323 = vpop.permute.xlu0 %2322
        %v2325 = vadd.f32 %v2221, %v2323
        %s2326 = sld [smem:[#allocation2 + $0xe1]]
        %v2327 = vstv %s2326
        %v2328 = vmul.f32 %v2327, %v208
        %v2329 = vmul.f32 %v2327, %v209
        %v2332 = vrot.slane %v2328, 1
        %v2333 = vrot.slane %v2329, 1
        %v2334 = vsel %vm1134, %v2332, %v2333
        %2335 = vrot.lane.b32.xlu0 %v2334, 125
        %v2336 = vpop.permute.xlu0 %2335
        %v2338 = vadd.f32 %v2234, %v2336
        %s2339 = sld [smem:[#allocation2 + $0xe2]]
        %v2340 = vstv %s2339
        %v2341 = vmul.f32 %v2340, %v208
        %v2342 = vmul.f32 %v2340, %v209
        %v2345 = vrot.slane %v2341, 1
        %v2346 = vrot.slane %v2342, 1
        %v2347 = vsel %vm1134, %v2345, %v2346
        %2348 = vrot.lane.b32.xlu0 %v2347, 125
        %v2349 = vpop.permute.xlu0 %2348
        %v2351 = vadd.f32 %v2247, %v2349
        %s2352 = sld [smem:[#allocation2 + $0xe3]]
        %v2353 = vstv %s2352
        %v2354 = vmul.f32 %v2353, %v208
        %v2355 = vmul.f32 %v2353, %v209
        %v2358 = vrot.slane %v2354, 1
        %v2359 = vrot.slane %v2355, 1
        %v2360 = vsel %vm1134, %v2358, %v2359
        %2361 = vrot.lane.b32.xlu0 %v2360, 125
        %v2362 = vpop.permute.xlu0 %2361
        %v2364 = vadd.f32 %v2260, %v2362
        %s2365 = sld [smem:[#allocation2 + $0xe4]]
        %v2366 = vstv %s2365
        %v2367 = vmul.f32 %v2366, %v208
        %v2368 = vmul.f32 %v2366, %v209
        %v2371 = vrot.slane %v2367, 1
        %v2372 = vrot.slane %v2368, 1
        %v2373 = vsel %vm1134, %v2371, %v2372
        %2374 = vrot.lane.b32.xlu0 %v2373, 125
        %v2375 = vpop.permute.xlu0 %2374
        %v2377 = vadd.f32 %v2273, %v2375
        %s2378 = sld [smem:[#allocation2 + $0xe5]]
        %v2379 = vstv %s2378
        %v2380 = vmul.f32 %v2379, %v208
        %v2381 = vmul.f32 %v2379, %v209
        %v2384 = vrot.slane %v2380, 1
        %v2385 = vrot.slane %v2381, 1
        %v2386 = vsel %vm1134, %v2384, %v2385
        %2387 = vrot.lane.b32.xlu0 %v2386, 125
        %v2388 = vpop.permute.xlu0 %2387
        %v2390 = vadd.f32 %v2286, %v2388
        %s2391 = sld [smem:[#allocation2 + $0xe6]]
        %v2392 = vstv %s2391
        %v2393 = vmul.f32 %v2392, %v208
        %v2394 = vmul.f32 %v2392, %v209
        %v2397 = vrot.slane %v2393, 1
        %v2398 = vrot.slane %v2394, 1
        %v2399 = vsel %vm1134, %v2397, %v2398
        %2400 = vrot.lane.b32.xlu0 %v2399, 125
        %v2401 = vpop.permute.xlu0 %2400
        %v2403 = vadd.f32 %v2299, %v2401
        %s2404 = sld [smem:[#allocation2 + $0xe7]]
        %v2405 = vstv %s2404
        %v2406 = vmul.f32 %v2405, %v208
        %v2407 = vmul.f32 %v2405, %v209
        %v2410 = vrot.slane %v2406, 1
        %v2411 = vrot.slane %v2407, 1
        %v2412 = vsel %vm1134, %v2410, %v2411
        %2413 = vrot.lane.b32.xlu0 %v2412, 125
        %v2414 = vpop.permute.xlu0 %2413
        %v2416 = vadd.f32 %v2312, %v2414
        %s2417 = sld [smem:[#allocation2 + $0xe8]]
        %v2418 = vstv %s2417
        %v2419 = vmul.f32 %v2418, %v210
        %v2420 = vmul.f32 %v2418, %v211
        %v2423 = vrot.slane %v2419, 1
        %v2424 = vrot.slane %v2420, 1
        %v2425 = vsel %vm1134, %v2423, %v2424
        %2426 = vrot.lane.b32.xlu0 %v2425, 125
        %v2427 = vpop.permute.xlu0 %2426
        %v2429 = vadd.f32 %v2325, %v2427
        %s2430 = sld [smem:[#allocation2 + $0xe9]]
        %v2431 = vstv %s2430
        %v2432 = vmul.f32 %v2431, %v210
        %v2433 = vmul.f32 %v2431, %v211
        %v2436 = vrot.slane %v2432, 1
        %v2437 = vrot.slane %v2433, 1
        %v2438 = vsel %vm1134, %v2436, %v2437
        %2439 = vrot.lane.b32.xlu0 %v2438, 125
        %v2440 = vpop.permute.xlu0 %2439
        %v2442 = vadd.f32 %v2338, %v2440
        %s2443 = sld [smem:[#allocation2 + $0xea]]
        %v2444 = vstv %s2443
        %v2445 = vmul.f32 %v2444, %v210
        %v2446 = vmul.f32 %v2444, %v211
        %v2449 = vrot.slane %v2445, 1
        %v2450 = vrot.slane %v2446, 1
        %v2451 = vsel %vm1134, %v2449, %v2450
        %2452 = vrot.lane.b32.xlu0 %v2451, 125
        %v2453 = vpop.permute.xlu0 %2452
        %v2455 = vadd.f32 %v2351, %v2453
        %s2456 = sld [smem:[#allocation2 + $0xeb]]
        %v2457 = vstv %s2456
        %v2458 = vmul.f32 %v2457, %v210
        %v2459 = vmul.f32 %v2457, %v211
        %v2462 = vrot.slane %v2458, 1
        %v2463 = vrot.slane %v2459, 1
        %v2464 = vsel %vm1134, %v2462, %v2463
        %2465 = vrot.lane.b32.xlu0 %v2464, 125
        %v2466 = vpop.permute.xlu0 %2465
        %v2468 = vadd.f32 %v2364, %v2466
        %s2469 = sld [smem:[#allocation2 + $0xec]]
        %v2470 = vstv %s2469
        %v2471 = vmul.f32 %v2470, %v210
        %v2472 = vmul.f32 %v2470, %v211
        %v2475 = vrot.slane %v2471, 1
        %v2476 = vrot.slane %v2472, 1
        %v2477 = vsel %vm1134, %v2475, %v2476
        %2478 = vrot.lane.b32.xlu0 %v2477, 125
        %v2479 = vpop.permute.xlu0 %2478
        %v2481 = vadd.f32 %v2377, %v2479
        %s2482 = sld [smem:[#allocation2 + $0xed]]
        %v2483 = vstv %s2482
        %v2484 = vmul.f32 %v2483, %v210
        %v2485 = vmul.f32 %v2483, %v211
        %v2488 = vrot.slane %v2484, 1
        %v2489 = vrot.slane %v2485, 1
        %v2490 = vsel %vm1134, %v2488, %v2489
        %2491 = vrot.lane.b32.xlu0 %v2490, 125
        %v2492 = vpop.permute.xlu0 %2491
        %v2494 = vadd.f32 %v2390, %v2492
        %s2495 = sld [smem:[#allocation2 + $0xee]]
        %v2496 = vstv %s2495
        %v2497 = vmul.f32 %v2496, %v210
        %v2498 = vmul.f32 %v2496, %v211
        %v2501 = vrot.slane %v2497, 1
        %v2502 = vrot.slane %v2498, 1
        %v2503 = vsel %vm1134, %v2501, %v2502
        %2504 = vrot.lane.b32.xlu0 %v2503, 125
        %v2505 = vpop.permute.xlu0 %2504
        %v2507 = vadd.f32 %v2403, %v2505
        %s2508 = sld [smem:[#allocation2 + $0xef]]
        %v2509 = vstv %s2508
        %v2510 = vmul.f32 %v2509, %v210
        %v2511 = vmul.f32 %v2509, %v211
        %v2514 = vrot.slane %v2510, 1
        %v2515 = vrot.slane %v2511, 1
        %v2516 = vsel %vm1134, %v2514, %v2515
        %2517 = vrot.lane.b32.xlu0 %v2516, 125
        %v2518 = vpop.permute.xlu0 %2517
        %v2520 = vadd.f32 %v2416, %v2518
        %s2521 = sld [smem:[#allocation2 + $0xf0]]
        %v2522 = vstv %s2521
        %v2523 = vmul.f32 %v2522, %v212
        %v2524 = vmul.f32 %v2522, %v213
        %v2527 = vrot.slane %v2523, 1
        %v2528 = vrot.slane %v2524, 1
        %v2529 = vsel %vm1134, %v2527, %v2528
        %2530 = vrot.lane.b32.xlu0 %v2529, 125
        %v2531 = vpop.permute.xlu0 %2530
        %v2533 = vadd.f32 %v2429, %v2531
        %s2534 = sld [smem:[#allocation2 + $0xf1]]
        %v2535 = vstv %s2534
        %v2536 = vmul.f32 %v2535, %v212
        %v2537 = vmul.f32 %v2535, %v213
        %v2540 = vrot.slane %v2536, 1
        %v2541 = vrot.slane %v2537, 1
        %v2542 = vsel %vm1134, %v2540, %v2541
        %2543 = vrot.lane.b32.xlu0 %v2542, 125
        %v2544 = vpop.permute.xlu0 %2543
        %v2546 = vadd.f32 %v2442, %v2544
        %s2547 = sld [smem:[#allocation2 + $0xf2]]
        %v2548 = vstv %s2547
        %v2549 = vmul.f32 %v2548, %v212
        %v2550 = vmul.f32 %v2548, %v213
        %v2553 = vrot.slane %v2549, 1
        %v2554 = vrot.slane %v2550, 1
        %v2555 = vsel %vm1134, %v2553, %v2554
        %2556 = vrot.lane.b32.xlu0 %v2555, 125
        %v2557 = vpop.permute.xlu0 %2556
        %v2559 = vadd.f32 %v2455, %v2557
        %s2560 = sld [smem:[#allocation2 + $0xf3]]
        %v2561 = vstv %s2560
        %v2562 = vmul.f32 %v2561, %v212
        %v2563 = vmul.f32 %v2561, %v213
        %v2566 = vrot.slane %v2562, 1
        %v2567 = vrot.slane %v2563, 1
        %v2568 = vsel %vm1134, %v2566, %v2567
        %2569 = vrot.lane.b32.xlu0 %v2568, 125
        %v2570 = vpop.permute.xlu0 %2569
        %v2572 = vadd.f32 %v2468, %v2570
        %s2573 = sld [smem:[#allocation2 + $0xf4]]
        %v2574 = vstv %s2573
        %v2575 = vmul.f32 %v2574, %v212
        %v2576 = vmul.f32 %v2574, %v213
        %v2579 = vrot.slane %v2575, 1
        %v2580 = vrot.slane %v2576, 1
        %v2581 = vsel %vm1134, %v2579, %v2580
        %2582 = vrot.lane.b32.xlu0 %v2581, 125
        %v2583 = vpop.permute.xlu0 %2582
        %v2585 = vadd.f32 %v2481, %v2583
        %s2586 = sld [smem:[#allocation2 + $0xf5]]
        %v2587 = vstv %s2586
        %v2588 = vmul.f32 %v2587, %v212
        %v2589 = vmul.f32 %v2587, %v213
        %v2592 = vrot.slane %v2588, 1
        %v2593 = vrot.slane %v2589, 1
        %v2594 = vsel %vm1134, %v2592, %v2593
        %2595 = vrot.lane.b32.xlu0 %v2594, 125
        %v2596 = vpop.permute.xlu0 %2595
        %v2598 = vadd.f32 %v2494, %v2596
        %s2599 = sld [smem:[#allocation2 + $0xf6]]
        %v2600 = vstv %s2599
        %v2601 = vmul.f32 %v2600, %v212
        %v2602 = vmul.f32 %v2600, %v213
        %v2605 = vrot.slane %v2601, 1
        %v2606 = vrot.slane %v2602, 1
        %v2607 = vsel %vm1134, %v2605, %v2606
        %2608 = vrot.lane.b32.xlu0 %v2607, 125
        %v2609 = vpop.permute.xlu0 %2608
        %v2611 = vadd.f32 %v2507, %v2609
        %s2612 = sld [smem:[#allocation2 + $0xf7]]
        %v2613 = vstv %s2612
        %v2614 = vmul.f32 %v2613, %v212
        %v2615 = vmul.f32 %v2613, %v213
        %v2618 = vrot.slane %v2614, 1
        %v2619 = vrot.slane %v2615, 1
        %v2620 = vsel %vm1134, %v2618, %v2619
        %2621 = vrot.lane.b32.xlu0 %v2620, 125
        %v2622 = vpop.permute.xlu0 %2621
        %v2624 = vadd.f32 %v2520, %v2622
        %s2625 = sld [smem:[#allocation2 + $0xf8]]
        %v2626 = vstv %s2625
        %v2627 = vmul.f32 %v2626, %v214
        %v2628 = vmul.f32 %v2626, %v215
        %v2631 = vrot.slane %v2627, 1
        %v2632 = vrot.slane %v2628, 1
        %v2633 = vsel %vm1134, %v2631, %v2632
        %2634 = vrot.lane.b32.xlu0 %v2633, 125
        %v2635 = vpop.permute.xlu0 %2634
        %v2637 = vadd.f32 %v2533, %v2635
        %s2638 = sld [smem:[#allocation2 + $0xf9]]
        %v2639 = vstv %s2638
        %v2640 = vmul.f32 %v2639, %v214
        %v2641 = vmul.f32 %v2639, %v215
        %v2644 = vrot.slane %v2640, 1
        %v2645 = vrot.slane %v2641, 1
        %v2646 = vsel %vm1134, %v2644, %v2645
        %2647 = vrot.lane.b32.xlu0 %v2646, 125
        %v2648 = vpop.permute.xlu0 %2647
        %v2650 = vadd.f32 %v2546, %v2648
        %s2651 = sld [smem:[#allocation2 + $0xfa]]
        %v2652 = vstv %s2651
        %v2653 = vmul.f32 %v2652, %v214
        %v2654 = vmul.f32 %v2652, %v215
        %v2657 = vrot.slane %v2653, 1
        %v2658 = vrot.slane %v2654, 1
        %v2659 = vsel %vm1134, %v2657, %v2658
        %2660 = vrot.lane.b32.xlu0 %v2659, 125
        %v2661 = vpop.permute.xlu0 %2660
        %v2663 = vadd.f32 %v2559, %v2661
        %s2664 = sld [smem:[#allocation2 + $0xfb]]
        %v2665 = vstv %s2664
        %v2666 = vmul.f32 %v2665, %v214
        %v2667 = vmul.f32 %v2665, %v215
        %v2670 = vrot.slane %v2666, 1
        %v2671 = vrot.slane %v2667, 1
        %v2672 = vsel %vm1134, %v2670, %v2671
        %2673 = vrot.lane.b32.xlu0 %v2672, 125
        %v2674 = vpop.permute.xlu0 %2673
        %v2676 = vadd.f32 %v2572, %v2674
        %s2677 = sld [smem:[#allocation2 + $0xfc]]
        %v2678 = vstv %s2677
        %v2679 = vmul.f32 %v2678, %v214
        %v2680 = vmul.f32 %v2678, %v215
        %v2683 = vrot.slane %v2679, 1
        %v2684 = vrot.slane %v2680, 1
        %v2685 = vsel %vm1134, %v2683, %v2684
        %2686 = vrot.lane.b32.xlu0 %v2685, 125
        %v2687 = vpop.permute.xlu0 %2686
        %v2689 = vadd.f32 %v2585, %v2687
        %s2690 = sld [smem:[#allocation2 + $0xfd]]
        %v2691 = vstv %s2690
        %v2692 = vmul.f32 %v2691, %v214
        %v2693 = vmul.f32 %v2691, %v215
        %v2696 = vrot.slane %v2692, 1
        %v2697 = vrot.slane %v2693, 1
        %v2698 = vsel %vm1134, %v2696, %v2697
        %2699 = vrot.lane.b32.xlu0 %v2698, 125
        %v2700 = vpop.permute.xlu0 %2699
        %v2702 = vadd.f32 %v2598, %v2700
        %s2703 = sld [smem:[#allocation2 + $0xfe]]
        %v2704 = vstv %s2703
        %v2705 = vmul.f32 %v2704, %v214
        %v2706 = vmul.f32 %v2704, %v215
        %v2709 = vrot.slane %v2705, 1
        %v2710 = vrot.slane %v2706, 1
        %v2711 = vsel %vm1134, %v2709, %v2710
        %2712 = vrot.lane.b32.xlu0 %v2711, 125
        %v2713 = vpop.permute.xlu0 %2712
        %v2715 = vadd.f32 %v2611, %v2713
        %s2716 = sld [smem:[#allocation2 + $0xff]]
        %v2717 = vstv %s2716
        %v2718 = vmul.f32 %v2717, %v214
        %v2719 = vmul.f32 %v2717, %v215
        %v2722 = vrot.slane %v2718, 1
        %v2723 = vrot.slane %v2719, 1
        %v2724 = vsel %vm1134, %v2722, %v2723
        %2725 = vrot.lane.b32.xlu0 %v2724, 125
        %v2726 = vpop.permute.xlu0 %2725
        %v2728 = vadd.f32 %v2624, %v2726
        %s2729 = sld [smem:[#allocation2 + $0x100]]
        %v2730 = vstv %s2729
        %v2731 = vmul.f32 %v2730, %v208
        %v2732 = vmul.f32 %v2730, %v209
        %vm2735 = vcmask 1045504
        %v2736 = vrot.slane %v2731, 2
        %v2737 = vrot.slane %v2732, 2
        %v2738 = vsel %vm2735, %v2736, %v2737
        %v2740 = vadd.f32 %v2637, %v2738
        %s2741 = sld [smem:[#allocation2 + $0x101]]
        %v2742 = vstv %s2741
        %v2743 = vmul.f32 %v2742, %v208
        %v2744 = vmul.f32 %v2742, %v209
        %v2747 = vrot.slane %v2743, 2
        %v2748 = vrot.slane %v2744, 2
        %v2749 = vsel %vm2735, %v2747, %v2748
        %v2751 = vadd.f32 %v2650, %v2749
        %s2752 = sld [smem:[#allocation2 + $0x102]]
        %v2753 = vstv %s2752
        %v2754 = vmul.f32 %v2753, %v208
        %v2755 = vmul.f32 %v2753, %v209
        %v2758 = vrot.slane %v2754, 2
        %v2759 = vrot.slane %v2755, 2
        %v2760 = vsel %vm2735, %v2758, %v2759
        %v2762 = vadd.f32 %v2663, %v2760
        %s2763 = sld [smem:[#allocation2 + $0x103]]
        %v2764 = vstv %s2763
        %v2765 = vmul.f32 %v2764, %v208
        %v2766 = vmul.f32 %v2764, %v209
        %v2769 = vrot.slane %v2765, 2
        %v2770 = vrot.slane %v2766, 2
        %v2771 = vsel %vm2735, %v2769, %v2770
        %v2773 = vadd.f32 %v2676, %v2771
        %s2774 = sld [smem:[#allocation2 + $0x104]]
        %v2775 = vstv %s2774
        %v2776 = vmul.f32 %v2775, %v208
        %v2777 = vmul.f32 %v2775, %v209
        %v2780 = vrot.slane %v2776, 2
        %v2781 = vrot.slane %v2777, 2
        %v2782 = vsel %vm2735, %v2780, %v2781
        %v2784 = vadd.f32 %v2689, %v2782
        %s2785 = sld [smem:[#allocation2 + $0x105]]
        %v2786 = vstv %s2785
        %v2787 = vmul.f32 %v2786, %v208
        %v2788 = vmul.f32 %v2786, %v209
        %v2791 = vrot.slane %v2787, 2
        %v2792 = vrot.slane %v2788, 2
        %v2793 = vsel %vm2735, %v2791, %v2792
        %v2795 = vadd.f32 %v2702, %v2793
        %s2796 = sld [smem:[#allocation2 + $0x106]]
        %v2797 = vstv %s2796
        %v2798 = vmul.f32 %v2797, %v208
        %v2799 = vmul.f32 %v2797, %v209
        %v2802 = vrot.slane %v2798, 2
        %v2803 = vrot.slane %v2799, 2
        %v2804 = vsel %vm2735, %v2802, %v2803
        %v2806 = vadd.f32 %v2715, %v2804
        %s2807 = sld [smem:[#allocation2 + $0x107]]
        %v2808 = vstv %s2807
        %v2809 = vmul.f32 %v2808, %v208
        %v2810 = vmul.f32 %v2808, %v209
        %v2813 = vrot.slane %v2809, 2
        %v2814 = vrot.slane %v2810, 2
        %v2815 = vsel %vm2735, %v2813, %v2814
        %v2817 = vadd.f32 %v2728, %v2815
        %s2818 = sld [smem:[#allocation2 + $0x108]]
        %v2819 = vstv %s2818
        %v2820 = vmul.f32 %v2819, %v210
        %v2821 = vmul.f32 %v2819, %v211
        %v2824 = vrot.slane %v2820, 2
        %v2825 = vrot.slane %v2821, 2
        %v2826 = vsel %vm2735, %v2824, %v2825
        %v2828 = vadd.f32 %v2740, %v2826
        %s2829 = sld [smem:[#allocation2 + $0x109]]
        %v2830 = vstv %s2829
        %v2831 = vmul.f32 %v2830, %v210
        %v2832 = vmul.f32 %v2830, %v211
        %v2835 = vrot.slane %v2831, 2
        %v2836 = vrot.slane %v2832, 2
        %v2837 = vsel %vm2735, %v2835, %v2836
        %v2839 = vadd.f32 %v2751, %v2837
        %s2840 = sld [smem:[#allocation2 + $0x10a]]
        %v2841 = vstv %s2840
        %v2842 = vmul.f32 %v2841, %v210
        %v2843 = vmul.f32 %v2841, %v211
        %v2846 = vrot.slane %v2842, 2
        %v2847 = vrot.slane %v2843, 2
        %v2848 = vsel %vm2735, %v2846, %v2847
        %v2850 = vadd.f32 %v2762, %v2848
        %s2851 = sld [smem:[#allocation2 + $0x10b]]
        %v2852 = vstv %s2851
        %v2853 = vmul.f32 %v2852, %v210
        %v2854 = vmul.f32 %v2852, %v211
        %v2857 = vrot.slane %v2853, 2
        %v2858 = vrot.slane %v2854, 2
        %v2859 = vsel %vm2735, %v2857, %v2858
        %v2861 = vadd.f32 %v2773, %v2859
        %s2862 = sld [smem:[#allocation2 + $0x10c]]
        %v2863 = vstv %s2862
        %v2864 = vmul.f32 %v2863, %v210
        %v2865 = vmul.f32 %v2863, %v211
        %v2868 = vrot.slane %v2864, 2
        %v2869 = vrot.slane %v2865, 2
        %v2870 = vsel %vm2735, %v2868, %v2869
        %v2872 = vadd.f32 %v2784, %v2870
        %s2873 = sld [smem:[#allocation2 + $0x10d]]
        %v2874 = vstv %s2873
        %v2875 = vmul.f32 %v2874, %v210
        %v2876 = vmul.f32 %v2874, %v211
        %v2879 = vrot.slane %v2875, 2
        %v2880 = vrot.slane %v2876, 2
        %v2881 = vsel %vm2735, %v2879, %v2880
        %v2883 = vadd.f32 %v2795, %v2881
        %s2884 = sld [smem:[#allocation2 + $0x10e]]
        %v2885 = vstv %s2884
        %v2886 = vmul.f32 %v2885, %v210
        %v2887 = vmul.f32 %v2885, %v211
        %v2890 = vrot.slane %v2886, 2
        %v2891 = vrot.slane %v2887, 2
        %v2892 = vsel %vm2735, %v2890, %v2891
        %v2894 = vadd.f32 %v2806, %v2892
        %s2895 = sld [smem:[#allocation2 + $0x10f]]
        %v2896 = vstv %s2895
        %v2897 = vmul.f32 %v2896, %v210
        %v2898 = vmul.f32 %v2896, %v211
        %v2901 = vrot.slane %v2897, 2
        %v2902 = vrot.slane %v2898, 2
        %v2903 = vsel %vm2735, %v2901, %v2902
        %v2905 = vadd.f32 %v2817, %v2903
        %s2906 = sld [smem:[#allocation2 + $0x110]]
        %v2907 = vstv %s2906
        %v2908 = vmul.f32 %v2907, %v212
        %v2909 = vmul.f32 %v2907, %v213
        %v2912 = vrot.slane %v2908, 2
        %v2913 = vrot.slane %v2909, 2
        %v2914 = vsel %vm2735, %v2912, %v2913
        %v2916 = vadd.f32 %v2828, %v2914
        %s2917 = sld [smem:[#allocation2 + $0x111]]
        %v2918 = vstv %s2917
        %v2919 = vmul.f32 %v2918, %v212
        %v2920 = vmul.f32 %v2918, %v213
        %v2923 = vrot.slane %v2919, 2
        %v2924 = vrot.slane %v2920, 2
        %v2925 = vsel %vm2735, %v2923, %v2924
        %v2927 = vadd.f32 %v2839, %v2925
        %s2928 = sld [smem:[#allocation2 + $0x112]]
        %v2929 = vstv %s2928
        %v2930 = vmul.f32 %v2929, %v212
        %v2931 = vmul.f32 %v2929, %v213
        %v2934 = vrot.slane %v2930, 2
        %v2935 = vrot.slane %v2931, 2
        %v2936 = vsel %vm2735, %v2934, %v2935
        %v2938 = vadd.f32 %v2850, %v2936
        %s2939 = sld [smem:[#allocation2 + $0x113]]
        %v2940 = vstv %s2939
        %v2941 = vmul.f32 %v2940, %v212
        %v2942 = vmul.f32 %v2940, %v213
        %v2945 = vrot.slane %v2941, 2
        %v2946 = vrot.slane %v2942, 2
        %v2947 = vsel %vm2735, %v2945, %v2946
        %v2949 = vadd.f32 %v2861, %v2947
        %s2950 = sld [smem:[#allocation2 + $0x114]]
        %v2951 = vstv %s2950
        %v2952 = vmul.f32 %v2951, %v212
        %v2953 = vmul.f32 %v2951, %v213
        %v2956 = vrot.slane %v2952, 2
        %v2957 = vrot.slane %v2953, 2
        %v2958 = vsel %vm2735, %v2956, %v2957
        %v2960 = vadd.f32 %v2872, %v2958
        %s2961 = sld [smem:[#allocation2 + $0x115]]
        %v2962 = vstv %s2961
        %v2963 = vmul.f32 %v2962, %v212
        %v2964 = vmul.f32 %v2962, %v213
        %v2967 = vrot.slane %v2963, 2
        %v2968 = vrot.slane %v2964, 2
        %v2969 = vsel %vm2735, %v2967, %v2968
        %v2971 = vadd.f32 %v2883, %v2969
        %s2972 = sld [smem:[#allocation2 + $0x116]]
        %v2973 = vstv %s2972
        %v2974 = vmul.f32 %v2973, %v212
        %v2975 = vmul.f32 %v2973, %v213
        %v2978 = vrot.slane %v2974, 2
        %v2979 = vrot.slane %v2975, 2
        %v2980 = vsel %vm2735, %v2978, %v2979
        %v2982 = vadd.f32 %v2894, %v2980
        %s2983 = sld [smem:[#allocation2 + $0x117]]
        %v2984 = vstv %s2983
        %v2985 = vmul.f32 %v2984, %v212
        %v2986 = vmul.f32 %v2984, %v213
        %v2989 = vrot.slane %v2985, 2
        %v2990 = vrot.slane %v2986, 2
        %v2991 = vsel %vm2735, %v2989, %v2990
        %v2993 = vadd.f32 %v2905, %v2991
        %s2994 = sld [smem:[#allocation2 + $0x118]]
        %v2995 = vstv %s2994
        %v2996 = vmul.f32 %v2995, %v214
        %v2997 = vmul.f32 %v2995, %v215
        %v3000 = vrot.slane %v2996, 2
        %v3001 = vrot.slane %v2997, 2
        %v3002 = vsel %vm2735, %v3000, %v3001
        %v3004 = vadd.f32 %v2916, %v3002
        %s3005 = sld [smem:[#allocation2 + $0x119]]
        %v3006 = vstv %s3005
        %v3007 = vmul.f32 %v3006, %v214
        %v3008 = vmul.f32 %v3006, %v215
        %v3011 = vrot.slane %v3007, 2
        %v3012 = vrot.slane %v3008, 2
        %v3013 = vsel %vm2735, %v3011, %v3012
        %v3015 = vadd.f32 %v2927, %v3013
        %s3016 = sld [smem:[#allocation2 + $0x11a]]
        %v3017 = vstv %s3016
        %v3018 = vmul.f32 %v3017, %v214
        %v3019 = vmul.f32 %v3017, %v215
        %v3022 = vrot.slane %v3018, 2
        %v3023 = vrot.slane %v3019, 2
        %v3024 = vsel %vm2735, %v3022, %v3023
        %v3026 = vadd.f32 %v2938, %v3024
        %s3027 = sld [smem:[#allocation2 + $0x11b]]
        %v3028 = vstv %s3027
        %v3029 = vmul.f32 %v3028, %v214
        %v3030 = vmul.f32 %v3028, %v215
        %v3033 = vrot.slane %v3029, 2
        %v3034 = vrot.slane %v3030, 2
        %v3035 = vsel %vm2735, %v3033, %v3034
        %v3037 = vadd.f32 %v2949, %v3035
        %s3038 = sld [smem:[#allocation2 + $0x11c]]
        %v3039 = vstv %s3038
        %v3040 = vmul.f32 %v3039, %v214
        %v3041 = vmul.f32 %v3039, %v215
        %v3044 = vrot.slane %v3040, 2
        %v3045 = vrot.slane %v3041, 2
        %v3046 = vsel %vm2735, %v3044, %v3045
        %v3048 = vadd.f32 %v2960, %v3046
        %s3049 = sld [smem:[#allocation2 + $0x11d]]
        %v3050 = vstv %s3049
        %v3051 = vmul.f32 %v3050, %v214
        %v3052 = vmul.f32 %v3050, %v215
        %v3055 = vrot.slane %v3051, 2
        %v3056 = vrot.slane %v3052, 2
        %v3057 = vsel %vm2735, %v3055, %v3056
        %v3059 = vadd.f32 %v2971, %v3057
        %s3060 = sld [smem:[#allocation2 + $0x11e]]
        %v3061 = vstv %s3060
        %v3062 = vmul.f32 %v3061, %v214
        %v3063 = vmul.f32 %v3061, %v215
        %v3066 = vrot.slane %v3062, 2
        %v3067 = vrot.slane %v3063, 2
        %v3068 = vsel %vm2735, %v3066, %v3067
        %v3070 = vadd.f32 %v2982, %v3068
        %s3071 = sld [smem:[#allocation2 + $0x11f]]
        %v3072 = vstv %s3071
        %v3073 = vmul.f32 %v3072, %v214
        %v3074 = vmul.f32 %v3072, %v215
        %v3077 = vrot.slane %v3073, 2
        %v3078 = vrot.slane %v3074, 2
        %v3079 = vsel %vm2735, %v3077, %v3078
        %v3081 = vadd.f32 %v2993, %v3079
        %s3082 = sld [smem:[#allocation2 + $0x120]]
        %v3083 = vstv %s3082
        %v3084 = vmul.f32 %v3083, %v208
        %v3085 = vmul.f32 %v3083, %v209
        %v3088 = vrot.slane %v3084, 2
        %v3089 = vrot.slane %v3085, 2
        %v3090 = vsel %vm2735, %v3088, %v3089
        %3091 = vrot.lane.b32.xlu0 %v3090, 127
        %v3092 = vpop.permute.xlu0 %3091
        %v3094 = vadd.f32 %v3004, %v3092
        %s3095 = sld [smem:[#allocation2 + $0x121]]
        %v3096 = vstv %s3095
        %v3097 = vmul.f32 %v3096, %v208
        %v3098 = vmul.f32 %v3096, %v209
        %v3101 = vrot.slane %v3097, 2
        %v3102 = vrot.slane %v3098, 2
        %v3103 = vsel %vm2735, %v3101, %v3102
        %3104 = vrot.lane.b32.xlu0 %v3103, 127
        %v3105 = vpop.permute.xlu0 %3104
        %v3107 = vadd.f32 %v3015, %v3105
        %s3108 = sld [smem:[#allocation2 + $0x122]]
        %v3109 = vstv %s3108
        %v3110 = vmul.f32 %v3109, %v208
        %v3111 = vmul.f32 %v3109, %v209
        %v3114 = vrot.slane %v3110, 2
        %v3115 = vrot.slane %v3111, 2
        %v3116 = vsel %vm2735, %v3114, %v3115
        %3117 = vrot.lane.b32.xlu0 %v3116, 127
        %v3118 = vpop.permute.xlu0 %3117
        %v3120 = vadd.f32 %v3026, %v3118
        %s3121 = sld [smem:[#allocation2 + $0x123]]
        %v3122 = vstv %s3121
        %v3123 = vmul.f32 %v3122, %v208
        %v3124 = vmul.f32 %v3122, %v209
        %v3127 = vrot.slane %v3123, 2
        %v3128 = vrot.slane %v3124, 2
        %v3129 = vsel %vm2735, %v3127, %v3128
        %3130 = vrot.lane.b32.xlu0 %v3129, 127
        %v3131 = vpop.permute.xlu0 %3130
        %v3133 = vadd.f32 %v3037, %v3131
        %s3134 = sld [smem:[#allocation2 + $0x124]]
        %v3135 = vstv %s3134
        %v3136 = vmul.f32 %v3135, %v208
        %v3137 = vmul.f32 %v3135, %v209
        %v3140 = vrot.slane %v3136, 2
        %v3141 = vrot.slane %v3137, 2
        %v3142 = vsel %vm2735, %v3140, %v3141
        %3143 = vrot.lane.b32.xlu0 %v3142, 127
        %v3144 = vpop.permute.xlu0 %3143
        %v3146 = vadd.f32 %v3048, %v3144
        %s3147 = sld [smem:[#allocation2 + $0x125]]
        %v3148 = vstv %s3147
        %v3149 = vmul.f32 %v3148, %v208
        %v3150 = vmul.f32 %v3148, %v209
        %v3153 = vrot.slane %v3149, 2
        %v3154 = vrot.slane %v3150, 2
        %v3155 = vsel %vm2735, %v3153, %v3154
        %3156 = vrot.lane.b32.xlu0 %v3155, 127
        %v3157 = vpop.permute.xlu0 %3156
        %v3159 = vadd.f32 %v3059, %v3157
        %s3160 = sld [smem:[#allocation2 + $0x126]]
        %v3161 = vstv %s3160
        %v3162 = vmul.f32 %v3161, %v208
        %v3163 = vmul.f32 %v3161, %v209
        %v3166 = vrot.slane %v3162, 2
        %v3167 = vrot.slane %v3163, 2
        %v3168 = vsel %vm2735, %v3166, %v3167
        %3169 = vrot.lane.b32.xlu0 %v3168, 127
        %v3170 = vpop.permute.xlu0 %3169
        %v3172 = vadd.f32 %v3070, %v3170
        %s3173 = sld [smem:[#allocation2 + $0x127]]
        %v3174 = vstv %s3173
        %v3175 = vmul.f32 %v3174, %v208
        %v3176 = vmul.f32 %v3174, %v209
        %v3179 = vrot.slane %v3175, 2
        %v3180 = vrot.slane %v3176, 2
        %v3181 = vsel %vm2735, %v3179, %v3180
        %3182 = vrot.lane.b32.xlu0 %v3181, 127
        %v3183 = vpop.permute.xlu0 %3182
        %v3185 = vadd.f32 %v3081, %v3183
        %s3186 = sld [smem:[#allocation2 + $0x128]]
        %v3187 = vstv %s3186
        %v3188 = vmul.f32 %v3187, %v210
        %v3189 = vmul.f32 %v3187, %v211
        %v3192 = vrot.slane %v3188, 2
        %v3193 = vrot.slane %v3189, 2
        %v3194 = vsel %vm2735, %v3192, %v3193
        %3195 = vrot.lane.b32.xlu0 %v3194, 127
        %v3196 = vpop.permute.xlu0 %3195
        %v3198 = vadd.f32 %v3094, %v3196
        %s3199 = sld [smem:[#allocation2 + $0x129]]
        %v3200 = vstv %s3199
        %v3201 = vmul.f32 %v3200, %v210
        %v3202 = vmul.f32 %v3200, %v211
        %v3205 = vrot.slane %v3201, 2
        %v3206 = vrot.slane %v3202, 2
        %v3207 = vsel %vm2735, %v3205, %v3206
        %3208 = vrot.lane.b32.xlu0 %v3207, 127
        %v3209 = vpop.permute.xlu0 %3208
        %v3211 = vadd.f32 %v3107, %v3209
        %s3212 = sld [smem:[#allocation2 + $0x12a]]
        %v3213 = vstv %s3212
        %v3214 = vmul.f32 %v3213, %v210
        %v3215 = vmul.f32 %v3213, %v211
        %v3218 = vrot.slane %v3214, 2
        %v3219 = vrot.slane %v3215, 2
        %v3220 = vsel %vm2735, %v3218, %v3219
        %3221 = vrot.lane.b32.xlu0 %v3220, 127
        %v3222 = vpop.permute.xlu0 %3221
        %v3224 = vadd.f32 %v3120, %v3222
        %s3225 = sld [smem:[#allocation2 + $0x12b]]
        %v3226 = vstv %s3225
        %v3227 = vmul.f32 %v3226, %v210
        %v3228 = vmul.f32 %v3226, %v211
        %v3231 = vrot.slane %v3227, 2
        %v3232 = vrot.slane %v3228, 2
        %v3233 = vsel %vm2735, %v3231, %v3232
        %3234 = vrot.lane.b32.xlu0 %v3233, 127
        %v3235 = vpop.permute.xlu0 %3234
        %v3237 = vadd.f32 %v3133, %v3235
        %s3238 = sld [smem:[#allocation2 + $0x12c]]
        %v3239 = vstv %s3238
        %v3240 = vmul.f32 %v3239, %v210
        %v3241 = vmul.f32 %v3239, %v211
        %v3244 = vrot.slane %v3240, 2
        %v3245 = vrot.slane %v3241, 2
        %v3246 = vsel %vm2735, %v3244, %v3245
        %3247 = vrot.lane.b32.xlu0 %v3246, 127
        %v3248 = vpop.permute.xlu0 %3247
        %v3250 = vadd.f32 %v3146, %v3248
        %s3251 = sld [smem:[#allocation2 + $0x12d]]
        %v3252 = vstv %s3251
        %v3253 = vmul.f32 %v3252, %v210
        %v3254 = vmul.f32 %v3252, %v211
        %v3257 = vrot.slane %v3253, 2
        %v3258 = vrot.slane %v3254, 2
        %v3259 = vsel %vm2735, %v3257, %v3258
        %3260 = vrot.lane.b32.xlu0 %v3259, 127
        %v3261 = vpop.permute.xlu0 %3260
        %v3263 = vadd.f32 %v3159, %v3261
        %s3264 = sld [smem:[#allocation2 + $0x12e]]
        %v3265 = vstv %s3264
        %v3266 = vmul.f32 %v3265, %v210
        %v3267 = vmul.f32 %v3265, %v211
        %v3270 = vrot.slane %v3266, 2
        %v3271 = vrot.slane %v3267, 2
        %v3272 = vsel %vm2735, %v3270, %v3271
        %3273 = vrot.lane.b32.xlu0 %v3272, 127
        %v3274 = vpop.permute.xlu0 %3273
        %v3276 = vadd.f32 %v3172, %v3274
        %s3277 = sld [smem:[#allocation2 + $0x12f]]
        %v3278 = vstv %s3277
        %v3279 = vmul.f32 %v3278, %v210
        %v3280 = vmul.f32 %v3278, %v211
        %v3283 = vrot.slane %v3279, 2
        %v3284 = vrot.slane %v3280, 2
        %v3285 = vsel %vm2735, %v3283, %v3284
        %3286 = vrot.lane.b32.xlu0 %v3285, 127
        %v3287 = vpop.permute.xlu0 %3286
        %v3289 = vadd.f32 %v3185, %v3287
        %s3290 = sld [smem:[#allocation2 + $0x130]]
        %v3291 = vstv %s3290
        %v3292 = vmul.f32 %v3291, %v212
        %v3293 = vmul.f32 %v3291, %v213
        %v3296 = vrot.slane %v3292, 2
        %v3297 = vrot.slane %v3293, 2
        %v3298 = vsel %vm2735, %v3296, %v3297
        %3299 = vrot.lane.b32.xlu0 %v3298, 127
        %v3300 = vpop.permute.xlu0 %3299
        %v3302 = vadd.f32 %v3198, %v3300
        %s3303 = sld [smem:[#allocation2 + $0x131]]
        %v3304 = vstv %s3303
        %v3305 = vmul.f32 %v3304, %v212
        %v3306 = vmul.f32 %v3304, %v213
        %v3309 = vrot.slane %v3305, 2
        %v3310 = vrot.slane %v3306, 2
        %v3311 = vsel %vm2735, %v3309, %v3310
        %3312 = vrot.lane.b32.xlu0 %v3311, 127
        %v3313 = vpop.permute.xlu0 %3312
        %v3315 = vadd.f32 %v3211, %v3313
        %s3316 = sld [smem:[#allocation2 + $0x132]]
        %v3317 = vstv %s3316
        %v3318 = vmul.f32 %v3317, %v212
        %v3319 = vmul.f32 %v3317, %v213
        %v3322 = vrot.slane %v3318, 2
        %v3323 = vrot.slane %v3319, 2
        %v3324 = vsel %vm2735, %v3322, %v3323
        %3325 = vrot.lane.b32.xlu0 %v3324, 127
        %v3326 = vpop.permute.xlu0 %3325
        %v3328 = vadd.f32 %v3224, %v3326
        %s3329 = sld [smem:[#allocation2 + $0x133]]
        %v3330 = vstv %s3329
        %v3331 = vmul.f32 %v3330, %v212
        %v3332 = vmul.f32 %v3330, %v213
        %v3335 = vrot.slane %v3331, 2
        %v3336 = vrot.slane %v3332, 2
        %v3337 = vsel %vm2735, %v3335, %v3336
        %3338 = vrot.lane.b32.xlu0 %v3337, 127
        %v3339 = vpop.permute.xlu0 %3338
        %v3341 = vadd.f32 %v3237, %v3339
        %s3342 = sld [smem:[#allocation2 + $0x134]]
        %v3343 = vstv %s3342
        %v3344 = vmul.f32 %v3343, %v212
        %v3345 = vmul.f32 %v3343, %v213
        %v3348 = vrot.slane %v3344, 2
        %v3349 = vrot.slane %v3345, 2
        %v3350 = vsel %vm2735, %v3348, %v3349
        %3351 = vrot.lane.b32.xlu0 %v3350, 127
        %v3352 = vpop.permute.xlu0 %3351
        %v3354 = vadd.f32 %v3250, %v3352
        %s3355 = sld [smem:[#allocation2 + $0x135]]
        %v3356 = vstv %s3355
        %v3357 = vmul.f32 %v3356, %v212
        %v3358 = vmul.f32 %v3356, %v213
        %v3361 = vrot.slane %v3357, 2
        %v3362 = vrot.slane %v3358, 2
        %v3363 = vsel %vm2735, %v3361, %v3362
        %3364 = vrot.lane.b32.xlu0 %v3363, 127
        %v3365 = vpop.permute.xlu0 %3364
        %v3367 = vadd.f32 %v3263, %v3365
        %s3368 = sld [smem:[#allocation2 + $0x136]]
        %v3369 = vstv %s3368
        %v3370 = vmul.f32 %v3369, %v212
        %v3371 = vmul.f32 %v3369, %v213
        %v3374 = vrot.slane %v3370, 2
        %v3375 = vrot.slane %v3371, 2
        %v3376 = vsel %vm2735, %v3374, %v3375
        %3377 = vrot.lane.b32.xlu0 %v3376, 127
        %v3378 = vpop.permute.xlu0 %3377
        %v3380 = vadd.f32 %v3276, %v3378
        %s3381 = sld [smem:[#allocation2 + $0x137]]
        %v3382 = vstv %s3381
        %v3383 = vmul.f32 %v3382, %v212
        %v3384 = vmul.f32 %v3382, %v213
        %v3387 = vrot.slane %v3383, 2
        %v3388 = vrot.slane %v3384, 2
        %v3389 = vsel %vm2735, %v3387, %v3388
        %3390 = vrot.lane.b32.xlu0 %v3389, 127
        %v3391 = vpop.permute.xlu0 %3390
        %v3393 = vadd.f32 %v3289, %v3391
        %s3394 = sld [smem:[#allocation2 + $0x138]]
        %v3395 = vstv %s3394
        %v3396 = vmul.f32 %v3395, %v214
        %v3397 = vmul.f32 %v3395, %v215
        %v3400 = vrot.slane %v3396, 2
        %v3401 = vrot.slane %v3397, 2
        %v3402 = vsel %vm2735, %v3400, %v3401
        %3403 = vrot.lane.b32.xlu0 %v3402, 127
        %v3404 = vpop.permute.xlu0 %3403
        %v3406 = vadd.f32 %v3302, %v3404
        %s3407 = sld [smem:[#allocation2 + $0x139]]
        %v3408 = vstv %s3407
        %v3409 = vmul.f32 %v3408, %v214
        %v3410 = vmul.f32 %v3408, %v215
        %v3413 = vrot.slane %v3409, 2
        %v3414 = vrot.slane %v3410, 2
        %v3415 = vsel %vm2735, %v3413, %v3414
        %3416 = vrot.lane.b32.xlu0 %v3415, 127
        %v3417 = vpop.permute.xlu0 %3416
        %v3419 = vadd.f32 %v3315, %v3417
        %s3420 = sld [smem:[#allocation2 + $0x13a]]
        %v3421 = vstv %s3420
        %v3422 = vmul.f32 %v3421, %v214
        %v3423 = vmul.f32 %v3421, %v215
        %v3426 = vrot.slane %v3422, 2
        %v3427 = vrot.slane %v3423, 2
        %v3428 = vsel %vm2735, %v3426, %v3427
        %3429 = vrot.lane.b32.xlu0 %v3428, 127
        %v3430 = vpop.permute.xlu0 %3429
        %v3432 = vadd.f32 %v3328, %v3430
        %s3433 = sld [smem:[#allocation2 + $0x13b]]
        %v3434 = vstv %s3433
        %v3435 = vmul.f32 %v3434, %v214
        %v3436 = vmul.f32 %v3434, %v215
        %v3439 = vrot.slane %v3435, 2
        %v3440 = vrot.slane %v3436, 2
        %v3441 = vsel %vm2735, %v3439, %v3440
        %3442 = vrot.lane.b32.xlu0 %v3441, 127
        %v3443 = vpop.permute.xlu0 %3442
        %v3445 = vadd.f32 %v3341, %v3443
        %s3446 = sld [smem:[#allocation2 + $0x13c]]
        %v3447 = vstv %s3446
        %v3448 = vmul.f32 %v3447, %v214
        %v3449 = vmul.f32 %v3447, %v215
        %v3452 = vrot.slane %v3448, 2
        %v3453 = vrot.slane %v3449, 2
        %v3454 = vsel %vm2735, %v3452, %v3453
        %3455 = vrot.lane.b32.xlu0 %v3454, 127
        %v3456 = vpop.permute.xlu0 %3455
        %v3458 = vadd.f32 %v3354, %v3456
        %s3459 = sld [smem:[#allocation2 + $0x13d]]
        %v3460 = vstv %s3459
        %v3461 = vmul.f32 %v3460, %v214
        %v3462 = vmul.f32 %v3460, %v215
        %v3465 = vrot.slane %v3461, 2
        %v3466 = vrot.slane %v3462, 2
        %v3467 = vsel %vm2735, %v3465, %v3466
        %3468 = vrot.lane.b32.xlu0 %v3467, 127
        %v3469 = vpop.permute.xlu0 %3468
        %v3471 = vadd.f32 %v3367, %v3469
        %s3472 = sld [smem:[#allocation2 + $0x13e]]
        %v3473 = vstv %s3472
        %v3474 = vmul.f32 %v3473, %v214
        %v3475 = vmul.f32 %v3473, %v215
        %v3478 = vrot.slane %v3474, 2
        %v3479 = vrot.slane %v3475, 2
        %v3480 = vsel %vm2735, %v3478, %v3479
        %3481 = vrot.lane.b32.xlu0 %v3480, 127
        %v3482 = vpop.permute.xlu0 %3481
        %v3484 = vadd.f32 %v3380, %v3482
        %s3485 = sld [smem:[#allocation2 + $0x13f]]
        %v3486 = vstv %s3485
        %v3487 = vmul.f32 %v3486, %v214
        %v3488 = vmul.f32 %v3486, %v215
        %v3491 = vrot.slane %v3487, 2
        %v3492 = vrot.slane %v3488, 2
        %v3493 = vsel %vm2735, %v3491, %v3492
        %3494 = vrot.lane.b32.xlu0 %v3493, 127
        %v3495 = vpop.permute.xlu0 %3494
        %v3497 = vadd.f32 %v3393, %v3495
        %s3498 = sld [smem:[#allocation2 + $0x140]]
        %v3499 = vstv %s3498
        %v3500 = vmul.f32 %v3499, %v208
        %v3501 = vmul.f32 %v3499, %v209
        %v3504 = vrot.slane %v3500, 2
        %v3505 = vrot.slane %v3501, 2
        %v3506 = vsel %vm2735, %v3504, %v3505
        %3507 = vrot.lane.b32.xlu0 %v3506, 126
        %v3508 = vpop.permute.xlu0 %3507
        %v3510 = vadd.f32 %v3406, %v3508
        %s3511 = sld [smem:[#allocation2 + $0x141]]
        %v3512 = vstv %s3511
        %v3513 = vmul.f32 %v3512, %v208
        %v3514 = vmul.f32 %v3512, %v209
        %v3517 = vrot.slane %v3513, 2
        %v3518 = vrot.slane %v3514, 2
        %v3519 = vsel %vm2735, %v3517, %v3518
        %3520 = vrot.lane.b32.xlu0 %v3519, 126
        %v3521 = vpop.permute.xlu0 %3520
        %v3523 = vadd.f32 %v3419, %v3521
        %s3524 = sld [smem:[#allocation2 + $0x142]]
        %v3525 = vstv %s3524
        %v3526 = vmul.f32 %v3525, %v208
        %v3527 = vmul.f32 %v3525, %v209
        %v3530 = vrot.slane %v3526, 2
        %v3531 = vrot.slane %v3527, 2
        %v3532 = vsel %vm2735, %v3530, %v3531
        %3533 = vrot.lane.b32.xlu0 %v3532, 126
        %v3534 = vpop.permute.xlu0 %3533
        %v3536 = vadd.f32 %v3432, %v3534
        %s3537 = sld [smem:[#allocation2 + $0x143]]
        %v3538 = vstv %s3537
        %v3539 = vmul.f32 %v3538, %v208
        %v3540 = vmul.f32 %v3538, %v209
        %v3543 = vrot.slane %v3539, 2
        %v3544 = vrot.slane %v3540, 2
        %v3545 = vsel %vm2735, %v3543, %v3544
        %3546 = vrot.lane.b32.xlu0 %v3545, 126
        %v3547 = vpop.permute.xlu0 %3546
        %v3549 = vadd.f32 %v3445, %v3547
        %s3550 = sld [smem:[#allocation2 + $0x144]]
        %v3551 = vstv %s3550
        %v3552 = vmul.f32 %v3551, %v208
        %v3553 = vmul.f32 %v3551, %v209
        %v3556 = vrot.slane %v3552, 2
        %v3557 = vrot.slane %v3553, 2
        %v3558 = vsel %vm2735, %v3556, %v3557
        %3559 = vrot.lane.b32.xlu0 %v3558, 126
        %v3560 = vpop.permute.xlu0 %3559
        %v3562 = vadd.f32 %v3458, %v3560
        %s3563 = sld [smem:[#allocation2 + $0x145]]
        %v3564 = vstv %s3563
        %v3565 = vmul.f32 %v3564, %v208
        %v3566 = vmul.f32 %v3564, %v209
        %v3569 = vrot.slane %v3565, 2
        %v3570 = vrot.slane %v3566, 2
        %v3571 = vsel %vm2735, %v3569, %v3570
        %3572 = vrot.lane.b32.xlu0 %v3571, 126
        %v3573 = vpop.permute.xlu0 %3572
        %v3575 = vadd.f32 %v3471, %v3573
        %s3576 = sld [smem:[#allocation2 + $0x146]]
        %v3577 = vstv %s3576
        %v3578 = vmul.f32 %v3577, %v208
        %v3579 = vmul.f32 %v3577, %v209
        %v3582 = vrot.slane %v3578, 2
        %v3583 = vrot.slane %v3579, 2
        %v3584 = vsel %vm2735, %v3582, %v3583
        %3585 = vrot.lane.b32.xlu0 %v3584, 126
        %v3586 = vpop.permute.xlu0 %3585
        %v3588 = vadd.f32 %v3484, %v3586
        %s3589 = sld [smem:[#allocation2 + $0x147]]
        %v3590 = vstv %s3589
        %v3591 = vmul.f32 %v3590, %v208
        %v3592 = vmul.f32 %v3590, %v209
        %v3595 = vrot.slane %v3591, 2
        %v3596 = vrot.slane %v3592, 2
        %v3597 = vsel %vm2735, %v3595, %v3596
        %3598 = vrot.lane.b32.xlu0 %v3597, 126
        %v3599 = vpop.permute.xlu0 %3598
        %v3601 = vadd.f32 %v3497, %v3599
        %s3602 = sld [smem:[#allocation2 + $0x148]]
        %v3603 = vstv %s3602
        %v3604 = vmul.f32 %v3603, %v210
        %v3605 = vmul.f32 %v3603, %v211
        %v3608 = vrot.slane %v3604, 2
        %v3609 = vrot.slane %v3605, 2
        %v3610 = vsel %vm2735, %v3608, %v3609
        %3611 = vrot.lane.b32.xlu0 %v3610, 126
        %v3612 = vpop.permute.xlu0 %3611
        %v3614 = vadd.f32 %v3510, %v3612
        %s3615 = sld [smem:[#allocation2 + $0x149]]
        %v3616 = vstv %s3615
        %v3617 = vmul.f32 %v3616, %v210
        %v3618 = vmul.f32 %v3616, %v211
        %v3621 = vrot.slane %v3617, 2
        %v3622 = vrot.slane %v3618, 2
        %v3623 = vsel %vm2735, %v3621, %v3622
        %3624 = vrot.lane.b32.xlu0 %v3623, 126
        %v3625 = vpop.permute.xlu0 %3624
        %v3627 = vadd.f32 %v3523, %v3625
        %s3628 = sld [smem:[#allocation2 + $0x14a]]
        %v3629 = vstv %s3628
        %v3630 = vmul.f32 %v3629, %v210
        %v3631 = vmul.f32 %v3629, %v211
        %v3634 = vrot.slane %v3630, 2
        %v3635 = vrot.slane %v3631, 2
        %v3636 = vsel %vm2735, %v3634, %v3635
        %3637 = vrot.lane.b32.xlu0 %v3636, 126
        %v3638 = vpop.permute.xlu0 %3637
        %v3640 = vadd.f32 %v3536, %v3638
        %s3641 = sld [smem:[#allocation2 + $0x14b]]
        %v3642 = vstv %s3641
        %v3643 = vmul.f32 %v3642, %v210
        %v3644 = vmul.f32 %v3642, %v211
        %v3647 = vrot.slane %v3643, 2
        %v3648 = vrot.slane %v3644, 2
        %v3649 = vsel %vm2735, %v3647, %v3648
        %3650 = vrot.lane.b32.xlu0 %v3649, 126
        %v3651 = vpop.permute.xlu0 %3650
        %v3653 = vadd.f32 %v3549, %v3651
        %s3654 = sld [smem:[#allocation2 + $0x14c]]
        %v3655 = vstv %s3654
        %v3656 = vmul.f32 %v3655, %v210
        %v3657 = vmul.f32 %v3655, %v211
        %v3660 = vrot.slane %v3656, 2
        %v3661 = vrot.slane %v3657, 2
        %v3662 = vsel %vm2735, %v3660, %v3661
        %3663 = vrot.lane.b32.xlu0 %v3662, 126
        %v3664 = vpop.permute.xlu0 %3663
        %v3666 = vadd.f32 %v3562, %v3664
        %s3667 = sld [smem:[#allocation2 + $0x14d]]
        %v3668 = vstv %s3667
        %v3669 = vmul.f32 %v3668, %v210
        %v3670 = vmul.f32 %v3668, %v211
        %v3673 = vrot.slane %v3669, 2
        %v3674 = vrot.slane %v3670, 2
        %v3675 = vsel %vm2735, %v3673, %v3674
        %3676 = vrot.lane.b32.xlu0 %v3675, 126
        %v3677 = vpop.permute.xlu0 %3676
        %v3679 = vadd.f32 %v3575, %v3677
        %s3680 = sld [smem:[#allocation2 + $0x14e]]
        %v3681 = vstv %s3680
        %v3682 = vmul.f32 %v3681, %v210
        %v3683 = vmul.f32 %v3681, %v211
        %v3686 = vrot.slane %v3682, 2
        %v3687 = vrot.slane %v3683, 2
        %v3688 = vsel %vm2735, %v3686, %v3687
        %3689 = vrot.lane.b32.xlu0 %v3688, 126
        %v3690 = vpop.permute.xlu0 %3689
        %v3692 = vadd.f32 %v3588, %v3690
        %s3693 = sld [smem:[#allocation2 + $0x14f]]
        %v3694 = vstv %s3693
        %v3695 = vmul.f32 %v3694, %v210
        %v3696 = vmul.f32 %v3694, %v211
        %v3699 = vrot.slane %v3695, 2
        %v3700 = vrot.slane %v3696, 2
        %v3701 = vsel %vm2735, %v3699, %v3700
        %3702 = vrot.lane.b32.xlu0 %v3701, 126
        %v3703 = vpop.permute.xlu0 %3702
        %v3705 = vadd.f32 %v3601, %v3703
        %s3706 = sld [smem:[#allocation2 + $0x150]]
        %v3707 = vstv %s3706
        %v3708 = vmul.f32 %v3707, %v212
        %v3709 = vmul.f32 %v3707, %v213
        %v3712 = vrot.slane %v3708, 2
        %v3713 = vrot.slane %v3709, 2
        %v3714 = vsel %vm2735, %v3712, %v3713
        %3715 = vrot.lane.b32.xlu0 %v3714, 126
        %v3716 = vpop.permute.xlu0 %3715
        %v3718 = vadd.f32 %v3614, %v3716
        %s3719 = sld [smem:[#allocation2 + $0x151]]
        %v3720 = vstv %s3719
        %v3721 = vmul.f32 %v3720, %v212
        %v3722 = vmul.f32 %v3720, %v213
        %v3725 = vrot.slane %v3721, 2
        %v3726 = vrot.slane %v3722, 2
        %v3727 = vsel %vm2735, %v3725, %v3726
        %3728 = vrot.lane.b32.xlu0 %v3727, 126
        %v3729 = vpop.permute.xlu0 %3728
        %v3731 = vadd.f32 %v3627, %v3729
        %s3732 = sld [smem:[#allocation2 + $0x152]]
        %v3733 = vstv %s3732
        %v3734 = vmul.f32 %v3733, %v212
        %v3735 = vmul.f32 %v3733, %v213
        %v3738 = vrot.slane %v3734, 2
        %v3739 = vrot.slane %v3735, 2
        %v3740 = vsel %vm2735, %v3738, %v3739
        %3741 = vrot.lane.b32.xlu0 %v3740, 126
        %v3742 = vpop.permute.xlu0 %3741
        %v3744 = vadd.f32 %v3640, %v3742
        %s3745 = sld [smem:[#allocation2 + $0x153]]
        %v3746 = vstv %s3745
        %v3747 = vmul.f32 %v3746, %v212
        %v3748 = vmul.f32 %v3746, %v213
        %v3751 = vrot.slane %v3747, 2
        %v3752 = vrot.slane %v3748, 2
        %v3753 = vsel %vm2735, %v3751, %v3752
        %3754 = vrot.lane.b32.xlu0 %v3753, 126
        %v3755 = vpop.permute.xlu0 %3754
        %v3757 = vadd.f32 %v3653, %v3755
        %s3758 = sld [smem:[#allocation2 + $0x154]]
        %v3759 = vstv %s3758
        %v3760 = vmul.f32 %v3759, %v212
        %v3761 = vmul.f32 %v3759, %v213
        %v3764 = vrot.slane %v3760, 2
        %v3765 = vrot.slane %v3761, 2
        %v3766 = vsel %vm2735, %v3764, %v3765
        %3767 = vrot.lane.b32.xlu0 %v3766, 126
        %v3768 = vpop.permute.xlu0 %3767
        %v3770 = vadd.f32 %v3666, %v3768
        %s3771 = sld [smem:[#allocation2 + $0x155]]
        %v3772 = vstv %s3771
        %v3773 = vmul.f32 %v3772, %v212
        %v3774 = vmul.f32 %v3772, %v213
        %v3777 = vrot.slane %v3773, 2
        %v3778 = vrot.slane %v3774, 2
        %v3779 = vsel %vm2735, %v3777, %v3778
        %3780 = vrot.lane.b32.xlu0 %v3779, 126
        %v3781 = vpop.permute.xlu0 %3780
        %v3783 = vadd.f32 %v3679, %v3781
        %s3784 = sld [smem:[#allocation2 + $0x156]]
        %v3785 = vstv %s3784
        %v3786 = vmul.f32 %v3785, %v212
        %v3787 = vmul.f32 %v3785, %v213
        %v3790 = vrot.slane %v3786, 2
        %v3791 = vrot.slane %v3787, 2
        %v3792 = vsel %vm2735, %v3790, %v3791
        %3793 = vrot.lane.b32.xlu0 %v3792, 126
        %v3794 = vpop.permute.xlu0 %3793
        %v3796 = vadd.f32 %v3692, %v3794
        %s3797 = sld [smem:[#allocation2 + $0x157]]
        %v3798 = vstv %s3797
        %v3799 = vmul.f32 %v3798, %v212
        %v3800 = vmul.f32 %v3798, %v213
        %v3803 = vrot.slane %v3799, 2
        %v3804 = vrot.slane %v3800, 2
        %v3805 = vsel %vm2735, %v3803, %v3804
        %3806 = vrot.lane.b32.xlu0 %v3805, 126
        %v3807 = vpop.permute.xlu0 %3806
        %v3809 = vadd.f32 %v3705, %v3807
        %s3810 = sld [smem:[#allocation2 + $0x158]]
        %v3811 = vstv %s3810
        %v3812 = vmul.f32 %v3811, %v214
        %v3813 = vmul.f32 %v3811, %v215
        %v3816 = vrot.slane %v3812, 2
        %v3817 = vrot.slane %v3813, 2
        %v3818 = vsel %vm2735, %v3816, %v3817
        %3819 = vrot.lane.b32.xlu0 %v3818, 126
        %v3820 = vpop.permute.xlu0 %3819
        %v3822 = vadd.f32 %v3718, %v3820
        %s3823 = sld [smem:[#allocation2 + $0x159]]
        %v3824 = vstv %s3823
        %v3825 = vmul.f32 %v3824, %v214
        %v3826 = vmul.f32 %v3824, %v215
        %v3829 = vrot.slane %v3825, 2
        %v3830 = vrot.slane %v3826, 2
        %v3831 = vsel %vm2735, %v3829, %v3830
        %3832 = vrot.lane.b32.xlu0 %v3831, 126
        %v3833 = vpop.permute.xlu0 %3832
        %v3835 = vadd.f32 %v3731, %v3833
        %s3836 = sld [smem:[#allocation2 + $0x15a]]
        %v3837 = vstv %s3836
        %v3838 = vmul.f32 %v3837, %v214
        %v3839 = vmul.f32 %v3837, %v215
        %v3842 = vrot.slane %v3838, 2
        %v3843 = vrot.slane %v3839, 2
        %v3844 = vsel %vm2735, %v3842, %v3843
        %3845 = vrot.lane.b32.xlu0 %v3844, 126
        %v3846 = vpop.permute.xlu0 %3845
        %v3848 = vadd.f32 %v3744, %v3846
        %s3849 = sld [smem:[#allocation2 + $0x15b]]
        %v3850 = vstv %s3849
        %v3851 = vmul.f32 %v3850, %v214
        %v3852 = vmul.f32 %v3850, %v215
        %v3855 = vrot.slane %v3851, 2
        %v3856 = vrot.slane %v3852, 2
        %v3857 = vsel %vm2735, %v3855, %v3856
        %3858 = vrot.lane.b32.xlu0 %v3857, 126
        %v3859 = vpop.permute.xlu0 %3858
        %v3861 = vadd.f32 %v3757, %v3859
        %s3862 = sld [smem:[#allocation2 + $0x15c]]
        %v3863 = vstv %s3862
        %v3864 = vmul.f32 %v3863, %v214
        %v3865 = vmul.f32 %v3863, %v215
        %v3868 = vrot.slane %v3864, 2
        %v3869 = vrot.slane %v3865, 2
        %v3870 = vsel %vm2735, %v3868, %v3869
        %3871 = vrot.lane.b32.xlu0 %v3870, 126
        %v3872 = vpop.permute.xlu0 %3871
        %v3874 = vadd.f32 %v3770, %v3872
        %s3875 = sld [smem:[#allocation2 + $0x15d]]
        %v3876 = vstv %s3875
        %v3877 = vmul.f32 %v3876, %v214
        %v3878 = vmul.f32 %v3876, %v215
        %v3881 = vrot.slane %v3877, 2
        %v3882 = vrot.slane %v3878, 2
        %v3883 = vsel %vm2735, %v3881, %v3882
        %3884 = vrot.lane.b32.xlu0 %v3883, 126
        %v3885 = vpop.permute.xlu0 %3884
        %v3887 = vadd.f32 %v3783, %v3885
        %s3888 = sld [smem:[#allocation2 + $0x15e]]
        %v3889 = vstv %s3888
        %v3890 = vmul.f32 %v3889, %v214
        %v3891 = vmul.f32 %v3889, %v215
        %v3894 = vrot.slane %v3890, 2
        %v3895 = vrot.slane %v3891, 2
        %v3896 = vsel %vm2735, %v3894, %v3895
        %3897 = vrot.lane.b32.xlu0 %v3896, 126
        %v3898 = vpop.permute.xlu0 %3897
        %v3900 = vadd.f32 %v3796, %v3898
        %s3901 = sld [smem:[#allocation2 + $0x15f]]
        %v3902 = vstv %s3901
        %v3903 = vmul.f32 %v3902, %v214
        %v3904 = vmul.f32 %v3902, %v215
        %v3907 = vrot.slane %v3903, 2
        %v3908 = vrot.slane %v3904, 2
        %v3909 = vsel %vm2735, %v3907, %v3908
        %3910 = vrot.lane.b32.xlu0 %v3909, 126
        %v3911 = vpop.permute.xlu0 %3910
        %v3913 = vadd.f32 %v3809, %v3911
        %s3914 = sld [smem:[#allocation2 + $0x160]]
        %v3915 = vstv %s3914
        %v3916 = vmul.f32 %v3915, %v208
        %v3917 = vmul.f32 %v3915, %v209
        %v3920 = vrot.slane %v3916, 2
        %v3921 = vrot.slane %v3917, 2
        %v3922 = vsel %vm2735, %v3920, %v3921
        %3923 = vrot.lane.b32.xlu0 %v3922, 125
        %v3924 = vpop.permute.xlu0 %3923
        %v3926 = vadd.f32 %v3822, %v3924
        %s3927 = sld [smem:[#allocation2 + $0x161]]
        %v3928 = vstv %s3927
        %v3929 = vmul.f32 %v3928, %v208
        %v3930 = vmul.f32 %v3928, %v209
        %v3933 = vrot.slane %v3929, 2
        %v3934 = vrot.slane %v3930, 2
        %v3935 = vsel %vm2735, %v3933, %v3934
        %3936 = vrot.lane.b32.xlu0 %v3935, 125
        %v3937 = vpop.permute.xlu0 %3936
        %v3939 = vadd.f32 %v3835, %v3937
        %s3940 = sld [smem:[#allocation2 + $0x162]]
        %v3941 = vstv %s3940
        %v3942 = vmul.f32 %v3941, %v208
        %v3943 = vmul.f32 %v3941, %v209
        %v3946 = vrot.slane %v3942, 2
        %v3947 = vrot.slane %v3943, 2
        %v3948 = vsel %vm2735, %v3946, %v3947
        %3949 = vrot.lane.b32.xlu0 %v3948, 125
        %v3950 = vpop.permute.xlu0 %3949
        %v3952 = vadd.f32 %v3848, %v3950
        %s3953 = sld [smem:[#allocation2 + $0x163]]
        %v3954 = vstv %s3953
        %v3955 = vmul.f32 %v3954, %v208
        %v3956 = vmul.f32 %v3954, %v209
        %v3959 = vrot.slane %v3955, 2
        %v3960 = vrot.slane %v3956, 2
        %v3961 = vsel %vm2735, %v3959, %v3960
        %3962 = vrot.lane.b32.xlu0 %v3961, 125
        %v3963 = vpop.permute.xlu0 %3962
        %v3965 = vadd.f32 %v3861, %v3963
        %s3966 = sld [smem:[#allocation2 + $0x164]]
        %v3967 = vstv %s3966
        %v3968 = vmul.f32 %v3967, %v208
        %v3969 = vmul.f32 %v3967, %v209
        %v3972 = vrot.slane %v3968, 2
        %v3973 = vrot.slane %v3969, 2
        %v3974 = vsel %vm2735, %v3972, %v3973
        %3975 = vrot.lane.b32.xlu0 %v3974, 125
        %v3976 = vpop.permute.xlu0 %3975
        %v3978 = vadd.f32 %v3874, %v3976
        %s3979 = sld [smem:[#allocation2 + $0x165]]
        %v3980 = vstv %s3979
        %v3981 = vmul.f32 %v3980, %v208
        %v3982 = vmul.f32 %v3980, %v209
        %v3985 = vrot.slane %v3981, 2
        %v3986 = vrot.slane %v3982, 2
        %v3987 = vsel %vm2735, %v3985, %v3986
        %3988 = vrot.lane.b32.xlu0 %v3987, 125
        %v3989 = vpop.permute.xlu0 %3988
        %v3991 = vadd.f32 %v3887, %v3989
        %s3992 = sld [smem:[#allocation2 + $0x166]]
        %v3993 = vstv %s3992
        %v3994 = vmul.f32 %v3993, %v208
        %v3995 = vmul.f32 %v3993, %v209
        %v3998 = vrot.slane %v3994, 2
        %v3999 = vrot.slane %v3995, 2
        %v4000 = vsel %vm2735, %v3998, %v3999
        %4001 = vrot.lane.b32.xlu0 %v4000, 125
        %v4002 = vpop.permute.xlu0 %4001
        %v4004 = vadd.f32 %v3900, %v4002
        %s4005 = sld [smem:[#allocation2 + $0x167]]
        %v4006 = vstv %s4005
        %v4007 = vmul.f32 %v4006, %v208
        %v4008 = vmul.f32 %v4006, %v209
        %v4011 = vrot.slane %v4007, 2
        %v4012 = vrot.slane %v4008, 2
        %v4013 = vsel %vm2735, %v4011, %v4012
        %4014 = vrot.lane.b32.xlu0 %v4013, 125
        %v4015 = vpop.permute.xlu0 %4014
        %v4017 = vadd.f32 %v3913, %v4015
        %s4018 = sld [smem:[#allocation2 + $0x168]]
        %v4019 = vstv %s4018
        %v4020 = vmul.f32 %v4019, %v210
        %v4021 = vmul.f32 %v4019, %v211
        %v4024 = vrot.slane %v4020, 2
        %v4025 = vrot.slane %v4021, 2
        %v4026 = vsel %vm2735, %v4024, %v4025
        %4027 = vrot.lane.b32.xlu0 %v4026, 125
        %v4028 = vpop.permute.xlu0 %4027
        %v4030 = vadd.f32 %v3926, %v4028
        %s4031 = sld [smem:[#allocation2 + $0x169]]
        %v4032 = vstv %s4031
        %v4033 = vmul.f32 %v4032, %v210
        %v4034 = vmul.f32 %v4032, %v211
        %v4037 = vrot.slane %v4033, 2
        %v4038 = vrot.slane %v4034, 2
        %v4039 = vsel %vm2735, %v4037, %v4038
        %4040 = vrot.lane.b32.xlu0 %v4039, 125
        %v4041 = vpop.permute.xlu0 %4040
        %v4043 = vadd.f32 %v3939, %v4041
        %s4044 = sld [smem:[#allocation2 + $0x16a]]
        %v4045 = vstv %s4044
        %v4046 = vmul.f32 %v4045, %v210
        %v4047 = vmul.f32 %v4045, %v211
        %v4050 = vrot.slane %v4046, 2
        %v4051 = vrot.slane %v4047, 2
        %v4052 = vsel %vm2735, %v4050, %v4051
        %4053 = vrot.lane.b32.xlu0 %v4052, 125
        %v4054 = vpop.permute.xlu0 %4053
        %v4056 = vadd.f32 %v3952, %v4054
        %s4057 = sld [smem:[#allocation2 + $0x16b]]
        %v4058 = vstv %s4057
        %v4059 = vmul.f32 %v4058, %v210
        %v4060 = vmul.f32 %v4058, %v211
        %v4063 = vrot.slane %v4059, 2
        %v4064 = vrot.slane %v4060, 2
        %v4065 = vsel %vm2735, %v4063, %v4064
        %4066 = vrot.lane.b32.xlu0 %v4065, 125
        %v4067 = vpop.permute.xlu0 %4066
        %v4069 = vadd.f32 %v3965, %v4067
        %s4070 = sld [smem:[#allocation2 + $0x16c]]
        %v4071 = vstv %s4070
        %v4072 = vmul.f32 %v4071, %v210
        %v4073 = vmul.f32 %v4071, %v211
        %v4076 = vrot.slane %v4072, 2
        %v4077 = vrot.slane %v4073, 2
        %v4078 = vsel %vm2735, %v4076, %v4077
        %4079 = vrot.lane.b32.xlu0 %v4078, 125
        %v4080 = vpop.permute.xlu0 %4079
        %v4082 = vadd.f32 %v3978, %v4080
        %s4083 = sld [smem:[#allocation2 + $0x16d]]
        %v4084 = vstv %s4083
        %v4085 = vmul.f32 %v4084, %v210
        %v4086 = vmul.f32 %v4084, %v211
        %v4089 = vrot.slane %v4085, 2
        %v4090 = vrot.slane %v4086, 2
        %v4091 = vsel %vm2735, %v4089, %v4090
        %4092 = vrot.lane.b32.xlu0 %v4091, 125
        %v4093 = vpop.permute.xlu0 %4092
        %v4095 = vadd.f32 %v3991, %v4093
        %s4096 = sld [smem:[#allocation2 + $0x16e]]
        %v4097 = vstv %s4096
        %v4098 = vmul.f32 %v4097, %v210
        %v4099 = vmul.f32 %v4097, %v211
        %v4102 = vrot.slane %v4098, 2
        %v4103 = vrot.slane %v4099, 2
        %v4104 = vsel %vm2735, %v4102, %v4103
        %4105 = vrot.lane.b32.xlu0 %v4104, 125
        %v4106 = vpop.permute.xlu0 %4105
        %v4108 = vadd.f32 %v4004, %v4106
        %s4109 = sld [smem:[#allocation2 + $0x16f]]
        %v4110 = vstv %s4109
        %v4111 = vmul.f32 %v4110, %v210
        %v4112 = vmul.f32 %v4110, %v211
        %v4115 = vrot.slane %v4111, 2
        %v4116 = vrot.slane %v4112, 2
        %v4117 = vsel %vm2735, %v4115, %v4116
        %4118 = vrot.lane.b32.xlu0 %v4117, 125
        %v4119 = vpop.permute.xlu0 %4118
        %v4121 = vadd.f32 %v4017, %v4119
        %s4122 = sld [smem:[#allocation2 + $0x170]]
        %v4123 = vstv %s4122
        %v4124 = vmul.f32 %v4123, %v212
        %v4125 = vmul.f32 %v4123, %v213
        %v4128 = vrot.slane %v4124, 2
        %v4129 = vrot.slane %v4125, 2
        %v4130 = vsel %vm2735, %v4128, %v4129
        %4131 = vrot.lane.b32.xlu0 %v4130, 125
        %v4132 = vpop.permute.xlu0 %4131
        %v4134 = vadd.f32 %v4030, %v4132
        %s4135 = sld [smem:[#allocation2 + $0x171]]
        %v4136 = vstv %s4135
        %v4137 = vmul.f32 %v4136, %v212
        %v4138 = vmul.f32 %v4136, %v213
        %v4141 = vrot.slane %v4137, 2
        %v4142 = vrot.slane %v4138, 2
        %v4143 = vsel %vm2735, %v4141, %v4142
        %4144 = vrot.lane.b32.xlu0 %v4143, 125
        %v4145 = vpop.permute.xlu0 %4144
        %v4147 = vadd.f32 %v4043, %v4145
        %s4148 = sld [smem:[#allocation2 + $0x172]]
        %v4149 = vstv %s4148
        %v4150 = vmul.f32 %v4149, %v212
        %v4151 = vmul.f32 %v4149, %v213
        %v4154 = vrot.slane %v4150, 2
        %v4155 = vrot.slane %v4151, 2
        %v4156 = vsel %vm2735, %v4154, %v4155
        %4157 = vrot.lane.b32.xlu0 %v4156, 125
        %v4158 = vpop.permute.xlu0 %4157
        %v4160 = vadd.f32 %v4056, %v4158
        %s4161 = sld [smem:[#allocation2 + $0x173]]
        %v4162 = vstv %s4161
        %v4163 = vmul.f32 %v4162, %v212
        %v4164 = vmul.f32 %v4162, %v213
        %v4167 = vrot.slane %v4163, 2
        %v4168 = vrot.slane %v4164, 2
        %v4169 = vsel %vm2735, %v4167, %v4168
        %4170 = vrot.lane.b32.xlu0 %v4169, 125
        %v4171 = vpop.permute.xlu0 %4170
        %v4173 = vadd.f32 %v4069, %v4171
        %s4174 = sld [smem:[#allocation2 + $0x174]]
        %v4175 = vstv %s4174
        %v4176 = vmul.f32 %v4175, %v212
        %v4177 = vmul.f32 %v4175, %v213
        %v4180 = vrot.slane %v4176, 2
        %v4181 = vrot.slane %v4177, 2
        %v4182 = vsel %vm2735, %v4180, %v4181
        %4183 = vrot.lane.b32.xlu0 %v4182, 125
        %v4184 = vpop.permute.xlu0 %4183
        %v4186 = vadd.f32 %v4082, %v4184
        %s4187 = sld [smem:[#allocation2 + $0x175]]
        %v4188 = vstv %s4187
        %v4189 = vmul.f32 %v4188, %v212
        %v4190 = vmul.f32 %v4188, %v213
        %v4193 = vrot.slane %v4189, 2
        %v4194 = vrot.slane %v4190, 2
        %v4195 = vsel %vm2735, %v4193, %v4194
        %4196 = vrot.lane.b32.xlu0 %v4195, 125
        %v4197 = vpop.permute.xlu0 %4196
        %v4199 = vadd.f32 %v4095, %v4197
        %s4200 = sld [smem:[#allocation2 + $0x176]]
        %v4201 = vstv %s4200
        %v4202 = vmul.f32 %v4201, %v212
        %v4203 = vmul.f32 %v4201, %v213
        %v4206 = vrot.slane %v4202, 2
        %v4207 = vrot.slane %v4203, 2
        %v4208 = vsel %vm2735, %v4206, %v4207
        %4209 = vrot.lane.b32.xlu0 %v4208, 125
        %v4210 = vpop.permute.xlu0 %4209
        %v4212 = vadd.f32 %v4108, %v4210
        %s4213 = sld [smem:[#allocation2 + $0x177]]
        %v4214 = vstv %s4213
        %v4215 = vmul.f32 %v4214, %v212
        %v4216 = vmul.f32 %v4214, %v213
        %v4219 = vrot.slane %v4215, 2
        %v4220 = vrot.slane %v4216, 2
        %v4221 = vsel %vm2735, %v4219, %v4220
        %4222 = vrot.lane.b32.xlu0 %v4221, 125
        %v4223 = vpop.permute.xlu0 %4222
        %v4225 = vadd.f32 %v4121, %v4223
        %s4226 = sld [smem:[#allocation2 + $0x178]]
        %v4227 = vstv %s4226
        %v4228 = vmul.f32 %v4227, %v214
        %v4229 = vmul.f32 %v4227, %v215
        %v4232 = vrot.slane %v4228, 2
        %v4233 = vrot.slane %v4229, 2
        %v4234 = vsel %vm2735, %v4232, %v4233
        %4235 = vrot.lane.b32.xlu0 %v4234, 125
        %v4236 = vpop.permute.xlu0 %4235
        %v4238 = vadd.f32 %v4134, %v4236
        %s4239 = sld [smem:[#allocation2 + $0x179]]
        %v4240 = vstv %s4239
        %v4241 = vmul.f32 %v4240, %v214
        %v4242 = vmul.f32 %v4240, %v215
        %v4245 = vrot.slane %v4241, 2
        %v4246 = vrot.slane %v4242, 2
        %v4247 = vsel %vm2735, %v4245, %v4246
        %4248 = vrot.lane.b32.xlu0 %v4247, 125
        %v4249 = vpop.permute.xlu0 %4248
        %v4251 = vadd.f32 %v4147, %v4249
        %s4252 = sld [smem:[#allocation2 + $0x17a]]
        %v4253 = vstv %s4252
        %v4254 = vmul.f32 %v4253, %v214
        %v4255 = vmul.f32 %v4253, %v215
        %v4258 = vrot.slane %v4254, 2
        %v4259 = vrot.slane %v4255, 2
        %v4260 = vsel %vm2735, %v4258, %v4259
        %4261 = vrot.lane.b32.xlu0 %v4260, 125
        %v4262 = vpop.permute.xlu0 %4261
        %v4264 = vadd.f32 %v4160, %v4262
        %s4265 = sld [smem:[#allocation2 + $0x17b]]
        %v4266 = vstv %s4265
        %v4267 = vmul.f32 %v4266, %v214
        %v4268 = vmul.f32 %v4266, %v215
        %v4271 = vrot.slane %v4267, 2
        %v4272 = vrot.slane %v4268, 2
        %v4273 = vsel %vm2735, %v4271, %v4272
        %4274 = vrot.lane.b32.xlu0 %v4273, 125
        %v4275 = vpop.permute.xlu0 %4274
        %v4277 = vadd.f32 %v4173, %v4275
        %s4278 = sld [smem:[#allocation2 + $0x17c]]
        %v4279 = vstv %s4278
        %v4280 = vmul.f32 %v4279, %v214
        %v4281 = vmul.f32 %v4279, %v215
        %v4284 = vrot.slane %v4280, 2
        %v4285 = vrot.slane %v4281, 2
        %v4286 = vsel %vm2735, %v4284, %v4285
        %4287 = vrot.lane.b32.xlu0 %v4286, 125
        %v4288 = vpop.permute.xlu0 %4287
        %v4290 = vadd.f32 %v4186, %v4288
        %s4291 = sld [smem:[#allocation2 + $0x17d]]
        %v4292 = vstv %s4291
        %v4293 = vmul.f32 %v4292, %v214
        %v4294 = vmul.f32 %v4292, %v215
        %v4297 = vrot.slane %v4293, 2
        %v4298 = vrot.slane %v4294, 2
        %v4299 = vsel %vm2735, %v4297, %v4298
        %4300 = vrot.lane.b32.xlu0 %v4299, 125
        %v4301 = vpop.permute.xlu0 %4300
        %v4303 = vadd.f32 %v4199, %v4301
        %s4304 = sld [smem:[#allocation2 + $0x17e]]
        %v4305 = vstv %s4304
        %v4306 = vmul.f32 %v4305, %v214
        %v4307 = vmul.f32 %v4305, %v215
        %v4310 = vrot.slane %v4306, 2
        %v4311 = vrot.slane %v4307, 2
        %v4312 = vsel %vm2735, %v4310, %v4311
        %4313 = vrot.lane.b32.xlu0 %v4312, 125
        %v4314 = vpop.permute.xlu0 %4313
        %v4316 = vadd.f32 %v4212, %v4314
        %s4317 = sld [smem:[#allocation2 + $0x17f]]
        %v4318 = vstv %s4317
        %v4319 = vmul.f32 %v4318, %v214
        %v4320 = vmul.f32 %v4318, %v215
        %v4323 = vrot.slane %v4319, 2
        %v4324 = vrot.slane %v4320, 2
        %v4325 = vsel %vm2735, %v4323, %v4324
        %4326 = vrot.lane.b32.xlu0 %v4325, 125
        %v4327 = vpop.permute.xlu0 %4326
        %v4329 = vadd.f32 %v4225, %v4327
        %s4330 = sld [smem:[#allocation2 + $0x180]]
        %v4331 = vstv %s4330
        %v4332 = vmul.f32 %v4331, %v208
        %v4333 = vmul.f32 %v4331, %v209
        %vm4336 = vcmask 1044480
        %v4337 = vrot.slane %v4332, 3
        %v4338 = vrot.slane %v4333, 3
        %v4339 = vsel %vm4336, %v4337, %v4338
        %v4341 = vadd.f32 %v4238, %v4339
        %s4342 = sld [smem:[#allocation2 + $0x181]]
        %v4343 = vstv %s4342
        %v4344 = vmul.f32 %v4343, %v208
        %v4345 = vmul.f32 %v4343, %v209
        %v4348 = vrot.slane %v4344, 3
        %v4349 = vrot.slane %v4345, 3
        %v4350 = vsel %vm4336, %v4348, %v4349
        %v4352 = vadd.f32 %v4251, %v4350
        %s4353 = sld [smem:[#allocation2 + $0x182]]
        %v4354 = vstv %s4353
        %v4355 = vmul.f32 %v4354, %v208
        %v4356 = vmul.f32 %v4354, %v209
        %v4359 = vrot.slane %v4355, 3
        %v4360 = vrot.slane %v4356, 3
        %v4361 = vsel %vm4336, %v4359, %v4360
        %v4363 = vadd.f32 %v4264, %v4361
        %s4364 = sld [smem:[#allocation2 + $0x183]]
        %v4365 = vstv %s4364
        %v4366 = vmul.f32 %v4365, %v208
        %v4367 = vmul.f32 %v4365, %v209
        %v4370 = vrot.slane %v4366, 3
        %v4371 = vrot.slane %v4367, 3
        %v4372 = vsel %vm4336, %v4370, %v4371
        %v4374 = vadd.f32 %v4277, %v4372
        %s4375 = sld [smem:[#allocation2 + $0x184]]
        %v4376 = vstv %s4375
        %v4377 = vmul.f32 %v4376, %v208
        %v4378 = vmul.f32 %v4376, %v209
        %v4381 = vrot.slane %v4377, 3
        %v4382 = vrot.slane %v4378, 3
        %v4383 = vsel %vm4336, %v4381, %v4382
        %v4385 = vadd.f32 %v4290, %v4383
        %s4386 = sld [smem:[#allocation2 + $0x185]]
        %v4387 = vstv %s4386
        %v4388 = vmul.f32 %v4387, %v208
        %v4389 = vmul.f32 %v4387, %v209
        %v4392 = vrot.slane %v4388, 3
        %v4393 = vrot.slane %v4389, 3
        %v4394 = vsel %vm4336, %v4392, %v4393
        %v4396 = vadd.f32 %v4303, %v4394
        %s4397 = sld [smem:[#allocation2 + $0x186]]
        %v4398 = vstv %s4397
        %v4399 = vmul.f32 %v4398, %v208
        %v4400 = vmul.f32 %v4398, %v209
        %v4403 = vrot.slane %v4399, 3
        %v4404 = vrot.slane %v4400, 3
        %v4405 = vsel %vm4336, %v4403, %v4404
        %v4407 = vadd.f32 %v4316, %v4405
        %s4408 = sld [smem:[#allocation2 + $0x187]]
        %v4409 = vstv %s4408
        %v4410 = vmul.f32 %v4409, %v208
        %v4411 = vmul.f32 %v4409, %v209
        %v4414 = vrot.slane %v4410, 3
        %v4415 = vrot.slane %v4411, 3
        %v4416 = vsel %vm4336, %v4414, %v4415
        %v4418 = vadd.f32 %v4329, %v4416
        %s4419 = sld [smem:[#allocation2 + $0x188]]
        %v4420 = vstv %s4419
        %v4421 = vmul.f32 %v4420, %v210
        %v4422 = vmul.f32 %v4420, %v211
        %v4425 = vrot.slane %v4421, 3
        %v4426 = vrot.slane %v4422, 3
        %v4427 = vsel %vm4336, %v4425, %v4426
        %v4429 = vadd.f32 %v4341, %v4427
        %s4430 = sld [smem:[#allocation2 + $0x189]]
        %v4431 = vstv %s4430
        %v4432 = vmul.f32 %v4431, %v210
        %v4433 = vmul.f32 %v4431, %v211
        %v4436 = vrot.slane %v4432, 3
        %v4437 = vrot.slane %v4433, 3
        %v4438 = vsel %vm4336, %v4436, %v4437
        %v4440 = vadd.f32 %v4352, %v4438
        %s4441 = sld [smem:[#allocation2 + $0x18a]]
        %v4442 = vstv %s4441
        %v4443 = vmul.f32 %v4442, %v210
        %v4444 = vmul.f32 %v4442, %v211
        %v4447 = vrot.slane %v4443, 3
        %v4448 = vrot.slane %v4444, 3
        %v4449 = vsel %vm4336, %v4447, %v4448
        %v4451 = vadd.f32 %v4363, %v4449
        %s4452 = sld [smem:[#allocation2 + $0x18b]]
        %v4453 = vstv %s4452
        %v4454 = vmul.f32 %v4453, %v210
        %v4455 = vmul.f32 %v4453, %v211
        %v4458 = vrot.slane %v4454, 3
        %v4459 = vrot.slane %v4455, 3
        %v4460 = vsel %vm4336, %v4458, %v4459
        %v4462 = vadd.f32 %v4374, %v4460
        %s4463 = sld [smem:[#allocation2 + $0x18c]]
        %v4464 = vstv %s4463
        %v4465 = vmul.f32 %v4464, %v210
        %v4466 = vmul.f32 %v4464, %v211
        %v4469 = vrot.slane %v4465, 3
        %v4470 = vrot.slane %v4466, 3
        %v4471 = vsel %vm4336, %v4469, %v4470
        %v4473 = vadd.f32 %v4385, %v4471
        %s4474 = sld [smem:[#allocation2 + $0x18d]]
        %v4475 = vstv %s4474
        %v4476 = vmul.f32 %v4475, %v210
        %v4477 = vmul.f32 %v4475, %v211
        %v4480 = vrot.slane %v4476, 3
        %v4481 = vrot.slane %v4477, 3
        %v4482 = vsel %vm4336, %v4480, %v4481
        %v4484 = vadd.f32 %v4396, %v4482
        %s4485 = sld [smem:[#allocation2 + $0x18e]]
        %v4486 = vstv %s4485
        %v4487 = vmul.f32 %v4486, %v210
        %v4488 = vmul.f32 %v4486, %v211
        %v4491 = vrot.slane %v4487, 3
        %v4492 = vrot.slane %v4488, 3
        %v4493 = vsel %vm4336, %v4491, %v4492
        %v4495 = vadd.f32 %v4407, %v4493
        %s4496 = sld [smem:[#allocation2 + $0x18f]]
        %v4497 = vstv %s4496
        %v4498 = vmul.f32 %v4497, %v210
        %v4499 = vmul.f32 %v4497, %v211
        %v4502 = vrot.slane %v4498, 3
        %v4503 = vrot.slane %v4499, 3
        %v4504 = vsel %vm4336, %v4502, %v4503
        %v4506 = vadd.f32 %v4418, %v4504
        %s4507 = sld [smem:[#allocation2 + $0x190]]
        %v4508 = vstv %s4507
        %v4509 = vmul.f32 %v4508, %v212
        %v4510 = vmul.f32 %v4508, %v213
        %v4513 = vrot.slane %v4509, 3
        %v4514 = vrot.slane %v4510, 3
        %v4515 = vsel %vm4336, %v4513, %v4514
        %v4517 = vadd.f32 %v4429, %v4515
        %s4518 = sld [smem:[#allocation2 + $0x191]]
        %v4519 = vstv %s4518
        %v4520 = vmul.f32 %v4519, %v212
        %v4521 = vmul.f32 %v4519, %v213
        %v4524 = vrot.slane %v4520, 3
        %v4525 = vrot.slane %v4521, 3
        %v4526 = vsel %vm4336, %v4524, %v4525
        %v4528 = vadd.f32 %v4440, %v4526
        %s4529 = sld [smem:[#allocation2 + $0x192]]
        %v4530 = vstv %s4529
        %v4531 = vmul.f32 %v4530, %v212
        %v4532 = vmul.f32 %v4530, %v213
        %v4535 = vrot.slane %v4531, 3
        %v4536 = vrot.slane %v4532, 3
        %v4537 = vsel %vm4336, %v4535, %v4536
        %v4539 = vadd.f32 %v4451, %v4537
        %s4540 = sld [smem:[#allocation2 + $0x193]]
        %v4541 = vstv %s4540
        %v4542 = vmul.f32 %v4541, %v212
        %v4543 = vmul.f32 %v4541, %v213
        %v4546 = vrot.slane %v4542, 3
        %v4547 = vrot.slane %v4543, 3
        %v4548 = vsel %vm4336, %v4546, %v4547
        %v4550 = vadd.f32 %v4462, %v4548
        %s4551 = sld [smem:[#allocation2 + $0x194]]
        %v4552 = vstv %s4551
        %v4553 = vmul.f32 %v4552, %v212
        %v4554 = vmul.f32 %v4552, %v213
        %v4557 = vrot.slane %v4553, 3
        %v4558 = vrot.slane %v4554, 3
        %v4559 = vsel %vm4336, %v4557, %v4558
        %v4561 = vadd.f32 %v4473, %v4559
        %s4562 = sld [smem:[#allocation2 + $0x195]]
        %v4563 = vstv %s4562
        %v4564 = vmul.f32 %v4563, %v212
        %v4565 = vmul.f32 %v4563, %v213
        %v4568 = vrot.slane %v4564, 3
        %v4569 = vrot.slane %v4565, 3
        %v4570 = vsel %vm4336, %v4568, %v4569
        %v4572 = vadd.f32 %v4484, %v4570
        %s4573 = sld [smem:[#allocation2 + $0x196]]
        %v4574 = vstv %s4573
        %v4575 = vmul.f32 %v4574, %v212
        %v4576 = vmul.f32 %v4574, %v213
        %v4579 = vrot.slane %v4575, 3
        %v4580 = vrot.slane %v4576, 3
        %v4581 = vsel %vm4336, %v4579, %v4580
        %v4583 = vadd.f32 %v4495, %v4581
        %s4584 = sld [smem:[#allocation2 + $0x197]]
        %v4585 = vstv %s4584
        %v4586 = vmul.f32 %v4585, %v212
        %v4587 = vmul.f32 %v4585, %v213
        %v4590 = vrot.slane %v4586, 3
        %v4591 = vrot.slane %v4587, 3
        %v4592 = vsel %vm4336, %v4590, %v4591
        %v4594 = vadd.f32 %v4506, %v4592
        %s4595 = sld [smem:[#allocation2 + $0x198]]
        %v4596 = vstv %s4595
        %v4597 = vmul.f32 %v4596, %v214
        %v4598 = vmul.f32 %v4596, %v215
        %v4601 = vrot.slane %v4597, 3
        %v4602 = vrot.slane %v4598, 3
        %v4603 = vsel %vm4336, %v4601, %v4602
        %v4605 = vadd.f32 %v4517, %v4603
        %s4606 = sld [smem:[#allocation2 + $0x199]]
        %v4607 = vstv %s4606
        %v4608 = vmul.f32 %v4607, %v214
        %v4609 = vmul.f32 %v4607, %v215
        %v4612 = vrot.slane %v4608, 3
        %v4613 = vrot.slane %v4609, 3
        %v4614 = vsel %vm4336, %v4612, %v4613
        %v4616 = vadd.f32 %v4528, %v4614
        %s4617 = sld [smem:[#allocation2 + $0x19a]]
        %v4618 = vstv %s4617
        %v4619 = vmul.f32 %v4618, %v214
        %v4620 = vmul.f32 %v4618, %v215
        %v4623 = vrot.slane %v4619, 3
        %v4624 = vrot.slane %v4620, 3
        %v4625 = vsel %vm4336, %v4623, %v4624
        %v4627 = vadd.f32 %v4539, %v4625
        %s4628 = sld [smem:[#allocation2 + $0x19b]]
        %v4629 = vstv %s4628
        %v4630 = vmul.f32 %v4629, %v214
        %v4631 = vmul.f32 %v4629, %v215
        %v4634 = vrot.slane %v4630, 3
        %v4635 = vrot.slane %v4631, 3
        %v4636 = vsel %vm4336, %v4634, %v4635
        %v4638 = vadd.f32 %v4550, %v4636
        %s4639 = sld [smem:[#allocation2 + $0x19c]]
        %v4640 = vstv %s4639
        %v4641 = vmul.f32 %v4640, %v214
        %v4642 = vmul.f32 %v4640, %v215
        %v4645 = vrot.slane %v4641, 3
        %v4646 = vrot.slane %v4642, 3
        %v4647 = vsel %vm4336, %v4645, %v4646
        %v4649 = vadd.f32 %v4561, %v4647
        %s4650 = sld [smem:[#allocation2 + $0x19d]]
        %v4651 = vstv %s4650
        %v4652 = vmul.f32 %v4651, %v214
        %v4653 = vmul.f32 %v4651, %v215
        %v4656 = vrot.slane %v4652, 3
        %v4657 = vrot.slane %v4653, 3
        %v4658 = vsel %vm4336, %v4656, %v4657
        %v4660 = vadd.f32 %v4572, %v4658
        %s4661 = sld [smem:[#allocation2 + $0x19e]]
        %v4662 = vstv %s4661
        %v4663 = vmul.f32 %v4662, %v214
        %v4664 = vmul.f32 %v4662, %v215
        %v4667 = vrot.slane %v4663, 3
        %v4668 = vrot.slane %v4664, 3
        %v4669 = vsel %vm4336, %v4667, %v4668
        %v4671 = vadd.f32 %v4583, %v4669
        %s4672 = sld [smem:[#allocation2 + $0x19f]]
        %v4673 = vstv %s4672
        %v4674 = vmul.f32 %v4673, %v214
        %v4675 = vmul.f32 %v4673, %v215
        %v4678 = vrot.slane %v4674, 3
        %v4679 = vrot.slane %v4675, 3
        %v4680 = vsel %vm4336, %v4678, %v4679
        %v4682 = vadd.f32 %v4594, %v4680
        %s4683 = sld [smem:[#allocation2 + $0x1a0]]
        %v4684 = vstv %s4683
        %v4685 = vmul.f32 %v4684, %v208
        %v4686 = vmul.f32 %v4684, %v209
        %v4689 = vrot.slane %v4685, 3
        %v4690 = vrot.slane %v4686, 3
        %v4691 = vsel %vm4336, %v4689, %v4690
        %4692 = vrot.lane.b32.xlu0 %v4691, 127
        %v4693 = vpop.permute.xlu0 %4692
        %v4695 = vadd.f32 %v4605, %v4693
        %s4696 = sld [smem:[#allocation2 + $0x1a1]]
        %v4697 = vstv %s4696
        %v4698 = vmul.f32 %v4697, %v208
        %v4699 = vmul.f32 %v4697, %v209
        %v4702 = vrot.slane %v4698, 3
        %v4703 = vrot.slane %v4699, 3
        %v4704 = vsel %vm4336, %v4702, %v4703
        %4705 = vrot.lane.b32.xlu0 %v4704, 127
        %v4706 = vpop.permute.xlu0 %4705
        %v4708 = vadd.f32 %v4616, %v4706
        %s4709 = sld [smem:[#allocation2 + $0x1a2]]
        %v4710 = vstv %s4709
        %v4711 = vmul.f32 %v4710, %v208
        %v4712 = vmul.f32 %v4710, %v209
        %v4715 = vrot.slane %v4711, 3
        %v4716 = vrot.slane %v4712, 3
        %v4717 = vsel %vm4336, %v4715, %v4716
        %4718 = vrot.lane.b32.xlu0 %v4717, 127
        %v4719 = vpop.permute.xlu0 %4718
        %v4721 = vadd.f32 %v4627, %v4719
        %s4722 = sld [smem:[#allocation2 + $0x1a3]]
        %v4723 = vstv %s4722
        %v4724 = vmul.f32 %v4723, %v208
        %v4725 = vmul.f32 %v4723, %v209
        %v4728 = vrot.slane %v4724, 3
        %v4729 = vrot.slane %v4725, 3
        %v4730 = vsel %vm4336, %v4728, %v4729
        %4731 = vrot.lane.b32.xlu0 %v4730, 127
        %v4732 = vpop.permute.xlu0 %4731
        %v4734 = vadd.f32 %v4638, %v4732
        %s4735 = sld [smem:[#allocation2 + $0x1a4]]
        %v4736 = vstv %s4735
        %v4737 = vmul.f32 %v4736, %v208
        %v4738 = vmul.f32 %v4736, %v209
        %v4741 = vrot.slane %v4737, 3
        %v4742 = vrot.slane %v4738, 3
        %v4743 = vsel %vm4336, %v4741, %v4742
        %4744 = vrot.lane.b32.xlu0 %v4743, 127
        %v4745 = vpop.permute.xlu0 %4744
        %v4747 = vadd.f32 %v4649, %v4745
        %s4748 = sld [smem:[#allocation2 + $0x1a5]]
        %v4749 = vstv %s4748
        %v4750 = vmul.f32 %v4749, %v208
        %v4751 = vmul.f32 %v4749, %v209
        %v4754 = vrot.slane %v4750, 3
        %v4755 = vrot.slane %v4751, 3
        %v4756 = vsel %vm4336, %v4754, %v4755
        %4757 = vrot.lane.b32.xlu0 %v4756, 127
        %v4758 = vpop.permute.xlu0 %4757
        %v4760 = vadd.f32 %v4660, %v4758
        %s4761 = sld [smem:[#allocation2 + $0x1a6]]
        %v4762 = vstv %s4761
        %v4763 = vmul.f32 %v4762, %v208
        %v4764 = vmul.f32 %v4762, %v209
        %v4767 = vrot.slane %v4763, 3
        %v4768 = vrot.slane %v4764, 3
        %v4769 = vsel %vm4336, %v4767, %v4768
        %4770 = vrot.lane.b32.xlu0 %v4769, 127
        %v4771 = vpop.permute.xlu0 %4770
        %v4773 = vadd.f32 %v4671, %v4771
        %s4774 = sld [smem:[#allocation2 + $0x1a7]]
        %v4775 = vstv %s4774
        %v4776 = vmul.f32 %v4775, %v208
        %v4777 = vmul.f32 %v4775, %v209
        %v4780 = vrot.slane %v4776, 3
        %v4781 = vrot.slane %v4777, 3
        %v4782 = vsel %vm4336, %v4780, %v4781
        %4783 = vrot.lane.b32.xlu0 %v4782, 127
        %v4784 = vpop.permute.xlu0 %4783
        %v4786 = vadd.f32 %v4682, %v4784
        %s4787 = sld [smem:[#allocation2 + $0x1a8]]
        %v4788 = vstv %s4787
        %v4789 = vmul.f32 %v4788, %v210
        %v4790 = vmul.f32 %v4788, %v211
        %v4793 = vrot.slane %v4789, 3
        %v4794 = vrot.slane %v4790, 3
        %v4795 = vsel %vm4336, %v4793, %v4794
        %4796 = vrot.lane.b32.xlu0 %v4795, 127
        %v4797 = vpop.permute.xlu0 %4796
        %v4799 = vadd.f32 %v4695, %v4797
        %s4800 = sld [smem:[#allocation2 + $0x1a9]]
        %v4801 = vstv %s4800
        %v4802 = vmul.f32 %v4801, %v210
        %v4803 = vmul.f32 %v4801, %v211
        %v4806 = vrot.slane %v4802, 3
        %v4807 = vrot.slane %v4803, 3
        %v4808 = vsel %vm4336, %v4806, %v4807
        %4809 = vrot.lane.b32.xlu0 %v4808, 127
        %v4810 = vpop.permute.xlu0 %4809
        %v4812 = vadd.f32 %v4708, %v4810
        %s4813 = sld [smem:[#allocation2 + $0x1aa]]
        %v4814 = vstv %s4813
        %v4815 = vmul.f32 %v4814, %v210
        %v4816 = vmul.f32 %v4814, %v211
        %v4819 = vrot.slane %v4815, 3
        %v4820 = vrot.slane %v4816, 3
        %v4821 = vsel %vm4336, %v4819, %v4820
        %4822 = vrot.lane.b32.xlu0 %v4821, 127
        %v4823 = vpop.permute.xlu0 %4822
        %v4825 = vadd.f32 %v4721, %v4823
        %s4826 = sld [smem:[#allocation2 + $0x1ab]]
        %v4827 = vstv %s4826
        %v4828 = vmul.f32 %v4827, %v210
        %v4829 = vmul.f32 %v4827, %v211
        %v4832 = vrot.slane %v4828, 3
        %v4833 = vrot.slane %v4829, 3
        %v4834 = vsel %vm4336, %v4832, %v4833
        %4835 = vrot.lane.b32.xlu0 %v4834, 127
        %v4836 = vpop.permute.xlu0 %4835
        %v4838 = vadd.f32 %v4734, %v4836
        %s4839 = sld [smem:[#allocation2 + $0x1ac]]
        %v4840 = vstv %s4839
        %v4841 = vmul.f32 %v4840, %v210
        %v4842 = vmul.f32 %v4840, %v211
        %v4845 = vrot.slane %v4841, 3
        %v4846 = vrot.slane %v4842, 3
        %v4847 = vsel %vm4336, %v4845, %v4846
        %4848 = vrot.lane.b32.xlu0 %v4847, 127
        %v4849 = vpop.permute.xlu0 %4848
        %v4851 = vadd.f32 %v4747, %v4849
        %s4852 = sld [smem:[#allocation2 + $0x1ad]]
        %v4853 = vstv %s4852
        %v4854 = vmul.f32 %v4853, %v210
        %v4855 = vmul.f32 %v4853, %v211
        %v4858 = vrot.slane %v4854, 3
        %v4859 = vrot.slane %v4855, 3
        %v4860 = vsel %vm4336, %v4858, %v4859
        %4861 = vrot.lane.b32.xlu0 %v4860, 127
        %v4862 = vpop.permute.xlu0 %4861
        %v4864 = vadd.f32 %v4760, %v4862
        %s4865 = sld [smem:[#allocation2 + $0x1ae]]
        %v4866 = vstv %s4865
        %v4867 = vmul.f32 %v4866, %v210
        %v4868 = vmul.f32 %v4866, %v211
        %v4871 = vrot.slane %v4867, 3
        %v4872 = vrot.slane %v4868, 3
        %v4873 = vsel %vm4336, %v4871, %v4872
        %4874 = vrot.lane.b32.xlu0 %v4873, 127
        %v4875 = vpop.permute.xlu0 %4874
        %v4877 = vadd.f32 %v4773, %v4875
        %s4878 = sld [smem:[#allocation2 + $0x1af]]
        %v4879 = vstv %s4878
        %v4880 = vmul.f32 %v4879, %v210
        %v4881 = vmul.f32 %v4879, %v211
        %v4884 = vrot.slane %v4880, 3
        %v4885 = vrot.slane %v4881, 3
        %v4886 = vsel %vm4336, %v4884, %v4885
        %4887 = vrot.lane.b32.xlu0 %v4886, 127
        %v4888 = vpop.permute.xlu0 %4887
        %v4890 = vadd.f32 %v4786, %v4888
        %s4891 = sld [smem:[#allocation2 + $0x1b0]]
        %v4892 = vstv %s4891
        %v4893 = vmul.f32 %v4892, %v212
        %v4894 = vmul.f32 %v4892, %v213
        %v4897 = vrot.slane %v4893, 3
        %v4898 = vrot.slane %v4894, 3
        %v4899 = vsel %vm4336, %v4897, %v4898
        %4900 = vrot.lane.b32.xlu0 %v4899, 127
        %v4901 = vpop.permute.xlu0 %4900
        %v4903 = vadd.f32 %v4799, %v4901
        %s4904 = sld [smem:[#allocation2 + $0x1b1]]
        %v4905 = vstv %s4904
        %v4906 = vmul.f32 %v4905, %v212
        %v4907 = vmul.f32 %v4905, %v213
        %v4910 = vrot.slane %v4906, 3
        %v4911 = vrot.slane %v4907, 3
        %v4912 = vsel %vm4336, %v4910, %v4911
        %4913 = vrot.lane.b32.xlu0 %v4912, 127
        %v4914 = vpop.permute.xlu0 %4913
        %v4916 = vadd.f32 %v4812, %v4914
        %s4917 = sld [smem:[#allocation2 + $0x1b2]]
        %v4918 = vstv %s4917
        %v4919 = vmul.f32 %v4918, %v212
        %v4920 = vmul.f32 %v4918, %v213
        %v4923 = vrot.slane %v4919, 3
        %v4924 = vrot.slane %v4920, 3
        %v4925 = vsel %vm4336, %v4923, %v4924
        %4926 = vrot.lane.b32.xlu0 %v4925, 127
        %v4927 = vpop.permute.xlu0 %4926
        %v4929 = vadd.f32 %v4825, %v4927
        %s4930 = sld [smem:[#allocation2 + $0x1b3]]
        %v4931 = vstv %s4930
        %v4932 = vmul.f32 %v4931, %v212
        %v4933 = vmul.f32 %v4931, %v213
        %v4936 = vrot.slane %v4932, 3
        %v4937 = vrot.slane %v4933, 3
        %v4938 = vsel %vm4336, %v4936, %v4937
        %4939 = vrot.lane.b32.xlu0 %v4938, 127
        %v4940 = vpop.permute.xlu0 %4939
        %v4942 = vadd.f32 %v4838, %v4940
        %s4943 = sld [smem:[#allocation2 + $0x1b4]]
        %v4944 = vstv %s4943
        %v4945 = vmul.f32 %v4944, %v212
        %v4946 = vmul.f32 %v4944, %v213
        %v4949 = vrot.slane %v4945, 3
        %v4950 = vrot.slane %v4946, 3
        %v4951 = vsel %vm4336, %v4949, %v4950
        %4952 = vrot.lane.b32.xlu0 %v4951, 127
        %v4953 = vpop.permute.xlu0 %4952
        %v4955 = vadd.f32 %v4851, %v4953
        %s4956 = sld [smem:[#allocation2 + $0x1b5]]
        %v4957 = vstv %s4956
        %v4958 = vmul.f32 %v4957, %v212
        %v4959 = vmul.f32 %v4957, %v213
        %v4962 = vrot.slane %v4958, 3
        %v4963 = vrot.slane %v4959, 3
        %v4964 = vsel %vm4336, %v4962, %v4963
        %4965 = vrot.lane.b32.xlu0 %v4964, 127
        %v4966 = vpop.permute.xlu0 %4965
        %v4968 = vadd.f32 %v4864, %v4966
        %s4969 = sld [smem:[#allocation2 + $0x1b6]]
        %v4970 = vstv %s4969
        %v4971 = vmul.f32 %v4970, %v212
        %v4972 = vmul.f32 %v4970, %v213
        %v4975 = vrot.slane %v4971, 3
        %v4976 = vrot.slane %v4972, 3
        %v4977 = vsel %vm4336, %v4975, %v4976
        %4978 = vrot.lane.b32.xlu0 %v4977, 127
        %v4979 = vpop.permute.xlu0 %4978
        %v4981 = vadd.f32 %v4877, %v4979
        %s4982 = sld [smem:[#allocation2 + $0x1b7]]
        %v4983 = vstv %s4982
        %v4984 = vmul.f32 %v4983, %v212
        %v4985 = vmul.f32 %v4983, %v213
        %v4988 = vrot.slane %v4984, 3
        %v4989 = vrot.slane %v4985, 3
        %v4990 = vsel %vm4336, %v4988, %v4989
        %4991 = vrot.lane.b32.xlu0 %v4990, 127
        %v4992 = vpop.permute.xlu0 %4991
        %v4994 = vadd.f32 %v4890, %v4992
        %s4995 = sld [smem:[#allocation2 + $0x1b8]]
        %v4996 = vstv %s4995
        %v4997 = vmul.f32 %v4996, %v214
        %v4998 = vmul.f32 %v4996, %v215
        %v5001 = vrot.slane %v4997, 3
        %v5002 = vrot.slane %v4998, 3
        %v5003 = vsel %vm4336, %v5001, %v5002
        %5004 = vrot.lane.b32.xlu0 %v5003, 127
        %v5005 = vpop.permute.xlu0 %5004
        %v5007 = vadd.f32 %v4903, %v5005
        %s5008 = sld [smem:[#allocation2 + $0x1b9]]
        %v5009 = vstv %s5008
        %v5010 = vmul.f32 %v5009, %v214
        %v5011 = vmul.f32 %v5009, %v215
        %v5014 = vrot.slane %v5010, 3
        %v5015 = vrot.slane %v5011, 3
        %v5016 = vsel %vm4336, %v5014, %v5015
        %5017 = vrot.lane.b32.xlu0 %v5016, 127
        %v5018 = vpop.permute.xlu0 %5017
        %v5020 = vadd.f32 %v4916, %v5018
        %s5021 = sld [smem:[#allocation2 + $0x1ba]]
        %v5022 = vstv %s5021
        %v5023 = vmul.f32 %v5022, %v214
        %v5024 = vmul.f32 %v5022, %v215
        %v5027 = vrot.slane %v5023, 3
        %v5028 = vrot.slane %v5024, 3
        %v5029 = vsel %vm4336, %v5027, %v5028
        %5030 = vrot.lane.b32.xlu0 %v5029, 127
        %v5031 = vpop.permute.xlu0 %5030
        %v5033 = vadd.f32 %v4929, %v5031
        %s5034 = sld [smem:[#allocation2 + $0x1bb]]
        %v5035 = vstv %s5034
        %v5036 = vmul.f32 %v5035, %v214
        %v5037 = vmul.f32 %v5035, %v215
        %v5040 = vrot.slane %v5036, 3
        %v5041 = vrot.slane %v5037, 3
        %v5042 = vsel %vm4336, %v5040, %v5041
        %5043 = vrot.lane.b32.xlu0 %v5042, 127
        %v5044 = vpop.permute.xlu0 %5043
        %v5046 = vadd.f32 %v4942, %v5044
        %s5047 = sld [smem:[#allocation2 + $0x1bc]]
        %v5048 = vstv %s5047
        %v5049 = vmul.f32 %v5048, %v214
        %v5050 = vmul.f32 %v5048, %v215
        %v5053 = vrot.slane %v5049, 3
        %v5054 = vrot.slane %v5050, 3
        %v5055 = vsel %vm4336, %v5053, %v5054
        %5056 = vrot.lane.b32.xlu0 %v5055, 127
        %v5057 = vpop.permute.xlu0 %5056
        %v5059 = vadd.f32 %v4955, %v5057
        %s5060 = sld [smem:[#allocation2 + $0x1bd]]
        %v5061 = vstv %s5060
        %v5062 = vmul.f32 %v5061, %v214
        %v5063 = vmul.f32 %v5061, %v215
        %v5066 = vrot.slane %v5062, 3
        %v5067 = vrot.slane %v5063, 3
        %v5068 = vsel %vm4336, %v5066, %v5067
        %5069 = vrot.lane.b32.xlu0 %v5068, 127
        %v5070 = vpop.permute.xlu0 %5069
        %v5072 = vadd.f32 %v4968, %v5070
        %s5073 = sld [smem:[#allocation2 + $0x1be]]
        %v5074 = vstv %s5073
        %v5075 = vmul.f32 %v5074, %v214
        %v5076 = vmul.f32 %v5074, %v215
        %v5079 = vrot.slane %v5075, 3
        %v5080 = vrot.slane %v5076, 3
        %v5081 = vsel %vm4336, %v5079, %v5080
        %5082 = vrot.lane.b32.xlu0 %v5081, 127
        %v5083 = vpop.permute.xlu0 %5082
        %v5085 = vadd.f32 %v4981, %v5083
        %s5086 = sld [smem:[#allocation2 + $0x1bf]]
        %v5087 = vstv %s5086
        %v5088 = vmul.f32 %v5087, %v214
        %v5089 = vmul.f32 %v5087, %v215
        %v5092 = vrot.slane %v5088, 3
        %v5093 = vrot.slane %v5089, 3
        %v5094 = vsel %vm4336, %v5092, %v5093
        %5095 = vrot.lane.b32.xlu0 %v5094, 127
        %v5096 = vpop.permute.xlu0 %5095
        %v5098 = vadd.f32 %v4994, %v5096
        %s5099 = sld [smem:[#allocation2 + $0x1c0]]
        %v5100 = vstv %s5099
        %v5101 = vmul.f32 %v5100, %v208
        %v5102 = vmul.f32 %v5100, %v209
        %v5105 = vrot.slane %v5101, 3
        %v5106 = vrot.slane %v5102, 3
        %v5107 = vsel %vm4336, %v5105, %v5106
        %5108 = vrot.lane.b32.xlu0 %v5107, 126
        %v5109 = vpop.permute.xlu0 %5108
        %v5111 = vadd.f32 %v5007, %v5109
        %s5112 = sld [smem:[#allocation2 + $0x1c1]]
        %v5113 = vstv %s5112
        %v5114 = vmul.f32 %v5113, %v208
        %v5115 = vmul.f32 %v5113, %v209
        %v5118 = vrot.slane %v5114, 3
        %v5119 = vrot.slane %v5115, 3
        %v5120 = vsel %vm4336, %v5118, %v5119
        %5121 = vrot.lane.b32.xlu0 %v5120, 126
        %v5122 = vpop.permute.xlu0 %5121
        %v5124 = vadd.f32 %v5020, %v5122
        %s5125 = sld [smem:[#allocation2 + $0x1c2]]
        %v5126 = vstv %s5125
        %v5127 = vmul.f32 %v5126, %v208
        %v5128 = vmul.f32 %v5126, %v209
        %v5131 = vrot.slane %v5127, 3
        %v5132 = vrot.slane %v5128, 3
        %v5133 = vsel %vm4336, %v5131, %v5132
        %5134 = vrot.lane.b32.xlu0 %v5133, 126
        %v5135 = vpop.permute.xlu0 %5134
        %v5137 = vadd.f32 %v5033, %v5135
        %s5138 = sld [smem:[#allocation2 + $0x1c3]]
        %v5139 = vstv %s5138
        %v5140 = vmul.f32 %v5139, %v208
        %v5141 = vmul.f32 %v5139, %v209
        %v5144 = vrot.slane %v5140, 3
        %v5145 = vrot.slane %v5141, 3
        %v5146 = vsel %vm4336, %v5144, %v5145
        %5147 = vrot.lane.b32.xlu0 %v5146, 126
        %v5148 = vpop.permute.xlu0 %5147
        %v5150 = vadd.f32 %v5046, %v5148
        %s5151 = sld [smem:[#allocation2 + $0x1c4]]
        %v5152 = vstv %s5151
        %v5153 = vmul.f32 %v5152, %v208
        %v5154 = vmul.f32 %v5152, %v209
        %v5157 = vrot.slane %v5153, 3
        %v5158 = vrot.slane %v5154, 3
        %v5159 = vsel %vm4336, %v5157, %v5158
        %5160 = vrot.lane.b32.xlu0 %v5159, 126
        %v5161 = vpop.permute.xlu0 %5160
        %v5163 = vadd.f32 %v5059, %v5161
        %s5164 = sld [smem:[#allocation2 + $0x1c5]]
        %v5165 = vstv %s5164
        %v5166 = vmul.f32 %v5165, %v208
        %v5167 = vmul.f32 %v5165, %v209
        %v5170 = vrot.slane %v5166, 3
        %v5171 = vrot.slane %v5167, 3
        %v5172 = vsel %vm4336, %v5170, %v5171
        %5173 = vrot.lane.b32.xlu0 %v5172, 126
        %v5174 = vpop.permute.xlu0 %5173
        %v5176 = vadd.f32 %v5072, %v5174
        %s5177 = sld [smem:[#allocation2 + $0x1c6]]
        %v5178 = vstv %s5177
        %v5179 = vmul.f32 %v5178, %v208
        %v5180 = vmul.f32 %v5178, %v209
        %v5183 = vrot.slane %v5179, 3
        %v5184 = vrot.slane %v5180, 3
        %v5185 = vsel %vm4336, %v5183, %v5184
        %5186 = vrot.lane.b32.xlu0 %v5185, 126
        %v5187 = vpop.permute.xlu0 %5186
        %v5189 = vadd.f32 %v5085, %v5187
        %s5190 = sld [smem:[#allocation2 + $0x1c7]]
        %v5191 = vstv %s5190
        %v5192 = vmul.f32 %v5191, %v208
        %v5193 = vmul.f32 %v5191, %v209
        %v5196 = vrot.slane %v5192, 3
        %v5197 = vrot.slane %v5193, 3
        %v5198 = vsel %vm4336, %v5196, %v5197
        %5199 = vrot.lane.b32.xlu0 %v5198, 126
        %v5200 = vpop.permute.xlu0 %5199
        %v5202 = vadd.f32 %v5098, %v5200
        %s5203 = sld [smem:[#allocation2 + $0x1c8]]
        %v5204 = vstv %s5203
        %v5205 = vmul.f32 %v5204, %v210
        %v5206 = vmul.f32 %v5204, %v211
        %v5209 = vrot.slane %v5205, 3
        %v5210 = vrot.slane %v5206, 3
        %v5211 = vsel %vm4336, %v5209, %v5210
        %5212 = vrot.lane.b32.xlu0 %v5211, 126
        %v5213 = vpop.permute.xlu0 %5212
        %v5215 = vadd.f32 %v5111, %v5213
        %s5216 = sld [smem:[#allocation2 + $0x1c9]]
        %v5217 = vstv %s5216
        %v5218 = vmul.f32 %v5217, %v210
        %v5219 = vmul.f32 %v5217, %v211
        %v5222 = vrot.slane %v5218, 3
        %v5223 = vrot.slane %v5219, 3
        %v5224 = vsel %vm4336, %v5222, %v5223
        %5225 = vrot.lane.b32.xlu0 %v5224, 126
        %v5226 = vpop.permute.xlu0 %5225
        %v5228 = vadd.f32 %v5124, %v5226
        %s5229 = sld [smem:[#allocation2 + $0x1ca]]
        %v5230 = vstv %s5229
        %v5231 = vmul.f32 %v5230, %v210
        %v5232 = vmul.f32 %v5230, %v211
        %v5235 = vrot.slane %v5231, 3
        %v5236 = vrot.slane %v5232, 3
        %v5237 = vsel %vm4336, %v5235, %v5236
        %5238 = vrot.lane.b32.xlu0 %v5237, 126
        %v5239 = vpop.permute.xlu0 %5238
        %v5241 = vadd.f32 %v5137, %v5239
        %s5242 = sld [smem:[#allocation2 + $0x1cb]]
        %v5243 = vstv %s5242
        %v5244 = vmul.f32 %v5243, %v210
        %v5245 = vmul.f32 %v5243, %v211
        %v5248 = vrot.slane %v5244, 3
        %v5249 = vrot.slane %v5245, 3
        %v5250 = vsel %vm4336, %v5248, %v5249
        %5251 = vrot.lane.b32.xlu0 %v5250, 126
        %v5252 = vpop.permute.xlu0 %5251
        %v5254 = vadd.f32 %v5150, %v5252
        %s5255 = sld [smem:[#allocation2 + $0x1cc]]
        %v5256 = vstv %s5255
        %v5257 = vmul.f32 %v5256, %v210
        %v5258 = vmul.f32 %v5256, %v211
        %v5261 = vrot.slane %v5257, 3
        %v5262 = vrot.slane %v5258, 3
        %v5263 = vsel %vm4336, %v5261, %v5262
        %5264 = vrot.lane.b32.xlu0 %v5263, 126
        %v5265 = vpop.permute.xlu0 %5264
        %v5267 = vadd.f32 %v5163, %v5265
        %s5268 = sld [smem:[#allocation2 + $0x1cd]]
        %v5269 = vstv %s5268
        %v5270 = vmul.f32 %v5269, %v210
        %v5271 = vmul.f32 %v5269, %v211
        %v5274 = vrot.slane %v5270, 3
        %v5275 = vrot.slane %v5271, 3
        %v5276 = vsel %vm4336, %v5274, %v5275
        %5277 = vrot.lane.b32.xlu0 %v5276, 126
        %v5278 = vpop.permute.xlu0 %5277
        %v5280 = vadd.f32 %v5176, %v5278
        %s5281 = sld [smem:[#allocation2 + $0x1ce]]
        %v5282 = vstv %s5281
        %v5283 = vmul.f32 %v5282, %v210
        %v5284 = vmul.f32 %v5282, %v211
        %v5287 = vrot.slane %v5283, 3
        %v5288 = vrot.slane %v5284, 3
        %v5289 = vsel %vm4336, %v5287, %v5288
        %5290 = vrot.lane.b32.xlu0 %v5289, 126
        %v5291 = vpop.permute.xlu0 %5290
        %v5293 = vadd.f32 %v5189, %v5291
        %s5294 = sld [smem:[#allocation2 + $0x1cf]]
        %v5295 = vstv %s5294
        %v5296 = vmul.f32 %v5295, %v210
        %v5297 = vmul.f32 %v5295, %v211
        %v5300 = vrot.slane %v5296, 3
        %v5301 = vrot.slane %v5297, 3
        %v5302 = vsel %vm4336, %v5300, %v5301
        %5303 = vrot.lane.b32.xlu0 %v5302, 126
        %v5304 = vpop.permute.xlu0 %5303
        %v5306 = vadd.f32 %v5202, %v5304
        %s5307 = sld [smem:[#allocation2 + $0x1d0]]
        %v5308 = vstv %s5307
        %v5309 = vmul.f32 %v5308, %v212
        %v5310 = vmul.f32 %v5308, %v213
        %v5313 = vrot.slane %v5309, 3
        %v5314 = vrot.slane %v5310, 3
        %v5315 = vsel %vm4336, %v5313, %v5314
        %5316 = vrot.lane.b32.xlu0 %v5315, 126
        %v5317 = vpop.permute.xlu0 %5316
        %v5319 = vadd.f32 %v5215, %v5317
        %s5320 = sld [smem:[#allocation2 + $0x1d1]]
        %v5321 = vstv %s5320
        %v5322 = vmul.f32 %v5321, %v212
        %v5323 = vmul.f32 %v5321, %v213
        %v5326 = vrot.slane %v5322, 3
        %v5327 = vrot.slane %v5323, 3
        %v5328 = vsel %vm4336, %v5326, %v5327
        %5329 = vrot.lane.b32.xlu0 %v5328, 126
        %v5330 = vpop.permute.xlu0 %5329
        %v5332 = vadd.f32 %v5228, %v5330
        %s5333 = sld [smem:[#allocation2 + $0x1d2]]
        %v5334 = vstv %s5333
        %v5335 = vmul.f32 %v5334, %v212
        %v5336 = vmul.f32 %v5334, %v213
        %v5339 = vrot.slane %v5335, 3
        %v5340 = vrot.slane %v5336, 3
        %v5341 = vsel %vm4336, %v5339, %v5340
        %5342 = vrot.lane.b32.xlu0 %v5341, 126
        %v5343 = vpop.permute.xlu0 %5342
        %v5345 = vadd.f32 %v5241, %v5343
        %s5346 = sld [smem:[#allocation2 + $0x1d3]]
        %v5347 = vstv %s5346
        %v5348 = vmul.f32 %v5347, %v212
        %v5349 = vmul.f32 %v5347, %v213
        %v5352 = vrot.slane %v5348, 3
        %v5353 = vrot.slane %v5349, 3
        %v5354 = vsel %vm4336, %v5352, %v5353
        %5355 = vrot.lane.b32.xlu0 %v5354, 126
        %v5356 = vpop.permute.xlu0 %5355
        %v5358 = vadd.f32 %v5254, %v5356
        %s5359 = sld [smem:[#allocation2 + $0x1d4]]
        %v5360 = vstv %s5359
        %v5361 = vmul.f32 %v5360, %v212
        %v5362 = vmul.f32 %v5360, %v213
        %v5365 = vrot.slane %v5361, 3
        %v5366 = vrot.slane %v5362, 3
        %v5367 = vsel %vm4336, %v5365, %v5366
        %5368 = vrot.lane.b32.xlu0 %v5367, 126
        %v5369 = vpop.permute.xlu0 %5368
        %v5371 = vadd.f32 %v5267, %v5369
        %s5372 = sld [smem:[#allocation2 + $0x1d5]]
        %v5373 = vstv %s5372
        %v5374 = vmul.f32 %v5373, %v212
        %v5375 = vmul.f32 %v5373, %v213
        %v5378 = vrot.slane %v5374, 3
        %v5379 = vrot.slane %v5375, 3
        %v5380 = vsel %vm4336, %v5378, %v5379
        %5381 = vrot.lane.b32.xlu0 %v5380, 126
        %v5382 = vpop.permute.xlu0 %5381
        %v5384 = vadd.f32 %v5280, %v5382
        %s5385 = sld [smem:[#allocation2 + $0x1d6]]
        %v5386 = vstv %s5385
        %v5387 = vmul.f32 %v5386, %v212
        %v5388 = vmul.f32 %v5386, %v213
        %v5391 = vrot.slane %v5387, 3
        %v5392 = vrot.slane %v5388, 3
        %v5393 = vsel %vm4336, %v5391, %v5392
        %5394 = vrot.lane.b32.xlu0 %v5393, 126
        %v5395 = vpop.permute.xlu0 %5394
        %v5397 = vadd.f32 %v5293, %v5395
        %s5398 = sld [smem:[#allocation2 + $0x1d7]]
        %v5399 = vstv %s5398
        %v5400 = vmul.f32 %v5399, %v212
        %v5401 = vmul.f32 %v5399, %v213
        %v5404 = vrot.slane %v5400, 3
        %v5405 = vrot.slane %v5401, 3
        %v5406 = vsel %vm4336, %v5404, %v5405
        %5407 = vrot.lane.b32.xlu0 %v5406, 126
        %v5408 = vpop.permute.xlu0 %5407
        %v5410 = vadd.f32 %v5306, %v5408
        %s5411 = sld [smem:[#allocation2 + $0x1d8]]
        %v5412 = vstv %s5411
        %v5413 = vmul.f32 %v5412, %v214
        %v5414 = vmul.f32 %v5412, %v215
        %v5417 = vrot.slane %v5413, 3
        %v5418 = vrot.slane %v5414, 3
        %v5419 = vsel %vm4336, %v5417, %v5418
        %5420 = vrot.lane.b32.xlu0 %v5419, 126
        %v5421 = vpop.permute.xlu0 %5420
        %v5423 = vadd.f32 %v5319, %v5421
        %s5424 = sld [smem:[#allocation2 + $0x1d9]]
        %v5425 = vstv %s5424
        %v5426 = vmul.f32 %v5425, %v214
        %v5427 = vmul.f32 %v5425, %v215
        %v5430 = vrot.slane %v5426, 3
        %v5431 = vrot.slane %v5427, 3
        %v5432 = vsel %vm4336, %v5430, %v5431
        %5433 = vrot.lane.b32.xlu0 %v5432, 126
        %v5434 = vpop.permute.xlu0 %5433
        %v5436 = vadd.f32 %v5332, %v5434
        %s5437 = sld [smem:[#allocation2 + $0x1da]]
        %v5438 = vstv %s5437
        %v5439 = vmul.f32 %v5438, %v214
        %v5440 = vmul.f32 %v5438, %v215
        %v5443 = vrot.slane %v5439, 3
        %v5444 = vrot.slane %v5440, 3
        %v5445 = vsel %vm4336, %v5443, %v5444
        %5446 = vrot.lane.b32.xlu0 %v5445, 126
        %v5447 = vpop.permute.xlu0 %5446
        %v5449 = vadd.f32 %v5345, %v5447
        %s5450 = sld [smem:[#allocation2 + $0x1db]]
        %v5451 = vstv %s5450
        %v5452 = vmul.f32 %v5451, %v214
        %v5453 = vmul.f32 %v5451, %v215
        %v5456 = vrot.slane %v5452, 3
        %v5457 = vrot.slane %v5453, 3
        %v5458 = vsel %vm4336, %v5456, %v5457
        %5459 = vrot.lane.b32.xlu0 %v5458, 126
        %v5460 = vpop.permute.xlu0 %5459
        %v5462 = vadd.f32 %v5358, %v5460
        %s5463 = sld [smem:[#allocation2 + $0x1dc]]
        %v5464 = vstv %s5463
        %v5465 = vmul.f32 %v5464, %v214
        %v5466 = vmul.f32 %v5464, %v215
        %v5469 = vrot.slane %v5465, 3
        %v5470 = vrot.slane %v5466, 3
        %v5471 = vsel %vm4336, %v5469, %v5470
        %5472 = vrot.lane.b32.xlu0 %v5471, 126
        %v5473 = vpop.permute.xlu0 %5472
        %v5475 = vadd.f32 %v5371, %v5473
        %s5476 = sld [smem:[#allocation2 + $0x1dd]]
        %v5477 = vstv %s5476
        %v5478 = vmul.f32 %v5477, %v214
        %v5479 = vmul.f32 %v5477, %v215
        %v5482 = vrot.slane %v5478, 3
        %v5483 = vrot.slane %v5479, 3
        %v5484 = vsel %vm4336, %v5482, %v5483
        %5485 = vrot.lane.b32.xlu0 %v5484, 126
        %v5486 = vpop.permute.xlu0 %5485
        %v5488 = vadd.f32 %v5384, %v5486
        %s5489 = sld [smem:[#allocation2 + $0x1de]]
        %v5490 = vstv %s5489
        %v5491 = vmul.f32 %v5490, %v214
        %v5492 = vmul.f32 %v5490, %v215
        %v5495 = vrot.slane %v5491, 3
        %v5496 = vrot.slane %v5492, 3
        %v5497 = vsel %vm4336, %v5495, %v5496
        %5498 = vrot.lane.b32.xlu0 %v5497, 126
        %v5499 = vpop.permute.xlu0 %5498
        %v5501 = vadd.f32 %v5397, %v5499
        %s5502 = sld [smem:[#allocation2 + $0x1df]]
        %v5503 = vstv %s5502
        %v5504 = vmul.f32 %v5503, %v214
        %v5505 = vmul.f32 %v5503, %v215
        %v5508 = vrot.slane %v5504, 3
        %v5509 = vrot.slane %v5505, 3
        %v5510 = vsel %vm4336, %v5508, %v5509
        %5511 = vrot.lane.b32.xlu0 %v5510, 126
        %v5512 = vpop.permute.xlu0 %5511
        %v5514 = vadd.f32 %v5410, %v5512
        %s5515 = sld [smem:[#allocation2 + $0x1e0]]
        %v5516 = vstv %s5515
        %v5517 = vmul.f32 %v5516, %v208
        %v5518 = vmul.f32 %v5516, %v209
        %v5521 = vrot.slane %v5517, 3
        %v5522 = vrot.slane %v5518, 3
        %v5523 = vsel %vm4336, %v5521, %v5522
        %5524 = vrot.lane.b32.xlu0 %v5523, 125
        %v5525 = vpop.permute.xlu0 %5524
        %v5527 = vadd.f32 %v5423, %v5525
        %s5528 = sld [smem:[#allocation2 + $0x1e1]]
        %v5529 = vstv %s5528
        %v5530 = vmul.f32 %v5529, %v208
        %v5531 = vmul.f32 %v5529, %v209
        %v5534 = vrot.slane %v5530, 3
        %v5535 = vrot.slane %v5531, 3
        %v5536 = vsel %vm4336, %v5534, %v5535
        %5537 = vrot.lane.b32.xlu0 %v5536, 125
        %v5538 = vpop.permute.xlu0 %5537
        %v5540 = vadd.f32 %v5436, %v5538
        %s5541 = sld [smem:[#allocation2 + $0x1e2]]
        %v5542 = vstv %s5541
        %v5543 = vmul.f32 %v5542, %v208
        %v5544 = vmul.f32 %v5542, %v209
        %v5547 = vrot.slane %v5543, 3
        %v5548 = vrot.slane %v5544, 3
        %v5549 = vsel %vm4336, %v5547, %v5548
        %5550 = vrot.lane.b32.xlu0 %v5549, 125
        %v5551 = vpop.permute.xlu0 %5550
        %v5553 = vadd.f32 %v5449, %v5551
        %s5554 = sld [smem:[#allocation2 + $0x1e3]]
        %v5555 = vstv %s5554
        %v5556 = vmul.f32 %v5555, %v208
        %v5557 = vmul.f32 %v5555, %v209
        %v5560 = vrot.slane %v5556, 3
        %v5561 = vrot.slane %v5557, 3
        %v5562 = vsel %vm4336, %v5560, %v5561
        %5563 = vrot.lane.b32.xlu0 %v5562, 125
        %v5564 = vpop.permute.xlu0 %5563
        %v5566 = vadd.f32 %v5462, %v5564
        %s5567 = sld [smem:[#allocation2 + $0x1e4]]
        %v5568 = vstv %s5567
        %v5569 = vmul.f32 %v5568, %v208
        %v5570 = vmul.f32 %v5568, %v209
        %v5573 = vrot.slane %v5569, 3
        %v5574 = vrot.slane %v5570, 3
        %v5575 = vsel %vm4336, %v5573, %v5574
        %5576 = vrot.lane.b32.xlu0 %v5575, 125
        %v5577 = vpop.permute.xlu0 %5576
        %v5579 = vadd.f32 %v5475, %v5577
        %s5580 = sld [smem:[#allocation2 + $0x1e5]]
        %v5581 = vstv %s5580
        %v5582 = vmul.f32 %v5581, %v208
        %v5583 = vmul.f32 %v5581, %v209
        %v5586 = vrot.slane %v5582, 3
        %v5587 = vrot.slane %v5583, 3
        %v5588 = vsel %vm4336, %v5586, %v5587
        %5589 = vrot.lane.b32.xlu0 %v5588, 125
        %v5590 = vpop.permute.xlu0 %5589
        %v5592 = vadd.f32 %v5488, %v5590
        %s5593 = sld [smem:[#allocation2 + $0x1e6]]
        %v5594 = vstv %s5593
        %v5595 = vmul.f32 %v5594, %v208
        %v5596 = vmul.f32 %v5594, %v209
        %v5599 = vrot.slane %v5595, 3
        %v5600 = vrot.slane %v5596, 3
        %v5601 = vsel %vm4336, %v5599, %v5600
        %5602 = vrot.lane.b32.xlu0 %v5601, 125
        %v5603 = vpop.permute.xlu0 %5602
        %v5605 = vadd.f32 %v5501, %v5603
        %s5606 = sld [smem:[#allocation2 + $0x1e7]]
        %v5607 = vstv %s5606
        %v5608 = vmul.f32 %v5607, %v208
        %v5609 = vmul.f32 %v5607, %v209
        %v5612 = vrot.slane %v5608, 3
        %v5613 = vrot.slane %v5609, 3
        %v5614 = vsel %vm4336, %v5612, %v5613
        %5615 = vrot.lane.b32.xlu0 %v5614, 125
        %v5616 = vpop.permute.xlu0 %5615
        %v5618 = vadd.f32 %v5514, %v5616
        %s5619 = sld [smem:[#allocation2 + $0x1e8]]
        %v5620 = vstv %s5619
        %v5621 = vmul.f32 %v5620, %v210
        %v5622 = vmul.f32 %v5620, %v211
        %v5625 = vrot.slane %v5621, 3
        %v5626 = vrot.slane %v5622, 3
        %v5627 = vsel %vm4336, %v5625, %v5626
        %5628 = vrot.lane.b32.xlu0 %v5627, 125
        %v5629 = vpop.permute.xlu0 %5628
        %v5631 = vadd.f32 %v5527, %v5629
        %s5632 = sld [smem:[#allocation2 + $0x1e9]]
        %v5633 = vstv %s5632
        %v5634 = vmul.f32 %v5633, %v210
        %v5635 = vmul.f32 %v5633, %v211
        %v5638 = vrot.slane %v5634, 3
        %v5639 = vrot.slane %v5635, 3
        %v5640 = vsel %vm4336, %v5638, %v5639
        %5641 = vrot.lane.b32.xlu0 %v5640, 125
        %v5642 = vpop.permute.xlu0 %5641
        %v5644 = vadd.f32 %v5540, %v5642
        %s5645 = sld [smem:[#allocation2 + $0x1ea]]
        %v5646 = vstv %s5645
        %v5647 = vmul.f32 %v5646, %v210
        %v5648 = vmul.f32 %v5646, %v211
        %v5651 = vrot.slane %v5647, 3
        %v5652 = vrot.slane %v5648, 3
        %v5653 = vsel %vm4336, %v5651, %v5652
        %5654 = vrot.lane.b32.xlu0 %v5653, 125
        %v5655 = vpop.permute.xlu0 %5654
        %v5657 = vadd.f32 %v5553, %v5655
        %s5658 = sld [smem:[#allocation2 + $0x1eb]]
        %v5659 = vstv %s5658
        %v5660 = vmul.f32 %v5659, %v210
        %v5661 = vmul.f32 %v5659, %v211
        %v5664 = vrot.slane %v5660, 3
        %v5665 = vrot.slane %v5661, 3
        %v5666 = vsel %vm4336, %v5664, %v5665
        %5667 = vrot.lane.b32.xlu0 %v5666, 125
        %v5668 = vpop.permute.xlu0 %5667
        %v5670 = vadd.f32 %v5566, %v5668
        %s5671 = sld [smem:[#allocation2 + $0x1ec]]
        %v5672 = vstv %s5671
        %v5673 = vmul.f32 %v5672, %v210
        %v5674 = vmul.f32 %v5672, %v211
        %v5677 = vrot.slane %v5673, 3
        %v5678 = vrot.slane %v5674, 3
        %v5679 = vsel %vm4336, %v5677, %v5678
        %5680 = vrot.lane.b32.xlu0 %v5679, 125
        %v5681 = vpop.permute.xlu0 %5680
        %v5683 = vadd.f32 %v5579, %v5681
        %s5684 = sld [smem:[#allocation2 + $0x1ed]]
        %v5685 = vstv %s5684
        %v5686 = vmul.f32 %v5685, %v210
        %v5687 = vmul.f32 %v5685, %v211
        %v5690 = vrot.slane %v5686, 3
        %v5691 = vrot.slane %v5687, 3
        %v5692 = vsel %vm4336, %v5690, %v5691
        %5693 = vrot.lane.b32.xlu0 %v5692, 125
        %v5694 = vpop.permute.xlu0 %5693
        %v5696 = vadd.f32 %v5592, %v5694
        %s5697 = sld [smem:[#allocation2 + $0x1ee]]
        %v5698 = vstv %s5697
        %v5699 = vmul.f32 %v5698, %v210
        %v5700 = vmul.f32 %v5698, %v211
        %v5703 = vrot.slane %v5699, 3
        %v5704 = vrot.slane %v5700, 3
        %v5705 = vsel %vm4336, %v5703, %v5704
        %5706 = vrot.lane.b32.xlu0 %v5705, 125
        %v5707 = vpop.permute.xlu0 %5706
        %v5709 = vadd.f32 %v5605, %v5707
        %s5710 = sld [smem:[#allocation2 + $0x1ef]]
        %v5711 = vstv %s5710
        %v5712 = vmul.f32 %v5711, %v210
        %v5713 = vmul.f32 %v5711, %v211
        %v5716 = vrot.slane %v5712, 3
        %v5717 = vrot.slane %v5713, 3
        %v5718 = vsel %vm4336, %v5716, %v5717
        %5719 = vrot.lane.b32.xlu0 %v5718, 125
        %v5720 = vpop.permute.xlu0 %5719
        %v5722 = vadd.f32 %v5618, %v5720
        %s5723 = sld [smem:[#allocation2 + $0x1f0]]
        %v5724 = vstv %s5723
        %v5725 = vmul.f32 %v5724, %v212
        %v5726 = vmul.f32 %v5724, %v213
        %v5729 = vrot.slane %v5725, 3
        %v5730 = vrot.slane %v5726, 3
        %v5731 = vsel %vm4336, %v5729, %v5730
        %5732 = vrot.lane.b32.xlu0 %v5731, 125
        %v5733 = vpop.permute.xlu0 %5732
        %v5735 = vadd.f32 %v5631, %v5733
        %s5736 = sld [smem:[#allocation2 + $0x1f1]]
        %v5737 = vstv %s5736
        %v5738 = vmul.f32 %v5737, %v212
        %v5739 = vmul.f32 %v5737, %v213
        %v5742 = vrot.slane %v5738, 3
        %v5743 = vrot.slane %v5739, 3
        %v5744 = vsel %vm4336, %v5742, %v5743
        %5745 = vrot.lane.b32.xlu0 %v5744, 125
        %v5746 = vpop.permute.xlu0 %5745
        %v5748 = vadd.f32 %v5644, %v5746
        %s5749 = sld [smem:[#allocation2 + $0x1f2]]
        %v5750 = vstv %s5749
        %v5751 = vmul.f32 %v5750, %v212
        %v5752 = vmul.f32 %v5750, %v213
        %v5755 = vrot.slane %v5751, 3
        %v5756 = vrot.slane %v5752, 3
        %v5757 = vsel %vm4336, %v5755, %v5756
        %5758 = vrot.lane.b32.xlu0 %v5757, 125
        %v5759 = vpop.permute.xlu0 %5758
        %v5761 = vadd.f32 %v5657, %v5759
        %s5762 = sld [smem:[#allocation2 + $0x1f3]]
        %v5763 = vstv %s5762
        %v5764 = vmul.f32 %v5763, %v212
        %v5765 = vmul.f32 %v5763, %v213
        %v5768 = vrot.slane %v5764, 3
        %v5769 = vrot.slane %v5765, 3
        %v5770 = vsel %vm4336, %v5768, %v5769
        %5771 = vrot.lane.b32.xlu0 %v5770, 125
        %v5772 = vpop.permute.xlu0 %5771
        %v5774 = vadd.f32 %v5670, %v5772
        %s5775 = sld [smem:[#allocation2 + $0x1f4]]
        %v5776 = vstv %s5775
        %v5777 = vmul.f32 %v5776, %v212
        %v5778 = vmul.f32 %v5776, %v213
        %v5781 = vrot.slane %v5777, 3
        %v5782 = vrot.slane %v5778, 3
        %v5783 = vsel %vm4336, %v5781, %v5782
        %5784 = vrot.lane.b32.xlu0 %v5783, 125
        %v5785 = vpop.permute.xlu0 %5784
        %v5787 = vadd.f32 %v5683, %v5785
        %s5788 = sld [smem:[#allocation2 + $0x1f5]]
        %v5789 = vstv %s5788
        %v5790 = vmul.f32 %v5789, %v212
        %v5791 = vmul.f32 %v5789, %v213
        %v5794 = vrot.slane %v5790, 3
        %v5795 = vrot.slane %v5791, 3
        %v5796 = vsel %vm4336, %v5794, %v5795
        %5797 = vrot.lane.b32.xlu0 %v5796, 125
        %v5798 = vpop.permute.xlu0 %5797
        %v5800 = vadd.f32 %v5696, %v5798
        %s5801 = sld [smem:[#allocation2 + $0x1f6]]
        %v5802 = vstv %s5801
        %v5803 = vmul.f32 %v5802, %v212
        %v5804 = vmul.f32 %v5802, %v213
        %v5807 = vrot.slane %v5803, 3
        %v5808 = vrot.slane %v5804, 3
        %v5809 = vsel %vm4336, %v5807, %v5808
        %5810 = vrot.lane.b32.xlu0 %v5809, 125
        %v5811 = vpop.permute.xlu0 %5810
        %v5813 = vadd.f32 %v5709, %v5811
        %s5814 = sld [smem:[#allocation2 + $0x1f7]]
        %v5815 = vstv %s5814
        %v5816 = vmul.f32 %v5815, %v212
        %v5817 = vmul.f32 %v5815, %v213
        %v5820 = vrot.slane %v5816, 3
        %v5821 = vrot.slane %v5817, 3
        %v5822 = vsel %vm4336, %v5820, %v5821
        %5823 = vrot.lane.b32.xlu0 %v5822, 125
        %v5824 = vpop.permute.xlu0 %5823
        %v5826 = vadd.f32 %v5722, %v5824
        %s5827 = sld [smem:[#allocation2 + $0x1f8]]
        %v5828 = vstv %s5827
        %v5829 = vmul.f32 %v5828, %v214
        %v5830 = vmul.f32 %v5828, %v215
        %v5833 = vrot.slane %v5829, 3
        %v5834 = vrot.slane %v5830, 3
        %v5835 = vsel %vm4336, %v5833, %v5834
        %5836 = vrot.lane.b32.xlu0 %v5835, 125
        %v5837 = vpop.permute.xlu0 %5836
        %v5839 = vadd.f32 %v5735, %v5837
        %s5840 = sld [smem:[#allocation2 + $0x1f9]]
        %v5841 = vstv %s5840
        %v5842 = vmul.f32 %v5841, %v214
        %v5843 = vmul.f32 %v5841, %v215
        %v5846 = vrot.slane %v5842, 3
        %v5847 = vrot.slane %v5843, 3
        %v5848 = vsel %vm4336, %v5846, %v5847
        %5849 = vrot.lane.b32.xlu0 %v5848, 125
        %v5850 = vpop.permute.xlu0 %5849
        %v5852 = vadd.f32 %v5748, %v5850
        %s5853 = sld [smem:[#allocation2 + $0x1fa]]
        %v5854 = vstv %s5853
        %v5855 = vmul.f32 %v5854, %v214
        %v5856 = vmul.f32 %v5854, %v215
        %v5859 = vrot.slane %v5855, 3
        %v5860 = vrot.slane %v5856, 3
        %v5861 = vsel %vm4336, %v5859, %v5860
        %5862 = vrot.lane.b32.xlu0 %v5861, 125
        %v5863 = vpop.permute.xlu0 %5862
        %v5865 = vadd.f32 %v5761, %v5863
        %s5866 = sld [smem:[#allocation2 + $0x1fb]]
        %v5867 = vstv %s5866
        %v5868 = vmul.f32 %v5867, %v214
        %v5869 = vmul.f32 %v5867, %v215
        %v5872 = vrot.slane %v5868, 3
        %v5873 = vrot.slane %v5869, 3
        %v5874 = vsel %vm4336, %v5872, %v5873
        %5875 = vrot.lane.b32.xlu0 %v5874, 125
        %v5876 = vpop.permute.xlu0 %5875
        %v5878 = vadd.f32 %v5774, %v5876
        %s5879 = sld [smem:[#allocation2 + $0x1fc]]
        %v5880 = vstv %s5879
        %v5881 = vmul.f32 %v5880, %v214
        %v5882 = vmul.f32 %v5880, %v215
        %v5885 = vrot.slane %v5881, 3
        %v5886 = vrot.slane %v5882, 3
        %v5887 = vsel %vm4336, %v5885, %v5886
        %5888 = vrot.lane.b32.xlu0 %v5887, 125
        %v5889 = vpop.permute.xlu0 %5888
        %v5891 = vadd.f32 %v5787, %v5889
        %s5892 = sld [smem:[#allocation2 + $0x1fd]]
        %v5893 = vstv %s5892
        %v5894 = vmul.f32 %v5893, %v214
        %v5895 = vmul.f32 %v5893, %v215
        %v5898 = vrot.slane %v5894, 3
        %v5899 = vrot.slane %v5895, 3
        %v5900 = vsel %vm4336, %v5898, %v5899
        %5901 = vrot.lane.b32.xlu0 %v5900, 125
        %v5902 = vpop.permute.xlu0 %5901
        %v5904 = vadd.f32 %v5800, %v5902
        %s5905 = sld [smem:[#allocation2 + $0x1fe]]
        %v5906 = vstv %s5905
        %v5907 = vmul.f32 %v5906, %v214
        %v5908 = vmul.f32 %v5906, %v215
        %v5911 = vrot.slane %v5907, 3
        %v5912 = vrot.slane %v5908, 3
        %v5913 = vsel %vm4336, %v5911, %v5912
        %5914 = vrot.lane.b32.xlu0 %v5913, 125
        %v5915 = vpop.permute.xlu0 %5914
        %v5917 = vadd.f32 %v5813, %v5915
        %s5918 = sld [smem:[#allocation2 + $0x1ff]]
        %v5919 = vstv %s5918
        %v5920 = vmul.f32 %v5919, %v214
        %v5921 = vmul.f32 %v5919, %v215
        %v5924 = vrot.slane %v5920, 3
        %v5925 = vrot.slane %v5921, 3
        %v5926 = vsel %vm4336, %v5924, %v5925
        %5927 = vrot.lane.b32.xlu0 %v5926, 125
        %v5928 = vpop.permute.xlu0 %5927
        %v5930 = vadd.f32 %v5826, %v5928
        %vm5931 = vcmask 138240
        %5932 = vst.msk [vmem:[%s200] sm:$0xff] %vm5931, %v5839
        %s5933 = scalar_lea.vmem %s200, 8 [#allocation6]
        %5934 = vst.msk [vmem:[%s5933] sm:$0xff] %vm5931, %v5852
        %s5935 = scalar_lea.vmem %s200, 16 [#allocation6]
        %5936 = vst.msk [vmem:[%s5935] sm:$0xff] %vm5931, %v5865
        %s5937 = scalar_lea.vmem %s200, 24 [#allocation6]
        %5938 = vst.msk [vmem:[%s5937] sm:$0xff] %vm5931, %v5878
        %s5939 = scalar_lea.vmem %s200, 32 [#allocation6]
        %5940 = vst.msk [vmem:[%s5939] sm:$0xff] %vm5931, %v5891
        %s5941 = scalar_lea.vmem %s200, 40 [#allocation6]
        %5942 = vst.msk [vmem:[%s5941] sm:$0xff] %vm5931, %v5904
        %s5943 = scalar_lea.vmem %s200, 48 [#allocation6]
        %5944 = vst.msk [vmem:[%s5943] sm:$0xff] %vm5931, %v5917
        %s5945 = scalar_lea.vmem %s200, 56 [#allocation6]
        %5946 = vst.msk [vmem:[%s5945] sm:$0xff] %vm5931, %v5930
        %s5947 = sand.u32 %s106, 1
        %s5948 = sand.u32 %s106, 1
        %s5949 = smul.addr %s5948, 64
        %s5950 = scalar_lea.vmem [#allocation6], %s5949
        // Predicated region
        $region41: #{tpu_custom_call.1} parent=31 // pred_check
          %p5951 = pneg %p116
        $region42: #{tpu_custom_call.1} parent=31 // pred_check_branch
          %5953 = sbr.rel (%p5951) target = $region44
        $region43: #{tpu_custom_call.1} parent=31 // pred_region
          %s5954 = smul.addr %s20, 24
          %s5955 = sadd.s32 %s21, %s5954
          %s5956 = smul.addr %s5955, 8
          %s5957 = scalar_lea.vmem %s3, %s5956
          // Predicated region
          $region45: #{tpu_custom_call.1} parent=43 // pred_check
            _
          $region46: #{tpu_custom_call.1} parent=43 // pred_check_branch
            %5959 = sbr.rel (0) target = $region48
          $region47: #{tpu_custom_call.1} parent=43 // pred_region
            // Predicated region
            $region49: #{tpu_custom_call.1} parent=47 // pred_check
              _
            $region50: #{tpu_custom_call.1} parent=47 // pred_check_branch
              %5961 = sbr.rel (0) target = $region52
            $region51: #{tpu_custom_call.1} parent=47 // pred_region
              // Predicated region
              $region64: #{tpu_custom_call.1} parent=51 // pred_check
                _
              $region65: #{tpu_custom_call.1} parent=51 // pred_check_branch
                %5990 = sbr.rel (0) target = $region67
              $region66: #{tpu_custom_call.1} parent=51 // pred_region
                loop: start=0, step=1, limit=1
                $region68: #{tpu_custom_call.1} parent=66 // loop_pre_header
                  _
                $region69: #{tpu_custom_call.1} parent=66 // loop_header
                  %s5992 = sphi 0, %s5996
                  %p5993 = scmp.ge.s32.totalorder %s5992, 1
                  %s5997 = sphi %s5950, %s5950
                  %s5998 = sphi %s5957, %s5957
                $region70: #{tpu_custom_call.1} parent=66 // loop_header_branch
                  %5995 = sbr.rel (%p5993) target = $region74
                $region71: #{tpu_custom_call.1} parent=66 // loop_body
                  %v5999 = vld [vmem:[%s5997] sm:$0xff]
                  %6000 = vst [vmem:[%s5998] sm:$0xff] %v5999
                  %v6001 = vld [vmem:[%s5997 + $0x8] sm:$0xff]
                  %6002 = vst [vmem:[%s5998 + $0x18] sm:$0xff] %v6001
                  %v6003 = vld [vmem:[%s5997 + $0x10] sm:$0xff]
                  %6004 = vst [vmem:[%s5998 + $0x30] sm:$0xff] %v6003
                  %v6005 = vld [vmem:[%s5997 + $0x18] sm:$0xff]
                  %6006 = vst [vmem:[%s5998 + $0x48] sm:$0xff] %v6005
                  %v6007 = vld [vmem:[%s5997 + $0x20] sm:$0xff]
                  %6008 = vst [vmem:[%s5998 + $0x60] sm:$0xff] %v6007
                  %v6009 = vld [vmem:[%s5997 + $0x28] sm:$0xff]
                  %6010 = vst [vmem:[%s5998 + $0x78] sm:$0xff] %v6009
                  %v6011 = vld [vmem:[%s5997 + $0x30] sm:$0xff]
                  %6012 = vst [vmem:[%s5998 + $0x90] sm:$0xff] %v6011
                  %v6013 = vld [vmem:[%s5997 + $0x38] sm:$0xff]
                  %6014 = vst [vmem:[%s5998 + $0xa8] sm:$0xff] %v6013
                $region72: #{tpu_custom_call.1} parent=66 // loop_footer
                  %s5996 = sadd.s32 1, %s5992
                $region73: #{tpu_custom_call.1} parent=66 // loop_footer_branch
                  %5991 = sbr.rel target = $region69
                $region74: #{tpu_custom_call.1} parent=66 // loop_exit
                  _
              $region67: #{tpu_custom_call.1} parent=51 // pred_fallthru
                _
              // Predicated region
              $region75: #{tpu_custom_call.1} parent=51 // pred_check
                _
              $region76: #{tpu_custom_call.1} parent=51 // pred_check_branch
                %6016 = sbr.rel target = $region78
              $region77: #{tpu_custom_call.1} parent=51 // pred_region
                _
              $region78: #{tpu_custom_call.1} parent=51 // pred_fallthru
                _
            $region52: #{tpu_custom_call.1} parent=47 // pred_fallthru
              _
            // Predicated region
            $region53: #{tpu_custom_call.1} parent=47 // pred_check
              _
            $region54: #{tpu_custom_call.1} parent=47 // pred_check_branch
              %5963 = sbr.rel target = $region56
            $region55: #{tpu_custom_call.1} parent=47 // pred_region
              loop: start=0, step=1, limit=1
              $region57: #{tpu_custom_call.1} parent=55 // loop_pre_header
                _
              $region58: #{tpu_custom_call.1} parent=55 // loop_header
                %s5966 = sphi 0, %s5970
                %p5967 = scmp.ge.s32.totalorder %s5966, 1
                %s5971 = sphi %s5950, %s5950
                %s5972 = sphi %s5957, %s5957
              $region59: #{tpu_custom_call.1} parent=55 // loop_header_branch
                %5969 = sbr.rel (%p5967) target = $region63
              $region60: #{tpu_custom_call.1} parent=55 // loop_body
                %v5973 = vld [vmem:[%s5971] sm:$0xff]
                %5974 = vst [vmem:[%s5972] sm:$0xff] %v5973
                %v5975 = vld [vmem:[%s5971 + $0x8] sm:$0xff]
                %5976 = vst [vmem:[%s5972 + $0x18] sm:$0xff] %v5975
                %v5977 = vld [vmem:[%s5971 + $0x10] sm:$0xff]
                %5978 = vst [vmem:[%s5972 + $0x30] sm:$0xff] %v5977
                %v5979 = vld [vmem:[%s5971 + $0x18] sm:$0xff]
                %5980 = vst [vmem:[%s5972 + $0x48] sm:$0xff] %v5979
                %v5981 = vld [vmem:[%s5971 + $0x20] sm:$0xff]
                %5982 = vst [vmem:[%s5972 + $0x60] sm:$0xff] %v5981
                %v5983 = vld [vmem:[%s5971 + $0x28] sm:$0xff]
                %5984 = vst [vmem:[%s5972 + $0x78] sm:$0xff] %v5983
                %v5985 = vld [vmem:[%s5971 + $0x30] sm:$0xff]
                %5986 = vst [vmem:[%s5972 + $0x90] sm:$0xff] %v5985
                %v5987 = vld [vmem:[%s5971 + $0x38] sm:$0xff]
                %5988 = vst [vmem:[%s5972 + $0xa8] sm:$0xff] %v5987
              $region61: #{tpu_custom_call.1} parent=55 // loop_footer
                %s5970 = sadd.s32 1, %s5966
              $region62: #{tpu_custom_call.1} parent=55 // loop_footer_branch
                %5965 = sbr.rel target = $region58
              $region63: #{tpu_custom_call.1} parent=55 // loop_exit
                _
            $region56: #{tpu_custom_call.1} parent=47 // pred_fallthru
              _
          $region48: #{tpu_custom_call.1} parent=43 // pred_fallthru
            _
          %6017 = vnop
        $region44: #{tpu_custom_call.1} parent=31 // pred_fallthru
          _
      $region32: #{tpu_custom_call.1} parent=5 // pred_fallthru
        _
      %p6018 = scmp.le.s32.totalorder 2, %s11
      // Predicated region
      $region79: #{tpu_custom_call.1} parent=5 // pred_check
        %p6019 = pneg %p6018
      $region80: #{tpu_custom_call.1} parent=5 // pred_check_branch
        %6021 = sbr.rel (%p6019) target = $region82
      $region81: #{tpu_custom_call.1} parent=5 // pred_region
        %s6022 = ssub.s32 %s11, 2
        // Predicated region
        $region83: #{tpu_custom_call.1} parent=81 // pred_check
          %p6023 = pneg %p122
        $region84: #{tpu_custom_call.1} parent=81 // pred_check_branch
          %6025 = sbr.rel (%p6023) target = $region86
        $region85: #{tpu_custom_call.1} parent=81 // pred_region
          %s6026 = sand.u32 %s107, 1
          %s6027 = sand.u32 %s107, 1
          %s6028 = smul.addr %s6027, 64
          %s6029 = scalar_lea.vmem [#allocation6], %s6028
        $region86: #{tpu_custom_call.1} parent=81 // pred_fallthru
          _
      $region82: #{tpu_custom_call.1} parent=5 // pred_fallthru
        _
    $region6: #{tpu_custom_call.1} parent=1 // loop_footer
      %s15 = sadd.s32 1, %s11
    $region7: #{tpu_custom_call.1} parent=1 // loop_footer_branch
      %10 = sbr.rel target = $region3
    $region8: #{tpu_custom_call.1} parent=1 // loop_exit
      _
    %6030 = vsyncpa [#allocation3], 1
    %s6031 = scalar_lea.sflag [#allocation3], 1
    %6032 = vsyncpa %s6031, 1
    %6033 = vsyncpa [#allocation5], 1

</llo_original>
